<compile_context>
chip_gen: v5e
topology: v5e:2x2
jax: 0.10.0
libtpu: 0.0.40
codegen_flags: <defaults>
</compile_context>

<pallas_src>
import functools

import jax
import jax.numpy as jnp
import numpy as np
from jax.experimental import pallas as pl
from jax.experimental.pallas import tpu as pltpu

EPS = 1e-5  # nn.InstanceNorm2d default eps (affine=False, no running stats)


# --------------------------------- kernel -------------------------------------
def _make_kernel(up_conv, cin, cout, h, w):
    """Fused  upsample -> 3x3 conv -> InstanceNorm -> ReLU  for one batch elem."""
    wo = 2 * w          # output width (Wo)
    wop = wo + 2        # width of the padded upsampled rows (1-px halo)

    def kernel(x_ref, wf_ref, o_ref):
        # x_ref : (1, Cin, H, W)        original-resolution input block (VMEM)
        # wf_ref: (2*2*3*Cin*Cout,)     phase-folded conv weights (SMEM scalars)
        # o_ref : (1, Cout, H, 2*Wo)    [even-row | odd-row] packed output block
        f32 = jnp.float32
        x = x_ref[0]                                              # (Cin, H, W)

        # ---- width-2x stage, built in VMEM with an exact 0/1 selection matmul
        #      nearest : padded col c picks x[(c-1)//2]   (c in [1, Wo])
        #      deconv  : padded col c picks x[j] iff c == 1+2j, else 0
        jj = jax.lax.broadcasted_iota(jnp.int32, (w, wop), 0)     # source col j
        cc = jax.lax.broadcasted_iota(jnp.int32, (w, wop), 1)     # padded col c
        sel = cc == 2 * jj + 1
        if not up_conv:
            sel = sel | (cc == 2 * jj + 2)
        s_mat = sel.astype(f32)                                   # (W, Wo+2)
        wide = jnp.dot(x.reshape(cin * h, w), s_mat,
                       preferred_element_type=f32).reshape(cin, h, wop)
        zr = jnp.zeros((cin, 1, wop), f32)
        xp = jnp.concatenate((zr, wide, zr), axis=1)              # (Cin,H+2,Wo+2)

        # 3 row offsets x 3 column offsets per input channel: static slices
        # (sublane / lane shifts); the VPU multiply-adds below are the conv.
        view = [[[xp[c_, ro:ro + h, dx:dx + wo] for c_ in range(cin)]
                 for dx in range(3)] for ro in range(3)]

        inv_n = 1.0 / float(2 * h * wo)                           # 1 / (Ho*Wo)

        def widx(pi, r, dx, ci, co):   # row-major index into the folded weights
            return (((pi * 2 + r) * 3 + dx) * cin + ci) * cout + co

        for co in range(cout):
            ph = []
            for pi in range(2):                    # output-row phase (2i + pi)
                a = jnp.zeros((h, wo), f32)
                for r in range(2):                 # folded row tap -> row i+pi+r
                    if up_conv and pi == 0 and r == 0:
                        continue                   # identically-zero fold (deconv)
                    for dx in range(3):            # column tap
                        for ci in range(cin):
                            a = a + wf_ref[widx(pi, r, dx, ci, co)] \
                                  * view[pi + r][dx][ci]
                ph.append(a)

            # InstanceNorm2d(affine=False): centred two-pass stats in f32.
            mean = (jnp.sum(ph[0]) + jnp.sum(ph[1])) * inv_n
            d0 = ph[0] - mean
            d1 = ph[1] - mean
            var = (jnp.sum(d0 * d0) + jnp.sum(d1 * d1)) * inv_n
            scale = jax.lax.rsqrt(var + EPS)
            # Packed store: columns [0,Wo) = output rows 2i, [Wo,2Wo) = rows 2i+1.
            o_ref[0, co, :, :wo] = jnp.maximum(d0 * scale, 0.0)
            o_ref[0, co, :, wo:] = jnp.maximum(d1 * scale, 0.0)

    return kernel


# -------------------------------- wrappers ------------------------------------
def _tconv_equiv_weight(w_tconv):
    # PyTorch ConvTranspose2d weight (Cin, Cout, kh, kw) -> equivalent forward
    # conv HWIO kernel: spatially flipped, in/out channels swapped.
    return jnp.transpose(w_tconv, (2, 3, 0, 1))[::-1, ::-1, :, :]


def _fold_row_taps(w_hwio, up_conv):
    """(3,3,Cin,Cout) HWIO kernel -> flat (2*2*3*Cin*Cout,) phase-folded taps.

    Index order (pi, r, dx, ci, co): output-row phase pi, folded row tap r
    (reads padded source row i+pi+r), column tap dx.
    """
    if up_conv:   # transposed conv: only the odd (data-carrying) dilated rows
        z = jnp.zeros_like(w_hwio[0])
        p0 = jnp.stack((z, w_hwio[1]))
        p1 = jnp.stack((w_hwio[0], w_hwio[2]))
    else:         # nearest upsample: adjacent row taps collapse onto one source row
        p0 = jnp.stack((w_hwio[0], w_hwio[1] + w_hwio[2]))
        p1 = jnp.stack((w_hwio[0] + w_hwio[1], w_hwio[2]))
    return jnp.stack((p0, p1)).reshape(-1).astype(jnp.float32)


def _vmem_limit_bytes():
    try:
        cap = int(pltpu.get_tpu_info().vmem_capacity_bytes)
    except Exception:
        return 32 * 1024 * 1024
    return int(min(96 * 1024 * 1024, cap // 2))


@functools.partial(jax.jit, static_argnames=("up_conv",))
def upconv_block(x_nchw, params, up_conv):
    x = x_nchw.astype(jnp.float32)                 # NCHW, stays NCHW throughout
    n, cin, h, w = x.shape
    w_eq = _tconv_equiv_weight(params["w_tconv"]) if up_conv else params["w_conv"]
    cout = w_eq.shape[-1]
    wf = _fold_row_taps(w_eq, up_conv)             # tiny SMEM weight table

    out = pl.pallas_call(
        _make_kernel(up_conv, cin, cout, h, w),
        out_shape=jax.ShapeDtypeStruct((n, cout, h, 4 * w), jnp.float32),
        grid=(n,),
        in_specs=[
            pl.BlockSpec((1, cin, h, w), lambda b: (b, 0, 0, 0)),
            pl.BlockSpec(memory_space=pltpu.MemorySpace.SMEM),
        ],
        out_specs=pl.BlockSpec((1, cout, h, 4 * w), lambda b: (b, 0, 0, 0)),
        compiler_params=pltpu.CompilerParams(
            dimension_semantics=("parallel",),
            vmem_limit_bytes=_vmem_limit_bytes(),
        ),
    )(x, wf)
    # (N, Cout, H, 4W) row-major is bit-identical to NCHW (N, Cout, 2H, 2W):
    # flat column pi*2W + b  <->  output pixel (row 2i+pi, col b).  Free reshape.
    return out.reshape(n, cout, 2 * h, 2 * w)


# ----------------------- deterministic parameter init --------------------------
def init_params(key, ch_in, ch_out):
    k = jax.random.split(key, 4)
    u = jax.random.uniform
    s_c = 1.0 / np.sqrt(9 * ch_in)    # Conv2d fan_in = ch_in * 3 * 3
    s_t = 1.0 / np.sqrt(9 * ch_out)   # ConvTranspose2d fan_in = ch_out * 3 * 3
    return {
        "w_conv": u(k[0], (3, 3, ch_in, ch_out), jnp.float32, -s_c, s_c),   # HWIO
        "b_conv": u(k[1], (ch_out,), jnp.float32, -s_c, s_c),
        "w_tconv": u(k[2], (ch_in, ch_out, 3, 3), jnp.float32, -s_t, s_t),  # torch layout
        "b_tconv": u(k[3], (ch_out,), jnp.float32, -s_t, s_t),
    }


# ---------------------------- pure-JAX reference --------------------------------
def upconv_ref(x_nchw, params, up_conv):
    x = jnp.transpose(x_nchw, (0, 2, 3, 1)).astype(jnp.float32)
    if up_conv:
        w_eq = _tconv_equiv_weight(params["w_tconv"])
        y = jax.lax.conv_general_dilated(
            x, w_eq, window_strides=(1, 1), padding=[(1, 2), (1, 2)],
            lhs_dilation=(2, 2), dimension_numbers=("NHWC", "HWIO", "NHWC"),
            precision=jax.lax.Precision.HIGHEST)
        y = y + params["b_tconv"].reshape(1, 1, 1, -1)
    else:
        up = jnp.repeat(jnp.repeat(x, 2, axis=1), 2, axis=2)
        y = jax.lax.conv_general_dilated(
            up, params["w_conv"], window_strides=(1, 1), padding=[(1, 1), (1, 1)],
            dimension_numbers=("NHWC", "HWIO", "NHWC"),
            precision=jax.lax.Precision.HIGHEST)
        y = y + params["b_conv"].reshape(1, 1, 1, -1)
    mean = jnp.mean(y, axis=(1, 2), keepdims=True)
    var = jnp.mean((y - mean) ** 2, axis=(1, 2), keepdims=True)
    out = jnp.maximum((y - mean) * jax.lax.rsqrt(var + EPS), 0.0)
    return jnp.transpose(out, (0, 3, 1, 2))


if __name__ == "__main__":
    key = jax.random.PRNGKey(0)
    kx, kp = jax.random.split(key)
    N, CH_IN, CH_OUT, S = 2, 4, 8, 16
    x = jax.random.normal(kx, (N, CH_IN, S, S), jnp.float32)   # NCHW like PyTorch
    params = init_params(kp, CH_IN, CH_OUT)

    for up_conv in (False, True):
        out = jax.block_until_ready(upconv_block(x, params, up_conv=up_conv))
        assert out.shape == (N, CH_OUT, 2 * S, 2 * S)
        ref = jax.block_until_ready(upconv_ref(x, params, up_conv=up_conv))
        np.testing.assert_allclose(np.asarray(out), np.asarray(ref),
                                   atol=2e-3, rtol=2e-3)
    print("KERNEL_OK")
</pallas_src>

<mosaic_0001>
module attributes {stable_mosaic.version = 11 : i64} {
  func.func @kernel(%arg0: i32, %arg1: memref<1x4x16x16xf32, #tpu.memory_space<vmem>>, %arg2: memref<384xf32, #tpu.memory_space<smem>>, %arg3: memref<1x8x16x64xf32, #tpu.memory_space<vmem>>) attributes {dimension_semantics = [#tpu.dimension_semantics<parallel>], iteration_bounds = array<i64: 2>, scalar_prefetch = 0 : i64, scratch_operands = 0 : i64, tpu.core_type = #tpu.core_type<tc>, window_params = [{transform_indices = @transform_0, window_bounds = array<i64: 1, 4, 16, 16>}, {transform_indices = @transform_1, window_bounds = array<i64: 384>}, {transform_indices = @transform_2, window_bounds = array<i64: 1, 8, 16, 64>}]} {
    %c0 = arith.constant 0 : index
    %c0_0 = arith.constant 0 : index
    %c0_1 = arith.constant 0 : index
    %c0_2 = arith.constant 0 : index
    %0 = vector.load %arg1[%c0, %c0_0, %c0_1, %c0_2] : memref<1x4x16x16xf32, #tpu.memory_space<vmem>>, vector<1x4x16x16xf32>
    %1 = vector.shape_cast %0 : vector<1x4x16x16xf32> to vector<4x16x16xf32>
    %2 = tpu.iota {dimensions = array<i32: 0>} : vector<16x34xi32>
    %3 = tpu.iota {dimensions = array<i32: 1>} : vector<16x34xi32>
    %c2_i32 = arith.constant 2 : i32
    %4 = vector.broadcast %c2_i32 : i32 to vector<16x34xi32>
    %5 = arith.muli %4, %2 : vector<16x34xi32>
    %c1_i32 = arith.constant 1 : i32
    %6 = vector.broadcast %c1_i32 : i32 to vector<16x34xi32>
    %7 = arith.addi %5, %6 : vector<16x34xi32>
    %8 = arith.cmpi eq, %3, %7 : vector<16x34xi32>
    %c2_i32_3 = arith.constant 2 : i32
    %9 = vector.broadcast %c2_i32_3 : i32 to vector<16x34xi32>
    %10 = arith.muli %9, %2 : vector<16x34xi32>
    %c2_i32_4 = arith.constant 2 : i32
    %11 = vector.broadcast %c2_i32_4 : i32 to vector<16x34xi32>
    %12 = arith.addi %10, %11 : vector<16x34xi32>
    %13 = arith.cmpi eq, %3, %12 : vector<16x34xi32>
    %14 = arith.ori %8, %13 : vector<16x34xi1>
    %15 = arith.extui %14 : vector<16x34xi1> to vector<16x34xi32>
    %16 = arith.sitofp %15 : vector<16x34xi32> to vector<16x34xf32>
    %17 = vector.shape_cast %1 : vector<4x16x16xf32> to vector<64x16xf32>
    %cst = arith.constant dense<0.000000e+00> : vector<64x34xf32>
    %18 = tpu.matmul %17, %16, %cst {dimension_numbers = #tpu.dot_dimension_numbers<[1], [0], [0], [1], [0, 0, 1, 1], [], []>} : vector<64x16xf32>, vector<16x34xf32>, vector<64x34xf32> -> vector<64x34xf32>
    %19 = vector.shape_cast %18 : vector<64x34xf32> to vector<4x16x34xf32>
    %cst_5 = arith.constant 0.000000e+00 : f32
    %20 = vector.broadcast %cst_5 : f32 to vector<4x1x34xf32>
    %21 = tpu.concatenate %20, %19, %20 in 1 : vector<4x1x34xf32>, vector<4x16x34xf32>, vector<4x1x34xf32> -> vector<4x18x34xf32>
    %22 = vector.extract_strided_slice %21 {offsets = [0, 0, 0], sizes = [1, 16, 32], strides = [1, 1, 1]} : vector<4x18x34xf32> to vector<1x16x32xf32>
    %23 = vector.shape_cast %22 : vector<1x16x32xf32> to vector<16x32xf32>
    %24 = vector.extract_strided_slice %21 {offsets = [1, 0, 0], sizes = [1, 16, 32], strides = [1, 1, 1]} : vector<4x18x34xf32> to vector<1x16x32xf32>
    %25 = vector.shape_cast %24 : vector<1x16x32xf32> to vector<16x32xf32>
    %26 = vector.extract_strided_slice %21 {offsets = [2, 0, 0], sizes = [1, 16, 32], strides = [1, 1, 1]} : vector<4x18x34xf32> to vector<1x16x32xf32>
    %27 = vector.shape_cast %26 : vector<1x16x32xf32> to vector<16x32xf32>
    %28 = vector.extract_strided_slice %21 {offsets = [3, 0, 0], sizes = [1, 16, 32], strides = [1, 1, 1]} : vector<4x18x34xf32> to vector<1x16x32xf32>
    %29 = vector.shape_cast %28 : vector<1x16x32xf32> to vector<16x32xf32>
    %30 = vector.extract_strided_slice %21 {offsets = [0, 0, 1], sizes = [1, 16, 32], strides = [1, 1, 1]} : vector<4x18x34xf32> to vector<1x16x32xf32>
    %31 = vector.shape_cast %30 : vector<1x16x32xf32> to vector<16x32xf32>
    %32 = vector.extract_strided_slice %21 {offsets = [1, 0, 1], sizes = [1, 16, 32], strides = [1, 1, 1]} : vector<4x18x34xf32> to vector<1x16x32xf32>
    %33 = vector.shape_cast %32 : vector<1x16x32xf32> to vector<16x32xf32>
    %34 = vector.extract_strided_slice %21 {offsets = [2, 0, 1], sizes = [1, 16, 32], strides = [1, 1, 1]} : vector<4x18x34xf32> to vector<1x16x32xf32>
    %35 = vector.shape_cast %34 : vector<1x16x32xf32> to vector<16x32xf32>
    %36 = vector.extract_strided_slice %21 {offsets = [3, 0, 1], sizes = [1, 16, 32], strides = [1, 1, 1]} : vector<4x18x34xf32> to vector<1x16x32xf32>
    %37 = vector.shape_cast %36 : vector<1x16x32xf32> to vector<16x32xf32>
    %38 = vector.extract_strided_slice %21 {offsets = [0, 0, 2], sizes = [1, 16, 32], strides = [1, 1, 1]} : vector<4x18x34xf32> to vector<1x16x32xf32>
    %39 = vector.shape_cast %38 : vector<1x16x32xf32> to vector<16x32xf32>
    %40 = vector.extract_strided_slice %21 {offsets = [1, 0, 2], sizes = [1, 16, 32], strides = [1, 1, 1]} : vector<4x18x34xf32> to vector<1x16x32xf32>
    %41 = vector.shape_cast %40 : vector<1x16x32xf32> to vector<16x32xf32>
    %42 = vector.extract_strided_slice %21 {offsets = [2, 0, 2], sizes = [1, 16, 32], strides = [1, 1, 1]} : vector<4x18x34xf32> to vector<1x16x32xf32>
    %43 = vector.shape_cast %42 : vector<1x16x32xf32> to vector<16x32xf32>
    %44 = vector.extract_strided_slice %21 {offsets = [3, 0, 2], sizes = [1, 16, 32], strides = [1, 1, 1]} : vector<4x18x34xf32> to vector<1x16x32xf32>
    %45 = vector.shape_cast %44 : vector<1x16x32xf32> to vector<16x32xf32>
    %46 = vector.extract_strided_slice %21 {offsets = [0, 1, 0], sizes = [1, 16, 32], strides = [1, 1, 1]} : vector<4x18x34xf32> to vector<1x16x32xf32>
    %47 = vector.shape_cast %46 : vector<1x16x32xf32> to vector<16x32xf32>
    %48 = vector.extract_strided_slice %21 {offsets = [1, 1, 0], sizes = [1, 16, 32], strides = [1, 1, 1]} : vector<4x18x34xf32> to vector<1x16x32xf32>
    %49 = vector.shape_cast %48 : vector<1x16x32xf32> to vector<16x32xf32>
    %50 = vector.extract_strided_slice %21 {offsets = [2, 1, 0], sizes = [1, 16, 32], strides = [1, 1, 1]} : vector<4x18x34xf32> to vector<1x16x32xf32>
    %51 = vector.shape_cast %50 : vector<1x16x32xf32> to vector<16x32xf32>
    %52 = vector.extract_strided_slice %21 {offsets = [3, 1, 0], sizes = [1, 16, 32], strides = [1, 1, 1]} : vector<4x18x34xf32> to vector<1x16x32xf32>
    %53 = vector.shape_cast %52 : vector<1x16x32xf32> to vector<16x32xf32>
    %54 = vector.extract_strided_slice %21 {offsets = [0, 1, 1], sizes = [1, 16, 32], strides = [1, 1, 1]} : vector<4x18x34xf32> to vector<1x16x32xf32>
    %55 = vector.shape_cast %54 : vector<1x16x32xf32> to vector<16x32xf32>
    %56 = vector.extract_strided_slice %21 {offsets = [1, 1, 1], sizes = [1, 16, 32], strides = [1, 1, 1]} : vector<4x18x34xf32> to vector<1x16x32xf32>
    %57 = vector.shape_cast %56 : vector<1x16x32xf32> to vector<16x32xf32>
    %58 = vector.extract_strided_slice %21 {offsets = [2, 1, 1], sizes = [1, 16, 32], strides = [1, 1, 1]} : vector<4x18x34xf32> to vector<1x16x32xf32>
    %59 = vector.shape_cast %58 : vector<1x16x32xf32> to vector<16x32xf32>
    %60 = vector.extract_strided_slice %21 {offsets = [3, 1, 1], sizes = [1, 16, 32], strides = [1, 1, 1]} : vector<4x18x34xf32> to vector<1x16x32xf32>
    %61 = vector.shape_cast %60 : vector<1x16x32xf32> to vector<16x32xf32>
    %62 = vector.extract_strided_slice %21 {offsets = [0, 1, 2], sizes = [1, 16, 32], strides = [1, 1, 1]} : vector<4x18x34xf32> to vector<1x16x32xf32>
    %63 = vector.shape_cast %62 : vector<1x16x32xf32> to vector<16x32xf32>
    %64 = vector.extract_strided_slice %21 {offsets = [1, 1, 2], sizes = [1, 16, 32], strides = [1, 1, 1]} : vector<4x18x34xf32> to vector<1x16x32xf32>
    %65 = vector.shape_cast %64 : vector<1x16x32xf32> to vector<16x32xf32>
    %66 = vector.extract_strided_slice %21 {offsets = [2, 1, 2], sizes = [1, 16, 32], strides = [1, 1, 1]} : vector<4x18x34xf32> to vector<1x16x32xf32>
    %67 = vector.shape_cast %66 : vector<1x16x32xf32> to vector<16x32xf32>
    %68 = vector.extract_strided_slice %21 {offsets = [3, 1, 2], sizes = [1, 16, 32], strides = [1, 1, 1]} : vector<4x18x34xf32> to vector<1x16x32xf32>
    %69 = vector.shape_cast %68 : vector<1x16x32xf32> to vector<16x32xf32>
    %70 = vector.extract_strided_slice %21 {offsets = [0, 2, 0], sizes = [1, 16, 32], strides = [1, 1, 1]} : vector<4x18x34xf32> to vector<1x16x32xf32>
    %71 = vector.shape_cast %70 : vector<1x16x32xf32> to vector<16x32xf32>
    %72 = vector.extract_strided_slice %21 {offsets = [1, 2, 0], sizes = [1, 16, 32], strides = [1, 1, 1]} : vector<4x18x34xf32> to vector<1x16x32xf32>
    %73 = vector.shape_cast %72 : vector<1x16x32xf32> to vector<16x32xf32>
    %74 = vector.extract_strided_slice %21 {offsets = [2, 2, 0], sizes = [1, 16, 32], strides = [1, 1, 1]} : vector<4x18x34xf32> to vector<1x16x32xf32>
    %75 = vector.shape_cast %74 : vector<1x16x32xf32> to vector<16x32xf32>
    %76 = vector.extract_strided_slice %21 {offsets = [3, 2, 0], sizes = [1, 16, 32], strides = [1, 1, 1]} : vector<4x18x34xf32> to vector<1x16x32xf32>
    %77 = vector.shape_cast %76 : vector<1x16x32xf32> to vector<16x32xf32>
    %78 = vector.extract_strided_slice %21 {offsets = [0, 2, 1], sizes = [1, 16, 32], strides = [1, 1, 1]} : vector<4x18x34xf32> to vector<1x16x32xf32>
    %79 = vector.shape_cast %78 : vector<1x16x32xf32> to vector<16x32xf32>
    %80 = vector.extract_strided_slice %21 {offsets = [1, 2, 1], sizes = [1, 16, 32], strides = [1, 1, 1]} : vector<4x18x34xf32> to vector<1x16x32xf32>
    %81 = vector.shape_cast %80 : vector<1x16x32xf32> to vector<16x32xf32>
    %82 = vector.extract_strided_slice %21 {offsets = [2, 2, 1], sizes = [1, 16, 32], strides = [1, 1, 1]} : vector<4x18x34xf32> to vector<1x16x32xf32>
    %83 = vector.shape_cast %82 : vector<1x16x32xf32> to vector<16x32xf32>
    %84 = vector.extract_strided_slice %21 {offsets = [3, 2, 1], sizes = [1, 16, 32], strides = [1, 1, 1]} : vector<4x18x34xf32> to vector<1x16x32xf32>
    %85 = vector.shape_cast %84 : vector<1x16x32xf32> to vector<16x32xf32>
    %86 = vector.extract_strided_slice %21 {offsets = [0, 2, 2], sizes = [1, 16, 32], strides = [1, 1, 1]} : vector<4x18x34xf32> to vector<1x16x32xf32>
    %87 = vector.shape_cast %86 : vector<1x16x32xf32> to vector<16x32xf32>
    %88 = vector.extract_strided_slice %21 {offsets = [1, 2, 2], sizes = [1, 16, 32], strides = [1, 1, 1]} : vector<4x18x34xf32> to vector<1x16x32xf32>
    %89 = vector.shape_cast %88 : vector<1x16x32xf32> to vector<16x32xf32>
    %90 = vector.extract_strided_slice %21 {offsets = [2, 2, 2], sizes = [1, 16, 32], strides = [1, 1, 1]} : vector<4x18x34xf32> to vector<1x16x32xf32>
    %91 = vector.shape_cast %90 : vector<1x16x32xf32> to vector<16x32xf32>
    %92 = vector.extract_strided_slice %21 {offsets = [3, 2, 2], sizes = [1, 16, 32], strides = [1, 1, 1]} : vector<4x18x34xf32> to vector<1x16x32xf32>
    %93 = vector.shape_cast %92 : vector<1x16x32xf32> to vector<16x32xf32>
    %cst_6 = arith.constant 0.000000e+00 : f32
    %94 = vector.broadcast %cst_6 : f32 to vector<16x32xf32>
    %c0_7 = arith.constant 0 : index
    %95 = memref.load %arg2[%c0_7] : memref<384xf32, #tpu.memory_space<smem>>
    %96 = vector.broadcast %95 : f32 to vector<16x32xf32>
    %97 = arith.mulf %96, %23 : vector<16x32xf32>
    %98 = arith.addf %94, %97 : vector<16x32xf32>
    %c8 = arith.constant 8 : index
    %99 = memref.load %arg2[%c8] : memref<384xf32, #tpu.memory_space<smem>>
    %100 = vector.broadcast %99 : f32 to vector<16x32xf32>
    %101 = arith.mulf %100, %25 : vector<16x32xf32>
    %102 = arith.addf %98, %101 : vector<16x32xf32>
    %c16 = arith.constant 16 : index
    %103 = memref.load %arg2[%c16] : memref<384xf32, #tpu.memory_space<smem>>
    %104 = vector.broadcast %103 : f32 to vector<16x32xf32>
    %105 = arith.mulf %104, %27 : vector<16x32xf32>
    %106 = arith.addf %102, %105 : vector<16x32xf32>
    %c24 = arith.constant 24 : index
    %107 = memref.load %arg2[%c24] : memref<384xf32, #tpu.memory_space<smem>>
    %108 = vector.broadcast %107 : f32 to vector<16x32xf32>
    %109 = arith.mulf %108, %29 : vector<16x32xf32>
    %110 = arith.addf %106, %109 : vector<16x32xf32>
    %c32 = arith.constant 32 : index
    %111 = memref.load %arg2[%c32] : memref<384xf32, #tpu.memory_space<smem>>
    %112 = vector.broadcast %111 : f32 to vector<16x32xf32>
    %113 = arith.mulf %112, %31 : vector<16x32xf32>
    %114 = arith.addf %110, %113 : vector<16x32xf32>
    %c40 = arith.constant 40 : index
    %115 = memref.load %arg2[%c40] : memref<384xf32, #tpu.memory_space<smem>>
    %116 = vector.broadcast %115 : f32 to vector<16x32xf32>
    %117 = arith.mulf %116, %33 : vector<16x32xf32>
    %118 = arith.addf %114, %117 : vector<16x32xf32>
    %c48 = arith.constant 48 : index
    %119 = memref.load %arg2[%c48] : memref<384xf32, #tpu.memory_space<smem>>
    %120 = vector.broadcast %119 : f32 to vector<16x32xf32>
    %121 = arith.mulf %120, %35 : vector<16x32xf32>
    %122 = arith.addf %118, %121 : vector<16x32xf32>
    %c56 = arith.constant 56 : index
    %123 = memref.load %arg2[%c56] : memref<384xf32, #tpu.memory_space<smem>>
    %124 = vector.broadcast %123 : f32 to vector<16x32xf32>
    %125 = arith.mulf %124, %37 : vector<16x32xf32>
    %126 = arith.addf %122, %125 : vector<16x32xf32>
    %c64 = arith.constant 64 : index
    %127 = memref.load %arg2[%c64] : memref<384xf32, #tpu.memory_space<smem>>
    %128 = vector.broadcast %127 : f32 to vector<16x32xf32>
    %129 = arith.mulf %128, %39 : vector<16x32xf32>
    %130 = arith.addf %126, %129 : vector<16x32xf32>
    %c72 = arith.constant 72 : index
    %131 = memref.load %arg2[%c72] : memref<384xf32, #tpu.memory_space<smem>>
    %132 = vector.broadcast %131 : f32 to vector<16x32xf32>
    %133 = arith.mulf %132, %41 : vector<16x32xf32>
    %134 = arith.addf %130, %133 : vector<16x32xf32>
    %c80 = arith.constant 80 : index
    %135 = memref.load %arg2[%c80] : memref<384xf32, #tpu.memory_space<smem>>
    %136 = vector.broadcast %135 : f32 to vector<16x32xf32>
    %137 = arith.mulf %136, %43 : vector<16x32xf32>
    %138 = arith.addf %134, %137 : vector<16x32xf32>
    %c88 = arith.constant 88 : index
    %139 = memref.load %arg2[%c88] : memref<384xf32, #tpu.memory_space<smem>>
    %140 = vector.broadcast %139 : f32 to vector<16x32xf32>
    %141 = arith.mulf %140, %45 : vector<16x32xf32>
    %142 = arith.addf %138, %141 : vector<16x32xf32>
    %c96 = arith.constant 96 : index
    %143 = memref.load %arg2[%c96] : memref<384xf32, #tpu.memory_space<smem>>
    %144 = vector.broadcast %143 : f32 to vector<16x32xf32>
    %145 = arith.mulf %144, %47 : vector<16x32xf32>
    %146 = arith.addf %142, %145 : vector<16x32xf32>
    %c104 = arith.constant 104 : index
    %147 = memref.load %arg2[%c104] : memref<384xf32, #tpu.memory_space<smem>>
    %148 = vector.broadcast %147 : f32 to vector<16x32xf32>
    %149 = arith.mulf %148, %49 : vector<16x32xf32>
    %150 = arith.addf %146, %149 : vector<16x32xf32>
    %c112 = arith.constant 112 : index
    %151 = memref.load %arg2[%c112] : memref<384xf32, #tpu.memory_space<smem>>
    %152 = vector.broadcast %151 : f32 to vector<16x32xf32>
    %153 = arith.mulf %152, %51 : vector<16x32xf32>
    %154 = arith.addf %150, %153 : vector<16x32xf32>
    %c120 = arith.constant 120 : index
    %155 = memref.load %arg2[%c120] : memref<384xf32, #tpu.memory_space<smem>>
    %156 = vector.broadcast %155 : f32 to vector<16x32xf32>
    %157 = arith.mulf %156, %53 : vector<16x32xf32>
    %158 = arith.addf %154, %157 : vector<16x32xf32>
    %c128 = arith.constant 128 : index
    %159 = memref.load %arg2[%c128] : memref<384xf32, #tpu.memory_space<smem>>
    %160 = vector.broadcast %159 : f32 to vector<16x32xf32>
    %161 = arith.mulf %160, %55 : vector<16x32xf32>
    %162 = arith.addf %158, %161 : vector<16x32xf32>
    %c136 = arith.constant 136 : index
    %163 = memref.load %arg2[%c136] : memref<384xf32, #tpu.memory_space<smem>>
    %164 = vector.broadcast %163 : f32 to vector<16x32xf32>
    %165 = arith.mulf %164, %57 : vector<16x32xf32>
    %166 = arith.addf %162, %165 : vector<16x32xf32>
    %c144 = arith.constant 144 : index
    %167 = memref.load %arg2[%c144] : memref<384xf32, #tpu.memory_space<smem>>
    %168 = vector.broadcast %167 : f32 to vector<16x32xf32>
    %169 = arith.mulf %168, %59 : vector<16x32xf32>
    %170 = arith.addf %166, %169 : vector<16x32xf32>
    %c152 = arith.constant 152 : index
    %171 = memref.load %arg2[%c152] : memref<384xf32, #tpu.memory_space<smem>>
    %172 = vector.broadcast %171 : f32 to vector<16x32xf32>
    %173 = arith.mulf %172, %61 : vector<16x32xf32>
    %174 = arith.addf %170, %173 : vector<16x32xf32>
    %c160 = arith.constant 160 : index
    %175 = memref.load %arg2[%c160] : memref<384xf32, #tpu.memory_space<smem>>
    %176 = vector.broadcast %175 : f32 to vector<16x32xf32>
    %177 = arith.mulf %176, %63 : vector<16x32xf32>
    %178 = arith.addf %174, %177 : vector<16x32xf32>
    %c168 = arith.constant 168 : index
    %179 = memref.load %arg2[%c168] : memref<384xf32, #tpu.memory_space<smem>>
    %180 = vector.broadcast %179 : f32 to vector<16x32xf32>
    %181 = arith.mulf %180, %65 : vector<16x32xf32>
    %182 = arith.addf %178, %181 : vector<16x32xf32>
    %c176 = arith.constant 176 : index
    %183 = memref.load %arg2[%c176] : memref<384xf32, #tpu.memory_space<smem>>
    %184 = vector.broadcast %183 : f32 to vector<16x32xf32>
    %185 = arith.mulf %184, %67 : vector<16x32xf32>
    %186 = arith.addf %182, %185 : vector<16x32xf32>
    %c184 = arith.constant 184 : index
    %187 = memref.load %arg2[%c184] : memref<384xf32, #tpu.memory_space<smem>>
    %188 = vector.broadcast %187 : f32 to vector<16x32xf32>
    %189 = arith.mulf %188, %69 : vector<16x32xf32>
    %190 = arith.addf %186, %189 : vector<16x32xf32>
    %cst_8 = arith.constant 0.000000e+00 : f32
    %191 = vector.broadcast %cst_8 : f32 to vector<16x32xf32>
    %c192 = arith.constant 192 : index
    %192 = memref.load %arg2[%c192] : memref<384xf32, #tpu.memory_space<smem>>
    %193 = vector.broadcast %192 : f32 to vector<16x32xf32>
    %194 = arith.mulf %193, %47 : vector<16x32xf32>
    %195 = arith.addf %191, %194 : vector<16x32xf32>
    %c200 = arith.constant 200 : index
    %196 = memref.load %arg2[%c200] : memref<384xf32, #tpu.memory_space<smem>>
    %197 = vector.broadcast %196 : f32 to vector<16x32xf32>
    %198 = arith.mulf %197, %49 : vector<16x32xf32>
    %199 = arith.addf %195, %198 : vector<16x32xf32>
    %c208 = arith.constant 208 : index
    %200 = memref.load %arg2[%c208] : memref<384xf32, #tpu.memory_space<smem>>
    %201 = vector.broadcast %200 : f32 to vector<16x32xf32>
    %202 = arith.mulf %201, %51 : vector<16x32xf32>
    %203 = arith.addf %199, %202 : vector<16x32xf32>
    %c216 = arith.constant 216 : index
    %204 = memref.load %arg2[%c216] : memref<384xf32, #tpu.memory_space<smem>>
    %205 = vector.broadcast %204 : f32 to vector<16x32xf32>
    %206 = arith.mulf %205, %53 : vector<16x32xf32>
    %207 = arith.addf %203, %206 : vector<16x32xf32>
    %c224 = arith.constant 224 : index
    %208 = memref.load %arg2[%c224] : memref<384xf32, #tpu.memory_space<smem>>
    %209 = vector.broadcast %208 : f32 to vector<16x32xf32>
    %210 = arith.mulf %209, %55 : vector<16x32xf32>
    %211 = arith.addf %207, %210 : vector<16x32xf32>
    %c232 = arith.constant 232 : index
    %212 = memref.load %arg2[%c232] : memref<384xf32, #tpu.memory_space<smem>>
    %213 = vector.broadcast %212 : f32 to vector<16x32xf32>
    %214 = arith.mulf %213, %57 : vector<16x32xf32>
    %215 = arith.addf %211, %214 : vector<16x32xf32>
    %c240 = arith.constant 240 : index
    %216 = memref.load %arg2[%c240] : memref<384xf32, #tpu.memory_space<smem>>
    %217 = vector.broadcast %216 : f32 to vector<16x32xf32>
    %218 = arith.mulf %217, %59 : vector<16x32xf32>
    %219 = arith.addf %215, %218 : vector<16x32xf32>
    %c248 = arith.constant 248 : index
    %220 = memref.load %arg2[%c248] : memref<384xf32, #tpu.memory_space<smem>>
    %221 = vector.broadcast %220 : f32 to vector<16x32xf32>
    %222 = arith.mulf %221, %61 : vector<16x32xf32>
    %223 = arith.addf %219, %222 : vector<16x32xf32>
    %c256 = arith.constant 256 : index
    %224 = memref.load %arg2[%c256] : memref<384xf32, #tpu.memory_space<smem>>
    %225 = vector.broadcast %224 : f32 to vector<16x32xf32>
    %226 = arith.mulf %225, %63 : vector<16x32xf32>
    %227 = arith.addf %223, %226 : vector<16x32xf32>
    %c264 = arith.constant 264 : index
    %228 = memref.load %arg2[%c264] : memref<384xf32, #tpu.memory_space<smem>>
    %229 = vector.broadcast %228 : f32 to vector<16x32xf32>
    %230 = arith.mulf %229, %65 : vector<16x32xf32>
    %231 = arith.addf %227, %230 : vector<16x32xf32>
    %c272 = arith.constant 272 : index
    %232 = memref.load %arg2[%c272] : memref<384xf32, #tpu.memory_space<smem>>
    %233 = vector.broadcast %232 : f32 to vector<16x32xf32>
    %234 = arith.mulf %233, %67 : vector<16x32xf32>
    %235 = arith.addf %231, %234 : vector<16x32xf32>
    %c280 = arith.constant 280 : index
    %236 = memref.load %arg2[%c280] : memref<384xf32, #tpu.memory_space<smem>>
    %237 = vector.broadcast %236 : f32 to vector<16x32xf32>
    %238 = arith.mulf %237, %69 : vector<16x32xf32>
    %239 = arith.addf %235, %238 : vector<16x32xf32>
    %c288 = arith.constant 288 : index
    %240 = memref.load %arg2[%c288] : memref<384xf32, #tpu.memory_space<smem>>
    %241 = vector.broadcast %240 : f32 to vector<16x32xf32>
    %242 = arith.mulf %241, %71 : vector<16x32xf32>
    %243 = arith.addf %239, %242 : vector<16x32xf32>
    %c296 = arith.constant 296 : index
    %244 = memref.load %arg2[%c296] : memref<384xf32, #tpu.memory_space<smem>>
    %245 = vector.broadcast %244 : f32 to vector<16x32xf32>
    %246 = arith.mulf %245, %73 : vector<16x32xf32>
    %247 = arith.addf %243, %246 : vector<16x32xf32>
    %c304 = arith.constant 304 : index
    %248 = memref.load %arg2[%c304] : memref<384xf32, #tpu.memory_space<smem>>
    %249 = vector.broadcast %248 : f32 to vector<16x32xf32>
    %250 = arith.mulf %249, %75 : vector<16x32xf32>
    %251 = arith.addf %247, %250 : vector<16x32xf32>
    %c312 = arith.constant 312 : index
    %252 = memref.load %arg2[%c312] : memref<384xf32, #tpu.memory_space<smem>>
    %253 = vector.broadcast %252 : f32 to vector<16x32xf32>
    %254 = arith.mulf %253, %77 : vector<16x32xf32>
    %255 = arith.addf %251, %254 : vector<16x32xf32>
    %c320 = arith.constant 320 : index
    %256 = memref.load %arg2[%c320] : memref<384xf32, #tpu.memory_space<smem>>
    %257 = vector.broadcast %256 : f32 to vector<16x32xf32>
    %258 = arith.mulf %257, %79 : vector<16x32xf32>
    %259 = arith.addf %255, %258 : vector<16x32xf32>
    %c328 = arith.constant 328 : index
    %260 = memref.load %arg2[%c328] : memref<384xf32, #tpu.memory_space<smem>>
    %261 = vector.broadcast %260 : f32 to vector<16x32xf32>
    %262 = arith.mulf %261, %81 : vector<16x32xf32>
    %263 = arith.addf %259, %262 : vector<16x32xf32>
    %c336 = arith.constant 336 : index
    %264 = memref.load %arg2[%c336] : memref<384xf32, #tpu.memory_space<smem>>
    %265 = vector.broadcast %264 : f32 to vector<16x32xf32>
    %266 = arith.mulf %265, %83 : vector<16x32xf32>
    %267 = arith.addf %263, %266 : vector<16x32xf32>
    %c344 = arith.constant 344 : index
    %268 = memref.load %arg2[%c344] : memref<384xf32, #tpu.memory_space<smem>>
    %269 = vector.broadcast %268 : f32 to vector<16x32xf32>
    %270 = arith.mulf %269, %85 : vector<16x32xf32>
    %271 = arith.addf %267, %270 : vector<16x32xf32>
    %c352 = arith.constant 352 : index
    %272 = memref.load %arg2[%c352] : memref<384xf32, #tpu.memory_space<smem>>
    %273 = vector.broadcast %272 : f32 to vector<16x32xf32>
    %274 = arith.mulf %273, %87 : vector<16x32xf32>
    %275 = arith.addf %271, %274 : vector<16x32xf32>
    %c360 = arith.constant 360 : index
    %276 = memref.load %arg2[%c360] : memref<384xf32, #tpu.memory_space<smem>>
    %277 = vector.broadcast %276 : f32 to vector<16x32xf32>
    %278 = arith.mulf %277, %89 : vector<16x32xf32>
    %279 = arith.addf %275, %278 : vector<16x32xf32>
    %c368 = arith.constant 368 : index
    %280 = memref.load %arg2[%c368] : memref<384xf32, #tpu.memory_space<smem>>
    %281 = vector.broadcast %280 : f32 to vector<16x32xf32>
    %282 = arith.mulf %281, %91 : vector<16x32xf32>
    %283 = arith.addf %279, %282 : vector<16x32xf32>
    %c376 = arith.constant 376 : index
    %284 = memref.load %arg2[%c376] : memref<384xf32, #tpu.memory_space<smem>>
    %285 = vector.broadcast %284 : f32 to vector<16x32xf32>
    %286 = arith.mulf %285, %93 : vector<16x32xf32>
    %287 = arith.addf %283, %286 : vector<16x32xf32>
    %288 = vector.shape_cast %190 : vector<16x32xf32> to vector<1x16x32xf32>
    %cst_9 = arith.constant dense<0.000000e+00> : vector<1xf32>
    %289 = vector.multi_reduction <add>, %288, %cst_9 [1, 2] : vector<1x16x32xf32> to vector<1xf32>
    %290 = vector.shape_cast %289 : vector<1xf32> to vector<1x1x1xf32>
    %291 = vector.extract %290[0, 0, 0] : f32 from vector<1x1x1xf32>
    %292 = vector.shape_cast %287 : vector<16x32xf32> to vector<1x16x32xf32>
    %cst_10 = arith.constant dense<0.000000e+00> : vector<1xf32>
    %293 = vector.multi_reduction <add>, %292, %cst_10 [1, 2] : vector<1x16x32xf32> to vector<1xf32>
    %294 = vector.shape_cast %293 : vector<1xf32> to vector<1x1x1xf32>
    %295 = vector.extract %294[0, 0, 0] : f32 from vector<1x1x1xf32>
    %296 = arith.addf %291, %295 : f32
    %cst_11 = arith.constant 9.765625E-4 : f32
    %297 = arith.mulf %296, %cst_11 : f32
    %298 = vector.broadcast %297 : f32 to vector<16x32xf32>
    %299 = arith.subf %190, %298 : vector<16x32xf32>
    %300 = vector.broadcast %297 : f32 to vector<16x32xf32>
    %301 = arith.subf %287, %300 : vector<16x32xf32>
    %302 = arith.mulf %299, %299 : vector<16x32xf32>
    %303 = vector.shape_cast %302 : vector<16x32xf32> to vector<1x16x32xf32>
    %cst_12 = arith.constant dense<0.000000e+00> : vector<1xf32>
    %304 = vector.multi_reduction <add>, %303, %cst_12 [1, 2] : vector<1x16x32xf32> to vector<1xf32>
    %305 = vector.shape_cast %304 : vector<1xf32> to vector<1x1x1xf32>
    %306 = vector.extract %305[0, 0, 0] : f32 from vector<1x1x1xf32>
    %307 = arith.mulf %301, %301 : vector<16x32xf32>
    %308 = vector.shape_cast %307 : vector<16x32xf32> to vector<1x16x32xf32>
    %cst_13 = arith.constant dense<0.000000e+00> : vector<1xf32>
    %309 = vector.multi_reduction <add>, %308, %cst_13 [1, 2] : vector<1x16x32xf32> to vector<1xf32>
    %310 = vector.shape_cast %309 : vector<1xf32> to vector<1x1x1xf32>
    %311 = vector.extract %310[0, 0, 0] : f32 from vector<1x1x1xf32>
    %312 = arith.addf %306, %311 : f32
    %cst_14 = arith.constant 9.765625E-4 : f32
    %313 = arith.mulf %312, %cst_14 : f32
    %cst_15 = arith.constant 9.99999974E-6 : f32
    %314 = arith.addf %313, %cst_15 : f32
    %315 = math.rsqrt %314 : f32
    %316 = vector.broadcast %315 : f32 to vector<16x32xf32>
    %317 = arith.mulf %299, %316 : vector<16x32xf32>
    %cst_16 = arith.constant 0.000000e+00 : f32
    %318 = vector.broadcast %cst_16 : f32 to vector<16x32xf32>
    %319 = arith.maximumf %317, %318 : vector<16x32xf32>
    %c0_17 = arith.constant 0 : index
    %c0_18 = arith.constant 0 : index
    %c0_19 = arith.constant 0 : index
    %c0_20 = arith.constant 0 : index
    %320 = vector.load %arg3[%c0_17, %c0_18, %c0_19, %c0_20] : memref<1x8x16x64xf32, #tpu.memory_space<vmem>>, vector<1x1x16x32xf32>
    %321 = vector.shape_cast %320 : vector<1x1x16x32xf32> to vector<16x32xf32>
    %322 = vector.shape_cast %319 : vector<16x32xf32> to vector<1x1x16x32xf32>
    tpu.vector_store %arg3[%c0_17, %c0_18, %c0_19, %c0_20], %322 {strides = array<i32>} : memref<1x8x16x64xf32, #tpu.memory_space<vmem>>, vector<1x1x16x32xf32>,
    %323 = vector.broadcast %315 : f32 to vector<16x32xf32>
    %324 = arith.mulf %301, %323 : vector<16x32xf32>
    %cst_21 = arith.constant 0.000000e+00 : f32
    %325 = vector.broadcast %cst_21 : f32 to vector<16x32xf32>
    %326 = arith.maximumf %324, %325 : vector<16x32xf32>
    %c0_22 = arith.constant 0 : index
    %c0_23 = arith.constant 0 : index
    %c0_24 = arith.constant 0 : index
    %c32_25 = arith.constant 32 : index
    %327 = vector.load %arg3[%c0_22, %c0_23, %c0_24, %c32_25] : memref<1x8x16x64xf32, #tpu.memory_space<vmem>>, vector<1x1x16x32xf32>
    %328 = vector.shape_cast %327 : vector<1x1x16x32xf32> to vector<16x32xf32>
    %329 = vector.shape_cast %326 : vector<16x32xf32> to vector<1x1x16x32xf32>
    tpu.vector_store %arg3[%c0_22, %c0_23, %c0_24, %c32_25], %329 {strides = array<i32>} : memref<1x8x16x64xf32, #tpu.memory_space<vmem>>, vector<1x1x16x32xf32>,
    %cst_26 = arith.constant 0.000000e+00 : f32
    %330 = vector.broadcast %cst_26 : f32 to vector<16x32xf32>
    %c1 = arith.constant 1 : index
    %331 = memref.load %arg2[%c1] : memref<384xf32, #tpu.memory_space<smem>>
    %332 = vector.broadcast %331 : f32 to vector<16x32xf32>
    %333 = arith.mulf %332, %23 : vector<16x32xf32>
    %334 = arith.addf %330, %333 : vector<16x32xf32>
    %c9 = arith.constant 9 : index
    %335 = memref.load %arg2[%c9] : memref<384xf32, #tpu.memory_space<smem>>
    %336 = vector.broadcast %335 : f32 to vector<16x32xf32>
    %337 = arith.mulf %336, %25 : vector<16x32xf32>
    %338 = arith.addf %334, %337 : vector<16x32xf32>
    %c17 = arith.constant 17 : index
    %339 = memref.load %arg2[%c17] : memref<384xf32, #tpu.memory_space<smem>>
    %340 = vector.broadcast %339 : f32 to vector<16x32xf32>
    %341 = arith.mulf %340, %27 : vector<16x32xf32>
    %342 = arith.addf %338, %341 : vector<16x32xf32>
    %c25 = arith.constant 25 : index
    %343 = memref.load %arg2[%c25] : memref<384xf32, #tpu.memory_space<smem>>
    %344 = vector.broadcast %343 : f32 to vector<16x32xf32>
    %345 = arith.mulf %344, %29 : vector<16x32xf32>
    %346 = arith.addf %342, %345 : vector<16x32xf32>
    %c33 = arith.constant 33 : index
    %347 = memref.load %arg2[%c33] : memref<384xf32, #tpu.memory_space<smem>>
    %348 = vector.broadcast %347 : f32 to vector<16x32xf32>
    %349 = arith.mulf %348, %31 : vector<16x32xf32>
    %350 = arith.addf %346, %349 : vector<16x32xf32>
    %c41 = arith.constant 41 : index
    %351 = memref.load %arg2[%c41] : memref<384xf32, #tpu.memory_space<smem>>
    %352 = vector.broadcast %351 : f32 to vector<16x32xf32>
    %353 = arith.mulf %352, %33 : vector<16x32xf32>
    %354 = arith.addf %350, %353 : vector<16x32xf32>
    %c49 = arith.constant 49 : index
    %355 = memref.load %arg2[%c49] : memref<384xf32, #tpu.memory_space<smem>>
    %356 = vector.broadcast %355 : f32 to vector<16x32xf32>
    %357 = arith.mulf %356, %35 : vector<16x32xf32>
    %358 = arith.addf %354, %357 : vector<16x32xf32>
    %c57 = arith.constant 57 : index
    %359 = memref.load %arg2[%c57] : memref<384xf32, #tpu.memory_space<smem>>
    %360 = vector.broadcast %359 : f32 to vector<16x32xf32>
    %361 = arith.mulf %360, %37 : vector<16x32xf32>
    %362 = arith.addf %358, %361 : vector<16x32xf32>
    %c65 = arith.constant 65 : index
    %363 = memref.load %arg2[%c65] : memref<384xf32, #tpu.memory_space<smem>>
    %364 = vector.broadcast %363 : f32 to vector<16x32xf32>
    %365 = arith.mulf %364, %39 : vector<16x32xf32>
    %366 = arith.addf %362, %365 : vector<16x32xf32>
    %c73 = arith.constant 73 : index
    %367 = memref.load %arg2[%c73] : memref<384xf32, #tpu.memory_space<smem>>
    %368 = vector.broadcast %367 : f32 to vector<16x32xf32>
    %369 = arith.mulf %368, %41 : vector<16x32xf32>
    %370 = arith.addf %366, %369 : vector<16x32xf32>
    %c81 = arith.constant 81 : index
    %371 = memref.load %arg2[%c81] : memref<384xf32, #tpu.memory_space<smem>>
    %372 = vector.broadcast %371 : f32 to vector<16x32xf32>
    %373 = arith.mulf %372, %43 : vector<16x32xf32>
    %374 = arith.addf %370, %373 : vector<16x32xf32>
    %c89 = arith.constant 89 : index
    %375 = memref.load %arg2[%c89] : memref<384xf32, #tpu.memory_space<smem>>
    %376 = vector.broadcast %375 : f32 to vector<16x32xf32>
    %377 = arith.mulf %376, %45 : vector<16x32xf32>
    %378 = arith.addf %374, %377 : vector<16x32xf32>
    %c97 = arith.constant 97 : index
    %379 = memref.load %arg2[%c97] : memref<384xf32, #tpu.memory_space<smem>>
    %380 = vector.broadcast %379 : f32 to vector<16x32xf32>
    %381 = arith.mulf %380, %47 : vector<16x32xf32>
    %382 = arith.addf %378, %381 : vector<16x32xf32>
    %c105 = arith.constant 105 : index
    %383 = memref.load %arg2[%c105] : memref<384xf32, #tpu.memory_space<smem>>
    %384 = vector.broadcast %383 : f32 to vector<16x32xf32>
    %385 = arith.mulf %384, %49 : vector<16x32xf32>
    %386 = arith.addf %382, %385 : vector<16x32xf32>
    %c113 = arith.constant 113 : index
    %387 = memref.load %arg2[%c113] : memref<384xf32, #tpu.memory_space<smem>>
    %388 = vector.broadcast %387 : f32 to vector<16x32xf32>
    %389 = arith.mulf %388, %51 : vector<16x32xf32>
    %390 = arith.addf %386, %389 : vector<16x32xf32>
    %c121 = arith.constant 121 : index
    %391 = memref.load %arg2[%c121] : memref<384xf32, #tpu.memory_space<smem>>
    %392 = vector.broadcast %391 : f32 to vector<16x32xf32>
    %393 = arith.mulf %392, %53 : vector<16x32xf32>
    %394 = arith.addf %390, %393 : vector<16x32xf32>
    %c129 = arith.constant 129 : index
    %395 = memref.load %arg2[%c129] : memref<384xf32, #tpu.memory_space<smem>>
    %396 = vector.broadcast %395 : f32 to vector<16x32xf32>
    %397 = arith.mulf %396, %55 : vector<16x32xf32>
    %398 = arith.addf %394, %397 : vector<16x32xf32>
    %c137 = arith.constant 137 : index
    %399 = memref.load %arg2[%c137] : memref<384xf32, #tpu.memory_space<smem>>
    %400 = vector.broadcast %399 : f32 to vector<16x32xf32>
    %401 = arith.mulf %400, %57 : vector<16x32xf32>
    %402 = arith.addf %398, %401 : vector<16x32xf32>
    %c145 = arith.constant 145 : index
    %403 = memref.load %arg2[%c145] : memref<384xf32, #tpu.memory_space<smem>>
    %404 = vector.broadcast %403 : f32 to vector<16x32xf32>
    %405 = arith.mulf %404, %59 : vector<16x32xf32>
    %406 = arith.addf %402, %405 : vector<16x32xf32>
    %c153 = arith.constant 153 : index
    %407 = memref.load %arg2[%c153] : memref<384xf32, #tpu.memory_space<smem>>
    %408 = vector.broadcast %407 : f32 to vector<16x32xf32>
    %409 = arith.mulf %408, %61 : vector<16x32xf32>
    %410 = arith.addf %406, %409 : vector<16x32xf32>
    %c161 = arith.constant 161 : index
    %411 = memref.load %arg2[%c161] : memref<384xf32, #tpu.memory_space<smem>>
    %412 = vector.broadcast %411 : f32 to vector<16x32xf32>
    %413 = arith.mulf %412, %63 : vector<16x32xf32>
    %414 = arith.addf %410, %413 : vector<16x32xf32>
    %c169 = arith.constant 169 : index
    %415 = memref.load %arg2[%c169] : memref<384xf32, #tpu.memory_space<smem>>
    %416 = vector.broadcast %415 : f32 to vector<16x32xf32>
    %417 = arith.mulf %416, %65 : vector<16x32xf32>
    %418 = arith.addf %414, %417 : vector<16x32xf32>
    %c177 = arith.constant 177 : index
    %419 = memref.load %arg2[%c177] : memref<384xf32, #tpu.memory_space<smem>>
    %420 = vector.broadcast %419 : f32 to vector<16x32xf32>
    %421 = arith.mulf %420, %67 : vector<16x32xf32>
    %422 = arith.addf %418, %421 : vector<16x32xf32>
    %c185 = arith.constant 185 : index
    %423 = memref.load %arg2[%c185] : memref<384xf32, #tpu.memory_space<smem>>
    %424 = vector.broadcast %423 : f32 to vector<16x32xf32>
    %425 = arith.mulf %424, %69 : vector<16x32xf32>
    %426 = arith.addf %422, %425 : vector<16x32xf32>
    %cst_27 = arith.constant 0.000000e+00 : f32
    %427 = vector.broadcast %cst_27 : f32 to vector<16x32xf32>
    %c193 = arith.constant 193 : index
    %428 = memref.load %arg2[%c193] : memref<384xf32, #tpu.memory_space<smem>>
    %429 = vector.broadcast %428 : f32 to vector<16x32xf32>
    %430 = arith.mulf %429, %47 : vector<16x32xf32>
    %431 = arith.addf %427, %430 : vector<16x32xf32>
    %c201 = arith.constant 201 : index
    %432 = memref.load %arg2[%c201] : memref<384xf32, #tpu.memory_space<smem>>
    %433 = vector.broadcast %432 : f32 to vector<16x32xf32>
    %434 = arith.mulf %433, %49 : vector<16x32xf32>
    %435 = arith.addf %431, %434 : vector<16x32xf32>
    %c209 = arith.constant 209 : index
    %436 = memref.load %arg2[%c209] : memref<384xf32, #tpu.memory_space<smem>>
    %437 = vector.broadcast %436 : f32 to vector<16x32xf32>
    %438 = arith.mulf %437, %51 : vector<16x32xf32>
    %439 = arith.addf %435, %438 : vector<16x32xf32>
    %c217 = arith.constant 217 : index
    %440 = memref.load %arg2[%c217] : memref<384xf32, #tpu.memory_space<smem>>
    %441 = vector.broadcast %440 : f32 to vector<16x32xf32>
    %442 = arith.mulf %441, %53 : vector<16x32xf32>
    %443 = arith.addf %439, %442 : vector<16x32xf32>
    %c225 = arith.constant 225 : index
    %444 = memref.load %arg2[%c225] : memref<384xf32, #tpu.memory_space<smem>>
    %445 = vector.broadcast %444 : f32 to vector<16x32xf32>
    %446 = arith.mulf %445, %55 : vector<16x32xf32>
    %447 = arith.addf %443, %446 : vector<16x32xf32>
    %c233 = arith.constant 233 : index
    %448 = memref.load %arg2[%c233] : memref<384xf32, #tpu.memory_space<smem>>
    %449 = vector.broadcast %448 : f32 to vector<16x32xf32>
    %450 = arith.mulf %449, %57 : vector<16x32xf32>
    %451 = arith.addf %447, %450 : vector<16x32xf32>
    %c241 = arith.constant 241 : index
    %452 = memref.load %arg2[%c241] : memref<384xf32, #tpu.memory_space<smem>>
    %453 = vector.broadcast %452 : f32 to vector<16x32xf32>
    %454 = arith.mulf %453, %59 : vector<16x32xf32>
    %455 = arith.addf %451, %454 : vector<16x32xf32>
    %c249 = arith.constant 249 : index
    %456 = memref.load %arg2[%c249] : memref<384xf32, #tpu.memory_space<smem>>
    %457 = vector.broadcast %456 : f32 to vector<16x32xf32>
    %458 = arith.mulf %457, %61 : vector<16x32xf32>
    %459 = arith.addf %455, %458 : vector<16x32xf32>
    %c257 = arith.constant 257 : index
    %460 = memref.load %arg2[%c257] : memref<384xf32, #tpu.memory_space<smem>>
    %461 = vector.broadcast %460 : f32 to vector<16x32xf32>
    %462 = arith.mulf %461, %63 : vector<16x32xf32>
    %463 = arith.addf %459, %462 : vector<16x32xf32>
    %c265 = arith.constant 265 : index
    %464 = memref.load %arg2[%c265] : memref<384xf32, #tpu.memory_space<smem>>
    %465 = vector.broadcast %464 : f32 to vector<16x32xf32>
    %466 = arith.mulf %465, %65 : vector<16x32xf32>
    %467 = arith.addf %463, %466 : vector<16x32xf32>
    %c273 = arith.constant 273 : index
    %468 = memref.load %arg2[%c273] : memref<384xf32, #tpu.memory_space<smem>>
    %469 = vector.broadcast %468 : f32 to vector<16x32xf32>
    %470 = arith.mulf %469, %67 : vector<16x32xf32>
    %471 = arith.addf %467, %470 : vector<16x32xf32>
    %c281 = arith.constant 281 : index
    %472 = memref.load %arg2[%c281] : memref<384xf32, #tpu.memory_space<smem>>
    %473 = vector.broadcast %472 : f32 to vector<16x32xf32>
    %474 = arith.mulf %473, %69 : vector<16x32xf32>
    %475 = arith.addf %471, %474 : vector<16x32xf32>
    %c289 = arith.constant 289 : index
    %476 = memref.load %arg2[%c289] : memref<384xf32, #tpu.memory_space<smem>>
    %477 = vector.broadcast %476 : f32 to vector<16x32xf32>
    %478 = arith.mulf %477, %71 : vector<16x32xf32>
    %479 = arith.addf %475, %478 : vector<16x32xf32>
    %c297 = arith.constant 297 : index
    %480 = memref.load %arg2[%c297] : memref<384xf32, #tpu.memory_space<smem>>
    %481 = vector.broadcast %480 : f32 to vector<16x32xf32>
    %482 = arith.mulf %481, %73 : vector<16x32xf32>
    %483 = arith.addf %479, %482 : vector<16x32xf32>
    %c305 = arith.constant 305 : index
    %484 = memref.load %arg2[%c305] : memref<384xf32, #tpu.memory_space<smem>>
    %485 = vector.broadcast %484 : f32 to vector<16x32xf32>
    %486 = arith.mulf %485, %75 : vector<16x32xf32>
    %487 = arith.addf %483, %486 : vector<16x32xf32>
    %c313 = arith.constant 313 : index
    %488 = memref.load %arg2[%c313] : memref<384xf32, #tpu.memory_space<smem>>
    %489 = vector.broadcast %488 : f32 to vector<16x32xf32>
    %490 = arith.mulf %489, %77 : vector<16x32xf32>
    %491 = arith.addf %487, %490 : vector<16x32xf32>
    %c321 = arith.constant 321 : index
    %492 = memref.load %arg2[%c321] : memref<384xf32, #tpu.memory_space<smem>>
    %493 = vector.broadcast %492 : f32 to vector<16x32xf32>
    %494 = arith.mulf %493, %79 : vector<16x32xf32>
    %495 = arith.addf %491, %494 : vector<16x32xf32>
    %c329 = arith.constant 329 : index
    %496 = memref.load %arg2[%c329] : memref<384xf32, #tpu.memory_space<smem>>
    %497 = vector.broadcast %496 : f32 to vector<16x32xf32>
    %498 = arith.mulf %497, %81 : vector<16x32xf32>
    %499 = arith.addf %495, %498 : vector<16x32xf32>
    %c337 = arith.constant 337 : index
    %500 = memref.load %arg2[%c337] : memref<384xf32, #tpu.memory_space<smem>>
    %501 = vector.broadcast %500 : f32 to vector<16x32xf32>
    %502 = arith.mulf %501, %83 : vector<16x32xf32>
    %503 = arith.addf %499, %502 : vector<16x32xf32>
    %c345 = arith.constant 345 : index
    %504 = memref.load %arg2[%c345] : memref<384xf32, #tpu.memory_space<smem>>
    %505 = vector.broadcast %504 : f32 to vector<16x32xf32>
    %506 = arith.mulf %505, %85 : vector<16x32xf32>
    %507 = arith.addf %503, %506 : vector<16x32xf32>
    %c353 = arith.constant 353 : index
    %508 = memref.load %arg2[%c353] : memref<384xf32, #tpu.memory_space<smem>>
    %509 = vector.broadcast %508 : f32 to vector<16x32xf32>
    %510 = arith.mulf %509, %87 : vector<16x32xf32>
    %511 = arith.addf %507, %510 : vector<16x32xf32>
    %c361 = arith.constant 361 : index
    %512 = memref.load %arg2[%c361] : memref<384xf32, #tpu.memory_space<smem>>
    %513 = vector.broadcast %512 : f32 to vector<16x32xf32>
    %514 = arith.mulf %513, %89 : vector<16x32xf32>
    %515 = arith.addf %511, %514 : vector<16x32xf32>
    %c369 = arith.constant 369 : index
    %516 = memref.load %arg2[%c369] : memref<384xf32, #tpu.memory_space<smem>>
    %517 = vector.broadcast %516 : f32 to vector<16x32xf32>
    %518 = arith.mulf %517, %91 : vector<16x32xf32>
    %519 = arith.addf %515, %518 : vector<16x32xf32>
    %c377 = arith.constant 377 : index
    %520 = memref.load %arg2[%c377] : memref<384xf32, #tpu.memory_space<smem>>
    %521 = vector.broadcast %520 : f32 to vector<16x32xf32>
    %522 = arith.mulf %521, %93 : vector<16x32xf32>
    %523 = arith.addf %519, %522 : vector<16x32xf32>
    %524 = vector.shape_cast %426 : vector<16x32xf32> to vector<1x16x32xf32>
    %cst_28 = arith.constant dense<0.000000e+00> : vector<1xf32>
    %525 = vector.multi_reduction <add>, %524, %cst_28 [1, 2] : vector<1x16x32xf32> to vector<1xf32>
    %526 = vector.shape_cast %525 : vector<1xf32> to vector<1x1x1xf32>
    %527 = vector.extract %526[0, 0, 0] : f32 from vector<1x1x1xf32>
    %528 = vector.shape_cast %523 : vector<16x32xf32> to vector<1x16x32xf32>
    %cst_29 = arith.constant dense<0.000000e+00> : vector<1xf32>
    %529 = vector.multi_reduction <add>, %528, %cst_29 [1, 2] : vector<1x16x32xf32> to vector<1xf32>
    %530 = vector.shape_cast %529 : vector<1xf32> to vector<1x1x1xf32>
    %531 = vector.extract %530[0, 0, 0] : f32 from vector<1x1x1xf32>
    %532 = arith.addf %527, %531 : f32
    %cst_30 = arith.constant 9.765625E-4 : f32
    %533 = arith.mulf %532, %cst_30 : f32
    %534 = vector.broadcast %533 : f32 to vector<16x32xf32>
    %535 = arith.subf %426, %534 : vector<16x32xf32>
    %536 = vector.broadcast %533 : f32 to vector<16x32xf32>
    %537 = arith.subf %523, %536 : vector<16x32xf32>
    %538 = arith.mulf %535, %535 : vector<16x32xf32>
    %539 = vector.shape_cast %538 : vector<16x32xf32> to vector<1x16x32xf32>
    %cst_31 = arith.constant dense<0.000000e+00> : vector<1xf32>
    %540 = vector.multi_reduction <add>, %539, %cst_31 [1, 2] : vector<1x16x32xf32> to vector<1xf32>
    %541 = vector.shape_cast %540 : vector<1xf32> to vector<1x1x1xf32>
    %542 = vector.extract %541[0, 0, 0] : f32 from vector<1x1x1xf32>
    %543 = arith.mulf %537, %537 : vector<16x32xf32>
    %544 = vector.shape_cast %543 : vector<16x32xf32> to vector<1x16x32xf32>
    %cst_32 = arith.constant dense<0.000000e+00> : vector<1xf32>
    %545 = vector.multi_reduction <add>, %544, %cst_32 [1, 2] : vector<1x16x32xf32> to vector<1xf32>
    %546 = vector.shape_cast %545 : vector<1xf32> to vector<1x1x1xf32>
    %547 = vector.extract %546[0, 0, 0] : f32 from vector<1x1x1xf32>
    %548 = arith.addf %542, %547 : f32
    %cst_33 = arith.constant 9.765625E-4 : f32
    %549 = arith.mulf %548, %cst_33 : f32
    %cst_34 = arith.constant 9.99999974E-6 : f32
    %550 = arith.addf %549, %cst_34 : f32
    %551 = math.rsqrt %550 : f32
    %552 = vector.broadcast %551 : f32 to vector<16x32xf32>
    %553 = arith.mulf %535, %552 : vector<16x32xf32>
    %cst_35 = arith.constant 0.000000e+00 : f32
    %554 = vector.broadcast %cst_35 : f32 to vector<16x32xf32>
    %555 = arith.maximumf %553, %554 : vector<16x32xf32>
    %c0_36 = arith.constant 0 : index
    %c1_37 = arith.constant 1 : index
    %c0_38 = arith.constant 0 : index
    %c0_39 = arith.constant 0 : index
    %556 = vector.load %arg3[%c0_36, %c1_37, %c0_38, %c0_39] : memref<1x8x16x64xf32, #tpu.memory_space<vmem>>, vector<1x1x16x32xf32>
    %557 = vector.shape_cast %556 : vector<1x1x16x32xf32> to vector<16x32xf32>
    %558 = vector.shape_cast %555 : vector<16x32xf32> to vector<1x1x16x32xf32>
    tpu.vector_store %arg3[%c0_36, %c1_37, %c0_38, %c0_39], %558 {strides = array<i32>} : memref<1x8x16x64xf32, #tpu.memory_space<vmem>>, vector<1x1x16x32xf32>,
    %559 = vector.broadcast %551 : f32 to vector<16x32xf32>
    %560 = arith.mulf %537, %559 : vector<16x32xf32>
    %cst_40 = arith.constant 0.000000e+00 : f32
    %561 = vector.broadcast %cst_40 : f32 to vector<16x32xf32>
    %562 = arith.maximumf %560, %561 : vector<16x32xf32>
    %c0_41 = arith.constant 0 : index
    %c1_42 = arith.constant 1 : index
    %c0_43 = arith.constant 0 : index
    %c32_44 = arith.constant 32 : index
    %563 = vector.load %arg3[%c0_41, %c1_42, %c0_43, %c32_44] : memref<1x8x16x64xf32, #tpu.memory_space<vmem>>, vector<1x1x16x32xf32>
    %564 = vector.shape_cast %563 : vector<1x1x16x32xf32> to vector<16x32xf32>
    %565 = vector.shape_cast %562 : vector<16x32xf32> to vector<1x1x16x32xf32>
    tpu.vector_store %arg3[%c0_41, %c1_42, %c0_43, %c32_44], %565 {strides = array<i32>} : memref<1x8x16x64xf32, #tpu.memory_space<vmem>>, vector<1x1x16x32xf32>,
    %cst_45 = arith.constant 0.000000e+00 : f32
    %566 = vector.broadcast %cst_45 : f32 to vector<16x32xf32>
    %c2 = arith.constant 2 : index
    %567 = memref.load %arg2[%c2] : memref<384xf32, #tpu.memory_space<smem>>
    %568 = vector.broadcast %567 : f32 to vector<16x32xf32>
    %569 = arith.mulf %568, %23 : vector<16x32xf32>
    %570 = arith.addf %566, %569 : vector<16x32xf32>
    %c10 = arith.constant 10 : index
    %571 = memref.load %arg2[%c10] : memref<384xf32, #tpu.memory_space<smem>>
    %572 = vector.broadcast %571 : f32 to vector<16x32xf32>
    %573 = arith.mulf %572, %25 : vector<16x32xf32>
    %574 = arith.addf %570, %573 : vector<16x32xf32>
    %c18 = arith.constant 18 : index
    %575 = memref.load %arg2[%c18] : memref<384xf32, #tpu.memory_space<smem>>
    %576 = vector.broadcast %575 : f32 to vector<16x32xf32>
    %577 = arith.mulf %576, %27 : vector<16x32xf32>
    %578 = arith.addf %574, %577 : vector<16x32xf32>
    %c26 = arith.constant 26 : index
    %579 = memref.load %arg2[%c26] : memref<384xf32, #tpu.memory_space<smem>>
    %580 = vector.broadcast %579 : f32 to vector<16x32xf32>
    %581 = arith.mulf %580, %29 : vector<16x32xf32>
    %582 = arith.addf %578, %581 : vector<16x32xf32>
    %c34 = arith.constant 34 : index
    %583 = memref.load %arg2[%c34] : memref<384xf32, #tpu.memory_space<smem>>
    %584 = vector.broadcast %583 : f32 to vector<16x32xf32>
    %585 = arith.mulf %584, %31 : vector<16x32xf32>
    %586 = arith.addf %582, %585 : vector<16x32xf32>
    %c42 = arith.constant 42 : index
    %587 = memref.load %arg2[%c42] : memref<384xf32, #tpu.memory_space<smem>>
    %588 = vector.broadcast %587 : f32 to vector<16x32xf32>
    %589 = arith.mulf %588, %33 : vector<16x32xf32>
    %590 = arith.addf %586, %589 : vector<16x32xf32>
    %c50 = arith.constant 50 : index
    %591 = memref.load %arg2[%c50] : memref<384xf32, #tpu.memory_space<smem>>
    %592 = vector.broadcast %591 : f32 to vector<16x32xf32>
    %593 = arith.mulf %592, %35 : vector<16x32xf32>
    %594 = arith.addf %590, %593 : vector<16x32xf32>
    %c58 = arith.constant 58 : index
    %595 = memref.load %arg2[%c58] : memref<384xf32, #tpu.memory_space<smem>>
    %596 = vector.broadcast %595 : f32 to vector<16x32xf32>
    %597 = arith.mulf %596, %37 : vector<16x32xf32>
    %598 = arith.addf %594, %597 : vector<16x32xf32>
    %c66 = arith.constant 66 : index
    %599 = memref.load %arg2[%c66] : memref<384xf32, #tpu.memory_space<smem>>
    %600 = vector.broadcast %599 : f32 to vector<16x32xf32>
    %601 = arith.mulf %600, %39 : vector<16x32xf32>
    %602 = arith.addf %598, %601 : vector<16x32xf32>
    %c74 = arith.constant 74 : index
    %603 = memref.load %arg2[%c74] : memref<384xf32, #tpu.memory_space<smem>>
    %604 = vector.broadcast %603 : f32 to vector<16x32xf32>
    %605 = arith.mulf %604, %41 : vector<16x32xf32>
    %606 = arith.addf %602, %605 : vector<16x32xf32>
    %c82 = arith.constant 82 : index
    %607 = memref.load %arg2[%c82] : memref<384xf32, #tpu.memory_space<smem>>
    %608 = vector.broadcast %607 : f32 to vector<16x32xf32>
    %609 = arith.mulf %608, %43 : vector<16x32xf32>
    %610 = arith.addf %606, %609 : vector<16x32xf32>
    %c90 = arith.constant 90 : index
    %611 = memref.load %arg2[%c90] : memref<384xf32, #tpu.memory_space<smem>>
    %612 = vector.broadcast %611 : f32 to vector<16x32xf32>
    %613 = arith.mulf %612, %45 : vector<16x32xf32>
    %614 = arith.addf %610, %613 : vector<16x32xf32>
    %c98 = arith.constant 98 : index
    %615 = memref.load %arg2[%c98] : memref<384xf32, #tpu.memory_space<smem>>
    %616 = vector.broadcast %615 : f32 to vector<16x32xf32>
    %617 = arith.mulf %616, %47 : vector<16x32xf32>
    %618 = arith.addf %614, %617 : vector<16x32xf32>
    %c106 = arith.constant 106 : index
    %619 = memref.load %arg2[%c106] : memref<384xf32, #tpu.memory_space<smem>>
    %620 = vector.broadcast %619 : f32 to vector<16x32xf32>
    %621 = arith.mulf %620, %49 : vector<16x32xf32>
    %622 = arith.addf %618, %621 : vector<16x32xf32>
    %c114 = arith.constant 114 : index
    %623 = memref.load %arg2[%c114] : memref<384xf32, #tpu.memory_space<smem>>
    %624 = vector.broadcast %623 : f32 to vector<16x32xf32>
    %625 = arith.mulf %624, %51 : vector<16x32xf32>
    %626 = arith.addf %622, %625 : vector<16x32xf32>
    %c122 = arith.constant 122 : index
    %627 = memref.load %arg2[%c122] : memref<384xf32, #tpu.memory_space<smem>>
    %628 = vector.broadcast %627 : f32 to vector<16x32xf32>
    %629 = arith.mulf %628, %53 : vector<16x32xf32>
    %630 = arith.addf %626, %629 : vector<16x32xf32>
    %c130 = arith.constant 130 : index
    %631 = memref.load %arg2[%c130] : memref<384xf32, #tpu.memory_space<smem>>
    %632 = vector.broadcast %631 : f32 to vector<16x32xf32>
    %633 = arith.mulf %632, %55 : vector<16x32xf32>
    %634 = arith.addf %630, %633 : vector<16x32xf32>
    %c138 = arith.constant 138 : index
    %635 = memref.load %arg2[%c138] : memref<384xf32, #tpu.memory_space<smem>>
    %636 = vector.broadcast %635 : f32 to vector<16x32xf32>
    %637 = arith.mulf %636, %57 : vector<16x32xf32>
    %638 = arith.addf %634, %637 : vector<16x32xf32>
    %c146 = arith.constant 146 : index
    %639 = memref.load %arg2[%c146] : memref<384xf32, #tpu.memory_space<smem>>
    %640 = vector.broadcast %639 : f32 to vector<16x32xf32>
    %641 = arith.mulf %640, %59 : vector<16x32xf32>
    %642 = arith.addf %638, %641 : vector<16x32xf32>
    %c154 = arith.constant 154 : index
    %643 = memref.load %arg2[%c154] : memref<384xf32, #tpu.memory_space<smem>>
    %644 = vector.broadcast %643 : f32 to vector<16x32xf32>
    %645 = arith.mulf %644, %61 : vector<16x32xf32>
    %646 = arith.addf %642, %645 : vector<16x32xf32>
    %c162 = arith.constant 162 : index
    %647 = memref.load %arg2[%c162] : memref<384xf32, #tpu.memory_space<smem>>
    %648 = vector.broadcast %647 : f32 to vector<16x32xf32>
    %649 = arith.mulf %648, %63 : vector<16x32xf32>
    %650 = arith.addf %646, %649 : vector<16x32xf32>
    %c170 = arith.constant 170 : index
    %651 = memref.load %arg2[%c170] : memref<384xf32, #tpu.memory_space<smem>>
    %652 = vector.broadcast %651 : f32 to vector<16x32xf32>
    %653 = arith.mulf %652, %65 : vector<16x32xf32>
    %654 = arith.addf %650, %653 : vector<16x32xf32>
    %c178 = arith.constant 178 : index
    %655 = memref.load %arg2[%c178] : memref<384xf32, #tpu.memory_space<smem>>
    %656 = vector.broadcast %655 : f32 to vector<16x32xf32>
    %657 = arith.mulf %656, %67 : vector<16x32xf32>
    %658 = arith.addf %654, %657 : vector<16x32xf32>
    %c186 = arith.constant 186 : index
    %659 = memref.load %arg2[%c186] : memref<384xf32, #tpu.memory_space<smem>>
    %660 = vector.broadcast %659 : f32 to vector<16x32xf32>
    %661 = arith.mulf %660, %69 : vector<16x32xf32>
    %662 = arith.addf %658, %661 : vector<16x32xf32>
    %cst_46 = arith.constant 0.000000e+00 : f32
    %663 = vector.broadcast %cst_46 : f32 to vector<16x32xf32>
    %c194 = arith.constant 194 : index
    %664 = memref.load %arg2[%c194] : memref<384xf32, #tpu.memory_space<smem>>
    %665 = vector.broadcast %664 : f32 to vector<16x32xf32>
    %666 = arith.mulf %665, %47 : vector<16x32xf32>
    %667 = arith.addf %663, %666 : vector<16x32xf32>
    %c202 = arith.constant 202 : index
    %668 = memref.load %arg2[%c202] : memref<384xf32, #tpu.memory_space<smem>>
    %669 = vector.broadcast %668 : f32 to vector<16x32xf32>
    %670 = arith.mulf %669, %49 : vector<16x32xf32>
    %671 = arith.addf %667, %670 : vector<16x32xf32>
    %c210 = arith.constant 210 : index
    %672 = memref.load %arg2[%c210] : memref<384xf32, #tpu.memory_space<smem>>
    %673 = vector.broadcast %672 : f32 to vector<16x32xf32>
    %674 = arith.mulf %673, %51 : vector<16x32xf32>
    %675 = arith.addf %671, %674 : vector<16x32xf32>
    %c218 = arith.constant 218 : index
    %676 = memref.load %arg2[%c218] : memref<384xf32, #tpu.memory_space<smem>>
    %677 = vector.broadcast %676 : f32 to vector<16x32xf32>
    %678 = arith.mulf %677, %53 : vector<16x32xf32>
    %679 = arith.addf %675, %678 : vector<16x32xf32>
    %c226 = arith.constant 226 : index
    %680 = memref.load %arg2[%c226] : memref<384xf32, #tpu.memory_space<smem>>
    %681 = vector.broadcast %680 : f32 to vector<16x32xf32>
    %682 = arith.mulf %681, %55 : vector<16x32xf32>
    %683 = arith.addf %679, %682 : vector<16x32xf32>
    %c234 = arith.constant 234 : index
    %684 = memref.load %arg2[%c234] : memref<384xf32, #tpu.memory_space<smem>>
    %685 = vector.broadcast %684 : f32 to vector<16x32xf32>
    %686 = arith.mulf %685, %57 : vector<16x32xf32>
    %687 = arith.addf %683, %686 : vector<16x32xf32>
    %c242 = arith.constant 242 : index
    %688 = memref.load %arg2[%c242] : memref<384xf32, #tpu.memory_space<smem>>
    %689 = vector.broadcast %688 : f32 to vector<16x32xf32>
    %690 = arith.mulf %689, %59 : vector<16x32xf32>
    %691 = arith.addf %687, %690 : vector<16x32xf32>
    %c250 = arith.constant 250 : index
    %692 = memref.load %arg2[%c250] : memref<384xf32, #tpu.memory_space<smem>>
    %693 = vector.broadcast %692 : f32 to vector<16x32xf32>
    %694 = arith.mulf %693, %61 : vector<16x32xf32>
    %695 = arith.addf %691, %694 : vector<16x32xf32>
    %c258 = arith.constant 258 : index
    %696 = memref.load %arg2[%c258] : memref<384xf32, #tpu.memory_space<smem>>
    %697 = vector.broadcast %696 : f32 to vector<16x32xf32>
    %698 = arith.mulf %697, %63 : vector<16x32xf32>
    %699 = arith.addf %695, %698 : vector<16x32xf32>
    %c266 = arith.constant 266 : index
    %700 = memref.load %arg2[%c266] : memref<384xf32, #tpu.memory_space<smem>>
    %701 = vector.broadcast %700 : f32 to vector<16x32xf32>
    %702 = arith.mulf %701, %65 : vector<16x32xf32>
    %703 = arith.addf %699, %702 : vector<16x32xf32>
    %c274 = arith.constant 274 : index
    %704 = memref.load %arg2[%c274] : memref<384xf32, #tpu.memory_space<smem>>
    %705 = vector.broadcast %704 : f32 to vector<16x32xf32>
    %706 = arith.mulf %705, %67 : vector<16x32xf32>
    %707 = arith.addf %703, %706 : vector<16x32xf32>
    %c282 = arith.constant 282 : index
    %708 = memref.load %arg2[%c282] : memref<384xf32, #tpu.memory_space<smem>>
    %709 = vector.broadcast %708 : f32 to vector<16x32xf32>
    %710 = arith.mulf %709, %69 : vector<16x32xf32>
    %711 = arith.addf %707, %710 : vector<16x32xf32>
    %c290 = arith.constant 290 : index
    %712 = memref.load %arg2[%c290] : memref<384xf32, #tpu.memory_space<smem>>
    %713 = vector.broadcast %712 : f32 to vector<16x32xf32>
    %714 = arith.mulf %713, %71 : vector<16x32xf32>
    %715 = arith.addf %711, %714 : vector<16x32xf32>
    %c298 = arith.constant 298 : index
    %716 = memref.load %arg2[%c298] : memref<384xf32, #tpu.memory_space<smem>>
    %717 = vector.broadcast %716 : f32 to vector<16x32xf32>
    %718 = arith.mulf %717, %73 : vector<16x32xf32>
    %719 = arith.addf %715, %718 : vector<16x32xf32>
    %c306 = arith.constant 306 : index
    %720 = memref.load %arg2[%c306] : memref<384xf32, #tpu.memory_space<smem>>
    %721 = vector.broadcast %720 : f32 to vector<16x32xf32>
    %722 = arith.mulf %721, %75 : vector<16x32xf32>
    %723 = arith.addf %719, %722 : vector<16x32xf32>
    %c314 = arith.constant 314 : index
    %724 = memref.load %arg2[%c314] : memref<384xf32, #tpu.memory_space<smem>>
    %725 = vector.broadcast %724 : f32 to vector<16x32xf32>
    %726 = arith.mulf %725, %77 : vector<16x32xf32>
    %727 = arith.addf %723, %726 : vector<16x32xf32>
    %c322 = arith.constant 322 : index
    %728 = memref.load %arg2[%c322] : memref<384xf32, #tpu.memory_space<smem>>
    %729 = vector.broadcast %728 : f32 to vector<16x32xf32>
    %730 = arith.mulf %729, %79 : vector<16x32xf32>
    %731 = arith.addf %727, %730 : vector<16x32xf32>
    %c330 = arith.constant 330 : index
    %732 = memref.load %arg2[%c330] : memref<384xf32, #tpu.memory_space<smem>>
    %733 = vector.broadcast %732 : f32 to vector<16x32xf32>
    %734 = arith.mulf %733, %81 : vector<16x32xf32>
    %735 = arith.addf %731, %734 : vector<16x32xf32>
    %c338 = arith.constant 338 : index
    %736 = memref.load %arg2[%c338] : memref<384xf32, #tpu.memory_space<smem>>
    %737 = vector.broadcast %736 : f32 to vector<16x32xf32>
    %738 = arith.mulf %737, %83 : vector<16x32xf32>
    %739 = arith.addf %735, %738 : vector<16x32xf32>
    %c346 = arith.constant 346 : index
    %740 = memref.load %arg2[%c346] : memref<384xf32, #tpu.memory_space<smem>>
    %741 = vector.broadcast %740 : f32 to vector<16x32xf32>
    %742 = arith.mulf %741, %85 : vector<16x32xf32>
    %743 = arith.addf %739, %742 : vector<16x32xf32>
    %c354 = arith.constant 354 : index
    %744 = memref.load %arg2[%c354] : memref<384xf32, #tpu.memory_space<smem>>
    %745 = vector.broadcast %744 : f32 to vector<16x32xf32>
    %746 = arith.mulf %745, %87 : vector<16x32xf32>
    %747 = arith.addf %743, %746 : vector<16x32xf32>
    %c362 = arith.constant 362 : index
    %748 = memref.load %arg2[%c362] : memref<384xf32, #tpu.memory_space<smem>>
    %749 = vector.broadcast %748 : f32 to vector<16x32xf32>
    %750 = arith.mulf %749, %89 : vector<16x32xf32>
    %751 = arith.addf %747, %750 : vector<16x32xf32>
    %c370 = arith.constant 370 : index
    %752 = memref.load %arg2[%c370] : memref<384xf32, #tpu.memory_space<smem>>
    %753 = vector.broadcast %752 : f32 to vector<16x32xf32>
    %754 = arith.mulf %753, %91 : vector<16x32xf32>
    %755 = arith.addf %751, %754 : vector<16x32xf32>
    %c378 = arith.constant 378 : index
    %756 = memref.load %arg2[%c378] : memref<384xf32, #tpu.memory_space<smem>>
    %757 = vector.broadcast %756 : f32 to vector<16x32xf32>
    %758 = arith.mulf %757, %93 : vector<16x32xf32>
    %759 = arith.addf %755, %758 : vector<16x32xf32>
    %760 = vector.shape_cast %662 : vector<16x32xf32> to vector<1x16x32xf32>
    %cst_47 = arith.constant dense<0.000000e+00> : vector<1xf32>
    %761 = vector.multi_reduction <add>, %760, %cst_47 [1, 2] : vector<1x16x32xf32> to vector<1xf32>
    %762 = vector.shape_cast %761 : vector<1xf32> to vector<1x1x1xf32>
    %763 = vector.extract %762[0, 0, 0] : f32 from vector<1x1x1xf32>
    %764 = vector.shape_cast %759 : vector<16x32xf32> to vector<1x16x32xf32>
    %cst_48 = arith.constant dense<0.000000e+00> : vector<1xf32>
    %765 = vector.multi_reduction <add>, %764, %cst_48 [1, 2] : vector<1x16x32xf32> to vector<1xf32>
    %766 = vector.shape_cast %765 : vector<1xf32> to vector<1x1x1xf32>
    %767 = vector.extract %766[0, 0, 0] : f32 from vector<1x1x1xf32>
    %768 = arith.addf %763, %767 : f32
    %cst_49 = arith.constant 9.765625E-4 : f32
    %769 = arith.mulf %768, %cst_49 : f32
    %770 = vector.broadcast %769 : f32 to vector<16x32xf32>
    %771 = arith.subf %662, %770 : vector<16x32xf32>
    %772 = vector.broadcast %769 : f32 to vector<16x32xf32>
    %773 = arith.subf %759, %772 : vector<16x32xf32>
    %774 = arith.mulf %771, %771 : vector<16x32xf32>
    %775 = vector.shape_cast %774 : vector<16x32xf32> to vector<1x16x32xf32>
    %cst_50 = arith.constant dense<0.000000e+00> : vector<1xf32>
    %776 = vector.multi_reduction <add>, %775, %cst_50 [1, 2] : vector<1x16x32xf32> to vector<1xf32>
    %777 = vector.shape_cast %776 : vector<1xf32> to vector<1x1x1xf32>
    %778 = vector.extract %777[0, 0, 0] : f32 from vector<1x1x1xf32>
    %779 = arith.mulf %773, %773 : vector<16x32xf32>
    %780 = vector.shape_cast %779 : vector<16x32xf32> to vector<1x16x32xf32>
    %cst_51 = arith.constant dense<0.000000e+00> : vector<1xf32>
    %781 = vector.multi_reduction <add>, %780, %cst_51 [1, 2] : vector<1x16x32xf32> to vector<1xf32>
    %782 = vector.shape_cast %781 : vector<1xf32> to vector<1x1x1xf32>
    %783 = vector.extract %782[0, 0, 0] : f32 from vector<1x1x1xf32>
    %784 = arith.addf %778, %783 : f32
    %cst_52 = arith.constant 9.765625E-4 : f32
    %785 = arith.mulf %784, %cst_52 : f32
    %cst_53 = arith.constant 9.99999974E-6 : f32
    %786 = arith.addf %785, %cst_53 : f32
    %787 = math.rsqrt %786 : f32
    %788 = vector.broadcast %787 : f32 to vector<16x32xf32>
    %789 = arith.mulf %771, %788 : vector<16x32xf32>
    %cst_54 = arith.constant 0.000000e+00 : f32
    %790 = vector.broadcast %cst_54 : f32 to vector<16x32xf32>
    %791 = arith.maximumf %789, %790 : vector<16x32xf32>
    %c0_55 = arith.constant 0 : index
    %c2_56 = arith.constant 2 : index
    %c0_57 = arith.constant 0 : index
    %c0_58 = arith.constant 0 : index
    %792 = vector.load %arg3[%c0_55, %c2_56, %c0_57, %c0_58] : memref<1x8x16x64xf32, #tpu.memory_space<vmem>>, vector<1x1x16x32xf32>
    %793 = vector.shape_cast %792 : vector<1x1x16x32xf32> to vector<16x32xf32>
    %794 = vector.shape_cast %791 : vector<16x32xf32> to vector<1x1x16x32xf32>
    tpu.vector_store %arg3[%c0_55, %c2_56, %c0_57, %c0_58], %794 {strides = array<i32>} : memref<1x8x16x64xf32, #tpu.memory_space<vmem>>, vector<1x1x16x32xf32>,
    %795 = vector.broadcast %787 : f32 to vector<16x32xf32>
    %796 = arith.mulf %773, %795 : vector<16x32xf32>
    %cst_59 = arith.constant 0.000000e+00 : f32
    %797 = vector.broadcast %cst_59 : f32 to vector<16x32xf32>
    %798 = arith.maximumf %796, %797 : vector<16x32xf32>
    %c0_60 = arith.constant 0 : index
    %c2_61 = arith.constant 2 : index
    %c0_62 = arith.constant 0 : index
    %c32_63 = arith.constant 32 : index
    %799 = vector.load %arg3[%c0_60, %c2_61, %c0_62, %c32_63] : memref<1x8x16x64xf32, #tpu.memory_space<vmem>>, vector<1x1x16x32xf32>
    %800 = vector.shape_cast %799 : vector<1x1x16x32xf32> to vector<16x32xf32>
    %801 = vector.shape_cast %798 : vector<16x32xf32> to vector<1x1x16x32xf32>
    tpu.vector_store %arg3[%c0_60, %c2_61, %c0_62, %c32_63], %801 {strides = array<i32>} : memref<1x8x16x64xf32, #tpu.memory_space<vmem>>, vector<1x1x16x32xf32>,
    %cst_64 = arith.constant 0.000000e+00 : f32
    %802 = vector.broadcast %cst_64 : f32 to vector<16x32xf32>
    %c3 = arith.constant 3 : index
    %803 = memref.load %arg2[%c3] : memref<384xf32, #tpu.memory_space<smem>>
    %804 = vector.broadcast %803 : f32 to vector<16x32xf32>
    %805 = arith.mulf %804, %23 : vector<16x32xf32>
    %806 = arith.addf %802, %805 : vector<16x32xf32>
    %c11 = arith.constant 11 : index
    %807 = memref.load %arg2[%c11] : memref<384xf32, #tpu.memory_space<smem>>
    %808 = vector.broadcast %807 : f32 to vector<16x32xf32>
    %809 = arith.mulf %808, %25 : vector<16x32xf32>
    %810 = arith.addf %806, %809 : vector<16x32xf32>
    %c19 = arith.constant 19 : index
    %811 = memref.load %arg2[%c19] : memref<384xf32, #tpu.memory_space<smem>>
    %812 = vector.broadcast %811 : f32 to vector<16x32xf32>
    %813 = arith.mulf %812, %27 : vector<16x32xf32>
    %814 = arith.addf %810, %813 : vector<16x32xf32>
    %c27 = arith.constant 27 : index
    %815 = memref.load %arg2[%c27] : memref<384xf32, #tpu.memory_space<smem>>
    %816 = vector.broadcast %815 : f32 to vector<16x32xf32>
    %817 = arith.mulf %816, %29 : vector<16x32xf32>
    %818 = arith.addf %814, %817 : vector<16x32xf32>
    %c35 = arith.constant 35 : index
    %819 = memref.load %arg2[%c35] : memref<384xf32, #tpu.memory_space<smem>>
    %820 = vector.broadcast %819 : f32 to vector<16x32xf32>
    %821 = arith.mulf %820, %31 : vector<16x32xf32>
    %822 = arith.addf %818, %821 : vector<16x32xf32>
    %c43 = arith.constant 43 : index
    %823 = memref.load %arg2[%c43] : memref<384xf32, #tpu.memory_space<smem>>
    %824 = vector.broadcast %823 : f32 to vector<16x32xf32>
    %825 = arith.mulf %824, %33 : vector<16x32xf32>
    %826 = arith.addf %822, %825 : vector<16x32xf32>
    %c51 = arith.constant 51 : index
    %827 = memref.load %arg2[%c51] : memref<384xf32, #tpu.memory_space<smem>>
    %828 = vector.broadcast %827 : f32 to vector<16x32xf32>
    %829 = arith.mulf %828, %35 : vector<16x32xf32>
    %830 = arith.addf %826, %829 : vector<16x32xf32>
    %c59 = arith.constant 59 : index
    %831 = memref.load %arg2[%c59] : memref<384xf32, #tpu.memory_space<smem>>
    %832 = vector.broadcast %831 : f32 to vector<16x32xf32>
    %833 = arith.mulf %832, %37 : vector<16x32xf32>
    %834 = arith.addf %830, %833 : vector<16x32xf32>
    %c67 = arith.constant 67 : index
    %835 = memref.load %arg2[%c67] : memref<384xf32, #tpu.memory_space<smem>>
    %836 = vector.broadcast %835 : f32 to vector<16x32xf32>
    %837 = arith.mulf %836, %39 : vector<16x32xf32>
    %838 = arith.addf %834, %837 : vector<16x32xf32>
    %c75 = arith.constant 75 : index
    %839 = memref.load %arg2[%c75] : memref<384xf32, #tpu.memory_space<smem>>
    %840 = vector.broadcast %839 : f32 to vector<16x32xf32>
    %841 = arith.mulf %840, %41 : vector<16x32xf32>
    %842 = arith.addf %838, %841 : vector<16x32xf32>
    %c83 = arith.constant 83 : index
    %843 = memref.load %arg2[%c83] : memref<384xf32, #tpu.memory_space<smem>>
    %844 = vector.broadcast %843 : f32 to vector<16x32xf32>
    %845 = arith.mulf %844, %43 : vector<16x32xf32>
    %846 = arith.addf %842, %845 : vector<16x32xf32>
    %c91 = arith.constant 91 : index
    %847 = memref.load %arg2[%c91] : memref<384xf32, #tpu.memory_space<smem>>
    %848 = vector.broadcast %847 : f32 to vector<16x32xf32>
    %849 = arith.mulf %848, %45 : vector<16x32xf32>
    %850 = arith.addf %846, %849 : vector<16x32xf32>
    %c99 = arith.constant 99 : index
    %851 = memref.load %arg2[%c99] : memref<384xf32, #tpu.memory_space<smem>>
    %852 = vector.broadcast %851 : f32 to vector<16x32xf32>
    %853 = arith.mulf %852, %47 : vector<16x32xf32>
    %854 = arith.addf %850, %853 : vector<16x32xf32>
    %c107 = arith.constant 107 : index
    %855 = memref.load %arg2[%c107] : memref<384xf32, #tpu.memory_space<smem>>
    %856 = vector.broadcast %855 : f32 to vector<16x32xf32>
    %857 = arith.mulf %856, %49 : vector<16x32xf32>
    %858 = arith.addf %854, %857 : vector<16x32xf32>
    %c115 = arith.constant 115 : index
    %859 = memref.load %arg2[%c115] : memref<384xf32, #tpu.memory_space<smem>>
    %860 = vector.broadcast %859 : f32 to vector<16x32xf32>
    %861 = arith.mulf %860, %51 : vector<16x32xf32>
    %862 = arith.addf %858, %861 : vector<16x32xf32>
    %c123 = arith.constant 123 : index
    %863 = memref.load %arg2[%c123] : memref<384xf32, #tpu.memory_space<smem>>
    %864 = vector.broadcast %863 : f32 to vector<16x32xf32>
    %865 = arith.mulf %864, %53 : vector<16x32xf32>
    %866 = arith.addf %862, %865 : vector<16x32xf32>
    %c131 = arith.constant 131 : index
    %867 = memref.load %arg2[%c131] : memref<384xf32, #tpu.memory_space<smem>>
    %868 = vector.broadcast %867 : f32 to vector<16x32xf32>
    %869 = arith.mulf %868, %55 : vector<16x32xf32>
    %870 = arith.addf %866, %869 : vector<16x32xf32>
    %c139 = arith.constant 139 : index
    %871 = memref.load %arg2[%c139] : memref<384xf32, #tpu.memory_space<smem>>
    %872 = vector.broadcast %871 : f32 to vector<16x32xf32>
    %873 = arith.mulf %872, %57 : vector<16x32xf32>
    %874 = arith.addf %870, %873 : vector<16x32xf32>
    %c147 = arith.constant 147 : index
    %875 = memref.load %arg2[%c147] : memref<384xf32, #tpu.memory_space<smem>>
    %876 = vector.broadcast %875 : f32 to vector<16x32xf32>
    %877 = arith.mulf %876, %59 : vector<16x32xf32>
    %878 = arith.addf %874, %877 : vector<16x32xf32>
    %c155 = arith.constant 155 : index
    %879 = memref.load %arg2[%c155] : memref<384xf32, #tpu.memory_space<smem>>
    %880 = vector.broadcast %879 : f32 to vector<16x32xf32>
    %881 = arith.mulf %880, %61 : vector<16x32xf32>
    %882 = arith.addf %878, %881 : vector<16x32xf32>
    %c163 = arith.constant 163 : index
    %883 = memref.load %arg2[%c163] : memref<384xf32, #tpu.memory_space<smem>>
    %884 = vector.broadcast %883 : f32 to vector<16x32xf32>
    %885 = arith.mulf %884, %63 : vector<16x32xf32>
    %886 = arith.addf %882, %885 : vector<16x32xf32>
    %c171 = arith.constant 171 : index
    %887 = memref.load %arg2[%c171] : memref<384xf32, #tpu.memory_space<smem>>
    %888 = vector.broadcast %887 : f32 to vector<16x32xf32>
    %889 = arith.mulf %888, %65 : vector<16x32xf32>
    %890 = arith.addf %886, %889 : vector<16x32xf32>
    %c179 = arith.constant 179 : index
    %891 = memref.load %arg2[%c179] : memref<384xf32, #tpu.memory_space<smem>>
    %892 = vector.broadcast %891 : f32 to vector<16x32xf32>
    %893 = arith.mulf %892, %67 : vector<16x32xf32>
    %894 = arith.addf %890, %893 : vector<16x32xf32>
    %c187 = arith.constant 187 : index
    %895 = memref.load %arg2[%c187] : memref<384xf32, #tpu.memory_space<smem>>
    %896 = vector.broadcast %895 : f32 to vector<16x32xf32>
    %897 = arith.mulf %896, %69 : vector<16x32xf32>
    %898 = arith.addf %894, %897 : vector<16x32xf32>
    %cst_65 = arith.constant 0.000000e+00 : f32
    %899 = vector.broadcast %cst_65 : f32 to vector<16x32xf32>
    %c195 = arith.constant 195 : index
    %900 = memref.load %arg2[%c195] : memref<384xf32, #tpu.memory_space<smem>>
    %901 = vector.broadcast %900 : f32 to vector<16x32xf32>
    %902 = arith.mulf %901, %47 : vector<16x32xf32>
    %903 = arith.addf %899, %902 : vector<16x32xf32>
    %c203 = arith.constant 203 : index
    %904 = memref.load %arg2[%c203] : memref<384xf32, #tpu.memory_space<smem>>
    %905 = vector.broadcast %904 : f32 to vector<16x32xf32>
    %906 = arith.mulf %905, %49 : vector<16x32xf32>
    %907 = arith.addf %903, %906 : vector<16x32xf32>
    %c211 = arith.constant 211 : index
    %908 = memref.load %arg2[%c211] : memref<384xf32, #tpu.memory_space<smem>>
    %909 = vector.broadcast %908 : f32 to vector<16x32xf32>
    %910 = arith.mulf %909, %51 : vector<16x32xf32>
    %911 = arith.addf %907, %910 : vector<16x32xf32>
    %c219 = arith.constant 219 : index
    %912 = memref.load %arg2[%c219] : memref<384xf32, #tpu.memory_space<smem>>
    %913 = vector.broadcast %912 : f32 to vector<16x32xf32>
    %914 = arith.mulf %913, %53 : vector<16x32xf32>
    %915 = arith.addf %911, %914 : vector<16x32xf32>
    %c227 = arith.constant 227 : index
    %916 = memref.load %arg2[%c227] : memref<384xf32, #tpu.memory_space<smem>>
    %917 = vector.broadcast %916 : f32 to vector<16x32xf32>
    %918 = arith.mulf %917, %55 : vector<16x32xf32>
    %919 = arith.addf %915, %918 : vector<16x32xf32>
    %c235 = arith.constant 235 : index
    %920 = memref.load %arg2[%c235] : memref<384xf32, #tpu.memory_space<smem>>
    %921 = vector.broadcast %920 : f32 to vector<16x32xf32>
    %922 = arith.mulf %921, %57 : vector<16x32xf32>
    %923 = arith.addf %919, %922 : vector<16x32xf32>
    %c243 = arith.constant 243 : index
    %924 = memref.load %arg2[%c243] : memref<384xf32, #tpu.memory_space<smem>>
    %925 = vector.broadcast %924 : f32 to vector<16x32xf32>
    %926 = arith.mulf %925, %59 : vector<16x32xf32>
    %927 = arith.addf %923, %926 : vector<16x32xf32>
    %c251 = arith.constant 251 : index
    %928 = memref.load %arg2[%c251] : memref<384xf32, #tpu.memory_space<smem>>
    %929 = vector.broadcast %928 : f32 to vector<16x32xf32>
    %930 = arith.mulf %929, %61 : vector<16x32xf32>
    %931 = arith.addf %927, %930 : vector<16x32xf32>
    %c259 = arith.constant 259 : index
    %932 = memref.load %arg2[%c259] : memref<384xf32, #tpu.memory_space<smem>>
    %933 = vector.broadcast %932 : f32 to vector<16x32xf32>
    %934 = arith.mulf %933, %63 : vector<16x32xf32>
    %935 = arith.addf %931, %934 : vector<16x32xf32>
    %c267 = arith.constant 267 : index
    %936 = memref.load %arg2[%c267] : memref<384xf32, #tpu.memory_space<smem>>
    %937 = vector.broadcast %936 : f32 to vector<16x32xf32>
    %938 = arith.mulf %937, %65 : vector<16x32xf32>
    %939 = arith.addf %935, %938 : vector<16x32xf32>
    %c275 = arith.constant 275 : index
    %940 = memref.load %arg2[%c275] : memref<384xf32, #tpu.memory_space<smem>>
    %941 = vector.broadcast %940 : f32 to vector<16x32xf32>
    %942 = arith.mulf %941, %67 : vector<16x32xf32>
    %943 = arith.addf %939, %942 : vector<16x32xf32>
    %c283 = arith.constant 283 : index
    %944 = memref.load %arg2[%c283] : memref<384xf32, #tpu.memory_space<smem>>
    %945 = vector.broadcast %944 : f32 to vector<16x32xf32>
    %946 = arith.mulf %945, %69 : vector<16x32xf32>
    %947 = arith.addf %943, %946 : vector<16x32xf32>
    %c291 = arith.constant 291 : index
    %948 = memref.load %arg2[%c291] : memref<384xf32, #tpu.memory_space<smem>>
    %949 = vector.broadcast %948 : f32 to vector<16x32xf32>
    %950 = arith.mulf %949, %71 : vector<16x32xf32>
    %951 = arith.addf %947, %950 : vector<16x32xf32>
    %c299 = arith.constant 299 : index
    %952 = memref.load %arg2[%c299] : memref<384xf32, #tpu.memory_space<smem>>
    %953 = vector.broadcast %952 : f32 to vector<16x32xf32>
    %954 = arith.mulf %953, %73 : vector<16x32xf32>
    %955 = arith.addf %951, %954 : vector<16x32xf32>
    %c307 = arith.constant 307 : index
    %956 = memref.load %arg2[%c307] : memref<384xf32, #tpu.memory_space<smem>>
    %957 = vector.broadcast %956 : f32 to vector<16x32xf32>
    %958 = arith.mulf %957, %75 : vector<16x32xf32>
    %959 = arith.addf %955, %958 : vector<16x32xf32>
    %c315 = arith.constant 315 : index
    %960 = memref.load %arg2[%c315] : memref<384xf32, #tpu.memory_space<smem>>
    %961 = vector.broadcast %960 : f32 to vector<16x32xf32>
    %962 = arith.mulf %961, %77 : vector<16x32xf32>
    %963 = arith.addf %959, %962 : vector<16x32xf32>
    %c323 = arith.constant 323 : index
    %964 = memref.load %arg2[%c323] : memref<384xf32, #tpu.memory_space<smem>>
    %965 = vector.broadcast %964 : f32 to vector<16x32xf32>
    %966 = arith.mulf %965, %79 : vector<16x32xf32>
    %967 = arith.addf %963, %966 : vector<16x32xf32>
    %c331 = arith.constant 331 : index
    %968 = memref.load %arg2[%c331] : memref<384xf32, #tpu.memory_space<smem>>
    %969 = vector.broadcast %968 : f32 to vector<16x32xf32>
    %970 = arith.mulf %969, %81 : vector<16x32xf32>
    %971 = arith.addf %967, %970 : vector<16x32xf32>
    %c339 = arith.constant 339 : index
    %972 = memref.load %arg2[%c339] : memref<384xf32, #tpu.memory_space<smem>>
    %973 = vector.broadcast %972 : f32 to vector<16x32xf32>
    %974 = arith.mulf %973, %83 : vector<16x32xf32>
    %975 = arith.addf %971, %974 : vector<16x32xf32>
    %c347 = arith.constant 347 : index
    %976 = memref.load %arg2[%c347] : memref<384xf32, #tpu.memory_space<smem>>
    %977 = vector.broadcast %976 : f32 to vector<16x32xf32>
    %978 = arith.mulf %977, %85 : vector<16x32xf32>
    %979 = arith.addf %975, %978 : vector<16x32xf32>
    %c355 = arith.constant 355 : index
    %980 = memref.load %arg2[%c355] : memref<384xf32, #tpu.memory_space<smem>>
    %981 = vector.broadcast %980 : f32 to vector<16x32xf32>
    %982 = arith.mulf %981, %87 : vector<16x32xf32>
    %983 = arith.addf %979, %982 : vector<16x32xf32>
    %c363 = arith.constant 363 : index
    %984 = memref.load %arg2[%c363] : memref<384xf32, #tpu.memory_space<smem>>
    %985 = vector.broadcast %984 : f32 to vector<16x32xf32>
    %986 = arith.mulf %985, %89 : vector<16x32xf32>
    %987 = arith.addf %983, %986 : vector<16x32xf32>
    %c371 = arith.constant 371 : index
    %988 = memref.load %arg2[%c371] : memref<384xf32, #tpu.memory_space<smem>>
    %989 = vector.broadcast %988 : f32 to vector<16x32xf32>
    %990 = arith.mulf %989, %91 : vector<16x32xf32>
    %991 = arith.addf %987, %990 : vector<16x32xf32>
    %c379 = arith.constant 379 : index
    %992 = memref.load %arg2[%c379] : memref<384xf32, #tpu.memory_space<smem>>
    %993 = vector.broadcast %992 : f32 to vector<16x32xf32>
    %994 = arith.mulf %993, %93 : vector<16x32xf32>
    %995 = arith.addf %991, %994 : vector<16x32xf32>
    %996 = vector.shape_cast %898 : vector<16x32xf32> to vector<1x16x32xf32>
    %cst_66 = arith.constant dense<0.000000e+00> : vector<1xf32>
    %997 = vector.multi_reduction <add>, %996, %cst_66 [1, 2] : vector<1x16x32xf32> to vector<1xf32>
    %998 = vector.shape_cast %997 : vector<1xf32> to vector<1x1x1xf32>
    %999 = vector.extract %998[0, 0, 0] : f32 from vector<1x1x1xf32>
    %1000 = vector.shape_cast %995 : vector<16x32xf32> to vector<1x16x32xf32>
    %cst_67 = arith.constant dense<0.000000e+00> : vector<1xf32>
    %1001 = vector.multi_reduction <add>, %1000, %cst_67 [1, 2] : vector<1x16x32xf32> to vector<1xf32>
    %1002 = vector.shape_cast %1001 : vector<1xf32> to vector<1x1x1xf32>
    %1003 = vector.extract %1002[0, 0, 0] : f32 from vector<1x1x1xf32>
    %1004 = arith.addf %999, %1003 : f32
    %cst_68 = arith.constant 9.765625E-4 : f32
    %1005 = arith.mulf %1004, %cst_68 : f32
    %1006 = vector.broadcast %1005 : f32 to vector<16x32xf32>
    %1007 = arith.subf %898, %1006 : vector<16x32xf32>
    %1008 = vector.broadcast %1005 : f32 to vector<16x32xf32>
    %1009 = arith.subf %995, %1008 : vector<16x32xf32>
    %1010 = arith.mulf %1007, %1007 : vector<16x32xf32>
    %1011 = vector.shape_cast %1010 : vector<16x32xf32> to vector<1x16x32xf32>
    %cst_69 = arith.constant dense<0.000000e+00> : vector<1xf32>
    %1012 = vector.multi_reduction <add>, %1011, %cst_69 [1, 2] : vector<1x16x32xf32> to vector<1xf32>
    %1013 = vector.shape_cast %1012 : vector<1xf32> to vector<1x1x1xf32>
    %1014 = vector.extract %1013[0, 0, 0] : f32 from vector<1x1x1xf32>
    %1015 = arith.mulf %1009, %1009 : vector<16x32xf32>
    %1016 = vector.shape_cast %1015 : vector<16x32xf32> to vector<1x16x32xf32>
    %cst_70 = arith.constant dense<0.000000e+00> : vector<1xf32>
    %1017 = vector.multi_reduction <add>, %1016, %cst_70 [1, 2] : vector<1x16x32xf32> to vector<1xf32>
    %1018 = vector.shape_cast %1017 : vector<1xf32> to vector<1x1x1xf32>
    %1019 = vector.extract %1018[0, 0, 0] : f32 from vector<1x1x1xf32>
    %1020 = arith.addf %1014, %1019 : f32
    %cst_71 = arith.constant 9.765625E-4 : f32
    %1021 = arith.mulf %1020, %cst_71 : f32
    %cst_72 = arith.constant 9.99999974E-6 : f32
    %1022 = arith.addf %1021, %cst_72 : f32
    %1023 = math.rsqrt %1022 : f32
    %1024 = vector.broadcast %1023 : f32 to vector<16x32xf32>
    %1025 = arith.mulf %1007, %1024 : vector<16x32xf32>
    %cst_73 = arith.constant 0.000000e+00 : f32
    %1026 = vector.broadcast %cst_73 : f32 to vector<16x32xf32>
    %1027 = arith.maximumf %1025, %1026 : vector<16x32xf32>
    %c0_74 = arith.constant 0 : index
    %c3_75 = arith.constant 3 : index
    %c0_76 = arith.constant 0 : index
    %c0_77 = arith.constant 0 : index
    %1028 = vector.load %arg3[%c0_74, %c3_75, %c0_76, %c0_77] : memref<1x8x16x64xf32, #tpu.memory_space<vmem>>, vector<1x1x16x32xf32>
    %1029 = vector.shape_cast %1028 : vector<1x1x16x32xf32> to vector<16x32xf32>
    %1030 = vector.shape_cast %1027 : vector<16x32xf32> to vector<1x1x16x32xf32>
    tpu.vector_store %arg3[%c0_74, %c3_75, %c0_76, %c0_77], %1030 {strides = array<i32>} : memref<1x8x16x64xf32, #tpu.memory_space<vmem>>, vector<1x1x16x32xf32>,
    %1031 = vector.broadcast %1023 : f32 to vector<16x32xf32>
    %1032 = arith.mulf %1009, %1031 : vector<16x32xf32>
    %cst_78 = arith.constant 0.000000e+00 : f32
    %1033 = vector.broadcast %cst_78 : f32 to vector<16x32xf32>
    %1034 = arith.maximumf %1032, %1033 : vector<16x32xf32>
    %c0_79 = arith.constant 0 : index
    %c3_80 = arith.constant 3 : index
    %c0_81 = arith.constant 0 : index
    %c32_82 = arith.constant 32 : index
    %1035 = vector.load %arg3[%c0_79, %c3_80, %c0_81, %c32_82] : memref<1x8x16x64xf32, #tpu.memory_space<vmem>>, vector<1x1x16x32xf32>
    %1036 = vector.shape_cast %1035 : vector<1x1x16x32xf32> to vector<16x32xf32>
    %1037 = vector.shape_cast %1034 : vector<16x32xf32> to vector<1x1x16x32xf32>
    tpu.vector_store %arg3[%c0_79, %c3_80, %c0_81, %c32_82], %1037 {strides = array<i32>} : memref<1x8x16x64xf32, #tpu.memory_space<vmem>>, vector<1x1x16x32xf32>,
    %cst_83 = arith.constant 0.000000e+00 : f32
    %1038 = vector.broadcast %cst_83 : f32 to vector<16x32xf32>
    %c4 = arith.constant 4 : index
    %1039 = memref.load %arg2[%c4] : memref<384xf32, #tpu.memory_space<smem>>
    %1040 = vector.broadcast %1039 : f32 to vector<16x32xf32>
    %1041 = arith.mulf %1040, %23 : vector<16x32xf32>
    %1042 = arith.addf %1038, %1041 : vector<16x32xf32>
    %c12 = arith.constant 12 : index
    %1043 = memref.load %arg2[%c12] : memref<384xf32, #tpu.memory_space<smem>>
    %1044 = vector.broadcast %1043 : f32 to vector<16x32xf32>
    %1045 = arith.mulf %1044, %25 : vector<16x32xf32>
    %1046 = arith.addf %1042, %1045 : vector<16x32xf32>
    %c20 = arith.constant 20 : index
    %1047 = memref.load %arg2[%c20] : memref<384xf32, #tpu.memory_space<smem>>
    %1048 = vector.broadcast %1047 : f32 to vector<16x32xf32>
    %1049 = arith.mulf %1048, %27 : vector<16x32xf32>
    %1050 = arith.addf %1046, %1049 : vector<16x32xf32>
    %c28 = arith.constant 28 : index
    %1051 = memref.load %arg2[%c28] : memref<384xf32, #tpu.memory_space<smem>>
    %1052 = vector.broadcast %1051 : f32 to vector<16x32xf32>
    %1053 = arith.mulf %1052, %29 : vector<16x32xf32>
    %1054 = arith.addf %1050, %1053 : vector<16x32xf32>
    %c36 = arith.constant 36 : index
    %1055 = memref.load %arg2[%c36] : memref<384xf32, #tpu.memory_space<smem>>
    %1056 = vector.broadcast %1055 : f32 to vector<16x32xf32>
    %1057 = arith.mulf %1056, %31 : vector<16x32xf32>
    %1058 = arith.addf %1054, %1057 : vector<16x32xf32>
    %c44 = arith.constant 44 : index
    %1059 = memref.load %arg2[%c44] : memref<384xf32, #tpu.memory_space<smem>>
    %1060 = vector.broadcast %1059 : f32 to vector<16x32xf32>
    %1061 = arith.mulf %1060, %33 : vector<16x32xf32>
    %1062 = arith.addf %1058, %1061 : vector<16x32xf32>
    %c52 = arith.constant 52 : index
    %1063 = memref.load %arg2[%c52] : memref<384xf32, #tpu.memory_space<smem>>
    %1064 = vector.broadcast %1063 : f32 to vector<16x32xf32>
    %1065 = arith.mulf %1064, %35 : vector<16x32xf32>
    %1066 = arith.addf %1062, %1065 : vector<16x32xf32>
    %c60 = arith.constant 60 : index
    %1067 = memref.load %arg2[%c60] : memref<384xf32, #tpu.memory_space<smem>>
    %1068 = vector.broadcast %1067 : f32 to vector<16x32xf32>
    %1069 = arith.mulf %1068, %37 : vector<16x32xf32>
    %1070 = arith.addf %1066, %1069 : vector<16x32xf32>
    %c68 = arith.constant 68 : index
    %1071 = memref.load %arg2[%c68] : memref<384xf32, #tpu.memory_space<smem>>
    %1072 = vector.broadcast %1071 : f32 to vector<16x32xf32>
    %1073 = arith.mulf %1072, %39 : vector<16x32xf32>
    %1074 = arith.addf %1070, %1073 : vector<16x32xf32>
    %c76 = arith.constant 76 : index
    %1075 = memref.load %arg2[%c76] : memref<384xf32, #tpu.memory_space<smem>>
    %1076 = vector.broadcast %1075 : f32 to vector<16x32xf32>
    %1077 = arith.mulf %1076, %41 : vector<16x32xf32>
    %1078 = arith.addf %1074, %1077 : vector<16x32xf32>
    %c84 = arith.constant 84 : index
    %1079 = memref.load %arg2[%c84] : memref<384xf32, #tpu.memory_space<smem>>
    %1080 = vector.broadcast %1079 : f32 to vector<16x32xf32>
    %1081 = arith.mulf %1080, %43 : vector<16x32xf32>
    %1082 = arith.addf %1078, %1081 : vector<16x32xf32>
    %c92 = arith.constant 92 : index
    %1083 = memref.load %arg2[%c92] : memref<384xf32, #tpu.memory_space<smem>>
    %1084 = vector.broadcast %1083 : f32 to vector<16x32xf32>
    %1085 = arith.mulf %1084, %45 : vector<16x32xf32>
    %1086 = arith.addf %1082, %1085 : vector<16x32xf32>
    %c100 = arith.constant 100 : index
    %1087 = memref.load %arg2[%c100] : memref<384xf32, #tpu.memory_space<smem>>
    %1088 = vector.broadcast %1087 : f32 to vector<16x32xf32>
    %1089 = arith.mulf %1088, %47 : vector<16x32xf32>
    %1090 = arith.addf %1086, %1089 : vector<16x32xf32>
    %c108 = arith.constant 108 : index
    %1091 = memref.load %arg2[%c108] : memref<384xf32, #tpu.memory_space<smem>>
    %1092 = vector.broadcast %1091 : f32 to vector<16x32xf32>
    %1093 = arith.mulf %1092, %49 : vector<16x32xf32>
    %1094 = arith.addf %1090, %1093 : vector<16x32xf32>
    %c116 = arith.constant 116 : index
    %1095 = memref.load %arg2[%c116] : memref<384xf32, #tpu.memory_space<smem>>
    %1096 = vector.broadcast %1095 : f32 to vector<16x32xf32>
    %1097 = arith.mulf %1096, %51 : vector<16x32xf32>
    %1098 = arith.addf %1094, %1097 : vector<16x32xf32>
    %c124 = arith.constant 124 : index
    %1099 = memref.load %arg2[%c124] : memref<384xf32, #tpu.memory_space<smem>>
    %1100 = vector.broadcast %1099 : f32 to vector<16x32xf32>
    %1101 = arith.mulf %1100, %53 : vector<16x32xf32>
    %1102 = arith.addf %1098, %1101 : vector<16x32xf32>
    %c132 = arith.constant 132 : index
    %1103 = memref.load %arg2[%c132] : memref<384xf32, #tpu.memory_space<smem>>
    %1104 = vector.broadcast %1103 : f32 to vector<16x32xf32>
    %1105 = arith.mulf %1104, %55 : vector<16x32xf32>
    %1106 = arith.addf %1102, %1105 : vector<16x32xf32>
    %c140 = arith.constant 140 : index
    %1107 = memref.load %arg2[%c140] : memref<384xf32, #tpu.memory_space<smem>>
    %1108 = vector.broadcast %1107 : f32 to vector<16x32xf32>
    %1109 = arith.mulf %1108, %57 : vector<16x32xf32>
    %1110 = arith.addf %1106, %1109 : vector<16x32xf32>
    %c148 = arith.constant 148 : index
    %1111 = memref.load %arg2[%c148] : memref<384xf32, #tpu.memory_space<smem>>
    %1112 = vector.broadcast %1111 : f32 to vector<16x32xf32>
    %1113 = arith.mulf %1112, %59 : vector<16x32xf32>
    %1114 = arith.addf %1110, %1113 : vector<16x32xf32>
    %c156 = arith.constant 156 : index
    %1115 = memref.load %arg2[%c156] : memref<384xf32, #tpu.memory_space<smem>>
    %1116 = vector.broadcast %1115 : f32 to vector<16x32xf32>
    %1117 = arith.mulf %1116, %61 : vector<16x32xf32>
    %1118 = arith.addf %1114, %1117 : vector<16x32xf32>
    %c164 = arith.constant 164 : index
    %1119 = memref.load %arg2[%c164] : memref<384xf32, #tpu.memory_space<smem>>
    %1120 = vector.broadcast %1119 : f32 to vector<16x32xf32>
    %1121 = arith.mulf %1120, %63 : vector<16x32xf32>
    %1122 = arith.addf %1118, %1121 : vector<16x32xf32>
    %c172 = arith.constant 172 : index
    %1123 = memref.load %arg2[%c172] : memref<384xf32, #tpu.memory_space<smem>>
    %1124 = vector.broadcast %1123 : f32 to vector<16x32xf32>
    %1125 = arith.mulf %1124, %65 : vector<16x32xf32>
    %1126 = arith.addf %1122, %1125 : vector<16x32xf32>
    %c180 = arith.constant 180 : index
    %1127 = memref.load %arg2[%c180] : memref<384xf32, #tpu.memory_space<smem>>
    %1128 = vector.broadcast %1127 : f32 to vector<16x32xf32>
    %1129 = arith.mulf %1128, %67 : vector<16x32xf32>
    %1130 = arith.addf %1126, %1129 : vector<16x32xf32>
    %c188 = arith.constant 188 : index
    %1131 = memref.load %arg2[%c188] : memref<384xf32, #tpu.memory_space<smem>>
    %1132 = vector.broadcast %1131 : f32 to vector<16x32xf32>
    %1133 = arith.mulf %1132, %69 : vector<16x32xf32>
    %1134 = arith.addf %1130, %1133 : vector<16x32xf32>
    %cst_84 = arith.constant 0.000000e+00 : f32
    %1135 = vector.broadcast %cst_84 : f32 to vector<16x32xf32>
    %c196 = arith.constant 196 : index
    %1136 = memref.load %arg2[%c196] : memref<384xf32, #tpu.memory_space<smem>>
    %1137 = vector.broadcast %1136 : f32 to vector<16x32xf32>
    %1138 = arith.mulf %1137, %47 : vector<16x32xf32>
    %1139 = arith.addf %1135, %1138 : vector<16x32xf32>
    %c204 = arith.constant 204 : index
    %1140 = memref.load %arg2[%c204] : memref<384xf32, #tpu.memory_space<smem>>
    %1141 = vector.broadcast %1140 : f32 to vector<16x32xf32>
    %1142 = arith.mulf %1141, %49 : vector<16x32xf32>
    %1143 = arith.addf %1139, %1142 : vector<16x32xf32>
    %c212 = arith.constant 212 : index
    %1144 = memref.load %arg2[%c212] : memref<384xf32, #tpu.memory_space<smem>>
    %1145 = vector.broadcast %1144 : f32 to vector<16x32xf32>
    %1146 = arith.mulf %1145, %51 : vector<16x32xf32>
    %1147 = arith.addf %1143, %1146 : vector<16x32xf32>
    %c220 = arith.constant 220 : index
    %1148 = memref.load %arg2[%c220] : memref<384xf32, #tpu.memory_space<smem>>
    %1149 = vector.broadcast %1148 : f32 to vector<16x32xf32>
    %1150 = arith.mulf %1149, %53 : vector<16x32xf32>
    %1151 = arith.addf %1147, %1150 : vector<16x32xf32>
    %c228 = arith.constant 228 : index
    %1152 = memref.load %arg2[%c228] : memref<384xf32, #tpu.memory_space<smem>>
    %1153 = vector.broadcast %1152 : f32 to vector<16x32xf32>
    %1154 = arith.mulf %1153, %55 : vector<16x32xf32>
    %1155 = arith.addf %1151, %1154 : vector<16x32xf32>
    %c236 = arith.constant 236 : index
    %1156 = memref.load %arg2[%c236] : memref<384xf32, #tpu.memory_space<smem>>
    %1157 = vector.broadcast %1156 : f32 to vector<16x32xf32>
    %1158 = arith.mulf %1157, %57 : vector<16x32xf32>
    %1159 = arith.addf %1155, %1158 : vector<16x32xf32>
    %c244 = arith.constant 244 : index
    %1160 = memref.load %arg2[%c244] : memref<384xf32, #tpu.memory_space<smem>>
    %1161 = vector.broadcast %1160 : f32 to vector<16x32xf32>
    %1162 = arith.mulf %1161, %59 : vector<16x32xf32>
    %1163 = arith.addf %1159, %1162 : vector<16x32xf32>
    %c252 = arith.constant 252 : index
    %1164 = memref.load %arg2[%c252] : memref<384xf32, #tpu.memory_space<smem>>
    %1165 = vector.broadcast %1164 : f32 to vector<16x32xf32>
    %1166 = arith.mulf %1165, %61 : vector<16x32xf32>
    %1167 = arith.addf %1163, %1166 : vector<16x32xf32>
    %c260 = arith.constant 260 : index
    %1168 = memref.load %arg2[%c260] : memref<384xf32, #tpu.memory_space<smem>>
    %1169 = vector.broadcast %1168 : f32 to vector<16x32xf32>
    %1170 = arith.mulf %1169, %63 : vector<16x32xf32>
    %1171 = arith.addf %1167, %1170 : vector<16x32xf32>
    %c268 = arith.constant 268 : index
    %1172 = memref.load %arg2[%c268] : memref<384xf32, #tpu.memory_space<smem>>
    %1173 = vector.broadcast %1172 : f32 to vector<16x32xf32>
    %1174 = arith.mulf %1173, %65 : vector<16x32xf32>
    %1175 = arith.addf %1171, %1174 : vector<16x32xf32>
    %c276 = arith.constant 276 : index
    %1176 = memref.load %arg2[%c276] : memref<384xf32, #tpu.memory_space<smem>>
    %1177 = vector.broadcast %1176 : f32 to vector<16x32xf32>
    %1178 = arith.mulf %1177, %67 : vector<16x32xf32>
    %1179 = arith.addf %1175, %1178 : vector<16x32xf32>
    %c284 = arith.constant 284 : index
    %1180 = memref.load %arg2[%c284] : memref<384xf32, #tpu.memory_space<smem>>
    %1181 = vector.broadcast %1180 : f32 to vector<16x32xf32>
    %1182 = arith.mulf %1181, %69 : vector<16x32xf32>
    %1183 = arith.addf %1179, %1182 : vector<16x32xf32>
    %c292 = arith.constant 292 : index
    %1184 = memref.load %arg2[%c292] : memref<384xf32, #tpu.memory_space<smem>>
    %1185 = vector.broadcast %1184 : f32 to vector<16x32xf32>
    %1186 = arith.mulf %1185, %71 : vector<16x32xf32>
    %1187 = arith.addf %1183, %1186 : vector<16x32xf32>
    %c300 = arith.constant 300 : index
    %1188 = memref.load %arg2[%c300] : memref<384xf32, #tpu.memory_space<smem>>
    %1189 = vector.broadcast %1188 : f32 to vector<16x32xf32>
    %1190 = arith.mulf %1189, %73 : vector<16x32xf32>
    %1191 = arith.addf %1187, %1190 : vector<16x32xf32>
    %c308 = arith.constant 308 : index
    %1192 = memref.load %arg2[%c308] : memref<384xf32, #tpu.memory_space<smem>>
    %1193 = vector.broadcast %1192 : f32 to vector<16x32xf32>
    %1194 = arith.mulf %1193, %75 : vector<16x32xf32>
    %1195 = arith.addf %1191, %1194 : vector<16x32xf32>
    %c316 = arith.constant 316 : index
    %1196 = memref.load %arg2[%c316] : memref<384xf32, #tpu.memory_space<smem>>
    %1197 = vector.broadcast %1196 : f32 to vector<16x32xf32>
    %1198 = arith.mulf %1197, %77 : vector<16x32xf32>
    %1199 = arith.addf %1195, %1198 : vector<16x32xf32>
    %c324 = arith.constant 324 : index
    %1200 = memref.load %arg2[%c324] : memref<384xf32, #tpu.memory_space<smem>>
    %1201 = vector.broadcast %1200 : f32 to vector<16x32xf32>
    %1202 = arith.mulf %1201, %79 : vector<16x32xf32>
    %1203 = arith.addf %1199, %1202 : vector<16x32xf32>
    %c332 = arith.constant 332 : index
    %1204 = memref.load %arg2[%c332] : memref<384xf32, #tpu.memory_space<smem>>
    %1205 = vector.broadcast %1204 : f32 to vector<16x32xf32>
    %1206 = arith.mulf %1205, %81 : vector<16x32xf32>
    %1207 = arith.addf %1203, %1206 : vector<16x32xf32>
    %c340 = arith.constant 340 : index
    %1208 = memref.load %arg2[%c340] : memref<384xf32, #tpu.memory_space<smem>>
    %1209 = vector.broadcast %1208 : f32 to vector<16x32xf32>
    %1210 = arith.mulf %1209, %83 : vector<16x32xf32>
    %1211 = arith.addf %1207, %1210 : vector<16x32xf32>
    %c348 = arith.constant 348 : index
    %1212 = memref.load %arg2[%c348] : memref<384xf32, #tpu.memory_space<smem>>
    %1213 = vector.broadcast %1212 : f32 to vector<16x32xf32>
    %1214 = arith.mulf %1213, %85 : vector<16x32xf32>
    %1215 = arith.addf %1211, %1214 : vector<16x32xf32>
    %c356 = arith.constant 356 : index
    %1216 = memref.load %arg2[%c356] : memref<384xf32, #tpu.memory_space<smem>>
    %1217 = vector.broadcast %1216 : f32 to vector<16x32xf32>
    %1218 = arith.mulf %1217, %87 : vector<16x32xf32>
    %1219 = arith.addf %1215, %1218 : vector<16x32xf32>
    %c364 = arith.constant 364 : index
    %1220 = memref.load %arg2[%c364] : memref<384xf32, #tpu.memory_space<smem>>
    %1221 = vector.broadcast %1220 : f32 to vector<16x32xf32>
    %1222 = arith.mulf %1221, %89 : vector<16x32xf32>
    %1223 = arith.addf %1219, %1222 : vector<16x32xf32>
    %c372 = arith.constant 372 : index
    %1224 = memref.load %arg2[%c372] : memref<384xf32, #tpu.memory_space<smem>>
    %1225 = vector.broadcast %1224 : f32 to vector<16x32xf32>
    %1226 = arith.mulf %1225, %91 : vector<16x32xf32>
    %1227 = arith.addf %1223, %1226 : vector<16x32xf32>
    %c380 = arith.constant 380 : index
    %1228 = memref.load %arg2[%c380] : memref<384xf32, #tpu.memory_space<smem>>
    %1229 = vector.broadcast %1228 : f32 to vector<16x32xf32>
    %1230 = arith.mulf %1229, %93 : vector<16x32xf32>
    %1231 = arith.addf %1227, %1230 : vector<16x32xf32>
    %1232 = vector.shape_cast %1134 : vector<16x32xf32> to vector<1x16x32xf32>
    %cst_85 = arith.constant dense<0.000000e+00> : vector<1xf32>
    %1233 = vector.multi_reduction <add>, %1232, %cst_85 [1, 2] : vector<1x16x32xf32> to vector<1xf32>
    %1234 = vector.shape_cast %1233 : vector<1xf32> to vector<1x1x1xf32>
    %1235 = vector.extract %1234[0, 0, 0] : f32 from vector<1x1x1xf32>
    %1236 = vector.shape_cast %1231 : vector<16x32xf32> to vector<1x16x32xf32>
    %cst_86 = arith.constant dense<0.000000e+00> : vector<1xf32>
    %1237 = vector.multi_reduction <add>, %1236, %cst_86 [1, 2] : vector<1x16x32xf32> to vector<1xf32>
    %1238 = vector.shape_cast %1237 : vector<1xf32> to vector<1x1x1xf32>
    %1239 = vector.extract %1238[0, 0, 0] : f32 from vector<1x1x1xf32>
    %1240 = arith.addf %1235, %1239 : f32
    %cst_87 = arith.constant 9.765625E-4 : f32
    %1241 = arith.mulf %1240, %cst_87 : f32
    %1242 = vector.broadcast %1241 : f32 to vector<16x32xf32>
    %1243 = arith.subf %1134, %1242 : vector<16x32xf32>
    %1244 = vector.broadcast %1241 : f32 to vector<16x32xf32>
    %1245 = arith.subf %1231, %1244 : vector<16x32xf32>
    %1246 = arith.mulf %1243, %1243 : vector<16x32xf32>
    %1247 = vector.shape_cast %1246 : vector<16x32xf32> to vector<1x16x32xf32>
    %cst_88 = arith.constant dense<0.000000e+00> : vector<1xf32>
    %1248 = vector.multi_reduction <add>, %1247, %cst_88 [1, 2] : vector<1x16x32xf32> to vector<1xf32>
    %1249 = vector.shape_cast %1248 : vector<1xf32> to vector<1x1x1xf32>
    %1250 = vector.extract %1249[0, 0, 0] : f32 from vector<1x1x1xf32>
    %1251 = arith.mulf %1245, %1245 : vector<16x32xf32>
    %1252 = vector.shape_cast %1251 : vector<16x32xf32> to vector<1x16x32xf32>
    %cst_89 = arith.constant dense<0.000000e+00> : vector<1xf32>
    %1253 = vector.multi_reduction <add>, %1252, %cst_89 [1, 2] : vector<1x16x32xf32> to vector<1xf32>
    %1254 = vector.shape_cast %1253 : vector<1xf32> to vector<1x1x1xf32>
    %1255 = vector.extract %1254[0, 0, 0] : f32 from vector<1x1x1xf32>
    %1256 = arith.addf %1250, %1255 : f32
    %cst_90 = arith.constant 9.765625E-4 : f32
    %1257 = arith.mulf %1256, %cst_90 : f32
    %cst_91 = arith.constant 9.99999974E-6 : f32
    %1258 = arith.addf %1257, %cst_91 : f32
    %1259 = math.rsqrt %1258 : f32
    %1260 = vector.broadcast %1259 : f32 to vector<16x32xf32>
    %1261 = arith.mulf %1243, %1260 : vector<16x32xf32>
    %cst_92 = arith.constant 0.000000e+00 : f32
    %1262 = vector.broadcast %cst_92 : f32 to vector<16x32xf32>
    %1263 = arith.maximumf %1261, %1262 : vector<16x32xf32>
    %c0_93 = arith.constant 0 : index
    %c4_94 = arith.constant 4 : index
    %c0_95 = arith.constant 0 : index
    %c0_96 = arith.constant 0 : index
    %1264 = vector.load %arg3[%c0_93, %c4_94, %c0_95, %c0_96] : memref<1x8x16x64xf32, #tpu.memory_space<vmem>>, vector<1x1x16x32xf32>
    %1265 = vector.shape_cast %1264 : vector<1x1x16x32xf32> to vector<16x32xf32>
    %1266 = vector.shape_cast %1263 : vector<16x32xf32> to vector<1x1x16x32xf32>
    tpu.vector_store %arg3[%c0_93, %c4_94, %c0_95, %c0_96], %1266 {strides = array<i32>} : memref<1x8x16x64xf32, #tpu.memory_space<vmem>>, vector<1x1x16x32xf32>,
    %1267 = vector.broadcast %1259 : f32 to vector<16x32xf32>
    %1268 = arith.mulf %1245, %1267 : vector<16x32xf32>
    %cst_97 = arith.constant 0.000000e+00 : f32
    %1269 = vector.broadcast %cst_97 : f32 to vector<16x32xf32>
    %1270 = arith.maximumf %1268, %1269 : vector<16x32xf32>
    %c0_98 = arith.constant 0 : index
    %c4_99 = arith.constant 4 : index
    %c0_100 = arith.constant 0 : index
    %c32_101 = arith.constant 32 : index
    %1271 = vector.load %arg3[%c0_98, %c4_99, %c0_100, %c32_101] : memref<1x8x16x64xf32, #tpu.memory_space<vmem>>, vector<1x1x16x32xf32>
    %1272 = vector.shape_cast %1271 : vector<1x1x16x32xf32> to vector<16x32xf32>
    %1273 = vector.shape_cast %1270 : vector<16x32xf32> to vector<1x1x16x32xf32>
    tpu.vector_store %arg3[%c0_98, %c4_99, %c0_100, %c32_101], %1273 {strides = array<i32>} : memref<1x8x16x64xf32, #tpu.memory_space<vmem>>, vector<1x1x16x32xf32>,
    %cst_102 = arith.constant 0.000000e+00 : f32
    %1274 = vector.broadcast %cst_102 : f32 to vector<16x32xf32>
    %c5 = arith.constant 5 : index
    %1275 = memref.load %arg2[%c5] : memref<384xf32, #tpu.memory_space<smem>>
    %1276 = vector.broadcast %1275 : f32 to vector<16x32xf32>
    %1277 = arith.mulf %1276, %23 : vector<16x32xf32>
    %1278 = arith.addf %1274, %1277 : vector<16x32xf32>
    %c13 = arith.constant 13 : index
    %1279 = memref.load %arg2[%c13] : memref<384xf32, #tpu.memory_space<smem>>
    %1280 = vector.broadcast %1279 : f32 to vector<16x32xf32>
    %1281 = arith.mulf %1280, %25 : vector<16x32xf32>
    %1282 = arith.addf %1278, %1281 : vector<16x32xf32>
    %c21 = arith.constant 21 : index
    %1283 = memref.load %arg2[%c21] : memref<384xf32, #tpu.memory_space<smem>>
    %1284 = vector.broadcast %1283 : f32 to vector<16x32xf32>
    %1285 = arith.mulf %1284, %27 : vector<16x32xf32>
    %1286 = arith.addf %1282, %1285 : vector<16x32xf32>
    %c29 = arith.constant 29 : index
    %1287 = memref.load %arg2[%c29] : memref<384xf32, #tpu.memory_space<smem>>
    %1288 = vector.broadcast %1287 : f32 to vector<16x32xf32>
    %1289 = arith.mulf %1288, %29 : vector<16x32xf32>
    %1290 = arith.addf %1286, %1289 : vector<16x32xf32>
    %c37 = arith.constant 37 : index
    %1291 = memref.load %arg2[%c37] : memref<384xf32, #tpu.memory_space<smem>>
    %1292 = vector.broadcast %1291 : f32 to vector<16x32xf32>
    %1293 = arith.mulf %1292, %31 : vector<16x32xf32>
    %1294 = arith.addf %1290, %1293 : vector<16x32xf32>
    %c45 = arith.constant 45 : index
    %1295 = memref.load %arg2[%c45] : memref<384xf32, #tpu.memory_space<smem>>
    %1296 = vector.broadcast %1295 : f32 to vector<16x32xf32>
    %1297 = arith.mulf %1296, %33 : vector<16x32xf32>
    %1298 = arith.addf %1294, %1297 : vector<16x32xf32>
    %c53 = arith.constant 53 : index
    %1299 = memref.load %arg2[%c53] : memref<384xf32, #tpu.memory_space<smem>>
    %1300 = vector.broadcast %1299 : f32 to vector<16x32xf32>
    %1301 = arith.mulf %1300, %35 : vector<16x32xf32>
    %1302 = arith.addf %1298, %1301 : vector<16x32xf32>
    %c61 = arith.constant 61 : index
    %1303 = memref.load %arg2[%c61] : memref<384xf32, #tpu.memory_space<smem>>
    %1304 = vector.broadcast %1303 : f32 to vector<16x32xf32>
    %1305 = arith.mulf %1304, %37 : vector<16x32xf32>
    %1306 = arith.addf %1302, %1305 : vector<16x32xf32>
    %c69 = arith.constant 69 : index
    %1307 = memref.load %arg2[%c69] : memref<384xf32, #tpu.memory_space<smem>>
    %1308 = vector.broadcast %1307 : f32 to vector<16x32xf32>
    %1309 = arith.mulf %1308, %39 : vector<16x32xf32>
    %1310 = arith.addf %1306, %1309 : vector<16x32xf32>
    %c77 = arith.constant 77 : index
    %1311 = memref.load %arg2[%c77] : memref<384xf32, #tpu.memory_space<smem>>
    %1312 = vector.broadcast %1311 : f32 to vector<16x32xf32>
    %1313 = arith.mulf %1312, %41 : vector<16x32xf32>
    %1314 = arith.addf %1310, %1313 : vector<16x32xf32>
    %c85 = arith.constant 85 : index
    %1315 = memref.load %arg2[%c85] : memref<384xf32, #tpu.memory_space<smem>>
    %1316 = vector.broadcast %1315 : f32 to vector<16x32xf32>
    %1317 = arith.mulf %1316, %43 : vector<16x32xf32>
    %1318 = arith.addf %1314, %1317 : vector<16x32xf32>
    %c93 = arith.constant 93 : index
    %1319 = memref.load %arg2[%c93] : memref<384xf32, #tpu.memory_space<smem>>
    %1320 = vector.broadcast %1319 : f32 to vector<16x32xf32>
    %1321 = arith.mulf %1320, %45 : vector<16x32xf32>
    %1322 = arith.addf %1318, %1321 : vector<16x32xf32>
    %c101 = arith.constant 101 : index
    %1323 = memref.load %arg2[%c101] : memref<384xf32, #tpu.memory_space<smem>>
    %1324 = vector.broadcast %1323 : f32 to vector<16x32xf32>
    %1325 = arith.mulf %1324, %47 : vector<16x32xf32>
    %1326 = arith.addf %1322, %1325 : vector<16x32xf32>
    %c109 = arith.constant 109 : index
    %1327 = memref.load %arg2[%c109] : memref<384xf32, #tpu.memory_space<smem>>
    %1328 = vector.broadcast %1327 : f32 to vector<16x32xf32>
    %1329 = arith.mulf %1328, %49 : vector<16x32xf32>
    %1330 = arith.addf %1326, %1329 : vector<16x32xf32>
    %c117 = arith.constant 117 : index
    %1331 = memref.load %arg2[%c117] : memref<384xf32, #tpu.memory_space<smem>>
    %1332 = vector.broadcast %1331 : f32 to vector<16x32xf32>
    %1333 = arith.mulf %1332, %51 : vector<16x32xf32>
    %1334 = arith.addf %1330, %1333 : vector<16x32xf32>
    %c125 = arith.constant 125 : index
    %1335 = memref.load %arg2[%c125] : memref<384xf32, #tpu.memory_space<smem>>
    %1336 = vector.broadcast %1335 : f32 to vector<16x32xf32>
    %1337 = arith.mulf %1336, %53 : vector<16x32xf32>
    %1338 = arith.addf %1334, %1337 : vector<16x32xf32>
    %c133 = arith.constant 133 : index
    %1339 = memref.load %arg2[%c133] : memref<384xf32, #tpu.memory_space<smem>>
    %1340 = vector.broadcast %1339 : f32 to vector<16x32xf32>
    %1341 = arith.mulf %1340, %55 : vector<16x32xf32>
    %1342 = arith.addf %1338, %1341 : vector<16x32xf32>
    %c141 = arith.constant 141 : index
    %1343 = memref.load %arg2[%c141] : memref<384xf32, #tpu.memory_space<smem>>
    %1344 = vector.broadcast %1343 : f32 to vector<16x32xf32>
    %1345 = arith.mulf %1344, %57 : vector<16x32xf32>
    %1346 = arith.addf %1342, %1345 : vector<16x32xf32>
    %c149 = arith.constant 149 : index
    %1347 = memref.load %arg2[%c149] : memref<384xf32, #tpu.memory_space<smem>>
    %1348 = vector.broadcast %1347 : f32 to vector<16x32xf32>
    %1349 = arith.mulf %1348, %59 : vector<16x32xf32>
    %1350 = arith.addf %1346, %1349 : vector<16x32xf32>
    %c157 = arith.constant 157 : index
    %1351 = memref.load %arg2[%c157] : memref<384xf32, #tpu.memory_space<smem>>
    %1352 = vector.broadcast %1351 : f32 to vector<16x32xf32>
    %1353 = arith.mulf %1352, %61 : vector<16x32xf32>
    %1354 = arith.addf %1350, %1353 : vector<16x32xf32>
    %c165 = arith.constant 165 : index
    %1355 = memref.load %arg2[%c165] : memref<384xf32, #tpu.memory_space<smem>>
    %1356 = vector.broadcast %1355 : f32 to vector<16x32xf32>
    %1357 = arith.mulf %1356, %63 : vector<16x32xf32>
    %1358 = arith.addf %1354, %1357 : vector<16x32xf32>
    %c173 = arith.constant 173 : index
    %1359 = memref.load %arg2[%c173] : memref<384xf32, #tpu.memory_space<smem>>
    %1360 = vector.broadcast %1359 : f32 to vector<16x32xf32>
    %1361 = arith.mulf %1360, %65 : vector<16x32xf32>
    %1362 = arith.addf %1358, %1361 : vector<16x32xf32>
    %c181 = arith.constant 181 : index
    %1363 = memref.load %arg2[%c181] : memref<384xf32, #tpu.memory_space<smem>>
    %1364 = vector.broadcast %1363 : f32 to vector<16x32xf32>
    %1365 = arith.mulf %1364, %67 : vector<16x32xf32>
    %1366 = arith.addf %1362, %1365 : vector<16x32xf32>
    %c189 = arith.constant 189 : index
    %1367 = memref.load %arg2[%c189] : memref<384xf32, #tpu.memory_space<smem>>
    %1368 = vector.broadcast %1367 : f32 to vector<16x32xf32>
    %1369 = arith.mulf %1368, %69 : vector<16x32xf32>
    %1370 = arith.addf %1366, %1369 : vector<16x32xf32>
    %cst_103 = arith.constant 0.000000e+00 : f32
    %1371 = vector.broadcast %cst_103 : f32 to vector<16x32xf32>
    %c197 = arith.constant 197 : index
    %1372 = memref.load %arg2[%c197] : memref<384xf32, #tpu.memory_space<smem>>
    %1373 = vector.broadcast %1372 : f32 to vector<16x32xf32>
    %1374 = arith.mulf %1373, %47 : vector<16x32xf32>
    %1375 = arith.addf %1371, %1374 : vector<16x32xf32>
    %c205 = arith.constant 205 : index
    %1376 = memref.load %arg2[%c205] : memref<384xf32, #tpu.memory_space<smem>>
    %1377 = vector.broadcast %1376 : f32 to vector<16x32xf32>
    %1378 = arith.mulf %1377, %49 : vector<16x32xf32>
    %1379 = arith.addf %1375, %1378 : vector<16x32xf32>
    %c213 = arith.constant 213 : index
    %1380 = memref.load %arg2[%c213] : memref<384xf32, #tpu.memory_space<smem>>
    %1381 = vector.broadcast %1380 : f32 to vector<16x32xf32>
    %1382 = arith.mulf %1381, %51 : vector<16x32xf32>
    %1383 = arith.addf %1379, %1382 : vector<16x32xf32>
    %c221 = arith.constant 221 : index
    %1384 = memref.load %arg2[%c221] : memref<384xf32, #tpu.memory_space<smem>>
    %1385 = vector.broadcast %1384 : f32 to vector<16x32xf32>
    %1386 = arith.mulf %1385, %53 : vector<16x32xf32>
    %1387 = arith.addf %1383, %1386 : vector<16x32xf32>
    %c229 = arith.constant 229 : index
    %1388 = memref.load %arg2[%c229] : memref<384xf32, #tpu.memory_space<smem>>
    %1389 = vector.broadcast %1388 : f32 to vector<16x32xf32>
    %1390 = arith.mulf %1389, %55 : vector<16x32xf32>
    %1391 = arith.addf %1387, %1390 : vector<16x32xf32>
    %c237 = arith.constant 237 : index
    %1392 = memref.load %arg2[%c237] : memref<384xf32, #tpu.memory_space<smem>>
    %1393 = vector.broadcast %1392 : f32 to vector<16x32xf32>
    %1394 = arith.mulf %1393, %57 : vector<16x32xf32>
    %1395 = arith.addf %1391, %1394 : vector<16x32xf32>
    %c245 = arith.constant 245 : index
    %1396 = memref.load %arg2[%c245] : memref<384xf32, #tpu.memory_space<smem>>
    %1397 = vector.broadcast %1396 : f32 to vector<16x32xf32>
    %1398 = arith.mulf %1397, %59 : vector<16x32xf32>
    %1399 = arith.addf %1395, %1398 : vector<16x32xf32>
    %c253 = arith.constant 253 : index
    %1400 = memref.load %arg2[%c253] : memref<384xf32, #tpu.memory_space<smem>>
    %1401 = vector.broadcast %1400 : f32 to vector<16x32xf32>
    %1402 = arith.mulf %1401, %61 : vector<16x32xf32>
    %1403 = arith.addf %1399, %1402 : vector<16x32xf32>
    %c261 = arith.constant 261 : index
    %1404 = memref.load %arg2[%c261] : memref<384xf32, #tpu.memory_space<smem>>
    %1405 = vector.broadcast %1404 : f32 to vector<16x32xf32>
    %1406 = arith.mulf %1405, %63 : vector<16x32xf32>
    %1407 = arith.addf %1403, %1406 : vector<16x32xf32>
    %c269 = arith.constant 269 : index
    %1408 = memref.load %arg2[%c269] : memref<384xf32, #tpu.memory_space<smem>>
    %1409 = vector.broadcast %1408 : f32 to vector<16x32xf32>
    %1410 = arith.mulf %1409, %65 : vector<16x32xf32>
    %1411 = arith.addf %1407, %1410 : vector<16x32xf32>
    %c277 = arith.constant 277 : index
    %1412 = memref.load %arg2[%c277] : memref<384xf32, #tpu.memory_space<smem>>
    %1413 = vector.broadcast %1412 : f32 to vector<16x32xf32>
    %1414 = arith.mulf %1413, %67 : vector<16x32xf32>
    %1415 = arith.addf %1411, %1414 : vector<16x32xf32>
    %c285 = arith.constant 285 : index
    %1416 = memref.load %arg2[%c285] : memref<384xf32, #tpu.memory_space<smem>>
    %1417 = vector.broadcast %1416 : f32 to vector<16x32xf32>
    %1418 = arith.mulf %1417, %69 : vector<16x32xf32>
    %1419 = arith.addf %1415, %1418 : vector<16x32xf32>
    %c293 = arith.constant 293 : index
    %1420 = memref.load %arg2[%c293] : memref<384xf32, #tpu.memory_space<smem>>
    %1421 = vector.broadcast %1420 : f32 to vector<16x32xf32>
    %1422 = arith.mulf %1421, %71 : vector<16x32xf32>
    %1423 = arith.addf %1419, %1422 : vector<16x32xf32>
    %c301 = arith.constant 301 : index
    %1424 = memref.load %arg2[%c301] : memref<384xf32, #tpu.memory_space<smem>>
    %1425 = vector.broadcast %1424 : f32 to vector<16x32xf32>
    %1426 = arith.mulf %1425, %73 : vector<16x32xf32>
    %1427 = arith.addf %1423, %1426 : vector<16x32xf32>
    %c309 = arith.constant 309 : index
    %1428 = memref.load %arg2[%c309] : memref<384xf32, #tpu.memory_space<smem>>
    %1429 = vector.broadcast %1428 : f32 to vector<16x32xf32>
    %1430 = arith.mulf %1429, %75 : vector<16x32xf32>
    %1431 = arith.addf %1427, %1430 : vector<16x32xf32>
    %c317 = arith.constant 317 : index
    %1432 = memref.load %arg2[%c317] : memref<384xf32, #tpu.memory_space<smem>>
    %1433 = vector.broadcast %1432 : f32 to vector<16x32xf32>
    %1434 = arith.mulf %1433, %77 : vector<16x32xf32>
    %1435 = arith.addf %1431, %1434 : vector<16x32xf32>
    %c325 = arith.constant 325 : index
    %1436 = memref.load %arg2[%c325] : memref<384xf32, #tpu.memory_space<smem>>
    %1437 = vector.broadcast %1436 : f32 to vector<16x32xf32>
    %1438 = arith.mulf %1437, %79 : vector<16x32xf32>
    %1439 = arith.addf %1435, %1438 : vector<16x32xf32>
    %c333 = arith.constant 333 : index
    %1440 = memref.load %arg2[%c333] : memref<384xf32, #tpu.memory_space<smem>>
    %1441 = vector.broadcast %1440 : f32 to vector<16x32xf32>
    %1442 = arith.mulf %1441, %81 : vector<16x32xf32>
    %1443 = arith.addf %1439, %1442 : vector<16x32xf32>
    %c341 = arith.constant 341 : index
    %1444 = memref.load %arg2[%c341] : memref<384xf32, #tpu.memory_space<smem>>
    %1445 = vector.broadcast %1444 : f32 to vector<16x32xf32>
    %1446 = arith.mulf %1445, %83 : vector<16x32xf32>
    %1447 = arith.addf %1443, %1446 : vector<16x32xf32>
    %c349 = arith.constant 349 : index
    %1448 = memref.load %arg2[%c349] : memref<384xf32, #tpu.memory_space<smem>>
    %1449 = vector.broadcast %1448 : f32 to vector<16x32xf32>
    %1450 = arith.mulf %1449, %85 : vector<16x32xf32>
    %1451 = arith.addf %1447, %1450 : vector<16x32xf32>
    %c357 = arith.constant 357 : index
    %1452 = memref.load %arg2[%c357] : memref<384xf32, #tpu.memory_space<smem>>
    %1453 = vector.broadcast %1452 : f32 to vector<16x32xf32>
    %1454 = arith.mulf %1453, %87 : vector<16x32xf32>
    %1455 = arith.addf %1451, %1454 : vector<16x32xf32>
    %c365 = arith.constant 365 : index
    %1456 = memref.load %arg2[%c365] : memref<384xf32, #tpu.memory_space<smem>>
    %1457 = vector.broadcast %1456 : f32 to vector<16x32xf32>
    %1458 = arith.mulf %1457, %89 : vector<16x32xf32>
    %1459 = arith.addf %1455, %1458 : vector<16x32xf32>
    %c373 = arith.constant 373 : index
    %1460 = memref.load %arg2[%c373] : memref<384xf32, #tpu.memory_space<smem>>
    %1461 = vector.broadcast %1460 : f32 to vector<16x32xf32>
    %1462 = arith.mulf %1461, %91 : vector<16x32xf32>
    %1463 = arith.addf %1459, %1462 : vector<16x32xf32>
    %c381 = arith.constant 381 : index
    %1464 = memref.load %arg2[%c381] : memref<384xf32, #tpu.memory_space<smem>>
    %1465 = vector.broadcast %1464 : f32 to vector<16x32xf32>
    %1466 = arith.mulf %1465, %93 : vector<16x32xf32>
    %1467 = arith.addf %1463, %1466 : vector<16x32xf32>
    %1468 = vector.shape_cast %1370 : vector<16x32xf32> to vector<1x16x32xf32>
    %cst_104 = arith.constant dense<0.000000e+00> : vector<1xf32>
    %1469 = vector.multi_reduction <add>, %1468, %cst_104 [1, 2] : vector<1x16x32xf32> to vector<1xf32>
    %1470 = vector.shape_cast %1469 : vector<1xf32> to vector<1x1x1xf32>
    %1471 = vector.extract %1470[0, 0, 0] : f32 from vector<1x1x1xf32>
    %1472 = vector.shape_cast %1467 : vector<16x32xf32> to vector<1x16x32xf32>
    %cst_105 = arith.constant dense<0.000000e+00> : vector<1xf32>
    %1473 = vector.multi_reduction <add>, %1472, %cst_105 [1, 2] : vector<1x16x32xf32> to vector<1xf32>
    %1474 = vector.shape_cast %1473 : vector<1xf32> to vector<1x1x1xf32>
    %1475 = vector.extract %1474[0, 0, 0] : f32 from vector<1x1x1xf32>
    %1476 = arith.addf %1471, %1475 : f32
    %cst_106 = arith.constant 9.765625E-4 : f32
    %1477 = arith.mulf %1476, %cst_106 : f32
    %1478 = vector.broadcast %1477 : f32 to vector<16x32xf32>
    %1479 = arith.subf %1370, %1478 : vector<16x32xf32>
    %1480 = vector.broadcast %1477 : f32 to vector<16x32xf32>
    %1481 = arith.subf %1467, %1480 : vector<16x32xf32>
    %1482 = arith.mulf %1479, %1479 : vector<16x32xf32>
    %1483 = vector.shape_cast %1482 : vector<16x32xf32> to vector<1x16x32xf32>
    %cst_107 = arith.constant dense<0.000000e+00> : vector<1xf32>
    %1484 = vector.multi_reduction <add>, %1483, %cst_107 [1, 2] : vector<1x16x32xf32> to vector<1xf32>
    %1485 = vector.shape_cast %1484 : vector<1xf32> to vector<1x1x1xf32>
    %1486 = vector.extract %1485[0, 0, 0] : f32 from vector<1x1x1xf32>
    %1487 = arith.mulf %1481, %1481 : vector<16x32xf32>
    %1488 = vector.shape_cast %1487 : vector<16x32xf32> to vector<1x16x32xf32>
    %cst_108 = arith.constant dense<0.000000e+00> : vector<1xf32>
    %1489 = vector.multi_reduction <add>, %1488, %cst_108 [1, 2] : vector<1x16x32xf32> to vector<1xf32>
    %1490 = vector.shape_cast %1489 : vector<1xf32> to vector<1x1x1xf32>
    %1491 = vector.extract %1490[0, 0, 0] : f32 from vector<1x1x1xf32>
    %1492 = arith.addf %1486, %1491 : f32
    %cst_109 = arith.constant 9.765625E-4 : f32
    %1493 = arith.mulf %1492, %cst_109 : f32
    %cst_110 = arith.constant 9.99999974E-6 : f32
    %1494 = arith.addf %1493, %cst_110 : f32
    %1495 = math.rsqrt %1494 : f32
    %1496 = vector.broadcast %1495 : f32 to vector<16x32xf32>
    %1497 = arith.mulf %1479, %1496 : vector<16x32xf32>
    %cst_111 = arith.constant 0.000000e+00 : f32
    %1498 = vector.broadcast %cst_111 : f32 to vector<16x32xf32>
    %1499 = arith.maximumf %1497, %1498 : vector<16x32xf32>
    %c0_112 = arith.constant 0 : index
    %c5_113 = arith.constant 5 : index
    %c0_114 = arith.constant 0 : index
    %c0_115 = arith.constant 0 : index
    %1500 = vector.load %arg3[%c0_112, %c5_113, %c0_114, %c0_115] : memref<1x8x16x64xf32, #tpu.memory_space<vmem>>, vector<1x1x16x32xf32>
    %1501 = vector.shape_cast %1500 : vector<1x1x16x32xf32> to vector<16x32xf32>
    %1502 = vector.shape_cast %1499 : vector<16x32xf32> to vector<1x1x16x32xf32>
    tpu.vector_store %arg3[%c0_112, %c5_113, %c0_114, %c0_115], %1502 {strides = array<i32>} : memref<1x8x16x64xf32, #tpu.memory_space<vmem>>, vector<1x1x16x32xf32>,
    %1503 = vector.broadcast %1495 : f32 to vector<16x32xf32>
    %1504 = arith.mulf %1481, %1503 : vector<16x32xf32>
    %cst_116 = arith.constant 0.000000e+00 : f32
    %1505 = vector.broadcast %cst_116 : f32 to vector<16x32xf32>
    %1506 = arith.maximumf %1504, %1505 : vector<16x32xf32>
    %c0_117 = arith.constant 0 : index
    %c5_118 = arith.constant 5 : index
    %c0_119 = arith.constant 0 : index
    %c32_120 = arith.constant 32 : index
    %1507 = vector.load %arg3[%c0_117, %c5_118, %c0_119, %c32_120] : memref<1x8x16x64xf32, #tpu.memory_space<vmem>>, vector<1x1x16x32xf32>
    %1508 = vector.shape_cast %1507 : vector<1x1x16x32xf32> to vector<16x32xf32>
    %1509 = vector.shape_cast %1506 : vector<16x32xf32> to vector<1x1x16x32xf32>
    tpu.vector_store %arg3[%c0_117, %c5_118, %c0_119, %c32_120], %1509 {strides = array<i32>} : memref<1x8x16x64xf32, #tpu.memory_space<vmem>>, vector<1x1x16x32xf32>,
    %cst_121 = arith.constant 0.000000e+00 : f32
    %1510 = vector.broadcast %cst_121 : f32 to vector<16x32xf32>
    %c6 = arith.constant 6 : index
    %1511 = memref.load %arg2[%c6] : memref<384xf32, #tpu.memory_space<smem>>
    %1512 = vector.broadcast %1511 : f32 to vector<16x32xf32>
    %1513 = arith.mulf %1512, %23 : vector<16x32xf32>
    %1514 = arith.addf %1510, %1513 : vector<16x32xf32>
    %c14 = arith.constant 14 : index
    %1515 = memref.load %arg2[%c14] : memref<384xf32, #tpu.memory_space<smem>>
    %1516 = vector.broadcast %1515 : f32 to vector<16x32xf32>
    %1517 = arith.mulf %1516, %25 : vector<16x32xf32>
    %1518 = arith.addf %1514, %1517 : vector<16x32xf32>
    %c22 = arith.constant 22 : index
    %1519 = memref.load %arg2[%c22] : memref<384xf32, #tpu.memory_space<smem>>
    %1520 = vector.broadcast %1519 : f32 to vector<16x32xf32>
    %1521 = arith.mulf %1520, %27 : vector<16x32xf32>
    %1522 = arith.addf %1518, %1521 : vector<16x32xf32>
    %c30 = arith.constant 30 : index
    %1523 = memref.load %arg2[%c30] : memref<384xf32, #tpu.memory_space<smem>>
    %1524 = vector.broadcast %1523 : f32 to vector<16x32xf32>
    %1525 = arith.mulf %1524, %29 : vector<16x32xf32>
    %1526 = arith.addf %1522, %1525 : vector<16x32xf32>
    %c38 = arith.constant 38 : index
    %1527 = memref.load %arg2[%c38] : memref<384xf32, #tpu.memory_space<smem>>
    %1528 = vector.broadcast %1527 : f32 to vector<16x32xf32>
    %1529 = arith.mulf %1528, %31 : vector<16x32xf32>
    %1530 = arith.addf %1526, %1529 : vector<16x32xf32>
    %c46 = arith.constant 46 : index
    %1531 = memref.load %arg2[%c46] : memref<384xf32, #tpu.memory_space<smem>>
    %1532 = vector.broadcast %1531 : f32 to vector<16x32xf32>
    %1533 = arith.mulf %1532, %33 : vector<16x32xf32>
    %1534 = arith.addf %1530, %1533 : vector<16x32xf32>
    %c54 = arith.constant 54 : index
    %1535 = memref.load %arg2[%c54] : memref<384xf32, #tpu.memory_space<smem>>
    %1536 = vector.broadcast %1535 : f32 to vector<16x32xf32>
    %1537 = arith.mulf %1536, %35 : vector<16x32xf32>
    %1538 = arith.addf %1534, %1537 : vector<16x32xf32>
    %c62 = arith.constant 62 : index
    %1539 = memref.load %arg2[%c62] : memref<384xf32, #tpu.memory_space<smem>>
    %1540 = vector.broadcast %1539 : f32 to vector<16x32xf32>
    %1541 = arith.mulf %1540, %37 : vector<16x32xf32>
    %1542 = arith.addf %1538, %1541 : vector<16x32xf32>
    %c70 = arith.constant 70 : index
    %1543 = memref.load %arg2[%c70] : memref<384xf32, #tpu.memory_space<smem>>
    %1544 = vector.broadcast %1543 : f32 to vector<16x32xf32>
    %1545 = arith.mulf %1544, %39 : vector<16x32xf32>
    %1546 = arith.addf %1542, %1545 : vector<16x32xf32>
    %c78 = arith.constant 78 : index
    %1547 = memref.load %arg2[%c78] : memref<384xf32, #tpu.memory_space<smem>>
    %1548 = vector.broadcast %1547 : f32 to vector<16x32xf32>
    %1549 = arith.mulf %1548, %41 : vector<16x32xf32>
    %1550 = arith.addf %1546, %1549 : vector<16x32xf32>
    %c86 = arith.constant 86 : index
    %1551 = memref.load %arg2[%c86] : memref<384xf32, #tpu.memory_space<smem>>
    %1552 = vector.broadcast %1551 : f32 to vector<16x32xf32>
    %1553 = arith.mulf %1552, %43 : vector<16x32xf32>
    %1554 = arith.addf %1550, %1553 : vector<16x32xf32>
    %c94 = arith.constant 94 : index
    %1555 = memref.load %arg2[%c94] : memref<384xf32, #tpu.memory_space<smem>>
    %1556 = vector.broadcast %1555 : f32 to vector<16x32xf32>
    %1557 = arith.mulf %1556, %45 : vector<16x32xf32>
    %1558 = arith.addf %1554, %1557 : vector<16x32xf32>
    %c102 = arith.constant 102 : index
    %1559 = memref.load %arg2[%c102] : memref<384xf32, #tpu.memory_space<smem>>
    %1560 = vector.broadcast %1559 : f32 to vector<16x32xf32>
    %1561 = arith.mulf %1560, %47 : vector<16x32xf32>
    %1562 = arith.addf %1558, %1561 : vector<16x32xf32>
    %c110 = arith.constant 110 : index
    %1563 = memref.load %arg2[%c110] : memref<384xf32, #tpu.memory_space<smem>>
    %1564 = vector.broadcast %1563 : f32 to vector<16x32xf32>
    %1565 = arith.mulf %1564, %49 : vector<16x32xf32>
    %1566 = arith.addf %1562, %1565 : vector<16x32xf32>
    %c118 = arith.constant 118 : index
    %1567 = memref.load %arg2[%c118] : memref<384xf32, #tpu.memory_space<smem>>
    %1568 = vector.broadcast %1567 : f32 to vector<16x32xf32>
    %1569 = arith.mulf %1568, %51 : vector<16x32xf32>
    %1570 = arith.addf %1566, %1569 : vector<16x32xf32>
    %c126 = arith.constant 126 : index
    %1571 = memref.load %arg2[%c126] : memref<384xf32, #tpu.memory_space<smem>>
    %1572 = vector.broadcast %1571 : f32 to vector<16x32xf32>
    %1573 = arith.mulf %1572, %53 : vector<16x32xf32>
    %1574 = arith.addf %1570, %1573 : vector<16x32xf32>
    %c134 = arith.constant 134 : index
    %1575 = memref.load %arg2[%c134] : memref<384xf32, #tpu.memory_space<smem>>
    %1576 = vector.broadcast %1575 : f32 to vector<16x32xf32>
    %1577 = arith.mulf %1576, %55 : vector<16x32xf32>
    %1578 = arith.addf %1574, %1577 : vector<16x32xf32>
    %c142 = arith.constant 142 : index
    %1579 = memref.load %arg2[%c142] : memref<384xf32, #tpu.memory_space<smem>>
    %1580 = vector.broadcast %1579 : f32 to vector<16x32xf32>
    %1581 = arith.mulf %1580, %57 : vector<16x32xf32>
    %1582 = arith.addf %1578, %1581 : vector<16x32xf32>
    %c150 = arith.constant 150 : index
    %1583 = memref.load %arg2[%c150] : memref<384xf32, #tpu.memory_space<smem>>
    %1584 = vector.broadcast %1583 : f32 to vector<16x32xf32>
    %1585 = arith.mulf %1584, %59 : vector<16x32xf32>
    %1586 = arith.addf %1582, %1585 : vector<16x32xf32>
    %c158 = arith.constant 158 : index
    %1587 = memref.load %arg2[%c158] : memref<384xf32, #tpu.memory_space<smem>>
    %1588 = vector.broadcast %1587 : f32 to vector<16x32xf32>
    %1589 = arith.mulf %1588, %61 : vector<16x32xf32>
    %1590 = arith.addf %1586, %1589 : vector<16x32xf32>
    %c166 = arith.constant 166 : index
    %1591 = memref.load %arg2[%c166] : memref<384xf32, #tpu.memory_space<smem>>
    %1592 = vector.broadcast %1591 : f32 to vector<16x32xf32>
    %1593 = arith.mulf %1592, %63 : vector<16x32xf32>
    %1594 = arith.addf %1590, %1593 : vector<16x32xf32>
    %c174 = arith.constant 174 : index
    %1595 = memref.load %arg2[%c174] : memref<384xf32, #tpu.memory_space<smem>>
    %1596 = vector.broadcast %1595 : f32 to vector<16x32xf32>
    %1597 = arith.mulf %1596, %65 : vector<16x32xf32>
    %1598 = arith.addf %1594, %1597 : vector<16x32xf32>
    %c182 = arith.constant 182 : index
    %1599 = memref.load %arg2[%c182] : memref<384xf32, #tpu.memory_space<smem>>
    %1600 = vector.broadcast %1599 : f32 to vector<16x32xf32>
    %1601 = arith.mulf %1600, %67 : vector<16x32xf32>
    %1602 = arith.addf %1598, %1601 : vector<16x32xf32>
    %c190 = arith.constant 190 : index
    %1603 = memref.load %arg2[%c190] : memref<384xf32, #tpu.memory_space<smem>>
    %1604 = vector.broadcast %1603 : f32 to vector<16x32xf32>
    %1605 = arith.mulf %1604, %69 : vector<16x32xf32>
    %1606 = arith.addf %1602, %1605 : vector<16x32xf32>
    %cst_122 = arith.constant 0.000000e+00 : f32
    %1607 = vector.broadcast %cst_122 : f32 to vector<16x32xf32>
    %c198 = arith.constant 198 : index
    %1608 = memref.load %arg2[%c198] : memref<384xf32, #tpu.memory_space<smem>>
    %1609 = vector.broadcast %1608 : f32 to vector<16x32xf32>
    %1610 = arith.mulf %1609, %47 : vector<16x32xf32>
    %1611 = arith.addf %1607, %1610 : vector<16x32xf32>
    %c206 = arith.constant 206 : index
    %1612 = memref.load %arg2[%c206] : memref<384xf32, #tpu.memory_space<smem>>
    %1613 = vector.broadcast %1612 : f32 to vector<16x32xf32>
    %1614 = arith.mulf %1613, %49 : vector<16x32xf32>
    %1615 = arith.addf %1611, %1614 : vector<16x32xf32>
    %c214 = arith.constant 214 : index
    %1616 = memref.load %arg2[%c214] : memref<384xf32, #tpu.memory_space<smem>>
    %1617 = vector.broadcast %1616 : f32 to vector<16x32xf32>
    %1618 = arith.mulf %1617, %51 : vector<16x32xf32>
    %1619 = arith.addf %1615, %1618 : vector<16x32xf32>
    %c222 = arith.constant 222 : index
    %1620 = memref.load %arg2[%c222] : memref<384xf32, #tpu.memory_space<smem>>
    %1621 = vector.broadcast %1620 : f32 to vector<16x32xf32>
    %1622 = arith.mulf %1621, %53 : vector<16x32xf32>
    %1623 = arith.addf %1619, %1622 : vector<16x32xf32>
    %c230 = arith.constant 230 : index
    %1624 = memref.load %arg2[%c230] : memref<384xf32, #tpu.memory_space<smem>>
    %1625 = vector.broadcast %1624 : f32 to vector<16x32xf32>
    %1626 = arith.mulf %1625, %55 : vector<16x32xf32>
    %1627 = arith.addf %1623, %1626 : vector<16x32xf32>
    %c238 = arith.constant 238 : index
    %1628 = memref.load %arg2[%c238] : memref<384xf32, #tpu.memory_space<smem>>
    %1629 = vector.broadcast %1628 : f32 to vector<16x32xf32>
    %1630 = arith.mulf %1629, %57 : vector<16x32xf32>
    %1631 = arith.addf %1627, %1630 : vector<16x32xf32>
    %c246 = arith.constant 246 : index
    %1632 = memref.load %arg2[%c246] : memref<384xf32, #tpu.memory_space<smem>>
    %1633 = vector.broadcast %1632 : f32 to vector<16x32xf32>
    %1634 = arith.mulf %1633, %59 : vector<16x32xf32>
    %1635 = arith.addf %1631, %1634 : vector<16x32xf32>
    %c254 = arith.constant 254 : index
    %1636 = memref.load %arg2[%c254] : memref<384xf32, #tpu.memory_space<smem>>
    %1637 = vector.broadcast %1636 : f32 to vector<16x32xf32>
    %1638 = arith.mulf %1637, %61 : vector<16x32xf32>
    %1639 = arith.addf %1635, %1638 : vector<16x32xf32>
    %c262 = arith.constant 262 : index
    %1640 = memref.load %arg2[%c262] : memref<384xf32, #tpu.memory_space<smem>>
    %1641 = vector.broadcast %1640 : f32 to vector<16x32xf32>
    %1642 = arith.mulf %1641, %63 : vector<16x32xf32>
    %1643 = arith.addf %1639, %1642 : vector<16x32xf32>
    %c270 = arith.constant 270 : index
    %1644 = memref.load %arg2[%c270] : memref<384xf32, #tpu.memory_space<smem>>
    %1645 = vector.broadcast %1644 : f32 to vector<16x32xf32>
    %1646 = arith.mulf %1645, %65 : vector<16x32xf32>
    %1647 = arith.addf %1643, %1646 : vector<16x32xf32>
    %c278 = arith.constant 278 : index
    %1648 = memref.load %arg2[%c278] : memref<384xf32, #tpu.memory_space<smem>>
    %1649 = vector.broadcast %1648 : f32 to vector<16x32xf32>
    %1650 = arith.mulf %1649, %67 : vector<16x32xf32>
    %1651 = arith.addf %1647, %1650 : vector<16x32xf32>
    %c286 = arith.constant 286 : index
    %1652 = memref.load %arg2[%c286] : memref<384xf32, #tpu.memory_space<smem>>
    %1653 = vector.broadcast %1652 : f32 to vector<16x32xf32>
    %1654 = arith.mulf %1653, %69 : vector<16x32xf32>
    %1655 = arith.addf %1651, %1654 : vector<16x32xf32>
    %c294 = arith.constant 294 : index
    %1656 = memref.load %arg2[%c294] : memref<384xf32, #tpu.memory_space<smem>>
    %1657 = vector.broadcast %1656 : f32 to vector<16x32xf32>
    %1658 = arith.mulf %1657, %71 : vector<16x32xf32>
    %1659 = arith.addf %1655, %1658 : vector<16x32xf32>
    %c302 = arith.constant 302 : index
    %1660 = memref.load %arg2[%c302] : memref<384xf32, #tpu.memory_space<smem>>
    %1661 = vector.broadcast %1660 : f32 to vector<16x32xf32>
    %1662 = arith.mulf %1661, %73 : vector<16x32xf32>
    %1663 = arith.addf %1659, %1662 : vector<16x32xf32>
    %c310 = arith.constant 310 : index
    %1664 = memref.load %arg2[%c310] : memref<384xf32, #tpu.memory_space<smem>>
    %1665 = vector.broadcast %1664 : f32 to vector<16x32xf32>
    %1666 = arith.mulf %1665, %75 : vector<16x32xf32>
    %1667 = arith.addf %1663, %1666 : vector<16x32xf32>
    %c318 = arith.constant 318 : index
    %1668 = memref.load %arg2[%c318] : memref<384xf32, #tpu.memory_space<smem>>
    %1669 = vector.broadcast %1668 : f32 to vector<16x32xf32>
    %1670 = arith.mulf %1669, %77 : vector<16x32xf32>
    %1671 = arith.addf %1667, %1670 : vector<16x32xf32>
    %c326 = arith.constant 326 : index
    %1672 = memref.load %arg2[%c326] : memref<384xf32, #tpu.memory_space<smem>>
    %1673 = vector.broadcast %1672 : f32 to vector<16x32xf32>
    %1674 = arith.mulf %1673, %79 : vector<16x32xf32>
    %1675 = arith.addf %1671, %1674 : vector<16x32xf32>
    %c334 = arith.constant 334 : index
    %1676 = memref.load %arg2[%c334] : memref<384xf32, #tpu.memory_space<smem>>
    %1677 = vector.broadcast %1676 : f32 to vector<16x32xf32>
    %1678 = arith.mulf %1677, %81 : vector<16x32xf32>
    %1679 = arith.addf %1675, %1678 : vector<16x32xf32>
    %c342 = arith.constant 342 : index
    %1680 = memref.load %arg2[%c342] : memref<384xf32, #tpu.memory_space<smem>>
    %1681 = vector.broadcast %1680 : f32 to vector<16x32xf32>
    %1682 = arith.mulf %1681, %83 : vector<16x32xf32>
    %1683 = arith.addf %1679, %1682 : vector<16x32xf32>
    %c350 = arith.constant 350 : index
    %1684 = memref.load %arg2[%c350] : memref<384xf32, #tpu.memory_space<smem>>
    %1685 = vector.broadcast %1684 : f32 to vector<16x32xf32>
    %1686 = arith.mulf %1685, %85 : vector<16x32xf32>
    %1687 = arith.addf %1683, %1686 : vector<16x32xf32>
    %c358 = arith.constant 358 : index
    %1688 = memref.load %arg2[%c358] : memref<384xf32, #tpu.memory_space<smem>>
    %1689 = vector.broadcast %1688 : f32 to vector<16x32xf32>
    %1690 = arith.mulf %1689, %87 : vector<16x32xf32>
    %1691 = arith.addf %1687, %1690 : vector<16x32xf32>
    %c366 = arith.constant 366 : index
    %1692 = memref.load %arg2[%c366] : memref<384xf32, #tpu.memory_space<smem>>
    %1693 = vector.broadcast %1692 : f32 to vector<16x32xf32>
    %1694 = arith.mulf %1693, %89 : vector<16x32xf32>
    %1695 = arith.addf %1691, %1694 : vector<16x32xf32>
    %c374 = arith.constant 374 : index
    %1696 = memref.load %arg2[%c374] : memref<384xf32, #tpu.memory_space<smem>>
    %1697 = vector.broadcast %1696 : f32 to vector<16x32xf32>
    %1698 = arith.mulf %1697, %91 : vector<16x32xf32>
    %1699 = arith.addf %1695, %1698 : vector<16x32xf32>
    %c382 = arith.constant 382 : index
    %1700 = memref.load %arg2[%c382] : memref<384xf32, #tpu.memory_space<smem>>
    %1701 = vector.broadcast %1700 : f32 to vector<16x32xf32>
    %1702 = arith.mulf %1701, %93 : vector<16x32xf32>
    %1703 = arith.addf %1699, %1702 : vector<16x32xf32>
    %1704 = vector.shape_cast %1606 : vector<16x32xf32> to vector<1x16x32xf32>
    %cst_123 = arith.constant dense<0.000000e+00> : vector<1xf32>
    %1705 = vector.multi_reduction <add>, %1704, %cst_123 [1, 2] : vector<1x16x32xf32> to vector<1xf32>
    %1706 = vector.shape_cast %1705 : vector<1xf32> to vector<1x1x1xf32>
    %1707 = vector.extract %1706[0, 0, 0] : f32 from vector<1x1x1xf32>
    %1708 = vector.shape_cast %1703 : vector<16x32xf32> to vector<1x16x32xf32>
    %cst_124 = arith.constant dense<0.000000e+00> : vector<1xf32>
    %1709 = vector.multi_reduction <add>, %1708, %cst_124 [1, 2] : vector<1x16x32xf32> to vector<1xf32>
    %1710 = vector.shape_cast %1709 : vector<1xf32> to vector<1x1x1xf32>
    %1711 = vector.extract %1710[0, 0, 0] : f32 from vector<1x1x1xf32>
    %1712 = arith.addf %1707, %1711 : f32
    %cst_125 = arith.constant 9.765625E-4 : f32
    %1713 = arith.mulf %1712, %cst_125 : f32
    %1714 = vector.broadcast %1713 : f32 to vector<16x32xf32>
    %1715 = arith.subf %1606, %1714 : vector<16x32xf32>
    %1716 = vector.broadcast %1713 : f32 to vector<16x32xf32>
    %1717 = arith.subf %1703, %1716 : vector<16x32xf32>
    %1718 = arith.mulf %1715, %1715 : vector<16x32xf32>
    %1719 = vector.shape_cast %1718 : vector<16x32xf32> to vector<1x16x32xf32>
    %cst_126 = arith.constant dense<0.000000e+00> : vector<1xf32>
    %1720 = vector.multi_reduction <add>, %1719, %cst_126 [1, 2] : vector<1x16x32xf32> to vector<1xf32>
    %1721 = vector.shape_cast %1720 : vector<1xf32> to vector<1x1x1xf32>
    %1722 = vector.extract %1721[0, 0, 0] : f32 from vector<1x1x1xf32>
    %1723 = arith.mulf %1717, %1717 : vector<16x32xf32>
    %1724 = vector.shape_cast %1723 : vector<16x32xf32> to vector<1x16x32xf32>
    %cst_127 = arith.constant dense<0.000000e+00> : vector<1xf32>
    %1725 = vector.multi_reduction <add>, %1724, %cst_127 [1, 2] : vector<1x16x32xf32> to vector<1xf32>
    %1726 = vector.shape_cast %1725 : vector<1xf32> to vector<1x1x1xf32>
    %1727 = vector.extract %1726[0, 0, 0] : f32 from vector<1x1x1xf32>
    %1728 = arith.addf %1722, %1727 : f32
    %cst_128 = arith.constant 9.765625E-4 : f32
    %1729 = arith.mulf %1728, %cst_128 : f32
    %cst_129 = arith.constant 9.99999974E-6 : f32
    %1730 = arith.addf %1729, %cst_129 : f32
    %1731 = math.rsqrt %1730 : f32
    %1732 = vector.broadcast %1731 : f32 to vector<16x32xf32>
    %1733 = arith.mulf %1715, %1732 : vector<16x32xf32>
    %cst_130 = arith.constant 0.000000e+00 : f32
    %1734 = vector.broadcast %cst_130 : f32 to vector<16x32xf32>
    %1735 = arith.maximumf %1733, %1734 : vector<16x32xf32>
    %c0_131 = arith.constant 0 : index
    %c6_132 = arith.constant 6 : index
    %c0_133 = arith.constant 0 : index
    %c0_134 = arith.constant 0 : index
    %1736 = vector.load %arg3[%c0_131, %c6_132, %c0_133, %c0_134] : memref<1x8x16x64xf32, #tpu.memory_space<vmem>>, vector<1x1x16x32xf32>
    %1737 = vector.shape_cast %1736 : vector<1x1x16x32xf32> to vector<16x32xf32>
    %1738 = vector.shape_cast %1735 : vector<16x32xf32> to vector<1x1x16x32xf32>
    tpu.vector_store %arg3[%c0_131, %c6_132, %c0_133, %c0_134], %1738 {strides = array<i32>} : memref<1x8x16x64xf32, #tpu.memory_space<vmem>>, vector<1x1x16x32xf32>,
    %1739 = vector.broadcast %1731 : f32 to vector<16x32xf32>
    %1740 = arith.mulf %1717, %1739 : vector<16x32xf32>
    %cst_135 = arith.constant 0.000000e+00 : f32
    %1741 = vector.broadcast %cst_135 : f32 to vector<16x32xf32>
    %1742 = arith.maximumf %1740, %1741 : vector<16x32xf32>
    %c0_136 = arith.constant 0 : index
    %c6_137 = arith.constant 6 : index
    %c0_138 = arith.constant 0 : index
    %c32_139 = arith.constant 32 : index
    %1743 = vector.load %arg3[%c0_136, %c6_137, %c0_138, %c32_139] : memref<1x8x16x64xf32, #tpu.memory_space<vmem>>, vector<1x1x16x32xf32>
    %1744 = vector.shape_cast %1743 : vector<1x1x16x32xf32> to vector<16x32xf32>
    %1745 = vector.shape_cast %1742 : vector<16x32xf32> to vector<1x1x16x32xf32>
    tpu.vector_store %arg3[%c0_136, %c6_137, %c0_138, %c32_139], %1745 {strides = array<i32>} : memref<1x8x16x64xf32, #tpu.memory_space<vmem>>, vector<1x1x16x32xf32>,
    %cst_140 = arith.constant 0.000000e+00 : f32
    %1746 = vector.broadcast %cst_140 : f32 to vector<16x32xf32>
    %c7 = arith.constant 7 : index
    %1747 = memref.load %arg2[%c7] : memref<384xf32, #tpu.memory_space<smem>>
    %1748 = vector.broadcast %1747 : f32 to vector<16x32xf32>
    %1749 = arith.mulf %1748, %23 : vector<16x32xf32>
    %1750 = arith.addf %1746, %1749 : vector<16x32xf32>
    %c15 = arith.constant 15 : index
    %1751 = memref.load %arg2[%c15] : memref<384xf32, #tpu.memory_space<smem>>
    %1752 = vector.broadcast %1751 : f32 to vector<16x32xf32>
    %1753 = arith.mulf %1752, %25 : vector<16x32xf32>
    %1754 = arith.addf %1750, %1753 : vector<16x32xf32>
    %c23 = arith.constant 23 : index
    %1755 = memref.load %arg2[%c23] : memref<384xf32, #tpu.memory_space<smem>>
    %1756 = vector.broadcast %1755 : f32 to vector<16x32xf32>
    %1757 = arith.mulf %1756, %27 : vector<16x32xf32>
    %1758 = arith.addf %1754, %1757 : vector<16x32xf32>
    %c31 = arith.constant 31 : index
    %1759 = memref.load %arg2[%c31] : memref<384xf32, #tpu.memory_space<smem>>
    %1760 = vector.broadcast %1759 : f32 to vector<16x32xf32>
    %1761 = arith.mulf %1760, %29 : vector<16x32xf32>
    %1762 = arith.addf %1758, %1761 : vector<16x32xf32>
    %c39 = arith.constant 39 : index
    %1763 = memref.load %arg2[%c39] : memref<384xf32, #tpu.memory_space<smem>>
    %1764 = vector.broadcast %1763 : f32 to vector<16x32xf32>
    %1765 = arith.mulf %1764, %31 : vector<16x32xf32>
    %1766 = arith.addf %1762, %1765 : vector<16x32xf32>
    %c47 = arith.constant 47 : index
    %1767 = memref.load %arg2[%c47] : memref<384xf32, #tpu.memory_space<smem>>
    %1768 = vector.broadcast %1767 : f32 to vector<16x32xf32>
    %1769 = arith.mulf %1768, %33 : vector<16x32xf32>
    %1770 = arith.addf %1766, %1769 : vector<16x32xf32>
    %c55 = arith.constant 55 : index
    %1771 = memref.load %arg2[%c55] : memref<384xf32, #tpu.memory_space<smem>>
    %1772 = vector.broadcast %1771 : f32 to vector<16x32xf32>
    %1773 = arith.mulf %1772, %35 : vector<16x32xf32>
    %1774 = arith.addf %1770, %1773 : vector<16x32xf32>
    %c63 = arith.constant 63 : index
    %1775 = memref.load %arg2[%c63] : memref<384xf32, #tpu.memory_space<smem>>
    %1776 = vector.broadcast %1775 : f32 to vector<16x32xf32>
    %1777 = arith.mulf %1776, %37 : vector<16x32xf32>
    %1778 = arith.addf %1774, %1777 : vector<16x32xf32>
    %c71 = arith.constant 71 : index
    %1779 = memref.load %arg2[%c71] : memref<384xf32, #tpu.memory_space<smem>>
    %1780 = vector.broadcast %1779 : f32 to vector<16x32xf32>
    %1781 = arith.mulf %1780, %39 : vector<16x32xf32>
    %1782 = arith.addf %1778, %1781 : vector<16x32xf32>
    %c79 = arith.constant 79 : index
    %1783 = memref.load %arg2[%c79] : memref<384xf32, #tpu.memory_space<smem>>
    %1784 = vector.broadcast %1783 : f32 to vector<16x32xf32>
    %1785 = arith.mulf %1784, %41 : vector<16x32xf32>
    %1786 = arith.addf %1782, %1785 : vector<16x32xf32>
    %c87 = arith.constant 87 : index
    %1787 = memref.load %arg2[%c87] : memref<384xf32, #tpu.memory_space<smem>>
    %1788 = vector.broadcast %1787 : f32 to vector<16x32xf32>
    %1789 = arith.mulf %1788, %43 : vector<16x32xf32>
    %1790 = arith.addf %1786, %1789 : vector<16x32xf32>
    %c95 = arith.constant 95 : index
    %1791 = memref.load %arg2[%c95] : memref<384xf32, #tpu.memory_space<smem>>
    %1792 = vector.broadcast %1791 : f32 to vector<16x32xf32>
    %1793 = arith.mulf %1792, %45 : vector<16x32xf32>
    %1794 = arith.addf %1790, %1793 : vector<16x32xf32>
    %c103 = arith.constant 103 : index
    %1795 = memref.load %arg2[%c103] : memref<384xf32, #tpu.memory_space<smem>>
    %1796 = vector.broadcast %1795 : f32 to vector<16x32xf32>
    %1797 = arith.mulf %1796, %47 : vector<16x32xf32>
    %1798 = arith.addf %1794, %1797 : vector<16x32xf32>
    %c111 = arith.constant 111 : index
    %1799 = memref.load %arg2[%c111] : memref<384xf32, #tpu.memory_space<smem>>
    %1800 = vector.broadcast %1799 : f32 to vector<16x32xf32>
    %1801 = arith.mulf %1800, %49 : vector<16x32xf32>
    %1802 = arith.addf %1798, %1801 : vector<16x32xf32>
    %c119 = arith.constant 119 : index
    %1803 = memref.load %arg2[%c119] : memref<384xf32, #tpu.memory_space<smem>>
    %1804 = vector.broadcast %1803 : f32 to vector<16x32xf32>
    %1805 = arith.mulf %1804, %51 : vector<16x32xf32>
    %1806 = arith.addf %1802, %1805 : vector<16x32xf32>
    %c127 = arith.constant 127 : index
    %1807 = memref.load %arg2[%c127] : memref<384xf32, #tpu.memory_space<smem>>
    %1808 = vector.broadcast %1807 : f32 to vector<16x32xf32>
    %1809 = arith.mulf %1808, %53 : vector<16x32xf32>
    %1810 = arith.addf %1806, %1809 : vector<16x32xf32>
    %c135 = arith.constant 135 : index
    %1811 = memref.load %arg2[%c135] : memref<384xf32, #tpu.memory_space<smem>>
    %1812 = vector.broadcast %1811 : f32 to vector<16x32xf32>
    %1813 = arith.mulf %1812, %55 : vector<16x32xf32>
    %1814 = arith.addf %1810, %1813 : vector<16x32xf32>
    %c143 = arith.constant 143 : index
    %1815 = memref.load %arg2[%c143] : memref<384xf32, #tpu.memory_space<smem>>
    %1816 = vector.broadcast %1815 : f32 to vector<16x32xf32>
    %1817 = arith.mulf %1816, %57 : vector<16x32xf32>
    %1818 = arith.addf %1814, %1817 : vector<16x32xf32>
    %c151 = arith.constant 151 : index
    %1819 = memref.load %arg2[%c151] : memref<384xf32, #tpu.memory_space<smem>>
    %1820 = vector.broadcast %1819 : f32 to vector<16x32xf32>
    %1821 = arith.mulf %1820, %59 : vector<16x32xf32>
    %1822 = arith.addf %1818, %1821 : vector<16x32xf32>
    %c159 = arith.constant 159 : index
    %1823 = memref.load %arg2[%c159] : memref<384xf32, #tpu.memory_space<smem>>
    %1824 = vector.broadcast %1823 : f32 to vector<16x32xf32>
    %1825 = arith.mulf %1824, %61 : vector<16x32xf32>
    %1826 = arith.addf %1822, %1825 : vector<16x32xf32>
    %c167 = arith.constant 167 : index
    %1827 = memref.load %arg2[%c167] : memref<384xf32, #tpu.memory_space<smem>>
    %1828 = vector.broadcast %1827 : f32 to vector<16x32xf32>
    %1829 = arith.mulf %1828, %63 : vector<16x32xf32>
    %1830 = arith.addf %1826, %1829 : vector<16x32xf32>
    %c175 = arith.constant 175 : index
    %1831 = memref.load %arg2[%c175] : memref<384xf32, #tpu.memory_space<smem>>
    %1832 = vector.broadcast %1831 : f32 to vector<16x32xf32>
    %1833 = arith.mulf %1832, %65 : vector<16x32xf32>
    %1834 = arith.addf %1830, %1833 : vector<16x32xf32>
    %c183 = arith.constant 183 : index
    %1835 = memref.load %arg2[%c183] : memref<384xf32, #tpu.memory_space<smem>>
    %1836 = vector.broadcast %1835 : f32 to vector<16x32xf32>
    %1837 = arith.mulf %1836, %67 : vector<16x32xf32>
    %1838 = arith.addf %1834, %1837 : vector<16x32xf32>
    %c191 = arith.constant 191 : index
    %1839 = memref.load %arg2[%c191] : memref<384xf32, #tpu.memory_space<smem>>
    %1840 = vector.broadcast %1839 : f32 to vector<16x32xf32>
    %1841 = arith.mulf %1840, %69 : vector<16x32xf32>
    %1842 = arith.addf %1838, %1841 : vector<16x32xf32>
    %cst_141 = arith.constant 0.000000e+00 : f32
    %1843 = vector.broadcast %cst_141 : f32 to vector<16x32xf32>
    %c199 = arith.constant 199 : index
    %1844 = memref.load %arg2[%c199] : memref<384xf32, #tpu.memory_space<smem>>
    %1845 = vector.broadcast %1844 : f32 to vector<16x32xf32>
    %1846 = arith.mulf %1845, %47 : vector<16x32xf32>
    %1847 = arith.addf %1843, %1846 : vector<16x32xf32>
    %c207 = arith.constant 207 : index
    %1848 = memref.load %arg2[%c207] : memref<384xf32, #tpu.memory_space<smem>>
    %1849 = vector.broadcast %1848 : f32 to vector<16x32xf32>
    %1850 = arith.mulf %1849, %49 : vector<16x32xf32>
    %1851 = arith.addf %1847, %1850 : vector<16x32xf32>
    %c215 = arith.constant 215 : index
    %1852 = memref.load %arg2[%c215] : memref<384xf32, #tpu.memory_space<smem>>
    %1853 = vector.broadcast %1852 : f32 to vector<16x32xf32>
    %1854 = arith.mulf %1853, %51 : vector<16x32xf32>
    %1855 = arith.addf %1851, %1854 : vector<16x32xf32>
    %c223 = arith.constant 223 : index
    %1856 = memref.load %arg2[%c223] : memref<384xf32, #tpu.memory_space<smem>>
    %1857 = vector.broadcast %1856 : f32 to vector<16x32xf32>
    %1858 = arith.mulf %1857, %53 : vector<16x32xf32>
    %1859 = arith.addf %1855, %1858 : vector<16x32xf32>
    %c231 = arith.constant 231 : index
    %1860 = memref.load %arg2[%c231] : memref<384xf32, #tpu.memory_space<smem>>
    %1861 = vector.broadcast %1860 : f32 to vector<16x32xf32>
    %1862 = arith.mulf %1861, %55 : vector<16x32xf32>
    %1863 = arith.addf %1859, %1862 : vector<16x32xf32>
    %c239 = arith.constant 239 : index
    %1864 = memref.load %arg2[%c239] : memref<384xf32, #tpu.memory_space<smem>>
    %1865 = vector.broadcast %1864 : f32 to vector<16x32xf32>
    %1866 = arith.mulf %1865, %57 : vector<16x32xf32>
    %1867 = arith.addf %1863, %1866 : vector<16x32xf32>
    %c247 = arith.constant 247 : index
    %1868 = memref.load %arg2[%c247] : memref<384xf32, #tpu.memory_space<smem>>
    %1869 = vector.broadcast %1868 : f32 to vector<16x32xf32>
    %1870 = arith.mulf %1869, %59 : vector<16x32xf32>
    %1871 = arith.addf %1867, %1870 : vector<16x32xf32>
    %c255 = arith.constant 255 : index
    %1872 = memref.load %arg2[%c255] : memref<384xf32, #tpu.memory_space<smem>>
    %1873 = vector.broadcast %1872 : f32 to vector<16x32xf32>
    %1874 = arith.mulf %1873, %61 : vector<16x32xf32>
    %1875 = arith.addf %1871, %1874 : vector<16x32xf32>
    %c263 = arith.constant 263 : index
    %1876 = memref.load %arg2[%c263] : memref<384xf32, #tpu.memory_space<smem>>
    %1877 = vector.broadcast %1876 : f32 to vector<16x32xf32>
    %1878 = arith.mulf %1877, %63 : vector<16x32xf32>
    %1879 = arith.addf %1875, %1878 : vector<16x32xf32>
    %c271 = arith.constant 271 : index
    %1880 = memref.load %arg2[%c271] : memref<384xf32, #tpu.memory_space<smem>>
    %1881 = vector.broadcast %1880 : f32 to vector<16x32xf32>
    %1882 = arith.mulf %1881, %65 : vector<16x32xf32>
    %1883 = arith.addf %1879, %1882 : vector<16x32xf32>
    %c279 = arith.constant 279 : index
    %1884 = memref.load %arg2[%c279] : memref<384xf32, #tpu.memory_space<smem>>
    %1885 = vector.broadcast %1884 : f32 to vector<16x32xf32>
    %1886 = arith.mulf %1885, %67 : vector<16x32xf32>
    %1887 = arith.addf %1883, %1886 : vector<16x32xf32>
    %c287 = arith.constant 287 : index
    %1888 = memref.load %arg2[%c287] : memref<384xf32, #tpu.memory_space<smem>>
    %1889 = vector.broadcast %1888 : f32 to vector<16x32xf32>
    %1890 = arith.mulf %1889, %69 : vector<16x32xf32>
    %1891 = arith.addf %1887, %1890 : vector<16x32xf32>
    %c295 = arith.constant 295 : index
    %1892 = memref.load %arg2[%c295] : memref<384xf32, #tpu.memory_space<smem>>
    %1893 = vector.broadcast %1892 : f32 to vector<16x32xf32>
    %1894 = arith.mulf %1893, %71 : vector<16x32xf32>
    %1895 = arith.addf %1891, %1894 : vector<16x32xf32>
    %c303 = arith.constant 303 : index
    %1896 = memref.load %arg2[%c303] : memref<384xf32, #tpu.memory_space<smem>>
    %1897 = vector.broadcast %1896 : f32 to vector<16x32xf32>
    %1898 = arith.mulf %1897, %73 : vector<16x32xf32>
    %1899 = arith.addf %1895, %1898 : vector<16x32xf32>
    %c311 = arith.constant 311 : index
    %1900 = memref.load %arg2[%c311] : memref<384xf32, #tpu.memory_space<smem>>
    %1901 = vector.broadcast %1900 : f32 to vector<16x32xf32>
    %1902 = arith.mulf %1901, %75 : vector<16x32xf32>
    %1903 = arith.addf %1899, %1902 : vector<16x32xf32>
    %c319 = arith.constant 319 : index
    %1904 = memref.load %arg2[%c319] : memref<384xf32, #tpu.memory_space<smem>>
    %1905 = vector.broadcast %1904 : f32 to vector<16x32xf32>
    %1906 = arith.mulf %1905, %77 : vector<16x32xf32>
    %1907 = arith.addf %1903, %1906 : vector<16x32xf32>
    %c327 = arith.constant 327 : index
    %1908 = memref.load %arg2[%c327] : memref<384xf32, #tpu.memory_space<smem>>
    %1909 = vector.broadcast %1908 : f32 to vector<16x32xf32>
    %1910 = arith.mulf %1909, %79 : vector<16x32xf32>
    %1911 = arith.addf %1907, %1910 : vector<16x32xf32>
    %c335 = arith.constant 335 : index
    %1912 = memref.load %arg2[%c335] : memref<384xf32, #tpu.memory_space<smem>>
    %1913 = vector.broadcast %1912 : f32 to vector<16x32xf32>
    %1914 = arith.mulf %1913, %81 : vector<16x32xf32>
    %1915 = arith.addf %1911, %1914 : vector<16x32xf32>
    %c343 = arith.constant 343 : index
    %1916 = memref.load %arg2[%c343] : memref<384xf32, #tpu.memory_space<smem>>
    %1917 = vector.broadcast %1916 : f32 to vector<16x32xf32>
    %1918 = arith.mulf %1917, %83 : vector<16x32xf32>
    %1919 = arith.addf %1915, %1918 : vector<16x32xf32>
    %c351 = arith.constant 351 : index
    %1920 = memref.load %arg2[%c351] : memref<384xf32, #tpu.memory_space<smem>>
    %1921 = vector.broadcast %1920 : f32 to vector<16x32xf32>
    %1922 = arith.mulf %1921, %85 : vector<16x32xf32>
    %1923 = arith.addf %1919, %1922 : vector<16x32xf32>
    %c359 = arith.constant 359 : index
    %1924 = memref.load %arg2[%c359] : memref<384xf32, #tpu.memory_space<smem>>
    %1925 = vector.broadcast %1924 : f32 to vector<16x32xf32>
    %1926 = arith.mulf %1925, %87 : vector<16x32xf32>
    %1927 = arith.addf %1923, %1926 : vector<16x32xf32>
    %c367 = arith.constant 367 : index
    %1928 = memref.load %arg2[%c367] : memref<384xf32, #tpu.memory_space<smem>>
    %1929 = vector.broadcast %1928 : f32 to vector<16x32xf32>
    %1930 = arith.mulf %1929, %89 : vector<16x32xf32>
    %1931 = arith.addf %1927, %1930 : vector<16x32xf32>
    %c375 = arith.constant 375 : index
    %1932 = memref.load %arg2[%c375] : memref<384xf32, #tpu.memory_space<smem>>
    %1933 = vector.broadcast %1932 : f32 to vector<16x32xf32>
    %1934 = arith.mulf %1933, %91 : vector<16x32xf32>
    %1935 = arith.addf %1931, %1934 : vector<16x32xf32>
    %c383 = arith.constant 383 : index
    %1936 = memref.load %arg2[%c383] : memref<384xf32, #tpu.memory_space<smem>>
    %1937 = vector.broadcast %1936 : f32 to vector<16x32xf32>
    %1938 = arith.mulf %1937, %93 : vector<16x32xf32>
    %1939 = arith.addf %1935, %1938 : vector<16x32xf32>
    %1940 = vector.shape_cast %1842 : vector<16x32xf32> to vector<1x16x32xf32>
    %cst_142 = arith.constant dense<0.000000e+00> : vector<1xf32>
    %1941 = vector.multi_reduction <add>, %1940, %cst_142 [1, 2] : vector<1x16x32xf32> to vector<1xf32>
    %1942 = vector.shape_cast %1941 : vector<1xf32> to vector<1x1x1xf32>
    %1943 = vector.extract %1942[0, 0, 0] : f32 from vector<1x1x1xf32>
    %1944 = vector.shape_cast %1939 : vector<16x32xf32> to vector<1x16x32xf32>
    %cst_143 = arith.constant dense<0.000000e+00> : vector<1xf32>
    %1945 = vector.multi_reduction <add>, %1944, %cst_143 [1, 2] : vector<1x16x32xf32> to vector<1xf32>
    %1946 = vector.shape_cast %1945 : vector<1xf32> to vector<1x1x1xf32>
    %1947 = vector.extract %1946[0, 0, 0] : f32 from vector<1x1x1xf32>
    %1948 = arith.addf %1943, %1947 : f32
    %cst_144 = arith.constant 9.765625E-4 : f32
    %1949 = arith.mulf %1948, %cst_144 : f32
    %1950 = vector.broadcast %1949 : f32 to vector<16x32xf32>
    %1951 = arith.subf %1842, %1950 : vector<16x32xf32>
    %1952 = vector.broadcast %1949 : f32 to vector<16x32xf32>
    %1953 = arith.subf %1939, %1952 : vector<16x32xf32>
    %1954 = arith.mulf %1951, %1951 : vector<16x32xf32>
    %1955 = vector.shape_cast %1954 : vector<16x32xf32> to vector<1x16x32xf32>
    %cst_145 = arith.constant dense<0.000000e+00> : vector<1xf32>
    %1956 = vector.multi_reduction <add>, %1955, %cst_145 [1, 2] : vector<1x16x32xf32> to vector<1xf32>
    %1957 = vector.shape_cast %1956 : vector<1xf32> to vector<1x1x1xf32>
    %1958 = vector.extract %1957[0, 0, 0] : f32 from vector<1x1x1xf32>
    %1959 = arith.mulf %1953, %1953 : vector<16x32xf32>
    %1960 = vector.shape_cast %1959 : vector<16x32xf32> to vector<1x16x32xf32>
    %cst_146 = arith.constant dense<0.000000e+00> : vector<1xf32>
    %1961 = vector.multi_reduction <add>, %1960, %cst_146 [1, 2] : vector<1x16x32xf32> to vector<1xf32>
    %1962 = vector.shape_cast %1961 : vector<1xf32> to vector<1x1x1xf32>
    %1963 = vector.extract %1962[0, 0, 0] : f32 from vector<1x1x1xf32>
    %1964 = arith.addf %1958, %1963 : f32
    %cst_147 = arith.constant 9.765625E-4 : f32
    %1965 = arith.mulf %1964, %cst_147 : f32
    %cst_148 = arith.constant 9.99999974E-6 : f32
    %1966 = arith.addf %1965, %cst_148 : f32
    %1967 = math.rsqrt %1966 : f32
    %1968 = vector.broadcast %1967 : f32 to vector<16x32xf32>
    %1969 = arith.mulf %1951, %1968 : vector<16x32xf32>
    %cst_149 = arith.constant 0.000000e+00 : f32
    %1970 = vector.broadcast %cst_149 : f32 to vector<16x32xf32>
    %1971 = arith.maximumf %1969, %1970 : vector<16x32xf32>
    %c0_150 = arith.constant 0 : index
    %c7_151 = arith.constant 7 : index
    %c0_152 = arith.constant 0 : index
    %c0_153 = arith.constant 0 : index
    %1972 = vector.load %arg3[%c0_150, %c7_151, %c0_152, %c0_153] : memref<1x8x16x64xf32, #tpu.memory_space<vmem>>, vector<1x1x16x32xf32>
    %1973 = vector.shape_cast %1972 : vector<1x1x16x32xf32> to vector<16x32xf32>
    %1974 = vector.shape_cast %1971 : vector<16x32xf32> to vector<1x1x16x32xf32>
    tpu.vector_store %arg3[%c0_150, %c7_151, %c0_152, %c0_153], %1974 {strides = array<i32>} : memref<1x8x16x64xf32, #tpu.memory_space<vmem>>, vector<1x1x16x32xf32>,
    %1975 = vector.broadcast %1967 : f32 to vector<16x32xf32>
    %1976 = arith.mulf %1953, %1975 : vector<16x32xf32>
    %cst_154 = arith.constant 0.000000e+00 : f32
    %1977 = vector.broadcast %cst_154 : f32 to vector<16x32xf32>
    %1978 = arith.maximumf %1976, %1977 : vector<16x32xf32>
    %c0_155 = arith.constant 0 : index
    %c7_156 = arith.constant 7 : index
    %c0_157 = arith.constant 0 : index
    %c32_158 = arith.constant 32 : index
    %1979 = vector.load %arg3[%c0_155, %c7_156, %c0_157, %c32_158] : memref<1x8x16x64xf32, #tpu.memory_space<vmem>>, vector<1x1x16x32xf32>
    %1980 = vector.shape_cast %1979 : vector<1x1x16x32xf32> to vector<16x32xf32>
    %1981 = vector.shape_cast %1978 : vector<16x32xf32> to vector<1x1x16x32xf32>
    tpu.vector_store %arg3[%c0_155, %c7_156, %c0_157, %c32_158], %1981 {strides = array<i32>} : memref<1x8x16x64xf32, #tpu.memory_space<vmem>>, vector<1x1x16x32xf32>,
    return
  }
  func.func @transform_0(%arg0: i32) -> (i32, i32, i32, i32) {
    %c0_i32 = arith.constant 0 : i32
    %c0_i32_0 = arith.constant 0 : i32
    %c0_i32_1 = arith.constant 0 : i32
    %c0_i32_2 = arith.constant 0 : i32
    return %arg0, %c0_i32, %c0_i32_0, %c0_i32_1 : i32, i32, i32, i32
  }
  func.func @transform_1(%arg0: i32) -> i32 {
    %c0_i32 = arith.constant 0 : i32
    %c0_i32_0 = arith.constant 0 : i32
    return %c0_i32 : i32
  }
  func.func @transform_2(%arg0: i32) -> (i32, i32, i32, i32) {
    %c0_i32 = arith.constant 0 : i32
    %c0_i32_0 = arith.constant 0 : i32
    %c0_i32_1 = arith.constant 0 : i32
    %c0_i32_2 = arith.constant 0 : i32
    return %arg0, %c0_i32, %c0_i32_0, %c0_i32_1 : i32, i32, i32, i32
  }
}

</mosaic_0001>

<llo_original>
// kernel: upconv_block.1
$region0: #{upconv_block.1}
  #allocation0 [shape = 'u32[]', space=smem, size = 0x4, offset = 0x4, fixed_abs, tag = 'smem constant byte address 0x4 - core index']
  #allocation1 [shape = 'u32[72,128]{1,0:T(1,128)}', space=vmem, size = 0x9000, scoped, tag = 'internal scratch']
  %s0 = inlined_call_operand.vmem [shape: f32[2,4,16,16], index: 0, kind: input, shape index: {}]
  %s1 = inlined_call_operand.vmem [shape: f32[384], index: 1, kind: input, shape index: {}]
  %s2 = inlined_call_operand.vmem [shape: f32[2,8,16,64], index: 2, kind: output, shape index: {}]
  %s3 = sld [smem:[#allocation0]]
  $region45: #{upconv_block.1} parent=0
    _
  %s5 = ssub.s32 1, %s3
  %s6 = scalar_select 0, %s5, %s3
  $region1: #{upconv_block.1} parent=0
    #allocation2 [shape = 'u8[1536]{0}', space=smem, size = 0x600, scoped, tag = 'input window, operand 1, single buffered']
    #allocation3 [shape = 's32[2]{0}', space=sflag, size = 0x8, scoped, tag = 'scoped memory for upconv_block.1']
    %7 = vsyncpa [#allocation3], 0
    loop: start=0, step=1, limit=4
    $region2: #{upconv_block.1} parent=1 // loop_pre_header
      _
    $region3: #{upconv_block.1} parent=1 // loop_header
      %s9 = sphi 0, %s13
      %p10 = scmp.ge.s32.totalorder %s9, 4
      %s19 = sphi 0, %s21
      %s22 = sphi 0, %s19
      %s23 = sphi 0, %s22
      %s39 = sphi 0, %s23
      %s43 = sphi 0, %s43
      %s45 = sphi 0, %s43
      %s46 = sphi 0, %s45
      %s60 = sphi 0, %s46
      %s66 = sphi 0, %s68
      %s69 = sphi 0, %s66
      %s70 = sphi 0, %s69
      %s86 = sphi 0, %s70
    $region4: #{upconv_block.1} parent=1 // loop_header_branch
      %12 = sbr.rel (%p10) target = $region8
    $region5: #{upconv_block.1} parent=1 // loop_body
      %s14 = ssub.s32 %s9, 1
      %s15 = ssub.s32 %s9, 2
      %s16 = sadd.s32 %s9, 1
      %s17 = ssub.s32 %s9, %s16
      %p18 = scmp.eq.s32.totalorder %s17, 0
      %s20 = sadd.s32 %s19, 1
      %s21 = scalar_select %p18, %s19, %s20
      %p24 = pneg %p18
      %p25 = scmp.eq.s32.totalorder %s9, 1
      %p26 = por %p24, %p25
      %p27 = scmp.ne.s32.totalorder %s19, %s22
      %p28 = scmp.eq.s32.totalorder %s9, 0
      %p29 = por %p27, %p28
      %p30 = scmp.ne.s32.totalorder %s19, %s22
      %p31 = scmp.eq.s32.totalorder %s14, 1
      %p32 = por %p30, %p31
      %p33 = scmp.ne.s32.totalorder %s22, %s23
      %p34 = scmp.eq.s32.totalorder %s14, 0
      %p35 = por %p33, %p34
      %p36 = scmp.ne.s32.totalorder %s22, %s23
      %p37 = scmp.eq.s32.totalorder %s15, 1
      %p38 = por %p36, %p37
      %p40 = scmp.ne.s32.totalorder %s23, %s39
      %p41 = scmp.eq.s32.totalorder %s15, 0
      %p42 = por %p40, %p41
      %s44 = sadd.s32 %s43, 1
      %p47 = scmp.eq.s32.totalorder %s9, 1
      %p48 = scmp.ne.s32.totalorder %s43, %s45
      %p49 = scmp.eq.s32.totalorder %s9, 0
      %p50 = por %p48, %p49
      %p51 = scmp.ne.s32.totalorder %s43, %s45
      %p52 = scmp.eq.s32.totalorder %s14, 1
      %p53 = por %p51, %p52
      %p54 = scmp.ne.s32.totalorder %s45, %s46
      %p55 = scmp.eq.s32.totalorder %s14, 0
      %p56 = por %p54, %p55
      %p57 = scmp.ne.s32.totalorder %s45, %s46
      %p58 = scmp.eq.s32.totalorder %s15, 1
      %p59 = por %p57, %p58
      %p61 = scmp.ne.s32.totalorder %s46, %s60
      %p62 = scmp.eq.s32.totalorder %s15, 0
      %p63 = por %p61, %p62
      %s64 = ssub.s32 %s9, %s16
      %p65 = scmp.eq.s32.totalorder %s64, 0
      %s67 = sadd.s32 %s66, 1
      %s68 = scalar_select %p65, %s66, %s67
      %p71 = pneg %p65
      %p72 = scmp.eq.s32.totalorder %s9, 1
      %p73 = por %p71, %p72
      %p74 = scmp.ne.s32.totalorder %s66, %s69
      %p75 = scmp.eq.s32.totalorder %s9, 0
      %p76 = por %p74, %p75
      %p77 = scmp.ne.s32.totalorder %s66, %s69
      %p78 = scmp.eq.s32.totalorder %s14, 1
      %p79 = por %p77, %p78
      %p80 = scmp.ne.s32.totalorder %s69, %s70
      %p81 = scmp.eq.s32.totalorder %s14, 0
      %p82 = por %p80, %p81
      %p83 = scmp.ne.s32.totalorder %s69, %s70
      %p84 = scmp.eq.s32.totalorder %s15, 1
      %p85 = por %p83, %p84
      %p87 = scmp.ne.s32.totalorder %s70, %s86
      %p88 = scmp.eq.s32.totalorder %s15, 0
      %p89 = por %p87, %p88
      %p90 = scmp.le.s32.totalorder 1, %s9
      %p91 = scmp.lt.s32.totalorder %s9, 3
      %p92 = pnand %p90, %p91
      %p93 = pneg %p92
      // Predicated region
      $region9: #{upconv_block.1} parent=5 // pred_check
        _
      $region10: #{upconv_block.1} parent=5 // pred_check_branch
        %95 = sbr.rel (%p92) target = $region12
      $region11: #{upconv_block.1} parent=5 // pred_region
        %s96 = ssub.s32 %s9, 1
        // Predicated region
        $region13: #{upconv_block.1} parent=11 // pred_check
          %p97 = pneg %p56
        $region14: #{upconv_block.1} parent=11 // pred_check_branch
          %99 = sbr.rel (%p97) target = $region16
        $region15: #{upconv_block.1} parent=11 // pred_region
          %101 = vsyncadd [#allocation3], 0
          %s103 = sshll.u32 %s1, 4
          %s104 = int_to_ptr.vmem [resolvable:$true] %s103
          %106 = dma.vmem_to_smem %s104, 48, [#allocation2], [#allocation3]
        $region16: #{upconv_block.1} parent=11 // pred_fallthru
          _
      $region12: #{upconv_block.1} parent=5 // pred_fallthru
        _
      %p107 = scmp.lt.s32.totalorder %s9, 2
      // Predicated region
      $region17: #{upconv_block.1} parent=5 // pred_check
        %p108 = pneg %p107
      $region18: #{upconv_block.1} parent=5 // pred_check_branch
        %110 = sbr.rel (%p108) target = $region20
      $region19: #{upconv_block.1} parent=5 // pred_region
        // Predicated region
        $region21: #{upconv_block.1} parent=19 // pred_check
          %p111 = pneg %p29
        $region22: #{upconv_block.1} parent=19 // pred_check_branch
          %113 = sbr.rel (%p111) target = $region24
        $region23: #{upconv_block.1} parent=19 // pred_region
          %p114 = scmp.lt.s32.totalorder %s9, 1
          %s115 = scalar_select %p114, %s9, 1
          %s116 = smul.addr %s115, 8
          %s117 = smul.addr %s116, 8
          %s118 = scalar_lea.vmem %s0, %s117
        $region24: #{upconv_block.1} parent=19 // pred_fallthru
          _
      $region20: #{upconv_block.1} parent=5 // pred_fallthru
        _
      %p119 = scmp.le.s32.totalorder 1, %s9
      %p120 = scmp.lt.s32.totalorder %s9, 3
      %p121 = pnand %p119, %p120
      %p122 = pneg %p121
      // Predicated region
      $region25: #{upconv_block.1} parent=5 // pred_check
        _
      $region26: #{upconv_block.1} parent=5 // pred_check_branch
        %124 = sbr.rel (%p121) target = $region28
      $region27: #{upconv_block.1} parent=5 // pred_region
        %s125 = ssub.s32 %s9, 1
        // Predicated region
        $region29: #{upconv_block.1} parent=27 // pred_check
          %p126 = pneg %p56
        $region30: #{upconv_block.1} parent=27 // pred_check_branch
          %128 = sbr.rel (%p126) target = $region32
        $region31: #{upconv_block.1} parent=27 // pred_region
          %130 = dma.done [#allocation3], 48
        $region32: #{upconv_block.1} parent=27 // pred_fallthru
          _
        %131 = sfence
        %p132 = scmp.lt.s32.totalorder %s14, 1
        %s133 = scalar_select %p132, %s14, 1
        %s134 = smul.addr %s133, 8
        %s135 = smul.addr %s134, 8
        %s136 = scalar_lea.vmem %s0, %s135
        %p137 = pneg %p35
        %p138 = pneg %p32
        %p139 = pneg %p56
        %p140 = pneg %p53
        %p141 = pneg %p82
        %p142 = pneg %p79
        %p143 = scmp.lt.s32.totalorder %s14, 1
        %s144 = scalar_select %p143, %s14, 1
        %s145 = smul.addr %s144, 16
        %s146 = smul.addr %s145, 8
        %s147 = scalar_lea.vmem %s2, %s146
        %p148 = scmp.lt.s32.totalorder %s14, 1
        %s149 = scalar_select %p148, %s14, 1
        %s150 = smul.addr %s149, 8
        %s151 = smul.addr %s150, 8
        %s152 = scalar_lea.vmem %s0, %s151
        %p153 = scmp.lt.s32.totalorder %s14, 1
        %s154 = scalar_select %p153, %s14, 1
        %s155 = smul.addr %s154, 16
        %s156 = smul.addr %s155, 8
        %s157 = scalar_lea.vmem %s2, %s156
        %v158 = vld [vmem:[%s152] sm:$0xff]
        %v159 = vld [vmem:[%s152 + $0x8] sm:$0xff]
        %v160 = vld [vmem:[%s152 + $0x10] sm:$0xff]
        %v161 = vld [vmem:[%s152 + $0x18] sm:$0xff]
        %v162 = vld [vmem:[%s152 + $0x20] sm:$0xff]
        %v163 = vld [vmem:[%s152 + $0x28] sm:$0xff]
        %v164 = vld [vmem:[%s152 + $0x30] sm:$0xff]
        %v165 = vld [vmem:[%s152 + $0x38] sm:$0xff]
        %v166 = vlaneseq
        %v167 = vshrl.u32 %v166, 7
        %v168 = vadd.s32 %v167, 8
        %v169 = vlaneseq
        %v170 = vand.u32 %v169, 127
        %v171 = vmul.u32 %v167, 2
        %v172 = vmul.u32 %v168, 2
        %v173 = vadd.s32 %v171, 1
        %v174 = vadd.s32 %v172, 1
        %vm175 = vcmp.eq.s32.totalorder %v170, %v173
        %vm176 = vcmp.eq.s32.totalorder %v170, %v174
        %v177 = vadd.s32 %v171, 2
        %v178 = vadd.s32 %v172, 2
        %vm179 = vcmp.eq.s32.totalorder %v170, %v177
        %vm180 = vcmp.eq.s32.totalorder %v170, %v178
        %vm181 = vmor %vm175, %vm179
        %vm182 = vmor %vm176, %vm180
        %v183 = vsel %vm181, 1, 0
        %v184 = vsel %vm182, 1, 0
        %v185 = vcvt.s32.f32 %v183
        %v186 = vcvt.s32.f32 %v184
        %vm187 = vcmask 130048
        %v189 = vsel %vm187, %v158, 0
        %v192 = vsel %vm187, %v159, 0
        %v195 = vsel %vm187, %v160, 0
        %v198 = vsel %vm187, %v161, 0
        %v201 = vsel %vm187, %v162, 0
        %v204 = vsel %vm187, %v163, 0
        %v207 = vsel %vm187, %v164, 0
        %v210 = vsel %vm187, %v165, 0
        %212 = vmatpush.msra.mxu0 0.0
        %213 = vmatpush.msra.mxu0 0.0
        %214 = vmatpush.msra.mxu0 0.0
        %215 = vmatpush.msra.mxu0 0.0
        %216 = vmatpush.msra.mxu0 0.0
        %217 = vmatpush.msra.mxu0 0.0
        %218 = vmatpush.msra.mxu0 0.0
        %219 = vmatpush.msra.mxu0 0.0
        %220 = vmatpush.msra.mxu0 0.0
        %221 = vmatpush.msra.mxu0 0.0
        %222 = vmatpush.msra.mxu0 0.0
        %223 = vmatpush.msra.mxu0 0.0
        %224 = vmatpush.msra.mxu0 0.0
        %225 = vmatpush.msra.mxu0 0.0
        %226 = vmatpush.msra.mxu0 %v186
        %227 = vmatpush.msra.mxu0 %v185
        %228 = vmatmul.f32.gmra.mxu0 %v189
        %v229 = vpop.f32.mrf.mxu0
        %v230 = vadd.f32 0.0, %v229
        %231 = vmatmul.f32.gmra.mxu0 %v192
        %v232 = vpop.f32.mrf.mxu0
        %v233 = vadd.f32 0.0, %v232
        %234 = vmatmul.f32.gmra.mxu0 %v195
        %v235 = vpop.f32.mrf.mxu0
        %v236 = vadd.f32 0.0, %v235
        %237 = vmatmul.f32.gmra.mxu0 %v198
        %v238 = vpop.f32.mrf.mxu0
        %v239 = vadd.f32 0.0, %v238
        %240 = vmatmul.f32.gmra.mxu0 %v201
        %v241 = vpop.f32.mrf.mxu0
        %v242 = vadd.f32 0.0, %v241
        %243 = vmatmul.f32.gmra.mxu0 %v204
        %v244 = vpop.f32.mrf.mxu0
        %v245 = vadd.f32 0.0, %v244
        %246 = vmatmul.f32.gmra.mxu0 %v207
        %v247 = vpop.f32.mrf.mxu0
        %v248 = vadd.f32 0.0, %v247
        %249 = vmatmul.f32.gmra.mxu0 %v210
        %v250 = vpop.f32.mrf.mxu0
        %v251 = vadd.f32 0.0, %v250
        %252 = vdwg.mxu0
        %vm261 = vcmask 1040384
        %v262 = vrot.slane %v230, 7
        %v263 = vrot.slane %v233, 7
        %v264 = vsel %vm261, %v262, %v263
        %v265 = vrot.slane %v236, 7
        %v266 = vrot.slane %v239, 7
        %v267 = vsel %vm261, %v265, %v266
        %v268 = vrot.slane %v242, 7
        %v269 = vrot.slane %v245, 7
        %v270 = vsel %vm261, %v268, %v269
        %v271 = vrot.slane %v248, 7
        %v272 = vrot.slane %v251, 7
        %v273 = vsel %vm261, %v271, %v272
        %v286 = vsel %vm261, 0.0, %v262
        %v287 = vsel %vm261, 0.0, %v265
        %v288 = vsel %vm261, 0.0, %v268
        %v289 = vsel %vm261, 0.0, %v271
        %v290 = vsel %vm261, %v263, 0.0
        %v291 = vsel %vm261, %v266, 0.0
        %v292 = vsel %vm261, %v269, 0.0
        %v293 = vsel %vm261, %v272, 0.0
        %s294 = sld [smem:[#allocation2]]
        %v295 = vstv %s294
        %v296 = vmul.f32 %v295, %v286
        %v297 = vmul.f32 %v295, %v264
        %v298 = vadd.f32 %v296, 0.0
        %v299 = vadd.f32 %v297, 0.0
        %s300 = sld [smem:[#allocation2 + $0x8]]
        %v301 = vstv %s300
        %v302 = vmul.f32 %v301, %v287
        %v303 = vmul.f32 %v301, %v267
        %v304 = vadd.f32 %v298, %v302
        %v305 = vadd.f32 %v299, %v303
        %s306 = sld [smem:[#allocation2 + $0x10]]
        %v307 = vstv %s306
        %v308 = vmul.f32 %v307, %v288
        %v309 = vmul.f32 %v307, %v270
        %v310 = vadd.f32 %v304, %v308
        %v311 = vadd.f32 %v305, %v309
        %s312 = sld [smem:[#allocation2 + $0x18]]
        %v313 = vstv %s312
        %v314 = vmul.f32 %v313, %v289
        %v315 = vmul.f32 %v313, %v273
        %v316 = vadd.f32 %v310, %v314
        %v317 = vadd.f32 %v311, %v315
        %s318 = sld [smem:[#allocation2 + $0x20]]
        %v319 = vstv %s318
        %v320 = vmul.f32 %v319, %v286
        %v321 = vmul.f32 %v319, %v264
        %324 = vrot.lane.b32.xlu0 %v320, 127
        %v325 = vpop.permute.xlu0 %324
        %326 = vrot.lane.b32.xlu0 %v321, 127
        %v327 = vpop.permute.xlu0 %326
        %v330 = vadd.f32 %v316, %v325
        %v331 = vadd.f32 %v317, %v327
        %s332 = sld [smem:[#allocation2 + $0x28]]
        %v333 = vstv %s332
        %v334 = vmul.f32 %v333, %v287
        %v335 = vmul.f32 %v333, %v267
        %338 = vrot.lane.b32.xlu0 %v334, 127
        %v339 = vpop.permute.xlu0 %338
        %340 = vrot.lane.b32.xlu0 %v335, 127
        %v341 = vpop.permute.xlu0 %340
        %v344 = vadd.f32 %v330, %v339
        %v345 = vadd.f32 %v331, %v341
        %s346 = sld [smem:[#allocation2 + $0x30]]
        %v347 = vstv %s346
        %v348 = vmul.f32 %v347, %v288
        %v349 = vmul.f32 %v347, %v270
        %352 = vrot.lane.b32.xlu0 %v348, 127
        %v353 = vpop.permute.xlu0 %352
        %354 = vrot.lane.b32.xlu0 %v349, 127
        %v355 = vpop.permute.xlu0 %354
        %v358 = vadd.f32 %v344, %v353
        %v359 = vadd.f32 %v345, %v355
        %s360 = sld [smem:[#allocation2 + $0x38]]
        %v361 = vstv %s360
        %v362 = vmul.f32 %v361, %v289
        %v363 = vmul.f32 %v361, %v273
        %366 = vrot.lane.b32.xlu0 %v362, 127
        %v367 = vpop.permute.xlu0 %366
        %368 = vrot.lane.b32.xlu0 %v363, 127
        %v369 = vpop.permute.xlu0 %368
        %v372 = vadd.f32 %v358, %v367
        %v373 = vadd.f32 %v359, %v369
        %s374 = sld [smem:[#allocation2 + $0x40]]
        %v375 = vstv %s374
        %v376 = vmul.f32 %v375, %v286
        %v377 = vmul.f32 %v375, %v264
        %380 = vrot.lane.b32.xlu0 %v376, 126
        %v381 = vpop.permute.xlu0 %380
        %382 = vrot.lane.b32.xlu0 %v377, 126
        %v383 = vpop.permute.xlu0 %382
        %v386 = vadd.f32 %v372, %v381
        %v387 = vadd.f32 %v373, %v383
        %s388 = sld [smem:[#allocation2 + $0x48]]
        %v389 = vstv %s388
        %v390 = vmul.f32 %v389, %v287
        %v391 = vmul.f32 %v389, %v267
        %394 = vrot.lane.b32.xlu0 %v390, 126
        %v395 = vpop.permute.xlu0 %394
        %396 = vrot.lane.b32.xlu0 %v391, 126
        %v397 = vpop.permute.xlu0 %396
        %v400 = vadd.f32 %v386, %v395
        %v401 = vadd.f32 %v387, %v397
        %s402 = sld [smem:[#allocation2 + $0x50]]
        %v403 = vstv %s402
        %v404 = vmul.f32 %v403, %v288
        %v405 = vmul.f32 %v403, %v270
        %408 = vrot.lane.b32.xlu0 %v404, 126
        %v409 = vpop.permute.xlu0 %408
        %410 = vrot.lane.b32.xlu0 %v405, 126
        %v411 = vpop.permute.xlu0 %410
        %v414 = vadd.f32 %v400, %v409
        %v415 = vadd.f32 %v401, %v411
        %s416 = sld [smem:[#allocation2 + $0x58]]
        %v417 = vstv %s416
        %v418 = vmul.f32 %v417, %v289
        %v419 = vmul.f32 %v417, %v273
        %422 = vrot.lane.b32.xlu0 %v418, 126
        %v423 = vpop.permute.xlu0 %422
        %424 = vrot.lane.b32.xlu0 %v419, 126
        %v425 = vpop.permute.xlu0 %424
        %v428 = vadd.f32 %v414, %v423
        %v429 = vadd.f32 %v415, %v425
        %s430 = sld [smem:[#allocation2 + $0x60]]
        %v431 = vstv %s430
        %v432 = vmul.f32 %v431, %v286
        %v433 = vmul.f32 %v431, %v264
        %v434 = vmul.f32 %v431, %v290
        %vm438 = vcmask 1046528
        %v439 = vrot.slane %v432, 1
        %v440 = vrot.slane %v433, 1
        %v441 = vsel %vm438, %v439, %v440
        %v442 = vrot.slane %v434, 1
        %v443 = vsel %vm438, %v440, %v442
        %v446 = vadd.f32 %v428, %v441
        %v447 = vadd.f32 %v429, %v443
        %s448 = sld [smem:[#allocation2 + $0x68]]
        %v449 = vstv %s448
        %v450 = vmul.f32 %v449, %v287
        %v451 = vmul.f32 %v449, %v267
        %v452 = vmul.f32 %v449, %v291
        %v456 = vrot.slane %v450, 1
        %v457 = vrot.slane %v451, 1
        %v458 = vsel %vm438, %v456, %v457
        %v459 = vrot.slane %v452, 1
        %v460 = vsel %vm438, %v457, %v459
        %v463 = vadd.f32 %v446, %v458
        %v464 = vadd.f32 %v447, %v460
        %s465 = sld [smem:[#allocation2 + $0x70]]
        %v466 = vstv %s465
        %v467 = vmul.f32 %v466, %v288
        %v468 = vmul.f32 %v466, %v270
        %v469 = vmul.f32 %v466, %v292
        %v473 = vrot.slane %v467, 1
        %v474 = vrot.slane %v468, 1
        %v475 = vsel %vm438, %v473, %v474
        %v476 = vrot.slane %v469, 1
        %v477 = vsel %vm438, %v474, %v476
        %v480 = vadd.f32 %v463, %v475
        %v481 = vadd.f32 %v464, %v477
        %s482 = sld [smem:[#allocation2 + $0x78]]
        %v483 = vstv %s482
        %v484 = vmul.f32 %v483, %v289
        %v485 = vmul.f32 %v483, %v273
        %v486 = vmul.f32 %v483, %v293
        %v490 = vrot.slane %v484, 1
        %v491 = vrot.slane %v485, 1
        %v492 = vsel %vm438, %v490, %v491
        %v493 = vrot.slane %v486, 1
        %v494 = vsel %vm438, %v491, %v493
        %v497 = vadd.f32 %v480, %v492
        %v498 = vadd.f32 %v481, %v494
        %s499 = sld [smem:[#allocation2 + $0x80]]
        %v500 = vstv %s499
        %v501 = vmul.f32 %v500, %v286
        %v502 = vmul.f32 %v500, %v264
        %v503 = vmul.f32 %v500, %v290
        %v507 = vrot.slane %v501, 1
        %v508 = vrot.slane %v502, 1
        %v509 = vsel %vm438, %v507, %v508
        %v510 = vrot.slane %v503, 1
        %v511 = vsel %vm438, %v508, %v510
        %512 = vrot.lane.b32.xlu0 %v509, 127
        %v513 = vpop.permute.xlu0 %512
        %514 = vrot.lane.b32.xlu0 %v511, 127
        %v515 = vpop.permute.xlu0 %514
        %v518 = vadd.f32 %v497, %v513
        %v519 = vadd.f32 %v498, %v515
        %s520 = sld [smem:[#allocation2 + $0x88]]
        %v521 = vstv %s520
        %v522 = vmul.f32 %v521, %v287
        %v523 = vmul.f32 %v521, %v267
        %v524 = vmul.f32 %v521, %v291
        %v528 = vrot.slane %v522, 1
        %v529 = vrot.slane %v523, 1
        %v530 = vsel %vm438, %v528, %v529
        %v531 = vrot.slane %v524, 1
        %v532 = vsel %vm438, %v529, %v531
        %533 = vrot.lane.b32.xlu0 %v530, 127
        %v534 = vpop.permute.xlu0 %533
        %535 = vrot.lane.b32.xlu0 %v532, 127
        %v536 = vpop.permute.xlu0 %535
        %v539 = vadd.f32 %v518, %v534
        %v540 = vadd.f32 %v519, %v536
        %s541 = sld [smem:[#allocation2 + $0x90]]
        %v542 = vstv %s541
        %v543 = vmul.f32 %v542, %v288
        %v544 = vmul.f32 %v542, %v270
        %v545 = vmul.f32 %v542, %v292
        %v549 = vrot.slane %v543, 1
        %v550 = vrot.slane %v544, 1
        %v551 = vsel %vm438, %v549, %v550
        %v552 = vrot.slane %v545, 1
        %v553 = vsel %vm438, %v550, %v552
        %554 = vrot.lane.b32.xlu0 %v551, 127
        %v555 = vpop.permute.xlu0 %554
        %556 = vrot.lane.b32.xlu0 %v553, 127
        %v557 = vpop.permute.xlu0 %556
        %v560 = vadd.f32 %v539, %v555
        %v561 = vadd.f32 %v540, %v557
        %s562 = sld [smem:[#allocation2 + $0x98]]
        %v563 = vstv %s562
        %v564 = vmul.f32 %v563, %v289
        %v565 = vmul.f32 %v563, %v273
        %v566 = vmul.f32 %v563, %v293
        %v570 = vrot.slane %v564, 1
        %v571 = vrot.slane %v565, 1
        %v572 = vsel %vm438, %v570, %v571
        %v573 = vrot.slane %v566, 1
        %v574 = vsel %vm438, %v571, %v573
        %575 = vrot.lane.b32.xlu0 %v572, 127
        %v576 = vpop.permute.xlu0 %575
        %577 = vrot.lane.b32.xlu0 %v574, 127
        %v578 = vpop.permute.xlu0 %577
        %v581 = vadd.f32 %v560, %v576
        %v582 = vadd.f32 %v561, %v578
        %s583 = sld [smem:[#allocation2 + $0xa0]]
        %v584 = vstv %s583
        %v585 = vmul.f32 %v584, %v286
        %v586 = vmul.f32 %v584, %v264
        %v587 = vmul.f32 %v584, %v290
        %v591 = vrot.slane %v585, 1
        %v592 = vrot.slane %v586, 1
        %v593 = vsel %vm438, %v591, %v592
        %v594 = vrot.slane %v587, 1
        %v595 = vsel %vm438, %v592, %v594
        %596 = vrot.lane.b32.xlu0 %v593, 126
        %v597 = vpop.permute.xlu0 %596
        %598 = vrot.lane.b32.xlu0 %v595, 126
        %v599 = vpop.permute.xlu0 %598
        %v602 = vadd.f32 %v581, %v597
        %v603 = vadd.f32 %v582, %v599
        %s604 = sld [smem:[#allocation2 + $0xa8]]
        %v605 = vstv %s604
        %v606 = vmul.f32 %v605, %v287
        %v607 = vmul.f32 %v605, %v267
        %v608 = vmul.f32 %v605, %v291
        %v612 = vrot.slane %v606, 1
        %v613 = vrot.slane %v607, 1
        %v614 = vsel %vm438, %v612, %v613
        %v615 = vrot.slane %v608, 1
        %v616 = vsel %vm438, %v613, %v615
        %617 = vrot.lane.b32.xlu0 %v614, 126
        %v618 = vpop.permute.xlu0 %617
        %619 = vrot.lane.b32.xlu0 %v616, 126
        %v620 = vpop.permute.xlu0 %619
        %v623 = vadd.f32 %v602, %v618
        %v624 = vadd.f32 %v603, %v620
        %s625 = sld [smem:[#allocation2 + $0xb0]]
        %v626 = vstv %s625
        %v627 = vmul.f32 %v626, %v288
        %v628 = vmul.f32 %v626, %v270
        %v629 = vmul.f32 %v626, %v292
        %v633 = vrot.slane %v627, 1
        %v634 = vrot.slane %v628, 1
        %v635 = vsel %vm438, %v633, %v634
        %v636 = vrot.slane %v629, 1
        %v637 = vsel %vm438, %v634, %v636
        %638 = vrot.lane.b32.xlu0 %v635, 126
        %v639 = vpop.permute.xlu0 %638
        %640 = vrot.lane.b32.xlu0 %v637, 126
        %v641 = vpop.permute.xlu0 %640
        %v644 = vadd.f32 %v623, %v639
        %v645 = vadd.f32 %v624, %v641
        %s646 = sld [smem:[#allocation2 + $0xb8]]
        %v647 = vstv %s646
        %v648 = vmul.f32 %v647, %v289
        %v649 = vmul.f32 %v647, %v273
        %v650 = vmul.f32 %v647, %v293
        %v654 = vrot.slane %v648, 1
        %v655 = vrot.slane %v649, 1
        %v656 = vsel %vm438, %v654, %v655
        %v657 = vrot.slane %v650, 1
        %v658 = vsel %vm438, %v655, %v657
        %659 = vrot.lane.b32.xlu0 %v656, 126
        %v660 = vpop.permute.xlu0 %659
        %661 = vrot.lane.b32.xlu0 %v658, 126
        %v662 = vpop.permute.xlu0 %661
        %v665 = vadd.f32 %v644, %v660
        %v666 = vadd.f32 %v645, %v662
        %s667 = sld [smem:[#allocation2 + $0xc0]]
        %v668 = vstv %s667
        %v669 = vmul.f32 %v668, %v286
        %v670 = vmul.f32 %v668, %v264
        %v671 = vmul.f32 %v668, %v290
        %v672 = vadd.f32 %v669, 0.0
        %v673 = vadd.f32 %v670, 0.0
        %v674 = vadd.f32 %v671, 0.0
        %s675 = sld [smem:[#allocation2 + $0xc8]]
        %v676 = vstv %s675
        %v677 = vmul.f32 %v676, %v287
        %v678 = vmul.f32 %v676, %v267
        %v679 = vmul.f32 %v676, %v291
        %v680 = vadd.f32 %v672, %v677
        %v681 = vadd.f32 %v673, %v678
        %v682 = vadd.f32 %v674, %v679
        %s683 = sld [smem:[#allocation2 + $0xd0]]
        %v684 = vstv %s683
        %v685 = vmul.f32 %v684, %v288
        %v686 = vmul.f32 %v684, %v270
        %v687 = vmul.f32 %v684, %v292
        %v688 = vadd.f32 %v680, %v685
        %v689 = vadd.f32 %v681, %v686
        %v690 = vadd.f32 %v682, %v687
        %s691 = sld [smem:[#allocation2 + $0xd8]]
        %v692 = vstv %s691
        %v693 = vmul.f32 %v692, %v289
        %v694 = vmul.f32 %v692, %v273
        %v695 = vmul.f32 %v692, %v293
        %v696 = vadd.f32 %v688, %v693
        %v697 = vadd.f32 %v689, %v694
        %v698 = vadd.f32 %v690, %v695
        %s699 = sld [smem:[#allocation2 + $0xe0]]
        %v700 = vstv %s699
        %v701 = vmul.f32 %v700, %v286
        %v702 = vmul.f32 %v700, %v264
        %v703 = vmul.f32 %v700, %v290
        %707 = vrot.lane.b32.xlu0 %v701, 127
        %v708 = vpop.permute.xlu0 %707
        %709 = vrot.lane.b32.xlu0 %v702, 127
        %v710 = vpop.permute.xlu0 %709
        %711 = vrot.lane.b32.xlu0 %v703, 127
        %v712 = vpop.permute.xlu0 %711
        %v716 = vadd.f32 %v696, %v708
        %v717 = vadd.f32 %v697, %v710
        %v718 = vadd.f32 %v698, %v712
        %s719 = sld [smem:[#allocation2 + $0xe8]]
        %v720 = vstv %s719
        %v721 = vmul.f32 %v720, %v287
        %v722 = vmul.f32 %v720, %v267
        %v723 = vmul.f32 %v720, %v291
        %727 = vrot.lane.b32.xlu0 %v721, 127
        %v728 = vpop.permute.xlu0 %727
        %729 = vrot.lane.b32.xlu0 %v722, 127
        %v730 = vpop.permute.xlu0 %729
        %731 = vrot.lane.b32.xlu0 %v723, 127
        %v732 = vpop.permute.xlu0 %731
        %v736 = vadd.f32 %v716, %v728
        %v737 = vadd.f32 %v717, %v730
        %v738 = vadd.f32 %v718, %v732
        %s739 = sld [smem:[#allocation2 + $0xf0]]
        %v740 = vstv %s739
        %v741 = vmul.f32 %v740, %v288
        %v742 = vmul.f32 %v740, %v270
        %v743 = vmul.f32 %v740, %v292
        %747 = vrot.lane.b32.xlu0 %v741, 127
        %v748 = vpop.permute.xlu0 %747
        %749 = vrot.lane.b32.xlu0 %v742, 127
        %v750 = vpop.permute.xlu0 %749
        %751 = vrot.lane.b32.xlu0 %v743, 127
        %v752 = vpop.permute.xlu0 %751
        %v756 = vadd.f32 %v736, %v748
        %v757 = vadd.f32 %v737, %v750
        %v758 = vadd.f32 %v738, %v752
        %s759 = sld [smem:[#allocation2 + $0xf8]]
        %v760 = vstv %s759
        %v761 = vmul.f32 %v760, %v289
        %v762 = vmul.f32 %v760, %v273
        %v763 = vmul.f32 %v760, %v293
        %767 = vrot.lane.b32.xlu0 %v761, 127
        %v768 = vpop.permute.xlu0 %767
        %769 = vrot.lane.b32.xlu0 %v762, 127
        %v770 = vpop.permute.xlu0 %769
        %771 = vrot.lane.b32.xlu0 %v763, 127
        %v772 = vpop.permute.xlu0 %771
        %v776 = vadd.f32 %v756, %v768
        %v777 = vadd.f32 %v757, %v770
        %v778 = vadd.f32 %v758, %v772
        %s779 = sld [smem:[#allocation2 + $0x100]]
        %v780 = vstv %s779
        %v781 = vmul.f32 %v780, %v286
        %v782 = vmul.f32 %v780, %v264
        %v783 = vmul.f32 %v780, %v290
        %787 = vrot.lane.b32.xlu0 %v781, 126
        %v788 = vpop.permute.xlu0 %787
        %789 = vrot.lane.b32.xlu0 %v782, 126
        %v790 = vpop.permute.xlu0 %789
        %791 = vrot.lane.b32.xlu0 %v783, 126
        %v792 = vpop.permute.xlu0 %791
        %v796 = vadd.f32 %v776, %v788
        %v797 = vadd.f32 %v777, %v790
        %v798 = vadd.f32 %v778, %v792
        %s799 = sld [smem:[#allocation2 + $0x108]]
        %v800 = vstv %s799
        %v801 = vmul.f32 %v800, %v287
        %v802 = vmul.f32 %v800, %v267
        %v803 = vmul.f32 %v800, %v291
        %807 = vrot.lane.b32.xlu0 %v801, 126
        %v808 = vpop.permute.xlu0 %807
        %809 = vrot.lane.b32.xlu0 %v802, 126
        %v810 = vpop.permute.xlu0 %809
        %811 = vrot.lane.b32.xlu0 %v803, 126
        %v812 = vpop.permute.xlu0 %811
        %v816 = vadd.f32 %v796, %v808
        %v817 = vadd.f32 %v797, %v810
        %v818 = vadd.f32 %v798, %v812
        %s819 = sld [smem:[#allocation2 + $0x110]]
        %v820 = vstv %s819
        %v821 = vmul.f32 %v820, %v288
        %v822 = vmul.f32 %v820, %v270
        %v823 = vmul.f32 %v820, %v292
        %827 = vrot.lane.b32.xlu0 %v821, 126
        %v828 = vpop.permute.xlu0 %827
        %829 = vrot.lane.b32.xlu0 %v822, 126
        %v830 = vpop.permute.xlu0 %829
        %831 = vrot.lane.b32.xlu0 %v823, 126
        %v832 = vpop.permute.xlu0 %831
        %v836 = vadd.f32 %v816, %v828
        %v837 = vadd.f32 %v817, %v830
        %v838 = vadd.f32 %v818, %v832
        %s839 = sld [smem:[#allocation2 + $0x118]]
        %v840 = vstv %s839
        %v841 = vmul.f32 %v840, %v289
        %v842 = vmul.f32 %v840, %v273
        %v843 = vmul.f32 %v840, %v293
        %847 = vrot.lane.b32.xlu0 %v841, 126
        %v848 = vpop.permute.xlu0 %847
        %849 = vrot.lane.b32.xlu0 %v842, 126
        %v850 = vpop.permute.xlu0 %849
        %851 = vrot.lane.b32.xlu0 %v843, 126
        %v852 = vpop.permute.xlu0 %851
        %v856 = vadd.f32 %v836, %v848
        %v857 = vadd.f32 %v837, %v850
        %v858 = vadd.f32 %v838, %v852
        %s859 = sld [smem:[#allocation2 + $0x120]]
        %v860 = vstv %s859
        %v861 = vmul.f32 %v860, %v286
        %v862 = vmul.f32 %v860, %v264
        %v863 = vmul.f32 %v860, %v290
        %v867 = vrot.slane %v861, 1
        %v868 = vrot.slane %v862, 1
        %v869 = vsel %vm438, %v867, %v868
        %v870 = vrot.slane %v863, 1
        %v871 = vsel %vm438, %v868, %v870
        %v875 = vadd.f32 %v856, %v869
        %v876 = vadd.f32 %v857, %v871
        %v877 = vadd.f32 %v858, %v870
        %s878 = sld [smem:[#allocation2 + $0x128]]
        %v879 = vstv %s878
        %v880 = vmul.f32 %v879, %v287
        %v881 = vmul.f32 %v879, %v267
        %v882 = vmul.f32 %v879, %v291
        %v886 = vrot.slane %v880, 1
        %v887 = vrot.slane %v881, 1
        %v888 = vsel %vm438, %v886, %v887
        %v889 = vrot.slane %v882, 1
        %v890 = vsel %vm438, %v887, %v889
        %v894 = vadd.f32 %v875, %v888
        %v895 = vadd.f32 %v876, %v890
        %v896 = vadd.f32 %v877, %v889
        %s897 = sld [smem:[#allocation2 + $0x130]]
        %v898 = vstv %s897
        %v899 = vmul.f32 %v898, %v288
        %v900 = vmul.f32 %v898, %v270
        %v901 = vmul.f32 %v898, %v292
        %v905 = vrot.slane %v899, 1
        %v906 = vrot.slane %v900, 1
        %v907 = vsel %vm438, %v905, %v906
        %v908 = vrot.slane %v901, 1
        %v909 = vsel %vm438, %v906, %v908
        %v913 = vadd.f32 %v894, %v907
        %v914 = vadd.f32 %v895, %v909
        %v915 = vadd.f32 %v896, %v908
        %s916 = sld [smem:[#allocation2 + $0x138]]
        %v917 = vstv %s916
        %v918 = vmul.f32 %v917, %v289
        %v919 = vmul.f32 %v917, %v273
        %v920 = vmul.f32 %v917, %v293
        %v924 = vrot.slane %v918, 1
        %v925 = vrot.slane %v919, 1
        %v926 = vsel %vm438, %v924, %v925
        %v927 = vrot.slane %v920, 1
        %v928 = vsel %vm438, %v925, %v927
        %v932 = vadd.f32 %v913, %v926
        %v933 = vadd.f32 %v914, %v928
        %v934 = vadd.f32 %v915, %v927
        %s935 = sld [smem:[#allocation2 + $0x140]]
        %v936 = vstv %s935
        %v937 = vmul.f32 %v936, %v286
        %v938 = vmul.f32 %v936, %v264
        %v939 = vmul.f32 %v936, %v290
        %v943 = vrot.slane %v937, 1
        %v944 = vrot.slane %v938, 1
        %v945 = vsel %vm438, %v943, %v944
        %v946 = vrot.slane %v939, 1
        %v947 = vsel %vm438, %v944, %v946
        %948 = vrot.lane.b32.xlu0 %v945, 127
        %v949 = vpop.permute.xlu0 %948
        %950 = vrot.lane.b32.xlu0 %v947, 127
        %v951 = vpop.permute.xlu0 %950
        %952 = vrot.lane.b32.xlu0 %v946, 127
        %v953 = vpop.permute.xlu0 %952
        %v957 = vadd.f32 %v932, %v949
        %v958 = vadd.f32 %v933, %v951
        %v959 = vadd.f32 %v934, %v953
        %s960 = sld [smem:[#allocation2 + $0x148]]
        %v961 = vstv %s960
        %v962 = vmul.f32 %v961, %v287
        %v963 = vmul.f32 %v961, %v267
        %v964 = vmul.f32 %v961, %v291
        %v968 = vrot.slane %v962, 1
        %v969 = vrot.slane %v963, 1
        %v970 = vsel %vm438, %v968, %v969
        %v971 = vrot.slane %v964, 1
        %v972 = vsel %vm438, %v969, %v971
        %973 = vrot.lane.b32.xlu0 %v970, 127
        %v974 = vpop.permute.xlu0 %973
        %975 = vrot.lane.b32.xlu0 %v972, 127
        %v976 = vpop.permute.xlu0 %975
        %977 = vrot.lane.b32.xlu0 %v971, 127
        %v978 = vpop.permute.xlu0 %977
        %v982 = vadd.f32 %v957, %v974
        %v983 = vadd.f32 %v958, %v976
        %v984 = vadd.f32 %v959, %v978
        %s985 = sld [smem:[#allocation2 + $0x150]]
        %v986 = vstv %s985
        %v987 = vmul.f32 %v986, %v288
        %v988 = vmul.f32 %v986, %v270
        %v989 = vmul.f32 %v986, %v292
        %v993 = vrot.slane %v987, 1
        %v994 = vrot.slane %v988, 1
        %v995 = vsel %vm438, %v993, %v994
        %v996 = vrot.slane %v989, 1
        %v997 = vsel %vm438, %v994, %v996
        %998 = vrot.lane.b32.xlu0 %v995, 127
        %v999 = vpop.permute.xlu0 %998
        %1000 = vrot.lane.b32.xlu0 %v997, 127
        %v1001 = vpop.permute.xlu0 %1000
        %1002 = vrot.lane.b32.xlu0 %v996, 127
        %v1003 = vpop.permute.xlu0 %1002
        %v1007 = vadd.f32 %v982, %v999
        %v1008 = vadd.f32 %v983, %v1001
        %v1009 = vadd.f32 %v984, %v1003
        %s1010 = sld [smem:[#allocation2 + $0x158]]
        %v1011 = vstv %s1010
        %v1012 = vmul.f32 %v1011, %v289
        %v1013 = vmul.f32 %v1011, %v273
        %v1014 = vmul.f32 %v1011, %v293
        %v1018 = vrot.slane %v1012, 1
        %v1019 = vrot.slane %v1013, 1
        %v1020 = vsel %vm438, %v1018, %v1019
        %v1021 = vrot.slane %v1014, 1
        %v1022 = vsel %vm438, %v1019, %v1021
        %1023 = vrot.lane.b32.xlu0 %v1020, 127
        %v1024 = vpop.permute.xlu0 %1023
        %1025 = vrot.lane.b32.xlu0 %v1022, 127
        %v1026 = vpop.permute.xlu0 %1025
        %1027 = vrot.lane.b32.xlu0 %v1021, 127
        %v1028 = vpop.permute.xlu0 %1027
        %v1032 = vadd.f32 %v1007, %v1024
        %v1033 = vadd.f32 %v1008, %v1026
        %v1034 = vadd.f32 %v1009, %v1028
        %s1035 = sld [smem:[#allocation2 + $0x160]]
        %v1036 = vstv %s1035
        %v1037 = vmul.f32 %v1036, %v286
        %v1038 = vmul.f32 %v1036, %v264
        %v1039 = vmul.f32 %v1036, %v290
        %v1043 = vrot.slane %v1037, 1
        %v1044 = vrot.slane %v1038, 1
        %v1045 = vsel %vm438, %v1043, %v1044
        %v1046 = vrot.slane %v1039, 1
        %v1047 = vsel %vm438, %v1044, %v1046
        %1048 = vrot.lane.b32.xlu0 %v1045, 126
        %v1049 = vpop.permute.xlu0 %1048
        %1050 = vrot.lane.b32.xlu0 %v1047, 126
        %v1051 = vpop.permute.xlu0 %1050
        %1052 = vrot.lane.b32.xlu0 %v1046, 126
        %v1053 = vpop.permute.xlu0 %1052
        %v1057 = vadd.f32 %v1032, %v1049
        %v1058 = vadd.f32 %v1033, %v1051
        %v1059 = vadd.f32 %v1034, %v1053
        %s1060 = sld [smem:[#allocation2 + $0x168]]
        %v1061 = vstv %s1060
        %v1062 = vmul.f32 %v1061, %v287
        %v1063 = vmul.f32 %v1061, %v267
        %v1064 = vmul.f32 %v1061, %v291
        %v1068 = vrot.slane %v1062, 1
        %v1069 = vrot.slane %v1063, 1
        %v1070 = vsel %vm438, %v1068, %v1069
        %v1071 = vrot.slane %v1064, 1
        %v1072 = vsel %vm438, %v1069, %v1071
        %1073 = vrot.lane.b32.xlu0 %v1070, 126
        %v1074 = vpop.permute.xlu0 %1073
        %1075 = vrot.lane.b32.xlu0 %v1072, 126
        %v1076 = vpop.permute.xlu0 %1075
        %1077 = vrot.lane.b32.xlu0 %v1071, 126
        %v1078 = vpop.permute.xlu0 %1077
        %v1082 = vadd.f32 %v1057, %v1074
        %v1083 = vadd.f32 %v1058, %v1076
        %v1084 = vadd.f32 %v1059, %v1078
        %s1085 = sld [smem:[#allocation2 + $0x170]]
        %v1086 = vstv %s1085
        %v1087 = vmul.f32 %v1086, %v288
        %v1088 = vmul.f32 %v1086, %v270
        %v1089 = vmul.f32 %v1086, %v292
        %v1093 = vrot.slane %v1087, 1
        %v1094 = vrot.slane %v1088, 1
        %v1095 = vsel %vm438, %v1093, %v1094
        %v1096 = vrot.slane %v1089, 1
        %v1097 = vsel %vm438, %v1094, %v1096
        %1098 = vrot.lane.b32.xlu0 %v1095, 126
        %v1099 = vpop.permute.xlu0 %1098
        %1100 = vrot.lane.b32.xlu0 %v1097, 126
        %v1101 = vpop.permute.xlu0 %1100
        %1102 = vrot.lane.b32.xlu0 %v1096, 126
        %v1103 = vpop.permute.xlu0 %1102
        %v1107 = vadd.f32 %v1082, %v1099
        %v1108 = vadd.f32 %v1083, %v1101
        %v1109 = vadd.f32 %v1084, %v1103
        %s1110 = sld [smem:[#allocation2 + $0x178]]
        %v1111 = vstv %s1110
        %v1112 = vmul.f32 %v1111, %v289
        %v1113 = vmul.f32 %v1111, %v273
        %v1114 = vmul.f32 %v1111, %v293
        %v1118 = vrot.slane %v1112, 1
        %v1119 = vrot.slane %v1113, 1
        %v1120 = vsel %vm438, %v1118, %v1119
        %v1121 = vrot.slane %v1114, 1
        %v1122 = vsel %vm438, %v1119, %v1121
        %1123 = vrot.lane.b32.xlu0 %v1120, 126
        %v1124 = vpop.permute.xlu0 %1123
        %1125 = vrot.lane.b32.xlu0 %v1122, 126
        %v1126 = vpop.permute.xlu0 %1125
        %1127 = vrot.lane.b32.xlu0 %v1121, 126
        %v1128 = vpop.permute.xlu0 %1127
        %v1132 = vadd.f32 %v1107, %v1124
        %v1133 = vadd.f32 %v1108, %v1126
        %v1134 = vadd.f32 %v1109, %v1128
        %vm1135 = vcmask 261120
        %v1136 = vsel %vm1135, %v665, 0.0
        %v1137 = vsel %vm1135, %v666, 0.0
        %v1138 = vadd.f32 %v1136, %v1137
        %1139 = vadd.xlane.f32.xlu0 %v1138
        %v1140 = vpop.xlane.xlu0 %1139
        %v1141 = vrot.slane %v1140, 4
        %v1142 = vadd.f32 %v1140, %v1141
        %v1143 = vrot.slane %v1142, 2
        %v1144 = vadd.f32 %v1142, %v1143
        %v1145 = vrot.slane %v1144, 1
        %v1146 = vadd.f32 %v1144, %v1145
        %s1147 = vtos %v1146
        %v1151 = vrot.slane %v1132, 1
        %v1152 = vrot.slane %v1133, 1
        %v1153 = vsel %vm438, %v1151, %v1152
        %v1154 = vrot.slane %v1134, 1
        %v1155 = vsel %vm438, %v1152, %v1154
        %v1158 = vsel %vm1135, %v1153, 0.0
        %v1159 = vsel %vm1135, %v1155, 0.0
        %v1160 = vadd.f32 %v1158, %v1159
        %1161 = vadd.xlane.f32.xlu0 %v1160
        %v1162 = vpop.xlane.xlu0 %1161
        %v1163 = vrot.slane %v1162, 4
        %v1164 = vadd.f32 %v1162, %v1163
        %v1165 = vrot.slane %v1164, 2
        %v1166 = vadd.f32 %v1164, %v1165
        %v1167 = vrot.slane %v1166, 1
        %v1168 = vadd.f32 %v1166, %v1167
        %s1169 = vtos %v1168
        %s1170 = sadd.f32 %s1147, %s1169
        %s1171 = smul.f32 %s1170, 0.0009765625
        %v1172 = vstv %s1171
        %v1173 = vsub.f32 %v665, %v1172
        %v1174 = vsub.f32 %v666, %v1172
        %v1175 = vsub.f32 %v1132, %v1172
        %v1176 = vsub.f32 %v1133, %v1172
        %v1177 = vsub.f32 %v1134, %v1172
        %v1178 = vmul.f32 %v1173, %v1173
        %v1179 = vmul.f32 %v1174, %v1174
        %v1180 = vsel %vm1135, %v1178, 0.0
        %v1181 = vsel %vm1135, %v1179, 0.0
        %v1182 = vadd.f32 %v1180, %v1181
        %1183 = vadd.xlane.f32.xlu0 %v1182
        %v1184 = vpop.xlane.xlu0 %1183
        %v1185 = vrot.slane %v1184, 4
        %v1186 = vadd.f32 %v1184, %v1185
        %v1187 = vrot.slane %v1186, 2
        %v1188 = vadd.f32 %v1186, %v1187
        %v1189 = vrot.slane %v1188, 1
        %v1190 = vadd.f32 %v1188, %v1189
        %s1191 = vtos %v1190
        %v1192 = vmul.f32 %v1175, %v1175
        %v1193 = vmul.f32 %v1176, %v1176
        %v1194 = vmul.f32 %v1177, %v1177
        %v1198 = vrot.slane %v1192, 1
        %v1199 = vrot.slane %v1193, 1
        %v1200 = vsel %vm438, %v1198, %v1199
        %v1201 = vrot.slane %v1194, 1
        %v1202 = vsel %vm438, %v1199, %v1201
        %v1205 = vsel %vm1135, %v1200, 0.0
        %v1206 = vsel %vm1135, %v1202, 0.0
        %v1207 = vadd.f32 %v1205, %v1206
        %1208 = vadd.xlane.f32.xlu0 %v1207
        %v1209 = vpop.xlane.xlu0 %1208
        %v1210 = vrot.slane %v1209, 4
        %v1211 = vadd.f32 %v1209, %v1210
        %v1212 = vrot.slane %v1211, 2
        %v1213 = vadd.f32 %v1211, %v1212
        %v1214 = vrot.slane %v1213, 1
        %v1215 = vadd.f32 %v1213, %v1214
        %s1216 = vtos %v1215
        %s1217 = sadd.f32 %s1191, %s1216
        %s1218 = smul.f32 %s1217, 0.0009765625
        %s1219 = sadd.f32 %s1218, 1e-05
        %v1220 = vstv %s1219
        %v1221 = vrsqrt.pop %v1220
        %v1222 = vmul.f32 %v1221, %v1220
        %v1223 = vmul.f32 %v1222, %v1221
        %v1224 = vmul.f32 0.5, %v1223
        %v1225 = vsub.f32 1.5, %v1224
        %v1226 = vmul.f32 %v1221, %v1225
        %vm1227 = vweird.f32 %v1220
        %vm1228 = vweird.f32 %v1221
        %vm1229 = vmor %vm1227, %vm1228
        %v1230 = vsel %vm1229, %v1221, %v1226
        %s1231 = vtos %v1230
        %v1232 = vstv %s1231
        %v1233 = vmul.f32 %v1173, %v1232
        %v1234 = vmul.f32 %v1174, %v1232
        %v1235 = vmax.f32 %v1233, 0.0
        %v1236 = vmax.f32 %v1234, 0.0
        %1237 = vst.msk [vmem:[%s157] sm:$0xff] %vm1135, %v1235
        %1238 = vst.msk [vmem:[%s157 + $0x8] sm:$0xff] %vm1135, %v1236
        %v1239 = vmul.f32 %v1175, %v1232
        %v1240 = vmul.f32 %v1176, %v1232
        %v1241 = vmul.f32 %v1177, %v1232
        %v1242 = vmax.f32 %v1239, 0.0
        %v1243 = vmax.f32 %v1240, 0.0
        %v1244 = vmax.f32 %v1241, 0.0
        %1248 = vrot.lane.b32.xlu0 %v1242, 32
        %v1249 = vpop.permute.xlu0 %1248
        %1250 = vrot.lane.b32.xlu0 %v1243, 32
        %v1251 = vpop.permute.xlu0 %1250
        %1252 = vrot.lane.b32.xlu0 %v1244, 32
        %v1253 = vpop.permute.xlu0 %1252
        %vm1257 = vcmask 523521
        %1258 = vst.msk [vmem:[%s157 - $0x1] sm:$0xfe] %vm1257, %v1249
        %vm1259 = vcmask 523520
        %1260 = vst.msk [vmem:[%s157 + $0x7] sm:$0xff] %vm1259, %v1251
        %vm1261 = vcmask 516352
        %1262 = vst.msk [vmem:[%s157 + $0xf] sm:$0x1] %vm1261, %v1253
        %s1263 = sld [smem:[#allocation2 + $0x1]]
        %v1264 = vstv %s1263
        %v1265 = vmul.f32 %v1264, %v286
        %v1266 = vmul.f32 %v1264, %v264
        %v1267 = vadd.f32 %v1265, 0.0
        %v1268 = vadd.f32 %v1266, 0.0
        %s1269 = sld [smem:[#allocation2 + $0x9]]
        %v1270 = vstv %s1269
        %v1271 = vmul.f32 %v1270, %v287
        %v1272 = vmul.f32 %v1270, %v267
        %v1273 = vadd.f32 %v1267, %v1271
        %v1274 = vadd.f32 %v1268, %v1272
        %s1275 = sld [smem:[#allocation2 + $0x11]]
        %v1276 = vstv %s1275
        %v1277 = vmul.f32 %v1276, %v288
        %v1278 = vmul.f32 %v1276, %v270
        %v1279 = vadd.f32 %v1273, %v1277
        %v1280 = vadd.f32 %v1274, %v1278
        %s1281 = sld [smem:[#allocation2 + $0x19]]
        %v1282 = vstv %s1281
        %v1283 = vmul.f32 %v1282, %v289
        %v1284 = vmul.f32 %v1282, %v273
        %v1285 = vadd.f32 %v1279, %v1283
        %v1286 = vadd.f32 %v1280, %v1284
        %s1287 = sld [smem:[#allocation2 + $0x21]]
        %v1288 = vstv %s1287
        %v1289 = vmul.f32 %v1288, %v286
        %v1290 = vmul.f32 %v1288, %v264
        %1293 = vrot.lane.b32.xlu0 %v1289, 127
        %v1294 = vpop.permute.xlu0 %1293
        %1295 = vrot.lane.b32.xlu0 %v1290, 127
        %v1296 = vpop.permute.xlu0 %1295
        %v1299 = vadd.f32 %v1285, %v1294
        %v1300 = vadd.f32 %v1286, %v1296
        %s1301 = sld [smem:[#allocation2 + $0x29]]
        %v1302 = vstv %s1301
        %v1303 = vmul.f32 %v1302, %v287
        %v1304 = vmul.f32 %v1302, %v267
        %1307 = vrot.lane.b32.xlu0 %v1303, 127
        %v1308 = vpop.permute.xlu0 %1307
        %1309 = vrot.lane.b32.xlu0 %v1304, 127
        %v1310 = vpop.permute.xlu0 %1309
        %v1313 = vadd.f32 %v1299, %v1308
        %v1314 = vadd.f32 %v1300, %v1310
        %s1315 = sld [smem:[#allocation2 + $0x31]]
        %v1316 = vstv %s1315
        %v1317 = vmul.f32 %v1316, %v288
        %v1318 = vmul.f32 %v1316, %v270
        %1321 = vrot.lane.b32.xlu0 %v1317, 127
        %v1322 = vpop.permute.xlu0 %1321
        %1323 = vrot.lane.b32.xlu0 %v1318, 127
        %v1324 = vpop.permute.xlu0 %1323
        %v1327 = vadd.f32 %v1313, %v1322
        %v1328 = vadd.f32 %v1314, %v1324
        %s1329 = sld [smem:[#allocation2 + $0x39]]
        %v1330 = vstv %s1329
        %v1331 = vmul.f32 %v1330, %v289
        %v1332 = vmul.f32 %v1330, %v273
        %1335 = vrot.lane.b32.xlu0 %v1331, 127
        %v1336 = vpop.permute.xlu0 %1335
        %1337 = vrot.lane.b32.xlu0 %v1332, 127
        %v1338 = vpop.permute.xlu0 %1337
        %v1341 = vadd.f32 %v1327, %v1336
        %v1342 = vadd.f32 %v1328, %v1338
        %s1343 = sld [smem:[#allocation2 + $0x41]]
        %v1344 = vstv %s1343
        %v1345 = vmul.f32 %v1344, %v286
        %v1346 = vmul.f32 %v1344, %v264
        %1349 = vrot.lane.b32.xlu0 %v1345, 126
        %v1350 = vpop.permute.xlu0 %1349
        %1351 = vrot.lane.b32.xlu0 %v1346, 126
        %v1352 = vpop.permute.xlu0 %1351
        %v1355 = vadd.f32 %v1341, %v1350
        %v1356 = vadd.f32 %v1342, %v1352
        %s1357 = sld [smem:[#allocation2 + $0x49]]
        %v1358 = vstv %s1357
        %v1359 = vmul.f32 %v1358, %v287
        %v1360 = vmul.f32 %v1358, %v267
        %1363 = vrot.lane.b32.xlu0 %v1359, 126
        %v1364 = vpop.permute.xlu0 %1363
        %1365 = vrot.lane.b32.xlu0 %v1360, 126
        %v1366 = vpop.permute.xlu0 %1365
        %v1369 = vadd.f32 %v1355, %v1364
        %v1370 = vadd.f32 %v1356, %v1366
        %s1371 = sld [smem:[#allocation2 + $0x51]]
        %v1372 = vstv %s1371
        %v1373 = vmul.f32 %v1372, %v288
        %v1374 = vmul.f32 %v1372, %v270
        %1377 = vrot.lane.b32.xlu0 %v1373, 126
        %v1378 = vpop.permute.xlu0 %1377
        %1379 = vrot.lane.b32.xlu0 %v1374, 126
        %v1380 = vpop.permute.xlu0 %1379
        %v1383 = vadd.f32 %v1369, %v1378
        %v1384 = vadd.f32 %v1370, %v1380
        %s1385 = sld [smem:[#allocation2 + $0x59]]
        %v1386 = vstv %s1385
        %v1387 = vmul.f32 %v1386, %v289
        %v1388 = vmul.f32 %v1386, %v273
        %1391 = vrot.lane.b32.xlu0 %v1387, 126
        %v1392 = vpop.permute.xlu0 %1391
        %1393 = vrot.lane.b32.xlu0 %v1388, 126
        %v1394 = vpop.permute.xlu0 %1393
        %v1397 = vadd.f32 %v1383, %v1392
        %v1398 = vadd.f32 %v1384, %v1394
        %s1399 = sld [smem:[#allocation2 + $0x61]]
        %v1400 = vstv %s1399
        %v1401 = vmul.f32 %v1400, %v286
        %v1402 = vmul.f32 %v1400, %v264
        %v1403 = vmul.f32 %v1400, %v290
        %v1407 = vrot.slane %v1401, 1
        %v1408 = vrot.slane %v1402, 1
        %v1409 = vsel %vm438, %v1407, %v1408
        %v1410 = vrot.slane %v1403, 1
        %v1411 = vsel %vm438, %v1408, %v1410
        %v1414 = vadd.f32 %v1397, %v1409
        %v1415 = vadd.f32 %v1398, %v1411
        %s1416 = sld [smem:[#allocation2 + $0x69]]
        %v1417 = vstv %s1416
        %v1418 = vmul.f32 %v1417, %v287
        %v1419 = vmul.f32 %v1417, %v267
        %v1420 = vmul.f32 %v1417, %v291
        %v1424 = vrot.slane %v1418, 1
        %v1425 = vrot.slane %v1419, 1
        %v1426 = vsel %vm438, %v1424, %v1425
        %v1427 = vrot.slane %v1420, 1
        %v1428 = vsel %vm438, %v1425, %v1427
        %v1431 = vadd.f32 %v1414, %v1426
        %v1432 = vadd.f32 %v1415, %v1428
        %s1433 = sld [smem:[#allocation2 + $0x71]]
        %v1434 = vstv %s1433
        %v1435 = vmul.f32 %v1434, %v288
        %v1436 = vmul.f32 %v1434, %v270
        %v1437 = vmul.f32 %v1434, %v292
        %v1441 = vrot.slane %v1435, 1
        %v1442 = vrot.slane %v1436, 1
        %v1443 = vsel %vm438, %v1441, %v1442
        %v1444 = vrot.slane %v1437, 1
        %v1445 = vsel %vm438, %v1442, %v1444
        %v1448 = vadd.f32 %v1431, %v1443
        %v1449 = vadd.f32 %v1432, %v1445
        %s1450 = sld [smem:[#allocation2 + $0x79]]
        %v1451 = vstv %s1450
        %v1452 = vmul.f32 %v1451, %v289
        %v1453 = vmul.f32 %v1451, %v273
        %v1454 = vmul.f32 %v1451, %v293
        %v1458 = vrot.slane %v1452, 1
        %v1459 = vrot.slane %v1453, 1
        %v1460 = vsel %vm438, %v1458, %v1459
        %v1461 = vrot.slane %v1454, 1
        %v1462 = vsel %vm438, %v1459, %v1461
        %v1465 = vadd.f32 %v1448, %v1460
        %v1466 = vadd.f32 %v1449, %v1462
        %s1467 = sld [smem:[#allocation2 + $0x81]]
        %v1468 = vstv %s1467
        %v1469 = vmul.f32 %v1468, %v286
        %v1470 = vmul.f32 %v1468, %v264
        %v1471 = vmul.f32 %v1468, %v290
        %v1475 = vrot.slane %v1469, 1
        %v1476 = vrot.slane %v1470, 1
        %v1477 = vsel %vm438, %v1475, %v1476
        %v1478 = vrot.slane %v1471, 1
        %v1479 = vsel %vm438, %v1476, %v1478
        %1480 = vrot.lane.b32.xlu0 %v1477, 127
        %v1481 = vpop.permute.xlu0 %1480
        %1482 = vrot.lane.b32.xlu0 %v1479, 127
        %v1483 = vpop.permute.xlu0 %1482
        %v1486 = vadd.f32 %v1465, %v1481
        %v1487 = vadd.f32 %v1466, %v1483
        %s1488 = sld [smem:[#allocation2 + $0x89]]
        %v1489 = vstv %s1488
        %v1490 = vmul.f32 %v1489, %v287
        %v1491 = vmul.f32 %v1489, %v267
        %v1492 = vmul.f32 %v1489, %v291
        %v1496 = vrot.slane %v1490, 1
        %v1497 = vrot.slane %v1491, 1
        %v1498 = vsel %vm438, %v1496, %v1497
        %v1499 = vrot.slane %v1492, 1
        %v1500 = vsel %vm438, %v1497, %v1499
        %1501 = vrot.lane.b32.xlu0 %v1498, 127
        %v1502 = vpop.permute.xlu0 %1501
        %1503 = vrot.lane.b32.xlu0 %v1500, 127
        %v1504 = vpop.permute.xlu0 %1503
        %v1507 = vadd.f32 %v1486, %v1502
        %v1508 = vadd.f32 %v1487, %v1504
        %s1509 = sld [smem:[#allocation2 + $0x91]]
        %v1510 = vstv %s1509
        %v1511 = vmul.f32 %v1510, %v288
        %v1512 = vmul.f32 %v1510, %v270
        %v1513 = vmul.f32 %v1510, %v292
        %v1517 = vrot.slane %v1511, 1
        %v1518 = vrot.slane %v1512, 1
        %v1519 = vsel %vm438, %v1517, %v1518
        %v1520 = vrot.slane %v1513, 1
        %v1521 = vsel %vm438, %v1518, %v1520
        %1522 = vrot.lane.b32.xlu0 %v1519, 127
        %v1523 = vpop.permute.xlu0 %1522
        %1524 = vrot.lane.b32.xlu0 %v1521, 127
        %v1525 = vpop.permute.xlu0 %1524
        %v1528 = vadd.f32 %v1507, %v1523
        %v1529 = vadd.f32 %v1508, %v1525
        %s1530 = sld [smem:[#allocation2 + $0x99]]
        %v1531 = vstv %s1530
        %v1532 = vmul.f32 %v1531, %v289
        %v1533 = vmul.f32 %v1531, %v273
        %v1534 = vmul.f32 %v1531, %v293
        %v1538 = vrot.slane %v1532, 1
        %v1539 = vrot.slane %v1533, 1
        %v1540 = vsel %vm438, %v1538, %v1539
        %v1541 = vrot.slane %v1534, 1
        %v1542 = vsel %vm438, %v1539, %v1541
        %1543 = vrot.lane.b32.xlu0 %v1540, 127
        %v1544 = vpop.permute.xlu0 %1543
        %1545 = vrot.lane.b32.xlu0 %v1542, 127
        %v1546 = vpop.permute.xlu0 %1545
        %v1549 = vadd.f32 %v1528, %v1544
        %v1550 = vadd.f32 %v1529, %v1546
        %s1551 = sld [smem:[#allocation2 + $0xa1]]
        %v1552 = vstv %s1551
        %v1553 = vmul.f32 %v1552, %v286
        %v1554 = vmul.f32 %v1552, %v264
        %v1555 = vmul.f32 %v1552, %v290
        %v1559 = vrot.slane %v1553, 1
        %v1560 = vrot.slane %v1554, 1
        %v1561 = vsel %vm438, %v1559, %v1560
        %v1562 = vrot.slane %v1555, 1
        %v1563 = vsel %vm438, %v1560, %v1562
        %1564 = vrot.lane.b32.xlu0 %v1561, 126
        %v1565 = vpop.permute.xlu0 %1564
        %1566 = vrot.lane.b32.xlu0 %v1563, 126
        %v1567 = vpop.permute.xlu0 %1566
        %v1570 = vadd.f32 %v1549, %v1565
        %v1571 = vadd.f32 %v1550, %v1567
        %s1572 = sld [smem:[#allocation2 + $0xa9]]
        %v1573 = vstv %s1572
        %v1574 = vmul.f32 %v1573, %v287
        %v1575 = vmul.f32 %v1573, %v267
        %v1576 = vmul.f32 %v1573, %v291
        %v1580 = vrot.slane %v1574, 1
        %v1581 = vrot.slane %v1575, 1
        %v1582 = vsel %vm438, %v1580, %v1581
        %v1583 = vrot.slane %v1576, 1
        %v1584 = vsel %vm438, %v1581, %v1583
        %1585 = vrot.lane.b32.xlu0 %v1582, 126
        %v1586 = vpop.permute.xlu0 %1585
        %1587 = vrot.lane.b32.xlu0 %v1584, 126
        %v1588 = vpop.permute.xlu0 %1587
        %v1591 = vadd.f32 %v1570, %v1586
        %v1592 = vadd.f32 %v1571, %v1588
        %s1593 = sld [smem:[#allocation2 + $0xb1]]
        %v1594 = vstv %s1593
        %v1595 = vmul.f32 %v1594, %v288
        %v1596 = vmul.f32 %v1594, %v270
        %v1597 = vmul.f32 %v1594, %v292
        %v1601 = vrot.slane %v1595, 1
        %v1602 = vrot.slane %v1596, 1
        %v1603 = vsel %vm438, %v1601, %v1602
        %v1604 = vrot.slane %v1597, 1
        %v1605 = vsel %vm438, %v1602, %v1604
        %1606 = vrot.lane.b32.xlu0 %v1603, 126
        %v1607 = vpop.permute.xlu0 %1606
        %1608 = vrot.lane.b32.xlu0 %v1605, 126
        %v1609 = vpop.permute.xlu0 %1608
        %v1612 = vadd.f32 %v1591, %v1607
        %v1613 = vadd.f32 %v1592, %v1609
        %s1614 = sld [smem:[#allocation2 + $0xb9]]
        %v1615 = vstv %s1614
        %v1616 = vmul.f32 %v1615, %v289
        %v1617 = vmul.f32 %v1615, %v273
        %v1618 = vmul.f32 %v1615, %v293
        %v1622 = vrot.slane %v1616, 1
        %v1623 = vrot.slane %v1617, 1
        %v1624 = vsel %vm438, %v1622, %v1623
        %v1625 = vrot.slane %v1618, 1
        %v1626 = vsel %vm438, %v1623, %v1625
        %1627 = vrot.lane.b32.xlu0 %v1624, 126
        %v1628 = vpop.permute.xlu0 %1627
        %1629 = vrot.lane.b32.xlu0 %v1626, 126
        %v1630 = vpop.permute.xlu0 %1629
        %v1633 = vadd.f32 %v1612, %v1628
        %v1634 = vadd.f32 %v1613, %v1630
        %s1635 = sld [smem:[#allocation2 + $0xc1]]
        %v1636 = vstv %s1635
        %v1637 = vmul.f32 %v1636, %v286
        %v1638 = vmul.f32 %v1636, %v264
        %v1639 = vmul.f32 %v1636, %v290
        %v1640 = vadd.f32 %v1637, 0.0
        %v1641 = vadd.f32 %v1638, 0.0
        %v1642 = vadd.f32 %v1639, 0.0
        %s1643 = sld [smem:[#allocation2 + $0xc9]]
        %v1644 = vstv %s1643
        %v1645 = vmul.f32 %v1644, %v287
        %v1646 = vmul.f32 %v1644, %v267
        %v1647 = vmul.f32 %v1644, %v291
        %v1648 = vadd.f32 %v1640, %v1645
        %v1649 = vadd.f32 %v1641, %v1646
        %v1650 = vadd.f32 %v1642, %v1647
        %s1651 = sld [smem:[#allocation2 + $0xd1]]
        %v1652 = vstv %s1651
        %v1653 = vmul.f32 %v1652, %v288
        %v1654 = vmul.f32 %v1652, %v270
        %v1655 = vmul.f32 %v1652, %v292
        %v1656 = vadd.f32 %v1648, %v1653
        %v1657 = vadd.f32 %v1649, %v1654
        %v1658 = vadd.f32 %v1650, %v1655
        %s1659 = sld [smem:[#allocation2 + $0xd9]]
        %v1660 = vstv %s1659
        %v1661 = vmul.f32 %v1660, %v289
        %v1662 = vmul.f32 %v1660, %v273
        %v1663 = vmul.f32 %v1660, %v293
        %v1664 = vadd.f32 %v1656, %v1661
        %v1665 = vadd.f32 %v1657, %v1662
        %v1666 = vadd.f32 %v1658, %v1663
        %s1667 = sld [smem:[#allocation2 + $0xe1]]
        %v1668 = vstv %s1667
        %v1669 = vmul.f32 %v1668, %v286
        %v1670 = vmul.f32 %v1668, %v264
        %v1671 = vmul.f32 %v1668, %v290
        %1675 = vrot.lane.b32.xlu0 %v1669, 127
        %v1676 = vpop.permute.xlu0 %1675
        %1677 = vrot.lane.b32.xlu0 %v1670, 127
        %v1678 = vpop.permute.xlu0 %1677
        %1679 = vrot.lane.b32.xlu0 %v1671, 127
        %v1680 = vpop.permute.xlu0 %1679
        %v1684 = vadd.f32 %v1664, %v1676
        %v1685 = vadd.f32 %v1665, %v1678
        %v1686 = vadd.f32 %v1666, %v1680
        %s1687 = sld [smem:[#allocation2 + $0xe9]]
        %v1688 = vstv %s1687
        %v1689 = vmul.f32 %v1688, %v287
        %v1690 = vmul.f32 %v1688, %v267
        %v1691 = vmul.f32 %v1688, %v291
        %1695 = vrot.lane.b32.xlu0 %v1689, 127
        %v1696 = vpop.permute.xlu0 %1695
        %1697 = vrot.lane.b32.xlu0 %v1690, 127
        %v1698 = vpop.permute.xlu0 %1697
        %1699 = vrot.lane.b32.xlu0 %v1691, 127
        %v1700 = vpop.permute.xlu0 %1699
        %v1704 = vadd.f32 %v1684, %v1696
        %v1705 = vadd.f32 %v1685, %v1698
        %v1706 = vadd.f32 %v1686, %v1700
        %s1707 = sld [smem:[#allocation2 + $0xf1]]
        %v1708 = vstv %s1707
        %v1709 = vmul.f32 %v1708, %v288
        %v1710 = vmul.f32 %v1708, %v270
        %v1711 = vmul.f32 %v1708, %v292
        %1715 = vrot.lane.b32.xlu0 %v1709, 127
        %v1716 = vpop.permute.xlu0 %1715
        %1717 = vrot.lane.b32.xlu0 %v1710, 127
        %v1718 = vpop.permute.xlu0 %1717
        %1719 = vrot.lane.b32.xlu0 %v1711, 127
        %v1720 = vpop.permute.xlu0 %1719
        %v1724 = vadd.f32 %v1704, %v1716
        %v1725 = vadd.f32 %v1705, %v1718
        %v1726 = vadd.f32 %v1706, %v1720
        %s1727 = sld [smem:[#allocation2 + $0xf9]]
        %v1728 = vstv %s1727
        %v1729 = vmul.f32 %v1728, %v289
        %v1730 = vmul.f32 %v1728, %v273
        %v1731 = vmul.f32 %v1728, %v293
        %1735 = vrot.lane.b32.xlu0 %v1729, 127
        %v1736 = vpop.permute.xlu0 %1735
        %1737 = vrot.lane.b32.xlu0 %v1730, 127
        %v1738 = vpop.permute.xlu0 %1737
        %1739 = vrot.lane.b32.xlu0 %v1731, 127
        %v1740 = vpop.permute.xlu0 %1739
        %v1744 = vadd.f32 %v1724, %v1736
        %v1745 = vadd.f32 %v1725, %v1738
        %v1746 = vadd.f32 %v1726, %v1740
        %s1747 = sld [smem:[#allocation2 + $0x101]]
        %v1748 = vstv %s1747
        %v1749 = vmul.f32 %v1748, %v286
        %v1750 = vmul.f32 %v1748, %v264
        %v1751 = vmul.f32 %v1748, %v290
        %1755 = vrot.lane.b32.xlu0 %v1749, 126
        %v1756 = vpop.permute.xlu0 %1755
        %1757 = vrot.lane.b32.xlu0 %v1750, 126
        %v1758 = vpop.permute.xlu0 %1757
        %1759 = vrot.lane.b32.xlu0 %v1751, 126
        %v1760 = vpop.permute.xlu0 %1759
        %v1764 = vadd.f32 %v1744, %v1756
        %v1765 = vadd.f32 %v1745, %v1758
        %v1766 = vadd.f32 %v1746, %v1760
        %s1767 = sld [smem:[#allocation2 + $0x109]]
        %v1768 = vstv %s1767
        %v1769 = vmul.f32 %v1768, %v287
        %v1770 = vmul.f32 %v1768, %v267
        %v1771 = vmul.f32 %v1768, %v291
        %1775 = vrot.lane.b32.xlu0 %v1769, 126
        %v1776 = vpop.permute.xlu0 %1775
        %1777 = vrot.lane.b32.xlu0 %v1770, 126
        %v1778 = vpop.permute.xlu0 %1777
        %1779 = vrot.lane.b32.xlu0 %v1771, 126
        %v1780 = vpop.permute.xlu0 %1779
        %v1784 = vadd.f32 %v1764, %v1776
        %v1785 = vadd.f32 %v1765, %v1778
        %v1786 = vadd.f32 %v1766, %v1780
        %s1787 = sld [smem:[#allocation2 + $0x111]]
        %v1788 = vstv %s1787
        %v1789 = vmul.f32 %v1788, %v288
        %v1790 = vmul.f32 %v1788, %v270
        %v1791 = vmul.f32 %v1788, %v292
        %1795 = vrot.lane.b32.xlu0 %v1789, 126
        %v1796 = vpop.permute.xlu0 %1795
        %1797 = vrot.lane.b32.xlu0 %v1790, 126
        %v1798 = vpop.permute.xlu0 %1797
        %1799 = vrot.lane.b32.xlu0 %v1791, 126
        %v1800 = vpop.permute.xlu0 %1799
        %v1804 = vadd.f32 %v1784, %v1796
        %v1805 = vadd.f32 %v1785, %v1798
        %v1806 = vadd.f32 %v1786, %v1800
        %s1807 = sld [smem:[#allocation2 + $0x119]]
        %v1808 = vstv %s1807
        %v1809 = vmul.f32 %v1808, %v289
        %v1810 = vmul.f32 %v1808, %v273
        %v1811 = vmul.f32 %v1808, %v293
        %1815 = vrot.lane.b32.xlu0 %v1809, 126
        %v1816 = vpop.permute.xlu0 %1815
        %1817 = vrot.lane.b32.xlu0 %v1810, 126
        %v1818 = vpop.permute.xlu0 %1817
        %1819 = vrot.lane.b32.xlu0 %v1811, 126
        %v1820 = vpop.permute.xlu0 %1819
        %v1824 = vadd.f32 %v1804, %v1816
        %v1825 = vadd.f32 %v1805, %v1818
        %v1826 = vadd.f32 %v1806, %v1820
        %s1827 = sld [smem:[#allocation2 + $0x121]]
        %v1828 = vstv %s1827
        %v1829 = vmul.f32 %v1828, %v286
        %v1830 = vmul.f32 %v1828, %v264
        %v1831 = vmul.f32 %v1828, %v290
        %v1835 = vrot.slane %v1829, 1
        %v1836 = vrot.slane %v1830, 1
        %v1837 = vsel %vm438, %v1835, %v1836
        %v1838 = vrot.slane %v1831, 1
        %v1839 = vsel %vm438, %v1836, %v1838
        %v1843 = vadd.f32 %v1824, %v1837
        %v1844 = vadd.f32 %v1825, %v1839
        %v1845 = vadd.f32 %v1826, %v1838
        %s1846 = sld [smem:[#allocation2 + $0x129]]
        %v1847 = vstv %s1846
        %v1848 = vmul.f32 %v1847, %v287
        %v1849 = vmul.f32 %v1847, %v267
        %v1850 = vmul.f32 %v1847, %v291
        %v1854 = vrot.slane %v1848, 1
        %v1855 = vrot.slane %v1849, 1
        %v1856 = vsel %vm438, %v1854, %v1855
        %v1857 = vrot.slane %v1850, 1
        %v1858 = vsel %vm438, %v1855, %v1857
        %v1862 = vadd.f32 %v1843, %v1856
        %v1863 = vadd.f32 %v1844, %v1858
        %v1864 = vadd.f32 %v1845, %v1857
        %s1865 = sld [smem:[#allocation2 + $0x131]]
        %v1866 = vstv %s1865
        %v1867 = vmul.f32 %v1866, %v288
        %v1868 = vmul.f32 %v1866, %v270
        %v1869 = vmul.f32 %v1866, %v292
        %v1873 = vrot.slane %v1867, 1
        %v1874 = vrot.slane %v1868, 1
        %v1875 = vsel %vm438, %v1873, %v1874
        %v1876 = vrot.slane %v1869, 1
        %v1877 = vsel %vm438, %v1874, %v1876
        %v1881 = vadd.f32 %v1862, %v1875
        %v1882 = vadd.f32 %v1863, %v1877
        %v1883 = vadd.f32 %v1864, %v1876
        %s1884 = sld [smem:[#allocation2 + $0x139]]
        %v1885 = vstv %s1884
        %v1886 = vmul.f32 %v1885, %v289
        %v1887 = vmul.f32 %v1885, %v273
        %v1888 = vmul.f32 %v1885, %v293
        %v1892 = vrot.slane %v1886, 1
        %v1893 = vrot.slane %v1887, 1
        %v1894 = vsel %vm438, %v1892, %v1893
        %v1895 = vrot.slane %v1888, 1
        %v1896 = vsel %vm438, %v1893, %v1895
        %v1900 = vadd.f32 %v1881, %v1894
        %v1901 = vadd.f32 %v1882, %v1896
        %v1902 = vadd.f32 %v1883, %v1895
        %s1903 = sld [smem:[#allocation2 + $0x141]]
        %v1904 = vstv %s1903
        %v1905 = vmul.f32 %v1904, %v286
        %v1906 = vmul.f32 %v1904, %v264
        %v1907 = vmul.f32 %v1904, %v290
        %v1911 = vrot.slane %v1905, 1
        %v1912 = vrot.slane %v1906, 1
        %v1913 = vsel %vm438, %v1911, %v1912
        %v1914 = vrot.slane %v1907, 1
        %v1915 = vsel %vm438, %v1912, %v1914
        %1916 = vrot.lane.b32.xlu0 %v1913, 127
        %v1917 = vpop.permute.xlu0 %1916
        %1918 = vrot.lane.b32.xlu0 %v1915, 127
        %v1919 = vpop.permute.xlu0 %1918
        %1920 = vrot.lane.b32.xlu0 %v1914, 127
        %v1921 = vpop.permute.xlu0 %1920
        %v1925 = vadd.f32 %v1900, %v1917
        %v1926 = vadd.f32 %v1901, %v1919
        %v1927 = vadd.f32 %v1902, %v1921
        %s1928 = sld [smem:[#allocation2 + $0x149]]
        %v1929 = vstv %s1928
        %v1930 = vmul.f32 %v1929, %v287
        %v1931 = vmul.f32 %v1929, %v267
        %v1932 = vmul.f32 %v1929, %v291
        %v1936 = vrot.slane %v1930, 1
        %v1937 = vrot.slane %v1931, 1
        %v1938 = vsel %vm438, %v1936, %v1937
        %v1939 = vrot.slane %v1932, 1
        %v1940 = vsel %vm438, %v1937, %v1939
        %1941 = vrot.lane.b32.xlu0 %v1938, 127
        %v1942 = vpop.permute.xlu0 %1941
        %1943 = vrot.lane.b32.xlu0 %v1940, 127
        %v1944 = vpop.permute.xlu0 %1943
        %1945 = vrot.lane.b32.xlu0 %v1939, 127
        %v1946 = vpop.permute.xlu0 %1945
        %v1950 = vadd.f32 %v1925, %v1942
        %v1951 = vadd.f32 %v1926, %v1944
        %v1952 = vadd.f32 %v1927, %v1946
        %s1953 = sld [smem:[#allocation2 + $0x151]]
        %v1954 = vstv %s1953
        %v1955 = vmul.f32 %v1954, %v288
        %v1956 = vmul.f32 %v1954, %v270
        %v1957 = vmul.f32 %v1954, %v292
        %v1961 = vrot.slane %v1955, 1
        %v1962 = vrot.slane %v1956, 1
        %v1963 = vsel %vm438, %v1961, %v1962
        %v1964 = vrot.slane %v1957, 1
        %v1965 = vsel %vm438, %v1962, %v1964
        %1966 = vrot.lane.b32.xlu0 %v1963, 127
        %v1967 = vpop.permute.xlu0 %1966
        %1968 = vrot.lane.b32.xlu0 %v1965, 127
        %v1969 = vpop.permute.xlu0 %1968
        %1970 = vrot.lane.b32.xlu0 %v1964, 127
        %v1971 = vpop.permute.xlu0 %1970
        %v1975 = vadd.f32 %v1950, %v1967
        %v1976 = vadd.f32 %v1951, %v1969
        %v1977 = vadd.f32 %v1952, %v1971
        %s1978 = sld [smem:[#allocation2 + $0x159]]
        %v1979 = vstv %s1978
        %v1980 = vmul.f32 %v1979, %v289
        %v1981 = vmul.f32 %v1979, %v273
        %v1982 = vmul.f32 %v1979, %v293
        %v1986 = vrot.slane %v1980, 1
        %v1987 = vrot.slane %v1981, 1
        %v1988 = vsel %vm438, %v1986, %v1987
        %v1989 = vrot.slane %v1982, 1
        %v1990 = vsel %vm438, %v1987, %v1989
        %1991 = vrot.lane.b32.xlu0 %v1988, 127
        %v1992 = vpop.permute.xlu0 %1991
        %1993 = vrot.lane.b32.xlu0 %v1990, 127
        %v1994 = vpop.permute.xlu0 %1993
        %1995 = vrot.lane.b32.xlu0 %v1989, 127
        %v1996 = vpop.permute.xlu0 %1995
        %v2000 = vadd.f32 %v1975, %v1992
        %v2001 = vadd.f32 %v1976, %v1994
        %v2002 = vadd.f32 %v1977, %v1996
        %s2003 = sld [smem:[#allocation2 + $0x161]]
        %v2004 = vstv %s2003
        %v2005 = vmul.f32 %v2004, %v286
        %v2006 = vmul.f32 %v2004, %v264
        %v2007 = vmul.f32 %v2004, %v290
        %v2011 = vrot.slane %v2005, 1
        %v2012 = vrot.slane %v2006, 1
        %v2013 = vsel %vm438, %v2011, %v2012
        %v2014 = vrot.slane %v2007, 1
        %v2015 = vsel %vm438, %v2012, %v2014
        %2016 = vrot.lane.b32.xlu0 %v2013, 126
        %v2017 = vpop.permute.xlu0 %2016
        %2018 = vrot.lane.b32.xlu0 %v2015, 126
        %v2019 = vpop.permute.xlu0 %2018
        %2020 = vrot.lane.b32.xlu0 %v2014, 126
        %v2021 = vpop.permute.xlu0 %2020
        %v2025 = vadd.f32 %v2000, %v2017
        %v2026 = vadd.f32 %v2001, %v2019
        %v2027 = vadd.f32 %v2002, %v2021
        %s2028 = sld [smem:[#allocation2 + $0x169]]
        %v2029 = vstv %s2028
        %v2030 = vmul.f32 %v2029, %v287
        %v2031 = vmul.f32 %v2029, %v267
        %v2032 = vmul.f32 %v2029, %v291
        %v2036 = vrot.slane %v2030, 1
        %v2037 = vrot.slane %v2031, 1
        %v2038 = vsel %vm438, %v2036, %v2037
        %v2039 = vrot.slane %v2032, 1
        %v2040 = vsel %vm438, %v2037, %v2039
        %2041 = vrot.lane.b32.xlu0 %v2038, 126
        %v2042 = vpop.permute.xlu0 %2041
        %2043 = vrot.lane.b32.xlu0 %v2040, 126
        %v2044 = vpop.permute.xlu0 %2043
        %2045 = vrot.lane.b32.xlu0 %v2039, 126
        %v2046 = vpop.permute.xlu0 %2045
        %v2050 = vadd.f32 %v2025, %v2042
        %v2051 = vadd.f32 %v2026, %v2044
        %v2052 = vadd.f32 %v2027, %v2046
        %s2053 = sld [smem:[#allocation2 + $0x171]]
        %v2054 = vstv %s2053
        %v2055 = vmul.f32 %v2054, %v288
        %v2056 = vmul.f32 %v2054, %v270
        %v2057 = vmul.f32 %v2054, %v292
        %v2061 = vrot.slane %v2055, 1
        %v2062 = vrot.slane %v2056, 1
        %v2063 = vsel %vm438, %v2061, %v2062
        %v2064 = vrot.slane %v2057, 1
        %v2065 = vsel %vm438, %v2062, %v2064
        %2066 = vrot.lane.b32.xlu0 %v2063, 126
        %v2067 = vpop.permute.xlu0 %2066
        %2068 = vrot.lane.b32.xlu0 %v2065, 126
        %v2069 = vpop.permute.xlu0 %2068
        %2070 = vrot.lane.b32.xlu0 %v2064, 126
        %v2071 = vpop.permute.xlu0 %2070
        %v2075 = vadd.f32 %v2050, %v2067
        %v2076 = vadd.f32 %v2051, %v2069
        %v2077 = vadd.f32 %v2052, %v2071
        %s2078 = sld [smem:[#allocation2 + $0x179]]
        %v2079 = vstv %s2078
        %v2080 = vmul.f32 %v2079, %v289
        %v2081 = vmul.f32 %v2079, %v273
        %v2082 = vmul.f32 %v2079, %v293
        %v2086 = vrot.slane %v2080, 1
        %v2087 = vrot.slane %v2081, 1
        %v2088 = vsel %vm438, %v2086, %v2087
        %v2089 = vrot.slane %v2082, 1
        %v2090 = vsel %vm438, %v2087, %v2089
        %2091 = vrot.lane.b32.xlu0 %v2088, 126
        %v2092 = vpop.permute.xlu0 %2091
        %2093 = vrot.lane.b32.xlu0 %v2090, 126
        %v2094 = vpop.permute.xlu0 %2093
        %2095 = vrot.lane.b32.xlu0 %v2089, 126
        %v2096 = vpop.permute.xlu0 %2095
        %v2100 = vadd.f32 %v2075, %v2092
        %v2101 = vadd.f32 %v2076, %v2094
        %v2102 = vadd.f32 %v2077, %v2096
        %v2103 = vsel %vm1135, %v1633, 0.0
        %v2104 = vsel %vm1135, %v1634, 0.0
        %v2105 = vadd.f32 %v2103, %v2104
        %2106 = vadd.xlane.f32.xlu0 %v2105
        %v2107 = vpop.xlane.xlu0 %2106
        %v2108 = vrot.slane %v2107, 4
        %v2109 = vadd.f32 %v2107, %v2108
        %v2110 = vrot.slane %v2109, 2
        %v2111 = vadd.f32 %v2109, %v2110
        %v2112 = vrot.slane %v2111, 1
        %v2113 = vadd.f32 %v2111, %v2112
        %s2114 = vtos %v2113
        %v2118 = vrot.slane %v2100, 1
        %v2119 = vrot.slane %v2101, 1
        %v2120 = vsel %vm438, %v2118, %v2119
        %v2121 = vrot.slane %v2102, 1
        %v2122 = vsel %vm438, %v2119, %v2121
        %v2125 = vsel %vm1135, %v2120, 0.0
        %v2126 = vsel %vm1135, %v2122, 0.0
        %v2127 = vadd.f32 %v2125, %v2126
        %2128 = vadd.xlane.f32.xlu0 %v2127
        %v2129 = vpop.xlane.xlu0 %2128
        %v2130 = vrot.slane %v2129, 4
        %v2131 = vadd.f32 %v2129, %v2130
        %v2132 = vrot.slane %v2131, 2
        %v2133 = vadd.f32 %v2131, %v2132
        %v2134 = vrot.slane %v2133, 1
        %v2135 = vadd.f32 %v2133, %v2134
        %s2136 = vtos %v2135
        %s2137 = sadd.f32 %s2114, %s2136
        %s2138 = smul.f32 %s2137, 0.0009765625
        %v2139 = vstv %s2138
        %v2140 = vsub.f32 %v1633, %v2139
        %v2141 = vsub.f32 %v1634, %v2139
        %v2142 = vsub.f32 %v2100, %v2139
        %v2143 = vsub.f32 %v2101, %v2139
        %v2144 = vsub.f32 %v2102, %v2139
        %v2145 = vmul.f32 %v2140, %v2140
        %v2146 = vmul.f32 %v2141, %v2141
        %v2147 = vsel %vm1135, %v2145, 0.0
        %v2148 = vsel %vm1135, %v2146, 0.0
        %v2149 = vadd.f32 %v2147, %v2148
        %2150 = vadd.xlane.f32.xlu0 %v2149
        %v2151 = vpop.xlane.xlu0 %2150
        %v2152 = vrot.slane %v2151, 4
        %v2153 = vadd.f32 %v2151, %v2152
        %v2154 = vrot.slane %v2153, 2
        %v2155 = vadd.f32 %v2153, %v2154
        %v2156 = vrot.slane %v2155, 1
        %v2157 = vadd.f32 %v2155, %v2156
        %s2158 = vtos %v2157
        %v2159 = vmul.f32 %v2142, %v2142
        %v2160 = vmul.f32 %v2143, %v2143
        %v2161 = vmul.f32 %v2144, %v2144
        %v2165 = vrot.slane %v2159, 1
        %v2166 = vrot.slane %v2160, 1
        %v2167 = vsel %vm438, %v2165, %v2166
        %v2168 = vrot.slane %v2161, 1
        %v2169 = vsel %vm438, %v2166, %v2168
        %v2172 = vsel %vm1135, %v2167, 0.0
        %v2173 = vsel %vm1135, %v2169, 0.0
        %v2174 = vadd.f32 %v2172, %v2173
        %2175 = vadd.xlane.f32.xlu0 %v2174
        %v2176 = vpop.xlane.xlu0 %2175
        %v2177 = vrot.slane %v2176, 4
        %v2178 = vadd.f32 %v2176, %v2177
        %v2179 = vrot.slane %v2178, 2
        %v2180 = vadd.f32 %v2178, %v2179
        %v2181 = vrot.slane %v2180, 1
        %v2182 = vadd.f32 %v2180, %v2181
        %s2183 = vtos %v2182
        %s2184 = sadd.f32 %s2158, %s2183
        %s2185 = smul.f32 %s2184, 0.0009765625
        %s2186 = sadd.f32 %s2185, 1e-05
        %v2187 = vstv %s2186
        %v2188 = vrsqrt.pop %v2187
        %v2189 = vmul.f32 %v2188, %v2187
        %v2190 = vmul.f32 %v2189, %v2188
        %v2191 = vmul.f32 0.5, %v2190
        %v2192 = vsub.f32 1.5, %v2191
        %v2193 = vmul.f32 %v2188, %v2192
        %vm2194 = vweird.f32 %v2187
        %vm2195 = vweird.f32 %v2188
        %vm2196 = vmor %vm2194, %vm2195
        %v2197 = vsel %vm2196, %v2188, %v2193
        %s2198 = vtos %v2197
        %v2199 = vstv %s2198
        %v2200 = vmul.f32 %v2140, %v2199
        %v2201 = vmul.f32 %v2141, %v2199
        %v2202 = vmax.f32 %v2200, 0.0
        %v2203 = vmax.f32 %v2201, 0.0
        %s2204 = scalar_lea.vmem %s157, 16
        %2205 = vst.msk [vmem:[%s2204] sm:$0xff] %vm1135, %v2202
        %2206 = vst.msk [vmem:[%s2204 + $0x8] sm:$0xff] %vm1135, %v2203
        %v2207 = vmul.f32 %v2142, %v2199
        %v2208 = vmul.f32 %v2143, %v2199
        %v2209 = vmul.f32 %v2144, %v2199
        %v2210 = vmax.f32 %v2207, 0.0
        %v2211 = vmax.f32 %v2208, 0.0
        %v2212 = vmax.f32 %v2209, 0.0
        %2216 = vrot.lane.b32.xlu0 %v2210, 32
        %v2217 = vpop.permute.xlu0 %2216
        %2218 = vrot.lane.b32.xlu0 %v2211, 32
        %v2219 = vpop.permute.xlu0 %2218
        %2220 = vrot.lane.b32.xlu0 %v2212, 32
        %v2221 = vpop.permute.xlu0 %2220
        %2225 = vst.msk [vmem:[%s2204 - $0x1] sm:$0xfe] %vm1257, %v2217
        %2226 = vst.msk [vmem:[%s2204 + $0x7] sm:$0xff] %vm1259, %v2219
        %2227 = vst.msk [vmem:[%s2204 + $0xf] sm:$0x1] %vm1261, %v2221
        %s2228 = sld [smem:[#allocation2 + $0x2]]
        %v2229 = vstv %s2228
        %v2230 = vmul.f32 %v2229, %v286
        %v2231 = vmul.f32 %v2229, %v264
        %v2232 = vadd.f32 %v2230, 0.0
        %v2233 = vadd.f32 %v2231, 0.0
        %s2234 = sld [smem:[#allocation2 + $0xa]]
        %v2235 = vstv %s2234
        %v2236 = vmul.f32 %v2235, %v287
        %v2237 = vmul.f32 %v2235, %v267
        %v2238 = vadd.f32 %v2232, %v2236
        %v2239 = vadd.f32 %v2233, %v2237
        %s2240 = sld [smem:[#allocation2 + $0x12]]
        %v2241 = vstv %s2240
        %v2242 = vmul.f32 %v2241, %v288
        %v2243 = vmul.f32 %v2241, %v270
        %v2244 = vadd.f32 %v2238, %v2242
        %v2245 = vadd.f32 %v2239, %v2243
        %s2246 = sld [smem:[#allocation2 + $0x1a]]
        %v2247 = vstv %s2246
        %v2248 = vmul.f32 %v2247, %v289
        %v2249 = vmul.f32 %v2247, %v273
        %v2250 = vadd.f32 %v2244, %v2248
        %v2251 = vadd.f32 %v2245, %v2249
        %s2252 = sld [smem:[#allocation2 + $0x22]]
        %v2253 = vstv %s2252
        %v2254 = vmul.f32 %v2253, %v286
        %v2255 = vmul.f32 %v2253, %v264
        %2258 = vrot.lane.b32.xlu0 %v2254, 127
        %v2259 = vpop.permute.xlu0 %2258
        %2260 = vrot.lane.b32.xlu0 %v2255, 127
        %v2261 = vpop.permute.xlu0 %2260
        %v2264 = vadd.f32 %v2250, %v2259
        %v2265 = vadd.f32 %v2251, %v2261
        %s2266 = sld [smem:[#allocation2 + $0x2a]]
        %v2267 = vstv %s2266
        %v2268 = vmul.f32 %v2267, %v287
        %v2269 = vmul.f32 %v2267, %v267
        %2272 = vrot.lane.b32.xlu0 %v2268, 127
        %v2273 = vpop.permute.xlu0 %2272
        %2274 = vrot.lane.b32.xlu0 %v2269, 127
        %v2275 = vpop.permute.xlu0 %2274
        %v2278 = vadd.f32 %v2264, %v2273
        %v2279 = vadd.f32 %v2265, %v2275
        %s2280 = sld [smem:[#allocation2 + $0x32]]
        %v2281 = vstv %s2280
        %v2282 = vmul.f32 %v2281, %v288
        %v2283 = vmul.f32 %v2281, %v270
        %2286 = vrot.lane.b32.xlu0 %v2282, 127
        %v2287 = vpop.permute.xlu0 %2286
        %2288 = vrot.lane.b32.xlu0 %v2283, 127
        %v2289 = vpop.permute.xlu0 %2288
        %v2292 = vadd.f32 %v2278, %v2287
        %v2293 = vadd.f32 %v2279, %v2289
        %s2294 = sld [smem:[#allocation2 + $0x3a]]
        %v2295 = vstv %s2294
        %v2296 = vmul.f32 %v2295, %v289
        %v2297 = vmul.f32 %v2295, %v273
        %2300 = vrot.lane.b32.xlu0 %v2296, 127
        %v2301 = vpop.permute.xlu0 %2300
        %2302 = vrot.lane.b32.xlu0 %v2297, 127
        %v2303 = vpop.permute.xlu0 %2302
        %v2306 = vadd.f32 %v2292, %v2301
        %v2307 = vadd.f32 %v2293, %v2303
        %s2308 = sld [smem:[#allocation2 + $0x42]]
        %v2309 = vstv %s2308
        %v2310 = vmul.f32 %v2309, %v286
        %v2311 = vmul.f32 %v2309, %v264
        %2314 = vrot.lane.b32.xlu0 %v2310, 126
        %v2315 = vpop.permute.xlu0 %2314
        %2316 = vrot.lane.b32.xlu0 %v2311, 126
        %v2317 = vpop.permute.xlu0 %2316
        %v2320 = vadd.f32 %v2306, %v2315
        %v2321 = vadd.f32 %v2307, %v2317
        %s2322 = sld [smem:[#allocation2 + $0x4a]]
        %v2323 = vstv %s2322
        %v2324 = vmul.f32 %v2323, %v287
        %v2325 = vmul.f32 %v2323, %v267
        %2328 = vrot.lane.b32.xlu0 %v2324, 126
        %v2329 = vpop.permute.xlu0 %2328
        %2330 = vrot.lane.b32.xlu0 %v2325, 126
        %v2331 = vpop.permute.xlu0 %2330
        %v2334 = vadd.f32 %v2320, %v2329
        %v2335 = vadd.f32 %v2321, %v2331
        %s2336 = sld [smem:[#allocation2 + $0x52]]
        %v2337 = vstv %s2336
        %v2338 = vmul.f32 %v2337, %v288
        %v2339 = vmul.f32 %v2337, %v270
        %2342 = vrot.lane.b32.xlu0 %v2338, 126
        %v2343 = vpop.permute.xlu0 %2342
        %2344 = vrot.lane.b32.xlu0 %v2339, 126
        %v2345 = vpop.permute.xlu0 %2344
        %v2348 = vadd.f32 %v2334, %v2343
        %v2349 = vadd.f32 %v2335, %v2345
        %s2350 = sld [smem:[#allocation2 + $0x5a]]
        %v2351 = vstv %s2350
        %v2352 = vmul.f32 %v2351, %v289
        %v2353 = vmul.f32 %v2351, %v273
        %2356 = vrot.lane.b32.xlu0 %v2352, 126
        %v2357 = vpop.permute.xlu0 %2356
        %2358 = vrot.lane.b32.xlu0 %v2353, 126
        %v2359 = vpop.permute.xlu0 %2358
        %v2362 = vadd.f32 %v2348, %v2357
        %v2363 = vadd.f32 %v2349, %v2359
        %s2364 = sld [smem:[#allocation2 + $0x62]]
        %v2365 = vstv %s2364
        %v2366 = vmul.f32 %v2365, %v286
        %v2367 = vmul.f32 %v2365, %v264
        %v2368 = vmul.f32 %v2365, %v290
        %v2372 = vrot.slane %v2366, 1
        %v2373 = vrot.slane %v2367, 1
        %v2374 = vsel %vm438, %v2372, %v2373
        %v2375 = vrot.slane %v2368, 1
        %v2376 = vsel %vm438, %v2373, %v2375
        %v2379 = vadd.f32 %v2362, %v2374
        %v2380 = vadd.f32 %v2363, %v2376
        %s2381 = sld [smem:[#allocation2 + $0x6a]]
        %v2382 = vstv %s2381
        %v2383 = vmul.f32 %v2382, %v287
        %v2384 = vmul.f32 %v2382, %v267
        %v2385 = vmul.f32 %v2382, %v291
        %v2389 = vrot.slane %v2383, 1
        %v2390 = vrot.slane %v2384, 1
        %v2391 = vsel %vm438, %v2389, %v2390
        %v2392 = vrot.slane %v2385, 1
        %v2393 = vsel %vm438, %v2390, %v2392
        %v2396 = vadd.f32 %v2379, %v2391
        %v2397 = vadd.f32 %v2380, %v2393
        %s2398 = sld [smem:[#allocation2 + $0x72]]
        %v2399 = vstv %s2398
        %v2400 = vmul.f32 %v2399, %v288
        %v2401 = vmul.f32 %v2399, %v270
        %v2402 = vmul.f32 %v2399, %v292
        %v2406 = vrot.slane %v2400, 1
        %v2407 = vrot.slane %v2401, 1
        %v2408 = vsel %vm438, %v2406, %v2407
        %v2409 = vrot.slane %v2402, 1
        %v2410 = vsel %vm438, %v2407, %v2409
        %v2413 = vadd.f32 %v2396, %v2408
        %v2414 = vadd.f32 %v2397, %v2410
        %s2415 = sld [smem:[#allocation2 + $0x7a]]
        %v2416 = vstv %s2415
        %v2417 = vmul.f32 %v2416, %v289
        %v2418 = vmul.f32 %v2416, %v273
        %v2419 = vmul.f32 %v2416, %v293
        %v2423 = vrot.slane %v2417, 1
        %v2424 = vrot.slane %v2418, 1
        %v2425 = vsel %vm438, %v2423, %v2424
        %v2426 = vrot.slane %v2419, 1
        %v2427 = vsel %vm438, %v2424, %v2426
        %v2430 = vadd.f32 %v2413, %v2425
        %v2431 = vadd.f32 %v2414, %v2427
        %s2432 = sld [smem:[#allocation2 + $0x82]]
        %v2433 = vstv %s2432
        %v2434 = vmul.f32 %v2433, %v286
        %v2435 = vmul.f32 %v2433, %v264
        %v2436 = vmul.f32 %v2433, %v290
        %v2440 = vrot.slane %v2434, 1
        %v2441 = vrot.slane %v2435, 1
        %v2442 = vsel %vm438, %v2440, %v2441
        %v2443 = vrot.slane %v2436, 1
        %v2444 = vsel %vm438, %v2441, %v2443
        %2445 = vrot.lane.b32.xlu0 %v2442, 127
        %v2446 = vpop.permute.xlu0 %2445
        %2447 = vrot.lane.b32.xlu0 %v2444, 127
        %v2448 = vpop.permute.xlu0 %2447
        %v2451 = vadd.f32 %v2430, %v2446
        %v2452 = vadd.f32 %v2431, %v2448
        %s2453 = sld [smem:[#allocation2 + $0x8a]]
        %v2454 = vstv %s2453
        %v2455 = vmul.f32 %v2454, %v287
        %v2456 = vmul.f32 %v2454, %v267
        %v2457 = vmul.f32 %v2454, %v291
        %v2461 = vrot.slane %v2455, 1
        %v2462 = vrot.slane %v2456, 1
        %v2463 = vsel %vm438, %v2461, %v2462
        %v2464 = vrot.slane %v2457, 1
        %v2465 = vsel %vm438, %v2462, %v2464
        %2466 = vrot.lane.b32.xlu0 %v2463, 127
        %v2467 = vpop.permute.xlu0 %2466
        %2468 = vrot.lane.b32.xlu0 %v2465, 127
        %v2469 = vpop.permute.xlu0 %2468
        %v2472 = vadd.f32 %v2451, %v2467
        %v2473 = vadd.f32 %v2452, %v2469
        %s2474 = sld [smem:[#allocation2 + $0x92]]
        %v2475 = vstv %s2474
        %v2476 = vmul.f32 %v2475, %v288
        %v2477 = vmul.f32 %v2475, %v270
        %v2478 = vmul.f32 %v2475, %v292
        %v2482 = vrot.slane %v2476, 1
        %v2483 = vrot.slane %v2477, 1
        %v2484 = vsel %vm438, %v2482, %v2483
        %v2485 = vrot.slane %v2478, 1
        %v2486 = vsel %vm438, %v2483, %v2485
        %2487 = vrot.lane.b32.xlu0 %v2484, 127
        %v2488 = vpop.permute.xlu0 %2487
        %2489 = vrot.lane.b32.xlu0 %v2486, 127
        %v2490 = vpop.permute.xlu0 %2489
        %v2493 = vadd.f32 %v2472, %v2488
        %v2494 = vadd.f32 %v2473, %v2490
        %s2495 = sld [smem:[#allocation2 + $0x9a]]
        %v2496 = vstv %s2495
        %v2497 = vmul.f32 %v2496, %v289
        %v2498 = vmul.f32 %v2496, %v273
        %v2499 = vmul.f32 %v2496, %v293
        %v2503 = vrot.slane %v2497, 1
        %v2504 = vrot.slane %v2498, 1
        %v2505 = vsel %vm438, %v2503, %v2504
        %v2506 = vrot.slane %v2499, 1
        %v2507 = vsel %vm438, %v2504, %v2506
        %2508 = vrot.lane.b32.xlu0 %v2505, 127
        %v2509 = vpop.permute.xlu0 %2508
        %2510 = vrot.lane.b32.xlu0 %v2507, 127
        %v2511 = vpop.permute.xlu0 %2510
        %v2514 = vadd.f32 %v2493, %v2509
        %v2515 = vadd.f32 %v2494, %v2511
        %s2516 = sld [smem:[#allocation2 + $0xa2]]
        %v2517 = vstv %s2516
        %v2518 = vmul.f32 %v2517, %v286
        %v2519 = vmul.f32 %v2517, %v264
        %v2520 = vmul.f32 %v2517, %v290
        %v2524 = vrot.slane %v2518, 1
        %v2525 = vrot.slane %v2519, 1
        %v2526 = vsel %vm438, %v2524, %v2525
        %v2527 = vrot.slane %v2520, 1
        %v2528 = vsel %vm438, %v2525, %v2527
        %2529 = vrot.lane.b32.xlu0 %v2526, 126
        %v2530 = vpop.permute.xlu0 %2529
        %2531 = vrot.lane.b32.xlu0 %v2528, 126
        %v2532 = vpop.permute.xlu0 %2531
        %v2535 = vadd.f32 %v2514, %v2530
        %v2536 = vadd.f32 %v2515, %v2532
        %s2537 = sld [smem:[#allocation2 + $0xaa]]
        %v2538 = vstv %s2537
        %v2539 = vmul.f32 %v2538, %v287
        %v2540 = vmul.f32 %v2538, %v267
        %v2541 = vmul.f32 %v2538, %v291
        %v2545 = vrot.slane %v2539, 1
        %v2546 = vrot.slane %v2540, 1
        %v2547 = vsel %vm438, %v2545, %v2546
        %v2548 = vrot.slane %v2541, 1
        %v2549 = vsel %vm438, %v2546, %v2548
        %2550 = vrot.lane.b32.xlu0 %v2547, 126
        %v2551 = vpop.permute.xlu0 %2550
        %2552 = vrot.lane.b32.xlu0 %v2549, 126
        %v2553 = vpop.permute.xlu0 %2552
        %v2556 = vadd.f32 %v2535, %v2551
        %v2557 = vadd.f32 %v2536, %v2553
        %s2558 = sld [smem:[#allocation2 + $0xb2]]
        %v2559 = vstv %s2558
        %v2560 = vmul.f32 %v2559, %v288
        %v2561 = vmul.f32 %v2559, %v270
        %v2562 = vmul.f32 %v2559, %v292
        %v2566 = vrot.slane %v2560, 1
        %v2567 = vrot.slane %v2561, 1
        %v2568 = vsel %vm438, %v2566, %v2567
        %v2569 = vrot.slane %v2562, 1
        %v2570 = vsel %vm438, %v2567, %v2569
        %2571 = vrot.lane.b32.xlu0 %v2568, 126
        %v2572 = vpop.permute.xlu0 %2571
        %2573 = vrot.lane.b32.xlu0 %v2570, 126
        %v2574 = vpop.permute.xlu0 %2573
        %v2577 = vadd.f32 %v2556, %v2572
        %v2578 = vadd.f32 %v2557, %v2574
        %s2579 = sld [smem:[#allocation2 + $0xba]]
        %v2580 = vstv %s2579
        %v2581 = vmul.f32 %v2580, %v289
        %v2582 = vmul.f32 %v2580, %v273
        %v2583 = vmul.f32 %v2580, %v293
        %v2587 = vrot.slane %v2581, 1
        %v2588 = vrot.slane %v2582, 1
        %v2589 = vsel %vm438, %v2587, %v2588
        %v2590 = vrot.slane %v2583, 1
        %v2591 = vsel %vm438, %v2588, %v2590
        %2592 = vrot.lane.b32.xlu0 %v2589, 126
        %v2593 = vpop.permute.xlu0 %2592
        %2594 = vrot.lane.b32.xlu0 %v2591, 126
        %v2595 = vpop.permute.xlu0 %2594
        %v2598 = vadd.f32 %v2577, %v2593
        %v2599 = vadd.f32 %v2578, %v2595
        %s2600 = sld [smem:[#allocation2 + $0xc2]]
        %v2601 = vstv %s2600
        %v2602 = vmul.f32 %v2601, %v286
        %v2603 = vmul.f32 %v2601, %v264
        %v2604 = vmul.f32 %v2601, %v290
        %v2605 = vadd.f32 %v2602, 0.0
        %v2606 = vadd.f32 %v2603, 0.0
        %v2607 = vadd.f32 %v2604, 0.0
        %s2608 = sld [smem:[#allocation2 + $0xca]]
        %v2609 = vstv %s2608
        %v2610 = vmul.f32 %v2609, %v287
        %v2611 = vmul.f32 %v2609, %v267
        %v2612 = vmul.f32 %v2609, %v291
        %v2613 = vadd.f32 %v2605, %v2610
        %v2614 = vadd.f32 %v2606, %v2611
        %v2615 = vadd.f32 %v2607, %v2612
        %s2616 = sld [smem:[#allocation2 + $0xd2]]
        %v2617 = vstv %s2616
        %v2618 = vmul.f32 %v2617, %v288
        %v2619 = vmul.f32 %v2617, %v270
        %v2620 = vmul.f32 %v2617, %v292
        %v2621 = vadd.f32 %v2613, %v2618
        %v2622 = vadd.f32 %v2614, %v2619
        %v2623 = vadd.f32 %v2615, %v2620
        %s2624 = sld [smem:[#allocation2 + $0xda]]
        %v2625 = vstv %s2624
        %v2626 = vmul.f32 %v2625, %v289
        %v2627 = vmul.f32 %v2625, %v273
        %v2628 = vmul.f32 %v2625, %v293
        %v2629 = vadd.f32 %v2621, %v2626
        %v2630 = vadd.f32 %v2622, %v2627
        %v2631 = vadd.f32 %v2623, %v2628
        %s2632 = sld [smem:[#allocation2 + $0xe2]]
        %v2633 = vstv %s2632
        %v2634 = vmul.f32 %v2633, %v286
        %v2635 = vmul.f32 %v2633, %v264
        %v2636 = vmul.f32 %v2633, %v290
        %2640 = vrot.lane.b32.xlu0 %v2634, 127
        %v2641 = vpop.permute.xlu0 %2640
        %2642 = vrot.lane.b32.xlu0 %v2635, 127
        %v2643 = vpop.permute.xlu0 %2642
        %2644 = vrot.lane.b32.xlu0 %v2636, 127
        %v2645 = vpop.permute.xlu0 %2644
        %v2649 = vadd.f32 %v2629, %v2641
        %v2650 = vadd.f32 %v2630, %v2643
        %v2651 = vadd.f32 %v2631, %v2645
        %s2652 = sld [smem:[#allocation2 + $0xea]]
        %v2653 = vstv %s2652
        %v2654 = vmul.f32 %v2653, %v287
        %v2655 = vmul.f32 %v2653, %v267
        %v2656 = vmul.f32 %v2653, %v291
        %2660 = vrot.lane.b32.xlu0 %v2654, 127
        %v2661 = vpop.permute.xlu0 %2660
        %2662 = vrot.lane.b32.xlu0 %v2655, 127
        %v2663 = vpop.permute.xlu0 %2662
        %2664 = vrot.lane.b32.xlu0 %v2656, 127
        %v2665 = vpop.permute.xlu0 %2664
        %v2669 = vadd.f32 %v2649, %v2661
        %v2670 = vadd.f32 %v2650, %v2663
        %v2671 = vadd.f32 %v2651, %v2665
        %s2672 = sld [smem:[#allocation2 + $0xf2]]
        %v2673 = vstv %s2672
        %v2674 = vmul.f32 %v2673, %v288
        %v2675 = vmul.f32 %v2673, %v270
        %v2676 = vmul.f32 %v2673, %v292
        %2680 = vrot.lane.b32.xlu0 %v2674, 127
        %v2681 = vpop.permute.xlu0 %2680
        %2682 = vrot.lane.b32.xlu0 %v2675, 127
        %v2683 = vpop.permute.xlu0 %2682
        %2684 = vrot.lane.b32.xlu0 %v2676, 127
        %v2685 = vpop.permute.xlu0 %2684
        %v2689 = vadd.f32 %v2669, %v2681
        %v2690 = vadd.f32 %v2670, %v2683
        %v2691 = vadd.f32 %v2671, %v2685
        %s2692 = sld [smem:[#allocation2 + $0xfa]]
        %v2693 = vstv %s2692
        %v2694 = vmul.f32 %v2693, %v289
        %v2695 = vmul.f32 %v2693, %v273
        %v2696 = vmul.f32 %v2693, %v293
        %2700 = vrot.lane.b32.xlu0 %v2694, 127
        %v2701 = vpop.permute.xlu0 %2700
        %2702 = vrot.lane.b32.xlu0 %v2695, 127
        %v2703 = vpop.permute.xlu0 %2702
        %2704 = vrot.lane.b32.xlu0 %v2696, 127
        %v2705 = vpop.permute.xlu0 %2704
        %v2709 = vadd.f32 %v2689, %v2701
        %v2710 = vadd.f32 %v2690, %v2703
        %v2711 = vadd.f32 %v2691, %v2705
        %s2712 = sld [smem:[#allocation2 + $0x102]]
        %v2713 = vstv %s2712
        %v2714 = vmul.f32 %v2713, %v286
        %v2715 = vmul.f32 %v2713, %v264
        %v2716 = vmul.f32 %v2713, %v290
        %2720 = vrot.lane.b32.xlu0 %v2714, 126
        %v2721 = vpop.permute.xlu0 %2720
        %2722 = vrot.lane.b32.xlu0 %v2715, 126
        %v2723 = vpop.permute.xlu0 %2722
        %2724 = vrot.lane.b32.xlu0 %v2716, 126
        %v2725 = vpop.permute.xlu0 %2724
        %v2729 = vadd.f32 %v2709, %v2721
        %v2730 = vadd.f32 %v2710, %v2723
        %v2731 = vadd.f32 %v2711, %v2725
        %s2732 = sld [smem:[#allocation2 + $0x10a]]
        %v2733 = vstv %s2732
        %v2734 = vmul.f32 %v2733, %v287
        %v2735 = vmul.f32 %v2733, %v267
        %v2736 = vmul.f32 %v2733, %v291
        %2740 = vrot.lane.b32.xlu0 %v2734, 126
        %v2741 = vpop.permute.xlu0 %2740
        %2742 = vrot.lane.b32.xlu0 %v2735, 126
        %v2743 = vpop.permute.xlu0 %2742
        %2744 = vrot.lane.b32.xlu0 %v2736, 126
        %v2745 = vpop.permute.xlu0 %2744
        %v2749 = vadd.f32 %v2729, %v2741
        %v2750 = vadd.f32 %v2730, %v2743
        %v2751 = vadd.f32 %v2731, %v2745
        %s2752 = sld [smem:[#allocation2 + $0x112]]
        %v2753 = vstv %s2752
        %v2754 = vmul.f32 %v2753, %v288
        %v2755 = vmul.f32 %v2753, %v270
        %v2756 = vmul.f32 %v2753, %v292
        %2760 = vrot.lane.b32.xlu0 %v2754, 126
        %v2761 = vpop.permute.xlu0 %2760
        %2762 = vrot.lane.b32.xlu0 %v2755, 126
        %v2763 = vpop.permute.xlu0 %2762
        %2764 = vrot.lane.b32.xlu0 %v2756, 126
        %v2765 = vpop.permute.xlu0 %2764
        %v2769 = vadd.f32 %v2749, %v2761
        %v2770 = vadd.f32 %v2750, %v2763
        %v2771 = vadd.f32 %v2751, %v2765
        %s2772 = sld [smem:[#allocation2 + $0x11a]]
        %v2773 = vstv %s2772
        %v2774 = vmul.f32 %v2773, %v289
        %v2775 = vmul.f32 %v2773, %v273
        %v2776 = vmul.f32 %v2773, %v293
        %2780 = vrot.lane.b32.xlu0 %v2774, 126
        %v2781 = vpop.permute.xlu0 %2780
        %2782 = vrot.lane.b32.xlu0 %v2775, 126
        %v2783 = vpop.permute.xlu0 %2782
        %2784 = vrot.lane.b32.xlu0 %v2776, 126
        %v2785 = vpop.permute.xlu0 %2784
        %v2789 = vadd.f32 %v2769, %v2781
        %v2790 = vadd.f32 %v2770, %v2783
        %v2791 = vadd.f32 %v2771, %v2785
        %s2792 = sld [smem:[#allocation2 + $0x122]]
        %v2793 = vstv %s2792
        %v2794 = vmul.f32 %v2793, %v286
        %v2795 = vmul.f32 %v2793, %v264
        %v2796 = vmul.f32 %v2793, %v290
        %v2800 = vrot.slane %v2794, 1
        %v2801 = vrot.slane %v2795, 1
        %v2802 = vsel %vm438, %v2800, %v2801
        %v2803 = vrot.slane %v2796, 1
        %v2804 = vsel %vm438, %v2801, %v2803
        %v2808 = vadd.f32 %v2789, %v2802
        %v2809 = vadd.f32 %v2790, %v2804
        %v2810 = vadd.f32 %v2791, %v2803
        %s2811 = sld [smem:[#allocation2 + $0x12a]]
        %v2812 = vstv %s2811
        %v2813 = vmul.f32 %v2812, %v287
        %v2814 = vmul.f32 %v2812, %v267
        %v2815 = vmul.f32 %v2812, %v291
        %v2819 = vrot.slane %v2813, 1
        %v2820 = vrot.slane %v2814, 1
        %v2821 = vsel %vm438, %v2819, %v2820
        %v2822 = vrot.slane %v2815, 1
        %v2823 = vsel %vm438, %v2820, %v2822
        %v2827 = vadd.f32 %v2808, %v2821
        %v2828 = vadd.f32 %v2809, %v2823
        %v2829 = vadd.f32 %v2810, %v2822
        %s2830 = sld [smem:[#allocation2 + $0x132]]
        %v2831 = vstv %s2830
        %v2832 = vmul.f32 %v2831, %v288
        %v2833 = vmul.f32 %v2831, %v270
        %v2834 = vmul.f32 %v2831, %v292
        %v2838 = vrot.slane %v2832, 1
        %v2839 = vrot.slane %v2833, 1
        %v2840 = vsel %vm438, %v2838, %v2839
        %v2841 = vrot.slane %v2834, 1
        %v2842 = vsel %vm438, %v2839, %v2841
        %v2846 = vadd.f32 %v2827, %v2840
        %v2847 = vadd.f32 %v2828, %v2842
        %v2848 = vadd.f32 %v2829, %v2841
        %s2849 = sld [smem:[#allocation2 + $0x13a]]
        %v2850 = vstv %s2849
        %v2851 = vmul.f32 %v2850, %v289
        %v2852 = vmul.f32 %v2850, %v273
        %v2853 = vmul.f32 %v2850, %v293
        %v2857 = vrot.slane %v2851, 1
        %v2858 = vrot.slane %v2852, 1
        %v2859 = vsel %vm438, %v2857, %v2858
        %v2860 = vrot.slane %v2853, 1
        %v2861 = vsel %vm438, %v2858, %v2860
        %v2865 = vadd.f32 %v2846, %v2859
        %v2866 = vadd.f32 %v2847, %v2861
        %v2867 = vadd.f32 %v2848, %v2860
        %s2868 = sld [smem:[#allocation2 + $0x142]]
        %v2869 = vstv %s2868
        %v2870 = vmul.f32 %v2869, %v286
        %v2871 = vmul.f32 %v2869, %v264
        %v2872 = vmul.f32 %v2869, %v290
        %v2876 = vrot.slane %v2870, 1
        %v2877 = vrot.slane %v2871, 1
        %v2878 = vsel %vm438, %v2876, %v2877
        %v2879 = vrot.slane %v2872, 1
        %v2880 = vsel %vm438, %v2877, %v2879
        %2881 = vrot.lane.b32.xlu0 %v2878, 127
        %v2882 = vpop.permute.xlu0 %2881
        %2883 = vrot.lane.b32.xlu0 %v2880, 127
        %v2884 = vpop.permute.xlu0 %2883
        %2885 = vrot.lane.b32.xlu0 %v2879, 127
        %v2886 = vpop.permute.xlu0 %2885
        %v2890 = vadd.f32 %v2865, %v2882
        %v2891 = vadd.f32 %v2866, %v2884
        %v2892 = vadd.f32 %v2867, %v2886
        %s2893 = sld [smem:[#allocation2 + $0x14a]]
        %v2894 = vstv %s2893
        %v2895 = vmul.f32 %v2894, %v287
        %v2896 = vmul.f32 %v2894, %v267
        %v2897 = vmul.f32 %v2894, %v291
        %v2901 = vrot.slane %v2895, 1
        %v2902 = vrot.slane %v2896, 1
        %v2903 = vsel %vm438, %v2901, %v2902
        %v2904 = vrot.slane %v2897, 1
        %v2905 = vsel %vm438, %v2902, %v2904
        %2906 = vrot.lane.b32.xlu0 %v2903, 127
        %v2907 = vpop.permute.xlu0 %2906
        %2908 = vrot.lane.b32.xlu0 %v2905, 127
        %v2909 = vpop.permute.xlu0 %2908
        %2910 = vrot.lane.b32.xlu0 %v2904, 127
        %v2911 = vpop.permute.xlu0 %2910
        %v2915 = vadd.f32 %v2890, %v2907
        %v2916 = vadd.f32 %v2891, %v2909
        %v2917 = vadd.f32 %v2892, %v2911
        %s2918 = sld [smem:[#allocation2 + $0x152]]
        %v2919 = vstv %s2918
        %v2920 = vmul.f32 %v2919, %v288
        %v2921 = vmul.f32 %v2919, %v270
        %v2922 = vmul.f32 %v2919, %v292
        %v2926 = vrot.slane %v2920, 1
        %v2927 = vrot.slane %v2921, 1
        %v2928 = vsel %vm438, %v2926, %v2927
        %v2929 = vrot.slane %v2922, 1
        %v2930 = vsel %vm438, %v2927, %v2929
        %2931 = vrot.lane.b32.xlu0 %v2928, 127
        %v2932 = vpop.permute.xlu0 %2931
        %2933 = vrot.lane.b32.xlu0 %v2930, 127
        %v2934 = vpop.permute.xlu0 %2933
        %2935 = vrot.lane.b32.xlu0 %v2929, 127
        %v2936 = vpop.permute.xlu0 %2935
        %v2940 = vadd.f32 %v2915, %v2932
        %v2941 = vadd.f32 %v2916, %v2934
        %v2942 = vadd.f32 %v2917, %v2936
        %s2943 = sld [smem:[#allocation2 + $0x15a]]
        %v2944 = vstv %s2943
        %v2945 = vmul.f32 %v2944, %v289
        %v2946 = vmul.f32 %v2944, %v273
        %v2947 = vmul.f32 %v2944, %v293
        %v2951 = vrot.slane %v2945, 1
        %v2952 = vrot.slane %v2946, 1
        %v2953 = vsel %vm438, %v2951, %v2952
        %v2954 = vrot.slane %v2947, 1
        %v2955 = vsel %vm438, %v2952, %v2954
        %2956 = vrot.lane.b32.xlu0 %v2953, 127
        %v2957 = vpop.permute.xlu0 %2956
        %2958 = vrot.lane.b32.xlu0 %v2955, 127
        %v2959 = vpop.permute.xlu0 %2958
        %2960 = vrot.lane.b32.xlu0 %v2954, 127
        %v2961 = vpop.permute.xlu0 %2960
        %v2965 = vadd.f32 %v2940, %v2957
        %v2966 = vadd.f32 %v2941, %v2959
        %v2967 = vadd.f32 %v2942, %v2961
        %s2968 = sld [smem:[#allocation2 + $0x162]]
        %v2969 = vstv %s2968
        %v2970 = vmul.f32 %v2969, %v286
        %v2971 = vmul.f32 %v2969, %v264
        %v2972 = vmul.f32 %v2969, %v290
        %v2976 = vrot.slane %v2970, 1
        %v2977 = vrot.slane %v2971, 1
        %v2978 = vsel %vm438, %v2976, %v2977
        %v2979 = vrot.slane %v2972, 1
        %v2980 = vsel %vm438, %v2977, %v2979
        %2981 = vrot.lane.b32.xlu0 %v2978, 126
        %v2982 = vpop.permute.xlu0 %2981
        %2983 = vrot.lane.b32.xlu0 %v2980, 126
        %v2984 = vpop.permute.xlu0 %2983
        %2985 = vrot.lane.b32.xlu0 %v2979, 126
        %v2986 = vpop.permute.xlu0 %2985
        %v2990 = vadd.f32 %v2965, %v2982
        %v2991 = vadd.f32 %v2966, %v2984
        %v2992 = vadd.f32 %v2967, %v2986
        %s2993 = sld [smem:[#allocation2 + $0x16a]]
        %v2994 = vstv %s2993
        %v2995 = vmul.f32 %v2994, %v287
        %v2996 = vmul.f32 %v2994, %v267
        %v2997 = vmul.f32 %v2994, %v291
        %v3001 = vrot.slane %v2995, 1
        %v3002 = vrot.slane %v2996, 1
        %v3003 = vsel %vm438, %v3001, %v3002
        %v3004 = vrot.slane %v2997, 1
        %v3005 = vsel %vm438, %v3002, %v3004
        %3006 = vrot.lane.b32.xlu0 %v3003, 126
        %v3007 = vpop.permute.xlu0 %3006
        %3008 = vrot.lane.b32.xlu0 %v3005, 126
        %v3009 = vpop.permute.xlu0 %3008
        %3010 = vrot.lane.b32.xlu0 %v3004, 126
        %v3011 = vpop.permute.xlu0 %3010
        %v3015 = vadd.f32 %v2990, %v3007
        %v3016 = vadd.f32 %v2991, %v3009
        %v3017 = vadd.f32 %v2992, %v3011
        %s3018 = sld [smem:[#allocation2 + $0x172]]
        %v3019 = vstv %s3018
        %v3020 = vmul.f32 %v3019, %v288
        %v3021 = vmul.f32 %v3019, %v270
        %v3022 = vmul.f32 %v3019, %v292
        %v3026 = vrot.slane %v3020, 1
        %v3027 = vrot.slane %v3021, 1
        %v3028 = vsel %vm438, %v3026, %v3027
        %v3029 = vrot.slane %v3022, 1
        %v3030 = vsel %vm438, %v3027, %v3029
        %3031 = vrot.lane.b32.xlu0 %v3028, 126
        %v3032 = vpop.permute.xlu0 %3031
        %3033 = vrot.lane.b32.xlu0 %v3030, 126
        %v3034 = vpop.permute.xlu0 %3033
        %3035 = vrot.lane.b32.xlu0 %v3029, 126
        %v3036 = vpop.permute.xlu0 %3035
        %v3040 = vadd.f32 %v3015, %v3032
        %v3041 = vadd.f32 %v3016, %v3034
        %v3042 = vadd.f32 %v3017, %v3036
        %s3043 = sld [smem:[#allocation2 + $0x17a]]
        %v3044 = vstv %s3043
        %v3045 = vmul.f32 %v3044, %v289
        %v3046 = vmul.f32 %v3044, %v273
        %v3047 = vmul.f32 %v3044, %v293
        %v3051 = vrot.slane %v3045, 1
        %v3052 = vrot.slane %v3046, 1
        %v3053 = vsel %vm438, %v3051, %v3052
        %v3054 = vrot.slane %v3047, 1
        %v3055 = vsel %vm438, %v3052, %v3054
        %3056 = vrot.lane.b32.xlu0 %v3053, 126
        %v3057 = vpop.permute.xlu0 %3056
        %3058 = vrot.lane.b32.xlu0 %v3055, 126
        %v3059 = vpop.permute.xlu0 %3058
        %3060 = vrot.lane.b32.xlu0 %v3054, 126
        %v3061 = vpop.permute.xlu0 %3060
        %v3065 = vadd.f32 %v3040, %v3057
        %v3066 = vadd.f32 %v3041, %v3059
        %v3067 = vadd.f32 %v3042, %v3061
        %v3068 = vsel %vm1135, %v2598, 0.0
        %v3069 = vsel %vm1135, %v2599, 0.0
        %v3070 = vadd.f32 %v3068, %v3069
        %3071 = vadd.xlane.f32.xlu0 %v3070
        %v3072 = vpop.xlane.xlu0 %3071
        %v3073 = vrot.slane %v3072, 4
        %v3074 = vadd.f32 %v3072, %v3073
        %v3075 = vrot.slane %v3074, 2
        %v3076 = vadd.f32 %v3074, %v3075
        %v3077 = vrot.slane %v3076, 1
        %v3078 = vadd.f32 %v3076, %v3077
        %s3079 = vtos %v3078
        %v3083 = vrot.slane %v3065, 1
        %v3084 = vrot.slane %v3066, 1
        %v3085 = vsel %vm438, %v3083, %v3084
        %v3086 = vrot.slane %v3067, 1
        %v3087 = vsel %vm438, %v3084, %v3086
        %v3090 = vsel %vm1135, %v3085, 0.0
        %v3091 = vsel %vm1135, %v3087, 0.0
        %v3092 = vadd.f32 %v3090, %v3091
        %3093 = vadd.xlane.f32.xlu0 %v3092
        %v3094 = vpop.xlane.xlu0 %3093
        %v3095 = vrot.slane %v3094, 4
        %v3096 = vadd.f32 %v3094, %v3095
        %v3097 = vrot.slane %v3096, 2
        %v3098 = vadd.f32 %v3096, %v3097
        %v3099 = vrot.slane %v3098, 1
        %v3100 = vadd.f32 %v3098, %v3099
        %s3101 = vtos %v3100
        %s3102 = sadd.f32 %s3079, %s3101
        %s3103 = smul.f32 %s3102, 0.0009765625
        %v3104 = vstv %s3103
        %v3105 = vsub.f32 %v2598, %v3104
        %v3106 = vsub.f32 %v2599, %v3104
        %v3107 = vsub.f32 %v3065, %v3104
        %v3108 = vsub.f32 %v3066, %v3104
        %v3109 = vsub.f32 %v3067, %v3104
        %v3110 = vmul.f32 %v3105, %v3105
        %v3111 = vmul.f32 %v3106, %v3106
        %v3112 = vsel %vm1135, %v3110, 0.0
        %v3113 = vsel %vm1135, %v3111, 0.0
        %v3114 = vadd.f32 %v3112, %v3113
        %3115 = vadd.xlane.f32.xlu0 %v3114
        %v3116 = vpop.xlane.xlu0 %3115
        %v3117 = vrot.slane %v3116, 4
        %v3118 = vadd.f32 %v3116, %v3117
        %v3119 = vrot.slane %v3118, 2
        %v3120 = vadd.f32 %v3118, %v3119
        %v3121 = vrot.slane %v3120, 1
        %v3122 = vadd.f32 %v3120, %v3121
        %s3123 = vtos %v3122
        %v3124 = vmul.f32 %v3107, %v3107
        %v3125 = vmul.f32 %v3108, %v3108
        %v3126 = vmul.f32 %v3109, %v3109
        %v3130 = vrot.slane %v3124, 1
        %v3131 = vrot.slane %v3125, 1
        %v3132 = vsel %vm438, %v3130, %v3131
        %v3133 = vrot.slane %v3126, 1
        %v3134 = vsel %vm438, %v3131, %v3133
        %v3137 = vsel %vm1135, %v3132, 0.0
        %v3138 = vsel %vm1135, %v3134, 0.0
        %v3139 = vadd.f32 %v3137, %v3138
        %3140 = vadd.xlane.f32.xlu0 %v3139
        %v3141 = vpop.xlane.xlu0 %3140
        %v3142 = vrot.slane %v3141, 4
        %v3143 = vadd.f32 %v3141, %v3142
        %v3144 = vrot.slane %v3143, 2
        %v3145 = vadd.f32 %v3143, %v3144
        %v3146 = vrot.slane %v3145, 1
        %v3147 = vadd.f32 %v3145, %v3146
        %s3148 = vtos %v3147
        %s3149 = sadd.f32 %s3123, %s3148
        %s3150 = smul.f32 %s3149, 0.0009765625
        %s3151 = sadd.f32 %s3150, 1e-05
        %v3152 = vstv %s3151
        %v3153 = vrsqrt.pop %v3152
        %v3154 = vmul.f32 %v3153, %v3152
        %v3155 = vmul.f32 %v3154, %v3153
        %v3156 = vmul.f32 0.5, %v3155
        %v3157 = vsub.f32 1.5, %v3156
        %v3158 = vmul.f32 %v3153, %v3157
        %vm3159 = vweird.f32 %v3152
        %vm3160 = vweird.f32 %v3153
        %vm3161 = vmor %vm3159, %vm3160
        %v3162 = vsel %vm3161, %v3153, %v3158
        %s3163 = vtos %v3162
        %v3164 = vstv %s3163
        %v3165 = vmul.f32 %v3105, %v3164
        %v3166 = vmul.f32 %v3106, %v3164
        %v3167 = vmax.f32 %v3165, 0.0
        %v3168 = vmax.f32 %v3166, 0.0
        %s3169 = scalar_lea.vmem %s157, 32
        %3170 = vst.msk [vmem:[%s3169] sm:$0xff] %vm1135, %v3167
        %3171 = vst.msk [vmem:[%s3169 + $0x8] sm:$0xff] %vm1135, %v3168
        %v3172 = vmul.f32 %v3107, %v3164
        %v3173 = vmul.f32 %v3108, %v3164
        %v3174 = vmul.f32 %v3109, %v3164
        %v3175 = vmax.f32 %v3172, 0.0
        %v3176 = vmax.f32 %v3173, 0.0
        %v3177 = vmax.f32 %v3174, 0.0
        %3181 = vrot.lane.b32.xlu0 %v3175, 32
        %v3182 = vpop.permute.xlu0 %3181
        %3183 = vrot.lane.b32.xlu0 %v3176, 32
        %v3184 = vpop.permute.xlu0 %3183
        %3185 = vrot.lane.b32.xlu0 %v3177, 32
        %v3186 = vpop.permute.xlu0 %3185
        %3190 = vst.msk [vmem:[%s3169 - $0x1] sm:$0xfe] %vm1257, %v3182
        %3191 = vst.msk [vmem:[%s3169 + $0x7] sm:$0xff] %vm1259, %v3184
        %3192 = vst.msk [vmem:[%s3169 + $0xf] sm:$0x1] %vm1261, %v3186
        %s3193 = sld [smem:[#allocation2 + $0x3]]
        %v3194 = vstv %s3193
        %v3195 = vmul.f32 %v3194, %v286
        %v3196 = vmul.f32 %v3194, %v264
        %v3197 = vadd.f32 %v3195, 0.0
        %v3198 = vadd.f32 %v3196, 0.0
        %s3199 = sld [smem:[#allocation2 + $0xb]]
        %v3200 = vstv %s3199
        %v3201 = vmul.f32 %v3200, %v287
        %v3202 = vmul.f32 %v3200, %v267
        %v3203 = vadd.f32 %v3197, %v3201
        %v3204 = vadd.f32 %v3198, %v3202
        %s3205 = sld [smem:[#allocation2 + $0x13]]
        %v3206 = vstv %s3205
        %v3207 = vmul.f32 %v3206, %v288
        %v3208 = vmul.f32 %v3206, %v270
        %v3209 = vadd.f32 %v3203, %v3207
        %v3210 = vadd.f32 %v3204, %v3208
        %s3211 = sld [smem:[#allocation2 + $0x1b]]
        %v3212 = vstv %s3211
        %v3213 = vmul.f32 %v3212, %v289
        %v3214 = vmul.f32 %v3212, %v273
        %v3215 = vadd.f32 %v3209, %v3213
        %v3216 = vadd.f32 %v3210, %v3214
        %s3217 = sld [smem:[#allocation2 + $0x23]]
        %v3218 = vstv %s3217
        %v3219 = vmul.f32 %v3218, %v286
        %v3220 = vmul.f32 %v3218, %v264
        %3223 = vrot.lane.b32.xlu0 %v3219, 127
        %v3224 = vpop.permute.xlu0 %3223
        %3225 = vrot.lane.b32.xlu0 %v3220, 127
        %v3226 = vpop.permute.xlu0 %3225
        %v3229 = vadd.f32 %v3215, %v3224
        %v3230 = vadd.f32 %v3216, %v3226
        %s3231 = sld [smem:[#allocation2 + $0x2b]]
        %v3232 = vstv %s3231
        %v3233 = vmul.f32 %v3232, %v287
        %v3234 = vmul.f32 %v3232, %v267
        %3237 = vrot.lane.b32.xlu0 %v3233, 127
        %v3238 = vpop.permute.xlu0 %3237
        %3239 = vrot.lane.b32.xlu0 %v3234, 127
        %v3240 = vpop.permute.xlu0 %3239
        %v3243 = vadd.f32 %v3229, %v3238
        %v3244 = vadd.f32 %v3230, %v3240
        %s3245 = sld [smem:[#allocation2 + $0x33]]
        %v3246 = vstv %s3245
        %v3247 = vmul.f32 %v3246, %v288
        %v3248 = vmul.f32 %v3246, %v270
        %3251 = vrot.lane.b32.xlu0 %v3247, 127
        %v3252 = vpop.permute.xlu0 %3251
        %3253 = vrot.lane.b32.xlu0 %v3248, 127
        %v3254 = vpop.permute.xlu0 %3253
        %v3257 = vadd.f32 %v3243, %v3252
        %v3258 = vadd.f32 %v3244, %v3254
        %s3259 = sld [smem:[#allocation2 + $0x3b]]
        %v3260 = vstv %s3259
        %v3261 = vmul.f32 %v3260, %v289
        %v3262 = vmul.f32 %v3260, %v273
        %3265 = vrot.lane.b32.xlu0 %v3261, 127
        %v3266 = vpop.permute.xlu0 %3265
        %3267 = vrot.lane.b32.xlu0 %v3262, 127
        %v3268 = vpop.permute.xlu0 %3267
        %v3271 = vadd.f32 %v3257, %v3266
        %v3272 = vadd.f32 %v3258, %v3268
        %s3273 = sld [smem:[#allocation2 + $0x43]]
        %v3274 = vstv %s3273
        %v3275 = vmul.f32 %v3274, %v286
        %v3276 = vmul.f32 %v3274, %v264
        %3279 = vrot.lane.b32.xlu0 %v3275, 126
        %v3280 = vpop.permute.xlu0 %3279
        %3281 = vrot.lane.b32.xlu0 %v3276, 126
        %v3282 = vpop.permute.xlu0 %3281
        %v3285 = vadd.f32 %v3271, %v3280
        %v3286 = vadd.f32 %v3272, %v3282
        %s3287 = sld [smem:[#allocation2 + $0x4b]]
        %v3288 = vstv %s3287
        %v3289 = vmul.f32 %v3288, %v287
        %v3290 = vmul.f32 %v3288, %v267
        %3293 = vrot.lane.b32.xlu0 %v3289, 126
        %v3294 = vpop.permute.xlu0 %3293
        %3295 = vrot.lane.b32.xlu0 %v3290, 126
        %v3296 = vpop.permute.xlu0 %3295
        %v3299 = vadd.f32 %v3285, %v3294
        %v3300 = vadd.f32 %v3286, %v3296
        %s3301 = sld [smem:[#allocation2 + $0x53]]
        %v3302 = vstv %s3301
        %v3303 = vmul.f32 %v3302, %v288
        %v3304 = vmul.f32 %v3302, %v270
        %3307 = vrot.lane.b32.xlu0 %v3303, 126
        %v3308 = vpop.permute.xlu0 %3307
        %3309 = vrot.lane.b32.xlu0 %v3304, 126
        %v3310 = vpop.permute.xlu0 %3309
        %v3313 = vadd.f32 %v3299, %v3308
        %v3314 = vadd.f32 %v3300, %v3310
        %s3315 = sld [smem:[#allocation2 + $0x5b]]
        %v3316 = vstv %s3315
        %v3317 = vmul.f32 %v3316, %v289
        %v3318 = vmul.f32 %v3316, %v273
        %3321 = vrot.lane.b32.xlu0 %v3317, 126
        %v3322 = vpop.permute.xlu0 %3321
        %3323 = vrot.lane.b32.xlu0 %v3318, 126
        %v3324 = vpop.permute.xlu0 %3323
        %v3327 = vadd.f32 %v3313, %v3322
        %v3328 = vadd.f32 %v3314, %v3324
        %s3329 = sld [smem:[#allocation2 + $0x63]]
        %v3330 = vstv %s3329
        %v3331 = vmul.f32 %v3330, %v286
        %v3332 = vmul.f32 %v3330, %v264
        %v3333 = vmul.f32 %v3330, %v290
        %v3337 = vrot.slane %v3331, 1
        %v3338 = vrot.slane %v3332, 1
        %v3339 = vsel %vm438, %v3337, %v3338
        %v3340 = vrot.slane %v3333, 1
        %v3341 = vsel %vm438, %v3338, %v3340
        %v3344 = vadd.f32 %v3327, %v3339
        %v3345 = vadd.f32 %v3328, %v3341
        %s3346 = sld [smem:[#allocation2 + $0x6b]]
        %v3347 = vstv %s3346
        %v3348 = vmul.f32 %v3347, %v287
        %v3349 = vmul.f32 %v3347, %v267
        %v3350 = vmul.f32 %v3347, %v291
        %v3354 = vrot.slane %v3348, 1
        %v3355 = vrot.slane %v3349, 1
        %v3356 = vsel %vm438, %v3354, %v3355
        %v3357 = vrot.slane %v3350, 1
        %v3358 = vsel %vm438, %v3355, %v3357
        %v3361 = vadd.f32 %v3344, %v3356
        %v3362 = vadd.f32 %v3345, %v3358
        %s3363 = sld [smem:[#allocation2 + $0x73]]
        %v3364 = vstv %s3363
        %v3365 = vmul.f32 %v3364, %v288
        %v3366 = vmul.f32 %v3364, %v270
        %v3367 = vmul.f32 %v3364, %v292
        %v3371 = vrot.slane %v3365, 1
        %v3372 = vrot.slane %v3366, 1
        %v3373 = vsel %vm438, %v3371, %v3372
        %v3374 = vrot.slane %v3367, 1
        %v3375 = vsel %vm438, %v3372, %v3374
        %v3378 = vadd.f32 %v3361, %v3373
        %v3379 = vadd.f32 %v3362, %v3375
        %s3380 = sld [smem:[#allocation2 + $0x7b]]
        %v3381 = vstv %s3380
        %v3382 = vmul.f32 %v3381, %v289
        %v3383 = vmul.f32 %v3381, %v273
        %v3384 = vmul.f32 %v3381, %v293
        %v3388 = vrot.slane %v3382, 1
        %v3389 = vrot.slane %v3383, 1
        %v3390 = vsel %vm438, %v3388, %v3389
        %v3391 = vrot.slane %v3384, 1
        %v3392 = vsel %vm438, %v3389, %v3391
        %v3395 = vadd.f32 %v3378, %v3390
        %v3396 = vadd.f32 %v3379, %v3392
        %s3397 = sld [smem:[#allocation2 + $0x83]]
        %v3398 = vstv %s3397
        %v3399 = vmul.f32 %v3398, %v286
        %v3400 = vmul.f32 %v3398, %v264
        %v3401 = vmul.f32 %v3398, %v290
        %v3405 = vrot.slane %v3399, 1
        %v3406 = vrot.slane %v3400, 1
        %v3407 = vsel %vm438, %v3405, %v3406
        %v3408 = vrot.slane %v3401, 1
        %v3409 = vsel %vm438, %v3406, %v3408
        %3410 = vrot.lane.b32.xlu0 %v3407, 127
        %v3411 = vpop.permute.xlu0 %3410
        %3412 = vrot.lane.b32.xlu0 %v3409, 127
        %v3413 = vpop.permute.xlu0 %3412
        %v3416 = vadd.f32 %v3395, %v3411
        %v3417 = vadd.f32 %v3396, %v3413
        %s3418 = sld [smem:[#allocation2 + $0x8b]]
        %v3419 = vstv %s3418
        %v3420 = vmul.f32 %v3419, %v287
        %v3421 = vmul.f32 %v3419, %v267
        %v3422 = vmul.f32 %v3419, %v291
        %v3426 = vrot.slane %v3420, 1
        %v3427 = vrot.slane %v3421, 1
        %v3428 = vsel %vm438, %v3426, %v3427
        %v3429 = vrot.slane %v3422, 1
        %v3430 = vsel %vm438, %v3427, %v3429
        %3431 = vrot.lane.b32.xlu0 %v3428, 127
        %v3432 = vpop.permute.xlu0 %3431
        %3433 = vrot.lane.b32.xlu0 %v3430, 127
        %v3434 = vpop.permute.xlu0 %3433
        %v3437 = vadd.f32 %v3416, %v3432
        %v3438 = vadd.f32 %v3417, %v3434
        %s3439 = sld [smem:[#allocation2 + $0x93]]
        %v3440 = vstv %s3439
        %v3441 = vmul.f32 %v3440, %v288
        %v3442 = vmul.f32 %v3440, %v270
        %v3443 = vmul.f32 %v3440, %v292
        %v3447 = vrot.slane %v3441, 1
        %v3448 = vrot.slane %v3442, 1
        %v3449 = vsel %vm438, %v3447, %v3448
        %v3450 = vrot.slane %v3443, 1
        %v3451 = vsel %vm438, %v3448, %v3450
        %3452 = vrot.lane.b32.xlu0 %v3449, 127
        %v3453 = vpop.permute.xlu0 %3452
        %3454 = vrot.lane.b32.xlu0 %v3451, 127
        %v3455 = vpop.permute.xlu0 %3454
        %v3458 = vadd.f32 %v3437, %v3453
        %v3459 = vadd.f32 %v3438, %v3455
        %s3460 = sld [smem:[#allocation2 + $0x9b]]
        %v3461 = vstv %s3460
        %v3462 = vmul.f32 %v3461, %v289
        %v3463 = vmul.f32 %v3461, %v273
        %v3464 = vmul.f32 %v3461, %v293
        %v3468 = vrot.slane %v3462, 1
        %v3469 = vrot.slane %v3463, 1
        %v3470 = vsel %vm438, %v3468, %v3469
        %v3471 = vrot.slane %v3464, 1
        %v3472 = vsel %vm438, %v3469, %v3471
        %3473 = vrot.lane.b32.xlu0 %v3470, 127
        %v3474 = vpop.permute.xlu0 %3473
        %3475 = vrot.lane.b32.xlu0 %v3472, 127
        %v3476 = vpop.permute.xlu0 %3475
        %v3479 = vadd.f32 %v3458, %v3474
        %v3480 = vadd.f32 %v3459, %v3476
        %s3481 = sld [smem:[#allocation2 + $0xa3]]
        %v3482 = vstv %s3481
        %v3483 = vmul.f32 %v3482, %v286
        %v3484 = vmul.f32 %v3482, %v264
        %v3485 = vmul.f32 %v3482, %v290
        %v3489 = vrot.slane %v3483, 1
        %v3490 = vrot.slane %v3484, 1
        %v3491 = vsel %vm438, %v3489, %v3490
        %v3492 = vrot.slane %v3485, 1
        %v3493 = vsel %vm438, %v3490, %v3492
        %3494 = vrot.lane.b32.xlu0 %v3491, 126
        %v3495 = vpop.permute.xlu0 %3494
        %3496 = vrot.lane.b32.xlu0 %v3493, 126
        %v3497 = vpop.permute.xlu0 %3496
        %v3500 = vadd.f32 %v3479, %v3495
        %v3501 = vadd.f32 %v3480, %v3497
        %s3502 = sld [smem:[#allocation2 + $0xab]]
        %v3503 = vstv %s3502
        %v3504 = vmul.f32 %v3503, %v287
        %v3505 = vmul.f32 %v3503, %v267
        %v3506 = vmul.f32 %v3503, %v291
        %v3510 = vrot.slane %v3504, 1
        %v3511 = vrot.slane %v3505, 1
        %v3512 = vsel %vm438, %v3510, %v3511
        %v3513 = vrot.slane %v3506, 1
        %v3514 = vsel %vm438, %v3511, %v3513
        %3515 = vrot.lane.b32.xlu0 %v3512, 126
        %v3516 = vpop.permute.xlu0 %3515
        %3517 = vrot.lane.b32.xlu0 %v3514, 126
        %v3518 = vpop.permute.xlu0 %3517
        %v3521 = vadd.f32 %v3500, %v3516
        %v3522 = vadd.f32 %v3501, %v3518
        %s3523 = sld [smem:[#allocation2 + $0xb3]]
        %v3524 = vstv %s3523
        %v3525 = vmul.f32 %v3524, %v288
        %v3526 = vmul.f32 %v3524, %v270
        %v3527 = vmul.f32 %v3524, %v292
        %v3531 = vrot.slane %v3525, 1
        %v3532 = vrot.slane %v3526, 1
        %v3533 = vsel %vm438, %v3531, %v3532
        %v3534 = vrot.slane %v3527, 1
        %v3535 = vsel %vm438, %v3532, %v3534
        %3536 = vrot.lane.b32.xlu0 %v3533, 126
        %v3537 = vpop.permute.xlu0 %3536
        %3538 = vrot.lane.b32.xlu0 %v3535, 126
        %v3539 = vpop.permute.xlu0 %3538
        %v3542 = vadd.f32 %v3521, %v3537
        %v3543 = vadd.f32 %v3522, %v3539
        %s3544 = sld [smem:[#allocation2 + $0xbb]]
        %v3545 = vstv %s3544
        %v3546 = vmul.f32 %v3545, %v289
        %v3547 = vmul.f32 %v3545, %v273
        %v3548 = vmul.f32 %v3545, %v293
        %v3552 = vrot.slane %v3546, 1
        %v3553 = vrot.slane %v3547, 1
        %v3554 = vsel %vm438, %v3552, %v3553
        %v3555 = vrot.slane %v3548, 1
        %v3556 = vsel %vm438, %v3553, %v3555
        %3557 = vrot.lane.b32.xlu0 %v3554, 126
        %v3558 = vpop.permute.xlu0 %3557
        %3559 = vrot.lane.b32.xlu0 %v3556, 126
        %v3560 = vpop.permute.xlu0 %3559
        %v3563 = vadd.f32 %v3542, %v3558
        %v3564 = vadd.f32 %v3543, %v3560
        %s3565 = sld [smem:[#allocation2 + $0xc3]]
        %v3566 = vstv %s3565
        %v3567 = vmul.f32 %v3566, %v286
        %v3568 = vmul.f32 %v3566, %v264
        %v3569 = vmul.f32 %v3566, %v290
        %v3570 = vadd.f32 %v3567, 0.0
        %v3571 = vadd.f32 %v3568, 0.0
        %v3572 = vadd.f32 %v3569, 0.0
        %s3573 = sld [smem:[#allocation2 + $0xcb]]
        %v3574 = vstv %s3573
        %v3575 = vmul.f32 %v3574, %v287
        %v3576 = vmul.f32 %v3574, %v267
        %v3577 = vmul.f32 %v3574, %v291
        %v3578 = vadd.f32 %v3570, %v3575
        %v3579 = vadd.f32 %v3571, %v3576
        %v3580 = vadd.f32 %v3572, %v3577
        %s3581 = sld [smem:[#allocation2 + $0xd3]]
        %v3582 = vstv %s3581
        %v3583 = vmul.f32 %v3582, %v288
        %v3584 = vmul.f32 %v3582, %v270
        %v3585 = vmul.f32 %v3582, %v292
        %v3586 = vadd.f32 %v3578, %v3583
        %v3587 = vadd.f32 %v3579, %v3584
        %v3588 = vadd.f32 %v3580, %v3585
        %s3589 = sld [smem:[#allocation2 + $0xdb]]
        %v3590 = vstv %s3589
        %v3591 = vmul.f32 %v3590, %v289
        %v3592 = vmul.f32 %v3590, %v273
        %v3593 = vmul.f32 %v3590, %v293
        %v3594 = vadd.f32 %v3586, %v3591
        %v3595 = vadd.f32 %v3587, %v3592
        %v3596 = vadd.f32 %v3588, %v3593
        %s3597 = sld [smem:[#allocation2 + $0xe3]]
        %v3598 = vstv %s3597
        %v3599 = vmul.f32 %v3598, %v286
        %v3600 = vmul.f32 %v3598, %v264
        %v3601 = vmul.f32 %v3598, %v290
        %3605 = vrot.lane.b32.xlu0 %v3599, 127
        %v3606 = vpop.permute.xlu0 %3605
        %3607 = vrot.lane.b32.xlu0 %v3600, 127
        %v3608 = vpop.permute.xlu0 %3607
        %3609 = vrot.lane.b32.xlu0 %v3601, 127
        %v3610 = vpop.permute.xlu0 %3609
        %v3614 = vadd.f32 %v3594, %v3606
        %v3615 = vadd.f32 %v3595, %v3608
        %v3616 = vadd.f32 %v3596, %v3610
        %s3617 = sld [smem:[#allocation2 + $0xeb]]
        %v3618 = vstv %s3617
        %v3619 = vmul.f32 %v3618, %v287
        %v3620 = vmul.f32 %v3618, %v267
        %v3621 = vmul.f32 %v3618, %v291
        %3625 = vrot.lane.b32.xlu0 %v3619, 127
        %v3626 = vpop.permute.xlu0 %3625
        %3627 = vrot.lane.b32.xlu0 %v3620, 127
        %v3628 = vpop.permute.xlu0 %3627
        %3629 = vrot.lane.b32.xlu0 %v3621, 127
        %v3630 = vpop.permute.xlu0 %3629
        %v3634 = vadd.f32 %v3614, %v3626
        %v3635 = vadd.f32 %v3615, %v3628
        %v3636 = vadd.f32 %v3616, %v3630
        %s3637 = sld [smem:[#allocation2 + $0xf3]]
        %v3638 = vstv %s3637
        %v3639 = vmul.f32 %v3638, %v288
        %v3640 = vmul.f32 %v3638, %v270
        %v3641 = vmul.f32 %v3638, %v292
        %3645 = vrot.lane.b32.xlu0 %v3639, 127
        %v3646 = vpop.permute.xlu0 %3645
        %3647 = vrot.lane.b32.xlu0 %v3640, 127
        %v3648 = vpop.permute.xlu0 %3647
        %3649 = vrot.lane.b32.xlu0 %v3641, 127
        %v3650 = vpop.permute.xlu0 %3649
        %v3654 = vadd.f32 %v3634, %v3646
        %v3655 = vadd.f32 %v3635, %v3648
        %v3656 = vadd.f32 %v3636, %v3650
        %s3657 = sld [smem:[#allocation2 + $0xfb]]
        %v3658 = vstv %s3657
        %v3659 = vmul.f32 %v3658, %v289
        %v3660 = vmul.f32 %v3658, %v273
        %v3661 = vmul.f32 %v3658, %v293
        %3665 = vrot.lane.b32.xlu0 %v3659, 127
        %v3666 = vpop.permute.xlu0 %3665
        %3667 = vrot.lane.b32.xlu0 %v3660, 127
        %v3668 = vpop.permute.xlu0 %3667
        %3669 = vrot.lane.b32.xlu0 %v3661, 127
        %v3670 = vpop.permute.xlu0 %3669
        %v3674 = vadd.f32 %v3654, %v3666
        %v3675 = vadd.f32 %v3655, %v3668
        %v3676 = vadd.f32 %v3656, %v3670
        %s3677 = sld [smem:[#allocation2 + $0x103]]
        %v3678 = vstv %s3677
        %v3679 = vmul.f32 %v3678, %v286
        %v3680 = vmul.f32 %v3678, %v264
        %v3681 = vmul.f32 %v3678, %v290
        %3685 = vrot.lane.b32.xlu0 %v3679, 126
        %v3686 = vpop.permute.xlu0 %3685
        %3687 = vrot.lane.b32.xlu0 %v3680, 126
        %v3688 = vpop.permute.xlu0 %3687
        %3689 = vrot.lane.b32.xlu0 %v3681, 126
        %v3690 = vpop.permute.xlu0 %3689
        %v3694 = vadd.f32 %v3674, %v3686
        %v3695 = vadd.f32 %v3675, %v3688
        %v3696 = vadd.f32 %v3676, %v3690
        %s3697 = sld [smem:[#allocation2 + $0x10b]]
        %v3698 = vstv %s3697
        %v3699 = vmul.f32 %v3698, %v287
        %v3700 = vmul.f32 %v3698, %v267
        %v3701 = vmul.f32 %v3698, %v291
        %3705 = vrot.lane.b32.xlu0 %v3699, 126
        %v3706 = vpop.permute.xlu0 %3705
        %3707 = vrot.lane.b32.xlu0 %v3700, 126
        %v3708 = vpop.permute.xlu0 %3707
        %3709 = vrot.lane.b32.xlu0 %v3701, 126
        %v3710 = vpop.permute.xlu0 %3709
        %v3714 = vadd.f32 %v3694, %v3706
        %v3715 = vadd.f32 %v3695, %v3708
        %v3716 = vadd.f32 %v3696, %v3710
        %s3717 = sld [smem:[#allocation2 + $0x113]]
        %v3718 = vstv %s3717
        %v3719 = vmul.f32 %v3718, %v288
        %v3720 = vmul.f32 %v3718, %v270
        %v3721 = vmul.f32 %v3718, %v292
        %3725 = vrot.lane.b32.xlu0 %v3719, 126
        %v3726 = vpop.permute.xlu0 %3725
        %3727 = vrot.lane.b32.xlu0 %v3720, 126
        %v3728 = vpop.permute.xlu0 %3727
        %3729 = vrot.lane.b32.xlu0 %v3721, 126
        %v3730 = vpop.permute.xlu0 %3729
        %v3734 = vadd.f32 %v3714, %v3726
        %v3735 = vadd.f32 %v3715, %v3728
        %v3736 = vadd.f32 %v3716, %v3730
        %s3737 = sld [smem:[#allocation2 + $0x11b]]
        %v3738 = vstv %s3737
        %v3739 = vmul.f32 %v3738, %v289
        %v3740 = vmul.f32 %v3738, %v273
        %v3741 = vmul.f32 %v3738, %v293
        %3745 = vrot.lane.b32.xlu0 %v3739, 126
        %v3746 = vpop.permute.xlu0 %3745
        %3747 = vrot.lane.b32.xlu0 %v3740, 126
        %v3748 = vpop.permute.xlu0 %3747
        %3749 = vrot.lane.b32.xlu0 %v3741, 126
        %v3750 = vpop.permute.xlu0 %3749
        %v3754 = vadd.f32 %v3734, %v3746
        %v3755 = vadd.f32 %v3735, %v3748
        %v3756 = vadd.f32 %v3736, %v3750
        %s3757 = sld [smem:[#allocation2 + $0x123]]
        %v3758 = vstv %s3757
        %v3759 = vmul.f32 %v3758, %v286
        %v3760 = vmul.f32 %v3758, %v264
        %v3761 = vmul.f32 %v3758, %v290
        %v3765 = vrot.slane %v3759, 1
        %v3766 = vrot.slane %v3760, 1
        %v3767 = vsel %vm438, %v3765, %v3766
        %v3768 = vrot.slane %v3761, 1
        %v3769 = vsel %vm438, %v3766, %v3768
        %v3773 = vadd.f32 %v3754, %v3767
        %v3774 = vadd.f32 %v3755, %v3769
        %v3775 = vadd.f32 %v3756, %v3768
        %s3776 = sld [smem:[#allocation2 + $0x12b]]
        %v3777 = vstv %s3776
        %v3778 = vmul.f32 %v3777, %v287
        %v3779 = vmul.f32 %v3777, %v267
        %v3780 = vmul.f32 %v3777, %v291
        %v3784 = vrot.slane %v3778, 1
        %v3785 = vrot.slane %v3779, 1
        %v3786 = vsel %vm438, %v3784, %v3785
        %v3787 = vrot.slane %v3780, 1
        %v3788 = vsel %vm438, %v3785, %v3787
        %v3792 = vadd.f32 %v3773, %v3786
        %v3793 = vadd.f32 %v3774, %v3788
        %v3794 = vadd.f32 %v3775, %v3787
        %s3795 = sld [smem:[#allocation2 + $0x133]]
        %v3796 = vstv %s3795
        %v3797 = vmul.f32 %v3796, %v288
        %v3798 = vmul.f32 %v3796, %v270
        %v3799 = vmul.f32 %v3796, %v292
        %v3803 = vrot.slane %v3797, 1
        %v3804 = vrot.slane %v3798, 1
        %v3805 = vsel %vm438, %v3803, %v3804
        %v3806 = vrot.slane %v3799, 1
        %v3807 = vsel %vm438, %v3804, %v3806
        %v3811 = vadd.f32 %v3792, %v3805
        %v3812 = vadd.f32 %v3793, %v3807
        %v3813 = vadd.f32 %v3794, %v3806
        %s3814 = sld [smem:[#allocation2 + $0x13b]]
        %v3815 = vstv %s3814
        %v3816 = vmul.f32 %v3815, %v289
        %v3817 = vmul.f32 %v3815, %v273
        %v3818 = vmul.f32 %v3815, %v293
        %v3822 = vrot.slane %v3816, 1
        %v3823 = vrot.slane %v3817, 1
        %v3824 = vsel %vm438, %v3822, %v3823
        %v3825 = vrot.slane %v3818, 1
        %v3826 = vsel %vm438, %v3823, %v3825
        %v3830 = vadd.f32 %v3811, %v3824
        %v3831 = vadd.f32 %v3812, %v3826
        %v3832 = vadd.f32 %v3813, %v3825
        %s3833 = sld [smem:[#allocation2 + $0x143]]
        %v3834 = vstv %s3833
        %v3835 = vmul.f32 %v3834, %v286
        %v3836 = vmul.f32 %v3834, %v264
        %v3837 = vmul.f32 %v3834, %v290
        %v3841 = vrot.slane %v3835, 1
        %v3842 = vrot.slane %v3836, 1
        %v3843 = vsel %vm438, %v3841, %v3842
        %v3844 = vrot.slane %v3837, 1
        %v3845 = vsel %vm438, %v3842, %v3844
        %3846 = vrot.lane.b32.xlu0 %v3843, 127
        %v3847 = vpop.permute.xlu0 %3846
        %3848 = vrot.lane.b32.xlu0 %v3845, 127
        %v3849 = vpop.permute.xlu0 %3848
        %3850 = vrot.lane.b32.xlu0 %v3844, 127
        %v3851 = vpop.permute.xlu0 %3850
        %v3855 = vadd.f32 %v3830, %v3847
        %v3856 = vadd.f32 %v3831, %v3849
        %v3857 = vadd.f32 %v3832, %v3851
        %s3858 = sld [smem:[#allocation2 + $0x14b]]
        %v3859 = vstv %s3858
        %v3860 = vmul.f32 %v3859, %v287
        %v3861 = vmul.f32 %v3859, %v267
        %v3862 = vmul.f32 %v3859, %v291
        %v3866 = vrot.slane %v3860, 1
        %v3867 = vrot.slane %v3861, 1
        %v3868 = vsel %vm438, %v3866, %v3867
        %v3869 = vrot.slane %v3862, 1
        %v3870 = vsel %vm438, %v3867, %v3869
        %3871 = vrot.lane.b32.xlu0 %v3868, 127
        %v3872 = vpop.permute.xlu0 %3871
        %3873 = vrot.lane.b32.xlu0 %v3870, 127
        %v3874 = vpop.permute.xlu0 %3873
        %3875 = vrot.lane.b32.xlu0 %v3869, 127
        %v3876 = vpop.permute.xlu0 %3875
        %v3880 = vadd.f32 %v3855, %v3872
        %v3881 = vadd.f32 %v3856, %v3874
        %v3882 = vadd.f32 %v3857, %v3876
        %s3883 = sld [smem:[#allocation2 + $0x153]]
        %v3884 = vstv %s3883
        %v3885 = vmul.f32 %v3884, %v288
        %v3886 = vmul.f32 %v3884, %v270
        %v3887 = vmul.f32 %v3884, %v292
        %v3891 = vrot.slane %v3885, 1
        %v3892 = vrot.slane %v3886, 1
        %v3893 = vsel %vm438, %v3891, %v3892
        %v3894 = vrot.slane %v3887, 1
        %v3895 = vsel %vm438, %v3892, %v3894
        %3896 = vrot.lane.b32.xlu0 %v3893, 127
        %v3897 = vpop.permute.xlu0 %3896
        %3898 = vrot.lane.b32.xlu0 %v3895, 127
        %v3899 = vpop.permute.xlu0 %3898
        %3900 = vrot.lane.b32.xlu0 %v3894, 127
        %v3901 = vpop.permute.xlu0 %3900
        %v3905 = vadd.f32 %v3880, %v3897
        %v3906 = vadd.f32 %v3881, %v3899
        %v3907 = vadd.f32 %v3882, %v3901
        %s3908 = sld [smem:[#allocation2 + $0x15b]]
        %v3909 = vstv %s3908
        %v3910 = vmul.f32 %v3909, %v289
        %v3911 = vmul.f32 %v3909, %v273
        %v3912 = vmul.f32 %v3909, %v293
        %v3916 = vrot.slane %v3910, 1
        %v3917 = vrot.slane %v3911, 1
        %v3918 = vsel %vm438, %v3916, %v3917
        %v3919 = vrot.slane %v3912, 1
        %v3920 = vsel %vm438, %v3917, %v3919
        %3921 = vrot.lane.b32.xlu0 %v3918, 127
        %v3922 = vpop.permute.xlu0 %3921
        %3923 = vrot.lane.b32.xlu0 %v3920, 127
        %v3924 = vpop.permute.xlu0 %3923
        %3925 = vrot.lane.b32.xlu0 %v3919, 127
        %v3926 = vpop.permute.xlu0 %3925
        %v3930 = vadd.f32 %v3905, %v3922
        %v3931 = vadd.f32 %v3906, %v3924
        %v3932 = vadd.f32 %v3907, %v3926
        %s3933 = sld [smem:[#allocation2 + $0x163]]
        %v3934 = vstv %s3933
        %v3935 = vmul.f32 %v3934, %v286
        %v3936 = vmul.f32 %v3934, %v264
        %v3937 = vmul.f32 %v3934, %v290
        %v3941 = vrot.slane %v3935, 1
        %v3942 = vrot.slane %v3936, 1
        %v3943 = vsel %vm438, %v3941, %v3942
        %v3944 = vrot.slane %v3937, 1
        %v3945 = vsel %vm438, %v3942, %v3944
        %3946 = vrot.lane.b32.xlu0 %v3943, 126
        %v3947 = vpop.permute.xlu0 %3946
        %3948 = vrot.lane.b32.xlu0 %v3945, 126
        %v3949 = vpop.permute.xlu0 %3948
        %3950 = vrot.lane.b32.xlu0 %v3944, 126
        %v3951 = vpop.permute.xlu0 %3950
        %v3955 = vadd.f32 %v3930, %v3947
        %v3956 = vadd.f32 %v3931, %v3949
        %v3957 = vadd.f32 %v3932, %v3951
        %s3958 = sld [smem:[#allocation2 + $0x16b]]
        %v3959 = vstv %s3958
        %v3960 = vmul.f32 %v3959, %v287
        %v3961 = vmul.f32 %v3959, %v267
        %v3962 = vmul.f32 %v3959, %v291
        %v3966 = vrot.slane %v3960, 1
        %v3967 = vrot.slane %v3961, 1
        %v3968 = vsel %vm438, %v3966, %v3967
        %v3969 = vrot.slane %v3962, 1
        %v3970 = vsel %vm438, %v3967, %v3969
        %3971 = vrot.lane.b32.xlu0 %v3968, 126
        %v3972 = vpop.permute.xlu0 %3971
        %3973 = vrot.lane.b32.xlu0 %v3970, 126
        %v3974 = vpop.permute.xlu0 %3973
        %3975 = vrot.lane.b32.xlu0 %v3969, 126
        %v3976 = vpop.permute.xlu0 %3975
        %v3980 = vadd.f32 %v3955, %v3972
        %v3981 = vadd.f32 %v3956, %v3974
        %v3982 = vadd.f32 %v3957, %v3976
        %s3983 = sld [smem:[#allocation2 + $0x173]]
        %v3984 = vstv %s3983
        %v3985 = vmul.f32 %v3984, %v288
        %v3986 = vmul.f32 %v3984, %v270
        %v3987 = vmul.f32 %v3984, %v292
        %v3991 = vrot.slane %v3985, 1
        %v3992 = vrot.slane %v3986, 1
        %v3993 = vsel %vm438, %v3991, %v3992
        %v3994 = vrot.slane %v3987, 1
        %v3995 = vsel %vm438, %v3992, %v3994
        %3996 = vrot.lane.b32.xlu0 %v3993, 126
        %v3997 = vpop.permute.xlu0 %3996
        %3998 = vrot.lane.b32.xlu0 %v3995, 126
        %v3999 = vpop.permute.xlu0 %3998
        %4000 = vrot.lane.b32.xlu0 %v3994, 126
        %v4001 = vpop.permute.xlu0 %4000
        %v4005 = vadd.f32 %v3980, %v3997
        %v4006 = vadd.f32 %v3981, %v3999
        %v4007 = vadd.f32 %v3982, %v4001
        %s4008 = sld [smem:[#allocation2 + $0x17b]]
        %v4009 = vstv %s4008
        %v4010 = vmul.f32 %v4009, %v289
        %v4011 = vmul.f32 %v4009, %v273
        %v4012 = vmul.f32 %v4009, %v293
        %v4016 = vrot.slane %v4010, 1
        %v4017 = vrot.slane %v4011, 1
        %v4018 = vsel %vm438, %v4016, %v4017
        %v4019 = vrot.slane %v4012, 1
        %v4020 = vsel %vm438, %v4017, %v4019
        %4021 = vrot.lane.b32.xlu0 %v4018, 126
        %v4022 = vpop.permute.xlu0 %4021
        %4023 = vrot.lane.b32.xlu0 %v4020, 126
        %v4024 = vpop.permute.xlu0 %4023
        %4025 = vrot.lane.b32.xlu0 %v4019, 126
        %v4026 = vpop.permute.xlu0 %4025
        %v4030 = vadd.f32 %v4005, %v4022
        %v4031 = vadd.f32 %v4006, %v4024
        %v4032 = vadd.f32 %v4007, %v4026
        %v4033 = vsel %vm1135, %v3563, 0.0
        %v4034 = vsel %vm1135, %v3564, 0.0
        %v4035 = vadd.f32 %v4033, %v4034
        %4036 = vadd.xlane.f32.xlu0 %v4035
        %v4037 = vpop.xlane.xlu0 %4036
        %v4038 = vrot.slane %v4037, 4
        %v4039 = vadd.f32 %v4037, %v4038
        %v4040 = vrot.slane %v4039, 2
        %v4041 = vadd.f32 %v4039, %v4040
        %v4042 = vrot.slane %v4041, 1
        %v4043 = vadd.f32 %v4041, %v4042
        %s4044 = vtos %v4043
        %v4048 = vrot.slane %v4030, 1
        %v4049 = vrot.slane %v4031, 1
        %v4050 = vsel %vm438, %v4048, %v4049
        %v4051 = vrot.slane %v4032, 1
        %v4052 = vsel %vm438, %v4049, %v4051
        %v4055 = vsel %vm1135, %v4050, 0.0
        %v4056 = vsel %vm1135, %v4052, 0.0
        %v4057 = vadd.f32 %v4055, %v4056
        %4058 = vadd.xlane.f32.xlu0 %v4057
        %v4059 = vpop.xlane.xlu0 %4058
        %v4060 = vrot.slane %v4059, 4
        %v4061 = vadd.f32 %v4059, %v4060
        %v4062 = vrot.slane %v4061, 2
        %v4063 = vadd.f32 %v4061, %v4062
        %v4064 = vrot.slane %v4063, 1
        %v4065 = vadd.f32 %v4063, %v4064
        %s4066 = vtos %v4065
        %s4067 = sadd.f32 %s4044, %s4066
        %s4068 = smul.f32 %s4067, 0.0009765625
        %v4069 = vstv %s4068
        %v4070 = vsub.f32 %v3563, %v4069
        %v4071 = vsub.f32 %v3564, %v4069
        %v4072 = vsub.f32 %v4030, %v4069
        %v4073 = vsub.f32 %v4031, %v4069
        %v4074 = vsub.f32 %v4032, %v4069
        %v4075 = vmul.f32 %v4070, %v4070
        %v4076 = vmul.f32 %v4071, %v4071
        %v4077 = vsel %vm1135, %v4075, 0.0
        %v4078 = vsel %vm1135, %v4076, 0.0
        %v4079 = vadd.f32 %v4077, %v4078
        %4080 = vadd.xlane.f32.xlu0 %v4079
        %v4081 = vpop.xlane.xlu0 %4080
        %v4082 = vrot.slane %v4081, 4
        %v4083 = vadd.f32 %v4081, %v4082
        %v4084 = vrot.slane %v4083, 2
        %v4085 = vadd.f32 %v4083, %v4084
        %v4086 = vrot.slane %v4085, 1
        %v4087 = vadd.f32 %v4085, %v4086
        %s4088 = vtos %v4087
        %v4089 = vmul.f32 %v4072, %v4072
        %v4090 = vmul.f32 %v4073, %v4073
        %v4091 = vmul.f32 %v4074, %v4074
        %v4095 = vrot.slane %v4089, 1
        %v4096 = vrot.slane %v4090, 1
        %v4097 = vsel %vm438, %v4095, %v4096
        %v4098 = vrot.slane %v4091, 1
        %v4099 = vsel %vm438, %v4096, %v4098
        %v4102 = vsel %vm1135, %v4097, 0.0
        %v4103 = vsel %vm1135, %v4099, 0.0
        %v4104 = vadd.f32 %v4102, %v4103
        %4105 = vadd.xlane.f32.xlu0 %v4104
        %v4106 = vpop.xlane.xlu0 %4105
        %v4107 = vrot.slane %v4106, 4
        %v4108 = vadd.f32 %v4106, %v4107
        %v4109 = vrot.slane %v4108, 2
        %v4110 = vadd.f32 %v4108, %v4109
        %v4111 = vrot.slane %v4110, 1
        %v4112 = vadd.f32 %v4110, %v4111
        %s4113 = vtos %v4112
        %s4114 = sadd.f32 %s4088, %s4113
        %s4115 = smul.f32 %s4114, 0.0009765625
        %s4116 = sadd.f32 %s4115, 1e-05
        %v4117 = vstv %s4116
        %v4118 = vrsqrt.pop %v4117
        %v4119 = vmul.f32 %v4118, %v4117
        %v4120 = vmul.f32 %v4119, %v4118
        %v4121 = vmul.f32 0.5, %v4120
        %v4122 = vsub.f32 1.5, %v4121
        %v4123 = vmul.f32 %v4118, %v4122
        %vm4124 = vweird.f32 %v4117
        %vm4125 = vweird.f32 %v4118
        %vm4126 = vmor %vm4124, %vm4125
        %v4127 = vsel %vm4126, %v4118, %v4123
        %s4128 = vtos %v4127
        %v4129 = vstv %s4128
        %v4130 = vmul.f32 %v4070, %v4129
        %v4131 = vmul.f32 %v4071, %v4129
        %v4132 = vmax.f32 %v4130, 0.0
        %v4133 = vmax.f32 %v4131, 0.0
        %s4134 = scalar_lea.vmem %s157, 48
        %4135 = vst.msk [vmem:[%s4134] sm:$0xff] %vm1135, %v4132
        %4136 = vst.msk [vmem:[%s4134 + $0x8] sm:$0xff] %vm1135, %v4133
        %v4137 = vmul.f32 %v4072, %v4129
        %v4138 = vmul.f32 %v4073, %v4129
        %v4139 = vmul.f32 %v4074, %v4129
        %v4140 = vmax.f32 %v4137, 0.0
        %v4141 = vmax.f32 %v4138, 0.0
        %v4142 = vmax.f32 %v4139, 0.0
        %4146 = vrot.lane.b32.xlu0 %v4140, 32
        %v4147 = vpop.permute.xlu0 %4146
        %4148 = vrot.lane.b32.xlu0 %v4141, 32
        %v4149 = vpop.permute.xlu0 %4148
        %4150 = vrot.lane.b32.xlu0 %v4142, 32
        %v4151 = vpop.permute.xlu0 %4150
        %4155 = vst.msk [vmem:[%s4134 - $0x1] sm:$0xfe] %vm1257, %v4147
        %4156 = vst.msk [vmem:[%s4134 + $0x7] sm:$0xff] %vm1259, %v4149
        %4157 = vst.msk [vmem:[%s4134 + $0xf] sm:$0x1] %vm1261, %v4151
        %s4158 = sld [smem:[#allocation2 + $0x4]]
        %v4159 = vstv %s4158
        %v4160 = vmul.f32 %v4159, %v286
        %v4161 = vmul.f32 %v4159, %v264
        %v4162 = vadd.f32 %v4160, 0.0
        %v4163 = vadd.f32 %v4161, 0.0
        %s4164 = sld [smem:[#allocation2 + $0xc]]
        %v4165 = vstv %s4164
        %v4166 = vmul.f32 %v4165, %v287
        %v4167 = vmul.f32 %v4165, %v267
        %v4168 = vadd.f32 %v4162, %v4166
        %v4169 = vadd.f32 %v4163, %v4167
        %s4170 = sld [smem:[#allocation2 + $0x14]]
        %v4171 = vstv %s4170
        %v4172 = vmul.f32 %v4171, %v288
        %v4173 = vmul.f32 %v4171, %v270
        %v4174 = vadd.f32 %v4168, %v4172
        %v4175 = vadd.f32 %v4169, %v4173
        %s4176 = sld [smem:[#allocation2 + $0x1c]]
        %v4177 = vstv %s4176
        %v4178 = vmul.f32 %v4177, %v289
        %v4179 = vmul.f32 %v4177, %v273
        %v4180 = vadd.f32 %v4174, %v4178
        %v4181 = vadd.f32 %v4175, %v4179
        %s4182 = sld [smem:[#allocation2 + $0x24]]
        %v4183 = vstv %s4182
        %v4184 = vmul.f32 %v4183, %v286
        %v4185 = vmul.f32 %v4183, %v264
        %4188 = vrot.lane.b32.xlu0 %v4184, 127
        %v4189 = vpop.permute.xlu0 %4188
        %4190 = vrot.lane.b32.xlu0 %v4185, 127
        %v4191 = vpop.permute.xlu0 %4190
        %v4194 = vadd.f32 %v4180, %v4189
        %v4195 = vadd.f32 %v4181, %v4191
        %s4196 = sld [smem:[#allocation2 + $0x2c]]
        %v4197 = vstv %s4196
        %v4198 = vmul.f32 %v4197, %v287
        %v4199 = vmul.f32 %v4197, %v267
        %4202 = vrot.lane.b32.xlu0 %v4198, 127
        %v4203 = vpop.permute.xlu0 %4202
        %4204 = vrot.lane.b32.xlu0 %v4199, 127
        %v4205 = vpop.permute.xlu0 %4204
        %v4208 = vadd.f32 %v4194, %v4203
        %v4209 = vadd.f32 %v4195, %v4205
        %s4210 = sld [smem:[#allocation2 + $0x34]]
        %v4211 = vstv %s4210
        %v4212 = vmul.f32 %v4211, %v288
        %v4213 = vmul.f32 %v4211, %v270
        %4216 = vrot.lane.b32.xlu0 %v4212, 127
        %v4217 = vpop.permute.xlu0 %4216
        %4218 = vrot.lane.b32.xlu0 %v4213, 127
        %v4219 = vpop.permute.xlu0 %4218
        %v4222 = vadd.f32 %v4208, %v4217
        %v4223 = vadd.f32 %v4209, %v4219
        %s4224 = sld [smem:[#allocation2 + $0x3c]]
        %v4225 = vstv %s4224
        %v4226 = vmul.f32 %v4225, %v289
        %v4227 = vmul.f32 %v4225, %v273
        %4230 = vrot.lane.b32.xlu0 %v4226, 127
        %v4231 = vpop.permute.xlu0 %4230
        %4232 = vrot.lane.b32.xlu0 %v4227, 127
        %v4233 = vpop.permute.xlu0 %4232
        %v4236 = vadd.f32 %v4222, %v4231
        %v4237 = vadd.f32 %v4223, %v4233
        %s4238 = sld [smem:[#allocation2 + $0x44]]
        %v4239 = vstv %s4238
        %v4240 = vmul.f32 %v4239, %v286
        %v4241 = vmul.f32 %v4239, %v264
        %4244 = vrot.lane.b32.xlu0 %v4240, 126
        %v4245 = vpop.permute.xlu0 %4244
        %4246 = vrot.lane.b32.xlu0 %v4241, 126
        %v4247 = vpop.permute.xlu0 %4246
        %v4250 = vadd.f32 %v4236, %v4245
        %v4251 = vadd.f32 %v4237, %v4247
        %s4252 = sld [smem:[#allocation2 + $0x4c]]
        %v4253 = vstv %s4252
        %v4254 = vmul.f32 %v4253, %v287
        %v4255 = vmul.f32 %v4253, %v267
        %4258 = vrot.lane.b32.xlu0 %v4254, 126
        %v4259 = vpop.permute.xlu0 %4258
        %4260 = vrot.lane.b32.xlu0 %v4255, 126
        %v4261 = vpop.permute.xlu0 %4260
        %v4264 = vadd.f32 %v4250, %v4259
        %v4265 = vadd.f32 %v4251, %v4261
        %s4266 = sld [smem:[#allocation2 + $0x54]]
        %v4267 = vstv %s4266
        %v4268 = vmul.f32 %v4267, %v288
        %v4269 = vmul.f32 %v4267, %v270
        %4272 = vrot.lane.b32.xlu0 %v4268, 126
        %v4273 = vpop.permute.xlu0 %4272
        %4274 = vrot.lane.b32.xlu0 %v4269, 126
        %v4275 = vpop.permute.xlu0 %4274
        %v4278 = vadd.f32 %v4264, %v4273
        %v4279 = vadd.f32 %v4265, %v4275
        %s4280 = sld [smem:[#allocation2 + $0x5c]]
        %v4281 = vstv %s4280
        %v4282 = vmul.f32 %v4281, %v289
        %v4283 = vmul.f32 %v4281, %v273
        %4286 = vrot.lane.b32.xlu0 %v4282, 126
        %v4287 = vpop.permute.xlu0 %4286
        %4288 = vrot.lane.b32.xlu0 %v4283, 126
        %v4289 = vpop.permute.xlu0 %4288
        %v4292 = vadd.f32 %v4278, %v4287
        %v4293 = vadd.f32 %v4279, %v4289
        %s4294 = sld [smem:[#allocation2 + $0x64]]
        %v4295 = vstv %s4294
        %v4296 = vmul.f32 %v4295, %v286
        %v4297 = vmul.f32 %v4295, %v264
        %v4298 = vmul.f32 %v4295, %v290
        %v4302 = vrot.slane %v4296, 1
        %v4303 = vrot.slane %v4297, 1
        %v4304 = vsel %vm438, %v4302, %v4303
        %v4305 = vrot.slane %v4298, 1
        %v4306 = vsel %vm438, %v4303, %v4305
        %v4309 = vadd.f32 %v4292, %v4304
        %v4310 = vadd.f32 %v4293, %v4306
        %s4311 = sld [smem:[#allocation2 + $0x6c]]
        %v4312 = vstv %s4311
        %v4313 = vmul.f32 %v4312, %v287
        %v4314 = vmul.f32 %v4312, %v267
        %v4315 = vmul.f32 %v4312, %v291
        %v4319 = vrot.slane %v4313, 1
        %v4320 = vrot.slane %v4314, 1
        %v4321 = vsel %vm438, %v4319, %v4320
        %v4322 = vrot.slane %v4315, 1
        %v4323 = vsel %vm438, %v4320, %v4322
        %v4326 = vadd.f32 %v4309, %v4321
        %v4327 = vadd.f32 %v4310, %v4323
        %s4328 = sld [smem:[#allocation2 + $0x74]]
        %v4329 = vstv %s4328
        %v4330 = vmul.f32 %v4329, %v288
        %v4331 = vmul.f32 %v4329, %v270
        %v4332 = vmul.f32 %v4329, %v292
        %v4336 = vrot.slane %v4330, 1
        %v4337 = vrot.slane %v4331, 1
        %v4338 = vsel %vm438, %v4336, %v4337
        %v4339 = vrot.slane %v4332, 1
        %v4340 = vsel %vm438, %v4337, %v4339
        %v4343 = vadd.f32 %v4326, %v4338
        %v4344 = vadd.f32 %v4327, %v4340
        %s4345 = sld [smem:[#allocation2 + $0x7c]]
        %v4346 = vstv %s4345
        %v4347 = vmul.f32 %v4346, %v289
        %v4348 = vmul.f32 %v4346, %v273
        %v4349 = vmul.f32 %v4346, %v293
        %v4353 = vrot.slane %v4347, 1
        %v4354 = vrot.slane %v4348, 1
        %v4355 = vsel %vm438, %v4353, %v4354
        %v4356 = vrot.slane %v4349, 1
        %v4357 = vsel %vm438, %v4354, %v4356
        %v4360 = vadd.f32 %v4343, %v4355
        %v4361 = vadd.f32 %v4344, %v4357
        %s4362 = sld [smem:[#allocation2 + $0x84]]
        %v4363 = vstv %s4362
        %v4364 = vmul.f32 %v4363, %v286
        %v4365 = vmul.f32 %v4363, %v264
        %v4366 = vmul.f32 %v4363, %v290
        %v4370 = vrot.slane %v4364, 1
        %v4371 = vrot.slane %v4365, 1
        %v4372 = vsel %vm438, %v4370, %v4371
        %v4373 = vrot.slane %v4366, 1
        %v4374 = vsel %vm438, %v4371, %v4373
        %4375 = vrot.lane.b32.xlu0 %v4372, 127
        %v4376 = vpop.permute.xlu0 %4375
        %4377 = vrot.lane.b32.xlu0 %v4374, 127
        %v4378 = vpop.permute.xlu0 %4377
        %v4381 = vadd.f32 %v4360, %v4376
        %v4382 = vadd.f32 %v4361, %v4378
        %s4383 = sld [smem:[#allocation2 + $0x8c]]
        %v4384 = vstv %s4383
        %v4385 = vmul.f32 %v4384, %v287
        %v4386 = vmul.f32 %v4384, %v267
        %v4387 = vmul.f32 %v4384, %v291
        %v4391 = vrot.slane %v4385, 1
        %v4392 = vrot.slane %v4386, 1
        %v4393 = vsel %vm438, %v4391, %v4392
        %v4394 = vrot.slane %v4387, 1
        %v4395 = vsel %vm438, %v4392, %v4394
        %4396 = vrot.lane.b32.xlu0 %v4393, 127
        %v4397 = vpop.permute.xlu0 %4396
        %4398 = vrot.lane.b32.xlu0 %v4395, 127
        %v4399 = vpop.permute.xlu0 %4398
        %v4402 = vadd.f32 %v4381, %v4397
        %v4403 = vadd.f32 %v4382, %v4399
        %s4404 = sld [smem:[#allocation2 + $0x94]]
        %v4405 = vstv %s4404
        %v4406 = vmul.f32 %v4405, %v288
        %v4407 = vmul.f32 %v4405, %v270
        %v4408 = vmul.f32 %v4405, %v292
        %v4412 = vrot.slane %v4406, 1
        %v4413 = vrot.slane %v4407, 1
        %v4414 = vsel %vm438, %v4412, %v4413
        %v4415 = vrot.slane %v4408, 1
        %v4416 = vsel %vm438, %v4413, %v4415
        %4417 = vrot.lane.b32.xlu0 %v4414, 127
        %v4418 = vpop.permute.xlu0 %4417
        %4419 = vrot.lane.b32.xlu0 %v4416, 127
        %v4420 = vpop.permute.xlu0 %4419
        %v4423 = vadd.f32 %v4402, %v4418
        %v4424 = vadd.f32 %v4403, %v4420
        %s4425 = sld [smem:[#allocation2 + $0x9c]]
        %v4426 = vstv %s4425
        %v4427 = vmul.f32 %v4426, %v289
        %v4428 = vmul.f32 %v4426, %v273
        %v4429 = vmul.f32 %v4426, %v293
        %v4433 = vrot.slane %v4427, 1
        %v4434 = vrot.slane %v4428, 1
        %v4435 = vsel %vm438, %v4433, %v4434
        %v4436 = vrot.slane %v4429, 1
        %v4437 = vsel %vm438, %v4434, %v4436
        %4438 = vrot.lane.b32.xlu0 %v4435, 127
        %v4439 = vpop.permute.xlu0 %4438
        %4440 = vrot.lane.b32.xlu0 %v4437, 127
        %v4441 = vpop.permute.xlu0 %4440
        %v4444 = vadd.f32 %v4423, %v4439
        %v4445 = vadd.f32 %v4424, %v4441
        %s4446 = sld [smem:[#allocation2 + $0xa4]]
        %v4447 = vstv %s4446
        %v4448 = vmul.f32 %v4447, %v286
        %v4449 = vmul.f32 %v4447, %v264
        %v4450 = vmul.f32 %v4447, %v290
        %v4454 = vrot.slane %v4448, 1
        %v4455 = vrot.slane %v4449, 1
        %v4456 = vsel %vm438, %v4454, %v4455
        %v4457 = vrot.slane %v4450, 1
        %v4458 = vsel %vm438, %v4455, %v4457
        %4459 = vrot.lane.b32.xlu0 %v4456, 126
        %v4460 = vpop.permute.xlu0 %4459
        %4461 = vrot.lane.b32.xlu0 %v4458, 126
        %v4462 = vpop.permute.xlu0 %4461
        %v4465 = vadd.f32 %v4444, %v4460
        %v4466 = vadd.f32 %v4445, %v4462
        %s4467 = sld [smem:[#allocation2 + $0xac]]
        %v4468 = vstv %s4467
        %v4469 = vmul.f32 %v4468, %v287
        %v4470 = vmul.f32 %v4468, %v267
        %v4471 = vmul.f32 %v4468, %v291
        %v4475 = vrot.slane %v4469, 1
        %v4476 = vrot.slane %v4470, 1
        %v4477 = vsel %vm438, %v4475, %v4476
        %v4478 = vrot.slane %v4471, 1
        %v4479 = vsel %vm438, %v4476, %v4478
        %4480 = vrot.lane.b32.xlu0 %v4477, 126
        %v4481 = vpop.permute.xlu0 %4480
        %4482 = vrot.lane.b32.xlu0 %v4479, 126
        %v4483 = vpop.permute.xlu0 %4482
        %v4486 = vadd.f32 %v4465, %v4481
        %v4487 = vadd.f32 %v4466, %v4483
        %s4488 = sld [smem:[#allocation2 + $0xb4]]
        %v4489 = vstv %s4488
        %v4490 = vmul.f32 %v4489, %v288
        %v4491 = vmul.f32 %v4489, %v270
        %v4492 = vmul.f32 %v4489, %v292
        %v4496 = vrot.slane %v4490, 1
        %v4497 = vrot.slane %v4491, 1
        %v4498 = vsel %vm438, %v4496, %v4497
        %v4499 = vrot.slane %v4492, 1
        %v4500 = vsel %vm438, %v4497, %v4499
        %4501 = vrot.lane.b32.xlu0 %v4498, 126
        %v4502 = vpop.permute.xlu0 %4501
        %4503 = vrot.lane.b32.xlu0 %v4500, 126
        %v4504 = vpop.permute.xlu0 %4503
        %v4507 = vadd.f32 %v4486, %v4502
        %v4508 = vadd.f32 %v4487, %v4504
        %s4509 = sld [smem:[#allocation2 + $0xbc]]
        %v4510 = vstv %s4509
        %v4511 = vmul.f32 %v4510, %v289
        %v4512 = vmul.f32 %v4510, %v273
        %v4513 = vmul.f32 %v4510, %v293
        %v4517 = vrot.slane %v4511, 1
        %v4518 = vrot.slane %v4512, 1
        %v4519 = vsel %vm438, %v4517, %v4518
        %v4520 = vrot.slane %v4513, 1
        %v4521 = vsel %vm438, %v4518, %v4520
        %4522 = vrot.lane.b32.xlu0 %v4519, 126
        %v4523 = vpop.permute.xlu0 %4522
        %4524 = vrot.lane.b32.xlu0 %v4521, 126
        %v4525 = vpop.permute.xlu0 %4524
        %v4528 = vadd.f32 %v4507, %v4523
        %v4529 = vadd.f32 %v4508, %v4525
        %s4530 = sld [smem:[#allocation2 + $0xc4]]
        %v4531 = vstv %s4530
        %v4532 = vmul.f32 %v4531, %v286
        %v4533 = vmul.f32 %v4531, %v264
        %v4534 = vmul.f32 %v4531, %v290
        %v4535 = vadd.f32 %v4532, 0.0
        %v4536 = vadd.f32 %v4533, 0.0
        %v4537 = vadd.f32 %v4534, 0.0
        %s4538 = sld [smem:[#allocation2 + $0xcc]]
        %v4539 = vstv %s4538
        %v4540 = vmul.f32 %v4539, %v287
        %v4541 = vmul.f32 %v4539, %v267
        %v4542 = vmul.f32 %v4539, %v291
        %v4543 = vadd.f32 %v4535, %v4540
        %v4544 = vadd.f32 %v4536, %v4541
        %v4545 = vadd.f32 %v4537, %v4542
        %s4546 = sld [smem:[#allocation2 + $0xd4]]
        %v4547 = vstv %s4546
        %v4548 = vmul.f32 %v4547, %v288
        %v4549 = vmul.f32 %v4547, %v270
        %v4550 = vmul.f32 %v4547, %v292
        %v4551 = vadd.f32 %v4543, %v4548
        %v4552 = vadd.f32 %v4544, %v4549
        %v4553 = vadd.f32 %v4545, %v4550
        %s4554 = sld [smem:[#allocation2 + $0xdc]]
        %v4555 = vstv %s4554
        %v4556 = vmul.f32 %v4555, %v289
        %v4557 = vmul.f32 %v4555, %v273
        %v4558 = vmul.f32 %v4555, %v293
        %v4559 = vadd.f32 %v4551, %v4556
        %v4560 = vadd.f32 %v4552, %v4557
        %v4561 = vadd.f32 %v4553, %v4558
        %s4562 = sld [smem:[#allocation2 + $0xe4]]
        %v4563 = vstv %s4562
        %v4564 = vmul.f32 %v4563, %v286
        %v4565 = vmul.f32 %v4563, %v264
        %v4566 = vmul.f32 %v4563, %v290
        %4570 = vrot.lane.b32.xlu0 %v4564, 127
        %v4571 = vpop.permute.xlu0 %4570
        %4572 = vrot.lane.b32.xlu0 %v4565, 127
        %v4573 = vpop.permute.xlu0 %4572
        %4574 = vrot.lane.b32.xlu0 %v4566, 127
        %v4575 = vpop.permute.xlu0 %4574
        %v4579 = vadd.f32 %v4559, %v4571
        %v4580 = vadd.f32 %v4560, %v4573
        %v4581 = vadd.f32 %v4561, %v4575
        %s4582 = sld [smem:[#allocation2 + $0xec]]
        %v4583 = vstv %s4582
        %v4584 = vmul.f32 %v4583, %v287
        %v4585 = vmul.f32 %v4583, %v267
        %v4586 = vmul.f32 %v4583, %v291
        %4590 = vrot.lane.b32.xlu0 %v4584, 127
        %v4591 = vpop.permute.xlu0 %4590
        %4592 = vrot.lane.b32.xlu0 %v4585, 127
        %v4593 = vpop.permute.xlu0 %4592
        %4594 = vrot.lane.b32.xlu0 %v4586, 127
        %v4595 = vpop.permute.xlu0 %4594
        %v4599 = vadd.f32 %v4579, %v4591
        %v4600 = vadd.f32 %v4580, %v4593
        %v4601 = vadd.f32 %v4581, %v4595
        %s4602 = sld [smem:[#allocation2 + $0xf4]]
        %v4603 = vstv %s4602
        %v4604 = vmul.f32 %v4603, %v288
        %v4605 = vmul.f32 %v4603, %v270
        %v4606 = vmul.f32 %v4603, %v292
        %4610 = vrot.lane.b32.xlu0 %v4604, 127
        %v4611 = vpop.permute.xlu0 %4610
        %4612 = vrot.lane.b32.xlu0 %v4605, 127
        %v4613 = vpop.permute.xlu0 %4612
        %4614 = vrot.lane.b32.xlu0 %v4606, 127
        %v4615 = vpop.permute.xlu0 %4614
        %v4619 = vadd.f32 %v4599, %v4611
        %v4620 = vadd.f32 %v4600, %v4613
        %v4621 = vadd.f32 %v4601, %v4615
        %s4622 = sld [smem:[#allocation2 + $0xfc]]
        %v4623 = vstv %s4622
        %v4624 = vmul.f32 %v4623, %v289
        %v4625 = vmul.f32 %v4623, %v273
        %v4626 = vmul.f32 %v4623, %v293
        %4630 = vrot.lane.b32.xlu0 %v4624, 127
        %v4631 = vpop.permute.xlu0 %4630
        %4632 = vrot.lane.b32.xlu0 %v4625, 127
        %v4633 = vpop.permute.xlu0 %4632
        %4634 = vrot.lane.b32.xlu0 %v4626, 127
        %v4635 = vpop.permute.xlu0 %4634
        %v4639 = vadd.f32 %v4619, %v4631
        %v4640 = vadd.f32 %v4620, %v4633
        %v4641 = vadd.f32 %v4621, %v4635
        %s4642 = sld [smem:[#allocation2 + $0x104]]
        %v4643 = vstv %s4642
        %v4644 = vmul.f32 %v4643, %v286
        %v4645 = vmul.f32 %v4643, %v264
        %v4646 = vmul.f32 %v4643, %v290
        %4650 = vrot.lane.b32.xlu0 %v4644, 126
        %v4651 = vpop.permute.xlu0 %4650
        %4652 = vrot.lane.b32.xlu0 %v4645, 126
        %v4653 = vpop.permute.xlu0 %4652
        %4654 = vrot.lane.b32.xlu0 %v4646, 126
        %v4655 = vpop.permute.xlu0 %4654
        %v4659 = vadd.f32 %v4639, %v4651
        %v4660 = vadd.f32 %v4640, %v4653
        %v4661 = vadd.f32 %v4641, %v4655
        %s4662 = sld [smem:[#allocation2 + $0x10c]]
        %v4663 = vstv %s4662
        %v4664 = vmul.f32 %v4663, %v287
        %v4665 = vmul.f32 %v4663, %v267
        %v4666 = vmul.f32 %v4663, %v291
        %4670 = vrot.lane.b32.xlu0 %v4664, 126
        %v4671 = vpop.permute.xlu0 %4670
        %4672 = vrot.lane.b32.xlu0 %v4665, 126
        %v4673 = vpop.permute.xlu0 %4672
        %4674 = vrot.lane.b32.xlu0 %v4666, 126
        %v4675 = vpop.permute.xlu0 %4674
        %v4679 = vadd.f32 %v4659, %v4671
        %v4680 = vadd.f32 %v4660, %v4673
        %v4681 = vadd.f32 %v4661, %v4675
        %s4682 = sld [smem:[#allocation2 + $0x114]]
        %v4683 = vstv %s4682
        %v4684 = vmul.f32 %v4683, %v288
        %v4685 = vmul.f32 %v4683, %v270
        %v4686 = vmul.f32 %v4683, %v292
        %4690 = vrot.lane.b32.xlu0 %v4684, 126
        %v4691 = vpop.permute.xlu0 %4690
        %4692 = vrot.lane.b32.xlu0 %v4685, 126
        %v4693 = vpop.permute.xlu0 %4692
        %4694 = vrot.lane.b32.xlu0 %v4686, 126
        %v4695 = vpop.permute.xlu0 %4694
        %v4699 = vadd.f32 %v4679, %v4691
        %v4700 = vadd.f32 %v4680, %v4693
        %v4701 = vadd.f32 %v4681, %v4695
        %s4702 = sld [smem:[#allocation2 + $0x11c]]
        %v4703 = vstv %s4702
        %v4704 = vmul.f32 %v4703, %v289
        %v4705 = vmul.f32 %v4703, %v273
        %v4706 = vmul.f32 %v4703, %v293
        %4710 = vrot.lane.b32.xlu0 %v4704, 126
        %v4711 = vpop.permute.xlu0 %4710
        %4712 = vrot.lane.b32.xlu0 %v4705, 126
        %v4713 = vpop.permute.xlu0 %4712
        %4714 = vrot.lane.b32.xlu0 %v4706, 126
        %v4715 = vpop.permute.xlu0 %4714
        %v4719 = vadd.f32 %v4699, %v4711
        %v4720 = vadd.f32 %v4700, %v4713
        %v4721 = vadd.f32 %v4701, %v4715
        %s4722 = sld [smem:[#allocation2 + $0x124]]
        %v4723 = vstv %s4722
        %v4724 = vmul.f32 %v4723, %v286
        %v4725 = vmul.f32 %v4723, %v264
        %v4726 = vmul.f32 %v4723, %v290
        %v4730 = vrot.slane %v4724, 1
        %v4731 = vrot.slane %v4725, 1
        %v4732 = vsel %vm438, %v4730, %v4731
        %v4733 = vrot.slane %v4726, 1
        %v4734 = vsel %vm438, %v4731, %v4733
        %v4738 = vadd.f32 %v4719, %v4732
        %v4739 = vadd.f32 %v4720, %v4734
        %v4740 = vadd.f32 %v4721, %v4733
        %s4741 = sld [smem:[#allocation2 + $0x12c]]
        %v4742 = vstv %s4741
        %v4743 = vmul.f32 %v4742, %v287
        %v4744 = vmul.f32 %v4742, %v267
        %v4745 = vmul.f32 %v4742, %v291
        %v4749 = vrot.slane %v4743, 1
        %v4750 = vrot.slane %v4744, 1
        %v4751 = vsel %vm438, %v4749, %v4750
        %v4752 = vrot.slane %v4745, 1
        %v4753 = vsel %vm438, %v4750, %v4752
        %v4757 = vadd.f32 %v4738, %v4751
        %v4758 = vadd.f32 %v4739, %v4753
        %v4759 = vadd.f32 %v4740, %v4752
        %s4760 = sld [smem:[#allocation2 + $0x134]]
        %v4761 = vstv %s4760
        %v4762 = vmul.f32 %v4761, %v288
        %v4763 = vmul.f32 %v4761, %v270
        %v4764 = vmul.f32 %v4761, %v292
        %v4768 = vrot.slane %v4762, 1
        %v4769 = vrot.slane %v4763, 1
        %v4770 = vsel %vm438, %v4768, %v4769
        %v4771 = vrot.slane %v4764, 1
        %v4772 = vsel %vm438, %v4769, %v4771
        %v4776 = vadd.f32 %v4757, %v4770
        %v4777 = vadd.f32 %v4758, %v4772
        %v4778 = vadd.f32 %v4759, %v4771
        %s4779 = sld [smem:[#allocation2 + $0x13c]]
        %v4780 = vstv %s4779
        %v4781 = vmul.f32 %v4780, %v289
        %v4782 = vmul.f32 %v4780, %v273
        %v4783 = vmul.f32 %v4780, %v293
        %v4787 = vrot.slane %v4781, 1
        %v4788 = vrot.slane %v4782, 1
        %v4789 = vsel %vm438, %v4787, %v4788
        %v4790 = vrot.slane %v4783, 1
        %v4791 = vsel %vm438, %v4788, %v4790
        %v4795 = vadd.f32 %v4776, %v4789
        %v4796 = vadd.f32 %v4777, %v4791
        %v4797 = vadd.f32 %v4778, %v4790
        %s4798 = sld [smem:[#allocation2 + $0x144]]
        %v4799 = vstv %s4798
        %v4800 = vmul.f32 %v4799, %v286
        %v4801 = vmul.f32 %v4799, %v264
        %v4802 = vmul.f32 %v4799, %v290
        %v4806 = vrot.slane %v4800, 1
        %v4807 = vrot.slane %v4801, 1
        %v4808 = vsel %vm438, %v4806, %v4807
        %v4809 = vrot.slane %v4802, 1
        %v4810 = vsel %vm438, %v4807, %v4809
        %4811 = vrot.lane.b32.xlu0 %v4808, 127
        %v4812 = vpop.permute.xlu0 %4811
        %4813 = vrot.lane.b32.xlu0 %v4810, 127
        %v4814 = vpop.permute.xlu0 %4813
        %4815 = vrot.lane.b32.xlu0 %v4809, 127
        %v4816 = vpop.permute.xlu0 %4815
        %v4820 = vadd.f32 %v4795, %v4812
        %v4821 = vadd.f32 %v4796, %v4814
        %v4822 = vadd.f32 %v4797, %v4816
        %s4823 = sld [smem:[#allocation2 + $0x14c]]
        %v4824 = vstv %s4823
        %v4825 = vmul.f32 %v4824, %v287
        %v4826 = vmul.f32 %v4824, %v267
        %v4827 = vmul.f32 %v4824, %v291
        %v4831 = vrot.slane %v4825, 1
        %v4832 = vrot.slane %v4826, 1
        %v4833 = vsel %vm438, %v4831, %v4832
        %v4834 = vrot.slane %v4827, 1
        %v4835 = vsel %vm438, %v4832, %v4834
        %4836 = vrot.lane.b32.xlu0 %v4833, 127
        %v4837 = vpop.permute.xlu0 %4836
        %4838 = vrot.lane.b32.xlu0 %v4835, 127
        %v4839 = vpop.permute.xlu0 %4838
        %4840 = vrot.lane.b32.xlu0 %v4834, 127
        %v4841 = vpop.permute.xlu0 %4840
        %v4845 = vadd.f32 %v4820, %v4837
        %v4846 = vadd.f32 %v4821, %v4839
        %v4847 = vadd.f32 %v4822, %v4841
        %s4848 = sld [smem:[#allocation2 + $0x154]]
        %v4849 = vstv %s4848
        %v4850 = vmul.f32 %v4849, %v288
        %v4851 = vmul.f32 %v4849, %v270
        %v4852 = vmul.f32 %v4849, %v292
        %v4856 = vrot.slane %v4850, 1
        %v4857 = vrot.slane %v4851, 1
        %v4858 = vsel %vm438, %v4856, %v4857
        %v4859 = vrot.slane %v4852, 1
        %v4860 = vsel %vm438, %v4857, %v4859
        %4861 = vrot.lane.b32.xlu0 %v4858, 127
        %v4862 = vpop.permute.xlu0 %4861
        %4863 = vrot.lane.b32.xlu0 %v4860, 127
        %v4864 = vpop.permute.xlu0 %4863
        %4865 = vrot.lane.b32.xlu0 %v4859, 127
        %v4866 = vpop.permute.xlu0 %4865
        %v4870 = vadd.f32 %v4845, %v4862
        %v4871 = vadd.f32 %v4846, %v4864
        %v4872 = vadd.f32 %v4847, %v4866
        %s4873 = sld [smem:[#allocation2 + $0x15c]]
        %v4874 = vstv %s4873
        %v4875 = vmul.f32 %v4874, %v289
        %v4876 = vmul.f32 %v4874, %v273
        %v4877 = vmul.f32 %v4874, %v293
        %v4881 = vrot.slane %v4875, 1
        %v4882 = vrot.slane %v4876, 1
        %v4883 = vsel %vm438, %v4881, %v4882
        %v4884 = vrot.slane %v4877, 1
        %v4885 = vsel %vm438, %v4882, %v4884
        %4886 = vrot.lane.b32.xlu0 %v4883, 127
        %v4887 = vpop.permute.xlu0 %4886
        %4888 = vrot.lane.b32.xlu0 %v4885, 127
        %v4889 = vpop.permute.xlu0 %4888
        %4890 = vrot.lane.b32.xlu0 %v4884, 127
        %v4891 = vpop.permute.xlu0 %4890
        %v4895 = vadd.f32 %v4870, %v4887
        %v4896 = vadd.f32 %v4871, %v4889
        %v4897 = vadd.f32 %v4872, %v4891
        %s4898 = sld [smem:[#allocation2 + $0x164]]
        %v4899 = vstv %s4898
        %v4900 = vmul.f32 %v4899, %v286
        %v4901 = vmul.f32 %v4899, %v264
        %v4902 = vmul.f32 %v4899, %v290
        %v4906 = vrot.slane %v4900, 1
        %v4907 = vrot.slane %v4901, 1
        %v4908 = vsel %vm438, %v4906, %v4907
        %v4909 = vrot.slane %v4902, 1
        %v4910 = vsel %vm438, %v4907, %v4909
        %4911 = vrot.lane.b32.xlu0 %v4908, 126
        %v4912 = vpop.permute.xlu0 %4911
        %4913 = vrot.lane.b32.xlu0 %v4910, 126
        %v4914 = vpop.permute.xlu0 %4913
        %4915 = vrot.lane.b32.xlu0 %v4909, 126
        %v4916 = vpop.permute.xlu0 %4915
        %v4920 = vadd.f32 %v4895, %v4912
        %v4921 = vadd.f32 %v4896, %v4914
        %v4922 = vadd.f32 %v4897, %v4916
        %s4923 = sld [smem:[#allocation2 + $0x16c]]
        %v4924 = vstv %s4923
        %v4925 = vmul.f32 %v4924, %v287
        %v4926 = vmul.f32 %v4924, %v267
        %v4927 = vmul.f32 %v4924, %v291
        %v4931 = vrot.slane %v4925, 1
        %v4932 = vrot.slane %v4926, 1
        %v4933 = vsel %vm438, %v4931, %v4932
        %v4934 = vrot.slane %v4927, 1
        %v4935 = vsel %vm438, %v4932, %v4934
        %4936 = vrot.lane.b32.xlu0 %v4933, 126
        %v4937 = vpop.permute.xlu0 %4936
        %4938 = vrot.lane.b32.xlu0 %v4935, 126
        %v4939 = vpop.permute.xlu0 %4938
        %4940 = vrot.lane.b32.xlu0 %v4934, 126
        %v4941 = vpop.permute.xlu0 %4940
        %v4945 = vadd.f32 %v4920, %v4937
        %v4946 = vadd.f32 %v4921, %v4939
        %v4947 = vadd.f32 %v4922, %v4941
        %s4948 = sld [smem:[#allocation2 + $0x174]]
        %v4949 = vstv %s4948
        %v4950 = vmul.f32 %v4949, %v288
        %v4951 = vmul.f32 %v4949, %v270
        %v4952 = vmul.f32 %v4949, %v292
        %v4956 = vrot.slane %v4950, 1
        %v4957 = vrot.slane %v4951, 1
        %v4958 = vsel %vm438, %v4956, %v4957
        %v4959 = vrot.slane %v4952, 1
        %v4960 = vsel %vm438, %v4957, %v4959
        %4961 = vrot.lane.b32.xlu0 %v4958, 126
        %v4962 = vpop.permute.xlu0 %4961
        %4963 = vrot.lane.b32.xlu0 %v4960, 126
        %v4964 = vpop.permute.xlu0 %4963
        %4965 = vrot.lane.b32.xlu0 %v4959, 126
        %v4966 = vpop.permute.xlu0 %4965
        %v4970 = vadd.f32 %v4945, %v4962
        %v4971 = vadd.f32 %v4946, %v4964
        %v4972 = vadd.f32 %v4947, %v4966
        %s4973 = sld [smem:[#allocation2 + $0x17c]]
        %v4974 = vstv %s4973
        %v4975 = vmul.f32 %v4974, %v289
        %v4976 = vmul.f32 %v4974, %v273
        %v4977 = vmul.f32 %v4974, %v293
        %v4981 = vrot.slane %v4975, 1
        %v4982 = vrot.slane %v4976, 1
        %v4983 = vsel %vm438, %v4981, %v4982
        %v4984 = vrot.slane %v4977, 1
        %v4985 = vsel %vm438, %v4982, %v4984
        %4986 = vrot.lane.b32.xlu0 %v4983, 126
        %v4987 = vpop.permute.xlu0 %4986
        %4988 = vrot.lane.b32.xlu0 %v4985, 126
        %v4989 = vpop.permute.xlu0 %4988
        %4990 = vrot.lane.b32.xlu0 %v4984, 126
        %v4991 = vpop.permute.xlu0 %4990
        %v4995 = vadd.f32 %v4970, %v4987
        %v4996 = vadd.f32 %v4971, %v4989
        %v4997 = vadd.f32 %v4972, %v4991
        %v4998 = vsel %vm1135, %v4528, 0.0
        %v4999 = vsel %vm1135, %v4529, 0.0
        %v5000 = vadd.f32 %v4998, %v4999
        %5001 = vadd.xlane.f32.xlu0 %v5000
        %v5002 = vpop.xlane.xlu0 %5001
        %v5003 = vrot.slane %v5002, 4
        %v5004 = vadd.f32 %v5002, %v5003
        %v5005 = vrot.slane %v5004, 2
        %v5006 = vadd.f32 %v5004, %v5005
        %v5007 = vrot.slane %v5006, 1
        %v5008 = vadd.f32 %v5006, %v5007
        %s5009 = vtos %v5008
        %v5013 = vrot.slane %v4995, 1
        %v5014 = vrot.slane %v4996, 1
        %v5015 = vsel %vm438, %v5013, %v5014
        %v5016 = vrot.slane %v4997, 1
        %v5017 = vsel %vm438, %v5014, %v5016
        %v5020 = vsel %vm1135, %v5015, 0.0
        %v5021 = vsel %vm1135, %v5017, 0.0
        %v5022 = vadd.f32 %v5020, %v5021
        %5023 = vadd.xlane.f32.xlu0 %v5022
        %v5024 = vpop.xlane.xlu0 %5023
        %v5025 = vrot.slane %v5024, 4
        %v5026 = vadd.f32 %v5024, %v5025
        %v5027 = vrot.slane %v5026, 2
        %v5028 = vadd.f32 %v5026, %v5027
        %v5029 = vrot.slane %v5028, 1
        %v5030 = vadd.f32 %v5028, %v5029
        %s5031 = vtos %v5030
        %s5032 = sadd.f32 %s5009, %s5031
        %s5033 = smul.f32 %s5032, 0.0009765625
        %v5034 = vstv %s5033
        %v5035 = vsub.f32 %v4528, %v5034
        %v5036 = vsub.f32 %v4529, %v5034
        %v5037 = vsub.f32 %v4995, %v5034
        %v5038 = vsub.f32 %v4996, %v5034
        %v5039 = vsub.f32 %v4997, %v5034
        %v5040 = vmul.f32 %v5035, %v5035
        %v5041 = vmul.f32 %v5036, %v5036
        %v5042 = vsel %vm1135, %v5040, 0.0
        %v5043 = vsel %vm1135, %v5041, 0.0
        %v5044 = vadd.f32 %v5042, %v5043
        %5045 = vadd.xlane.f32.xlu0 %v5044
        %v5046 = vpop.xlane.xlu0 %5045
        %v5047 = vrot.slane %v5046, 4
        %v5048 = vadd.f32 %v5046, %v5047
        %v5049 = vrot.slane %v5048, 2
        %v5050 = vadd.f32 %v5048, %v5049
        %v5051 = vrot.slane %v5050, 1
        %v5052 = vadd.f32 %v5050, %v5051
        %s5053 = vtos %v5052
        %v5054 = vmul.f32 %v5037, %v5037
        %v5055 = vmul.f32 %v5038, %v5038
        %v5056 = vmul.f32 %v5039, %v5039
        %v5060 = vrot.slane %v5054, 1
        %v5061 = vrot.slane %v5055, 1
        %v5062 = vsel %vm438, %v5060, %v5061
        %v5063 = vrot.slane %v5056, 1
        %v5064 = vsel %vm438, %v5061, %v5063
        %v5067 = vsel %vm1135, %v5062, 0.0
        %v5068 = vsel %vm1135, %v5064, 0.0
        %v5069 = vadd.f32 %v5067, %v5068
        %5070 = vadd.xlane.f32.xlu0 %v5069
        %v5071 = vpop.xlane.xlu0 %5070
        %v5072 = vrot.slane %v5071, 4
        %v5073 = vadd.f32 %v5071, %v5072
        %v5074 = vrot.slane %v5073, 2
        %v5075 = vadd.f32 %v5073, %v5074
        %v5076 = vrot.slane %v5075, 1
        %v5077 = vadd.f32 %v5075, %v5076
        %s5078 = vtos %v5077
        %s5079 = sadd.f32 %s5053, %s5078
        %s5080 = smul.f32 %s5079, 0.0009765625
        %s5081 = sadd.f32 %s5080, 1e-05
        %v5082 = vstv %s5081
        %v5083 = vrsqrt.pop %v5082
        %v5084 = vmul.f32 %v5083, %v5082
        %v5085 = vmul.f32 %v5084, %v5083
        %v5086 = vmul.f32 0.5, %v5085
        %v5087 = vsub.f32 1.5, %v5086
        %v5088 = vmul.f32 %v5083, %v5087
        %vm5089 = vweird.f32 %v5082
        %vm5090 = vweird.f32 %v5083
        %vm5091 = vmor %vm5089, %vm5090
        %v5092 = vsel %vm5091, %v5083, %v5088
        %s5093 = vtos %v5092
        %v5094 = vstv %s5093
        %v5095 = vmul.f32 %v5035, %v5094
        %v5096 = vmul.f32 %v5036, %v5094
        %v5097 = vmax.f32 %v5095, 0.0
        %v5098 = vmax.f32 %v5096, 0.0
        %s5099 = scalar_lea.vmem %s157, 64
        %5100 = vst.msk [vmem:[%s5099] sm:$0xff] %vm1135, %v5097
        %5101 = vst.msk [vmem:[%s5099 + $0x8] sm:$0xff] %vm1135, %v5098
        %v5102 = vmul.f32 %v5037, %v5094
        %v5103 = vmul.f32 %v5038, %v5094
        %v5104 = vmul.f32 %v5039, %v5094
        %v5105 = vmax.f32 %v5102, 0.0
        %v5106 = vmax.f32 %v5103, 0.0
        %v5107 = vmax.f32 %v5104, 0.0
        %5111 = vrot.lane.b32.xlu0 %v5105, 32
        %v5112 = vpop.permute.xlu0 %5111
        %5113 = vrot.lane.b32.xlu0 %v5106, 32
        %v5114 = vpop.permute.xlu0 %5113
        %5115 = vrot.lane.b32.xlu0 %v5107, 32
        %v5116 = vpop.permute.xlu0 %5115
        %5120 = vst.msk [vmem:[%s5099 - $0x1] sm:$0xfe] %vm1257, %v5112
        %5121 = vst.msk [vmem:[%s5099 + $0x7] sm:$0xff] %vm1259, %v5114
        %5122 = vst.msk [vmem:[%s5099 + $0xf] sm:$0x1] %vm1261, %v5116
        %s5123 = sld [smem:[#allocation2 + $0x5]]
        %v5124 = vstv %s5123
        %v5125 = vmul.f32 %v5124, %v286
        %v5126 = vmul.f32 %v5124, %v264
        %v5127 = vadd.f32 %v5125, 0.0
        %v5128 = vadd.f32 %v5126, 0.0
        %s5129 = sld [smem:[#allocation2 + $0xd]]
        %v5130 = vstv %s5129
        %v5131 = vmul.f32 %v5130, %v287
        %v5132 = vmul.f32 %v5130, %v267
        %v5133 = vadd.f32 %v5127, %v5131
        %v5134 = vadd.f32 %v5128, %v5132
        %s5135 = sld [smem:[#allocation2 + $0x15]]
        %v5136 = vstv %s5135
        %v5137 = vmul.f32 %v5136, %v288
        %v5138 = vmul.f32 %v5136, %v270
        %v5139 = vadd.f32 %v5133, %v5137
        %v5140 = vadd.f32 %v5134, %v5138
        %s5141 = sld [smem:[#allocation2 + $0x1d]]
        %v5142 = vstv %s5141
        %v5143 = vmul.f32 %v5142, %v289
        %v5144 = vmul.f32 %v5142, %v273
        %v5145 = vadd.f32 %v5139, %v5143
        %v5146 = vadd.f32 %v5140, %v5144
        %s5147 = sld [smem:[#allocation2 + $0x25]]
        %v5148 = vstv %s5147
        %v5149 = vmul.f32 %v5148, %v286
        %v5150 = vmul.f32 %v5148, %v264
        %5153 = vrot.lane.b32.xlu0 %v5149, 127
        %v5154 = vpop.permute.xlu0 %5153
        %5155 = vrot.lane.b32.xlu0 %v5150, 127
        %v5156 = vpop.permute.xlu0 %5155
        %v5159 = vadd.f32 %v5145, %v5154
        %v5160 = vadd.f32 %v5146, %v5156
        %s5161 = sld [smem:[#allocation2 + $0x2d]]
        %v5162 = vstv %s5161
        %v5163 = vmul.f32 %v5162, %v287
        %v5164 = vmul.f32 %v5162, %v267
        %5167 = vrot.lane.b32.xlu0 %v5163, 127
        %v5168 = vpop.permute.xlu0 %5167
        %5169 = vrot.lane.b32.xlu0 %v5164, 127
        %v5170 = vpop.permute.xlu0 %5169
        %v5173 = vadd.f32 %v5159, %v5168
        %v5174 = vadd.f32 %v5160, %v5170
        %s5175 = sld [smem:[#allocation2 + $0x35]]
        %v5176 = vstv %s5175
        %v5177 = vmul.f32 %v5176, %v288
        %v5178 = vmul.f32 %v5176, %v270
        %5181 = vrot.lane.b32.xlu0 %v5177, 127
        %v5182 = vpop.permute.xlu0 %5181
        %5183 = vrot.lane.b32.xlu0 %v5178, 127
        %v5184 = vpop.permute.xlu0 %5183
        %v5187 = vadd.f32 %v5173, %v5182
        %v5188 = vadd.f32 %v5174, %v5184
        %s5189 = sld [smem:[#allocation2 + $0x3d]]
        %v5190 = vstv %s5189
        %v5191 = vmul.f32 %v5190, %v289
        %v5192 = vmul.f32 %v5190, %v273
        %5195 = vrot.lane.b32.xlu0 %v5191, 127
        %v5196 = vpop.permute.xlu0 %5195
        %5197 = vrot.lane.b32.xlu0 %v5192, 127
        %v5198 = vpop.permute.xlu0 %5197
        %v5201 = vadd.f32 %v5187, %v5196
        %v5202 = vadd.f32 %v5188, %v5198
        %s5203 = sld [smem:[#allocation2 + $0x45]]
        %v5204 = vstv %s5203
        %v5205 = vmul.f32 %v5204, %v286
        %v5206 = vmul.f32 %v5204, %v264
        %5209 = vrot.lane.b32.xlu0 %v5205, 126
        %v5210 = vpop.permute.xlu0 %5209
        %5211 = vrot.lane.b32.xlu0 %v5206, 126
        %v5212 = vpop.permute.xlu0 %5211
        %v5215 = vadd.f32 %v5201, %v5210
        %v5216 = vadd.f32 %v5202, %v5212
        %s5217 = sld [smem:[#allocation2 + $0x4d]]
        %v5218 = vstv %s5217
        %v5219 = vmul.f32 %v5218, %v287
        %v5220 = vmul.f32 %v5218, %v267
        %5223 = vrot.lane.b32.xlu0 %v5219, 126
        %v5224 = vpop.permute.xlu0 %5223
        %5225 = vrot.lane.b32.xlu0 %v5220, 126
        %v5226 = vpop.permute.xlu0 %5225
        %v5229 = vadd.f32 %v5215, %v5224
        %v5230 = vadd.f32 %v5216, %v5226
        %s5231 = sld [smem:[#allocation2 + $0x55]]
        %v5232 = vstv %s5231
        %v5233 = vmul.f32 %v5232, %v288
        %v5234 = vmul.f32 %v5232, %v270
        %5237 = vrot.lane.b32.xlu0 %v5233, 126
        %v5238 = vpop.permute.xlu0 %5237
        %5239 = vrot.lane.b32.xlu0 %v5234, 126
        %v5240 = vpop.permute.xlu0 %5239
        %v5243 = vadd.f32 %v5229, %v5238
        %v5244 = vadd.f32 %v5230, %v5240
        %s5245 = sld [smem:[#allocation2 + $0x5d]]
        %v5246 = vstv %s5245
        %v5247 = vmul.f32 %v5246, %v289
        %v5248 = vmul.f32 %v5246, %v273
        %5251 = vrot.lane.b32.xlu0 %v5247, 126
        %v5252 = vpop.permute.xlu0 %5251
        %5253 = vrot.lane.b32.xlu0 %v5248, 126
        %v5254 = vpop.permute.xlu0 %5253
        %v5257 = vadd.f32 %v5243, %v5252
        %v5258 = vadd.f32 %v5244, %v5254
        %s5259 = sld [smem:[#allocation2 + $0x65]]
        %v5260 = vstv %s5259
        %v5261 = vmul.f32 %v5260, %v286
        %v5262 = vmul.f32 %v5260, %v264
        %v5263 = vmul.f32 %v5260, %v290
        %v5267 = vrot.slane %v5261, 1
        %v5268 = vrot.slane %v5262, 1
        %v5269 = vsel %vm438, %v5267, %v5268
        %v5270 = vrot.slane %v5263, 1
        %v5271 = vsel %vm438, %v5268, %v5270
        %v5274 = vadd.f32 %v5257, %v5269
        %v5275 = vadd.f32 %v5258, %v5271
        %s5276 = sld [smem:[#allocation2 + $0x6d]]
        %v5277 = vstv %s5276
        %v5278 = vmul.f32 %v5277, %v287
        %v5279 = vmul.f32 %v5277, %v267
        %v5280 = vmul.f32 %v5277, %v291
        %v5284 = vrot.slane %v5278, 1
        %v5285 = vrot.slane %v5279, 1
        %v5286 = vsel %vm438, %v5284, %v5285
        %v5287 = vrot.slane %v5280, 1
        %v5288 = vsel %vm438, %v5285, %v5287
        %v5291 = vadd.f32 %v5274, %v5286
        %v5292 = vadd.f32 %v5275, %v5288
        %s5293 = sld [smem:[#allocation2 + $0x75]]
        %v5294 = vstv %s5293
        %v5295 = vmul.f32 %v5294, %v288
        %v5296 = vmul.f32 %v5294, %v270
        %v5297 = vmul.f32 %v5294, %v292
        %v5301 = vrot.slane %v5295, 1
        %v5302 = vrot.slane %v5296, 1
        %v5303 = vsel %vm438, %v5301, %v5302
        %v5304 = vrot.slane %v5297, 1
        %v5305 = vsel %vm438, %v5302, %v5304
        %v5308 = vadd.f32 %v5291, %v5303
        %v5309 = vadd.f32 %v5292, %v5305
        %s5310 = sld [smem:[#allocation2 + $0x7d]]
        %v5311 = vstv %s5310
        %v5312 = vmul.f32 %v5311, %v289
        %v5313 = vmul.f32 %v5311, %v273
        %v5314 = vmul.f32 %v5311, %v293
        %v5318 = vrot.slane %v5312, 1
        %v5319 = vrot.slane %v5313, 1
        %v5320 = vsel %vm438, %v5318, %v5319
        %v5321 = vrot.slane %v5314, 1
        %v5322 = vsel %vm438, %v5319, %v5321
        %v5325 = vadd.f32 %v5308, %v5320
        %v5326 = vadd.f32 %v5309, %v5322
        %s5327 = sld [smem:[#allocation2 + $0x85]]
        %v5328 = vstv %s5327
        %v5329 = vmul.f32 %v5328, %v286
        %v5330 = vmul.f32 %v5328, %v264
        %v5331 = vmul.f32 %v5328, %v290
        %v5335 = vrot.slane %v5329, 1
        %v5336 = vrot.slane %v5330, 1
        %v5337 = vsel %vm438, %v5335, %v5336
        %v5338 = vrot.slane %v5331, 1
        %v5339 = vsel %vm438, %v5336, %v5338
        %5340 = vrot.lane.b32.xlu0 %v5337, 127
        %v5341 = vpop.permute.xlu0 %5340
        %5342 = vrot.lane.b32.xlu0 %v5339, 127
        %v5343 = vpop.permute.xlu0 %5342
        %v5346 = vadd.f32 %v5325, %v5341
        %v5347 = vadd.f32 %v5326, %v5343
        %s5348 = sld [smem:[#allocation2 + $0x8d]]
        %v5349 = vstv %s5348
        %v5350 = vmul.f32 %v5349, %v287
        %v5351 = vmul.f32 %v5349, %v267
        %v5352 = vmul.f32 %v5349, %v291
        %v5356 = vrot.slane %v5350, 1
        %v5357 = vrot.slane %v5351, 1
        %v5358 = vsel %vm438, %v5356, %v5357
        %v5359 = vrot.slane %v5352, 1
        %v5360 = vsel %vm438, %v5357, %v5359
        %5361 = vrot.lane.b32.xlu0 %v5358, 127
        %v5362 = vpop.permute.xlu0 %5361
        %5363 = vrot.lane.b32.xlu0 %v5360, 127
        %v5364 = vpop.permute.xlu0 %5363
        %v5367 = vadd.f32 %v5346, %v5362
        %v5368 = vadd.f32 %v5347, %v5364
        %s5369 = sld [smem:[#allocation2 + $0x95]]
        %v5370 = vstv %s5369
        %v5371 = vmul.f32 %v5370, %v288
        %v5372 = vmul.f32 %v5370, %v270
        %v5373 = vmul.f32 %v5370, %v292
        %v5377 = vrot.slane %v5371, 1
        %v5378 = vrot.slane %v5372, 1
        %v5379 = vsel %vm438, %v5377, %v5378
        %v5380 = vrot.slane %v5373, 1
        %v5381 = vsel %vm438, %v5378, %v5380
        %5382 = vrot.lane.b32.xlu0 %v5379, 127
        %v5383 = vpop.permute.xlu0 %5382
        %5384 = vrot.lane.b32.xlu0 %v5381, 127
        %v5385 = vpop.permute.xlu0 %5384
        %v5388 = vadd.f32 %v5367, %v5383
        %v5389 = vadd.f32 %v5368, %v5385
        %s5390 = sld [smem:[#allocation2 + $0x9d]]
        %v5391 = vstv %s5390
        %v5392 = vmul.f32 %v5391, %v289
        %v5393 = vmul.f32 %v5391, %v273
        %v5394 = vmul.f32 %v5391, %v293
        %v5398 = vrot.slane %v5392, 1
        %v5399 = vrot.slane %v5393, 1
        %v5400 = vsel %vm438, %v5398, %v5399
        %v5401 = vrot.slane %v5394, 1
        %v5402 = vsel %vm438, %v5399, %v5401
        %5403 = vrot.lane.b32.xlu0 %v5400, 127
        %v5404 = vpop.permute.xlu0 %5403
        %5405 = vrot.lane.b32.xlu0 %v5402, 127
        %v5406 = vpop.permute.xlu0 %5405
        %v5409 = vadd.f32 %v5388, %v5404
        %v5410 = vadd.f32 %v5389, %v5406
        %s5411 = sld [smem:[#allocation2 + $0xa5]]
        %v5412 = vstv %s5411
        %v5413 = vmul.f32 %v5412, %v286
        %v5414 = vmul.f32 %v5412, %v264
        %v5415 = vmul.f32 %v5412, %v290
        %v5419 = vrot.slane %v5413, 1
        %v5420 = vrot.slane %v5414, 1
        %v5421 = vsel %vm438, %v5419, %v5420
        %v5422 = vrot.slane %v5415, 1
        %v5423 = vsel %vm438, %v5420, %v5422
        %5424 = vrot.lane.b32.xlu0 %v5421, 126
        %v5425 = vpop.permute.xlu0 %5424
        %5426 = vrot.lane.b32.xlu0 %v5423, 126
        %v5427 = vpop.permute.xlu0 %5426
        %v5430 = vadd.f32 %v5409, %v5425
        %v5431 = vadd.f32 %v5410, %v5427
        %s5432 = sld [smem:[#allocation2 + $0xad]]
        %v5433 = vstv %s5432
        %v5434 = vmul.f32 %v5433, %v287
        %v5435 = vmul.f32 %v5433, %v267
        %v5436 = vmul.f32 %v5433, %v291
        %v5440 = vrot.slane %v5434, 1
        %v5441 = vrot.slane %v5435, 1
        %v5442 = vsel %vm438, %v5440, %v5441
        %v5443 = vrot.slane %v5436, 1
        %v5444 = vsel %vm438, %v5441, %v5443
        %5445 = vrot.lane.b32.xlu0 %v5442, 126
        %v5446 = vpop.permute.xlu0 %5445
        %5447 = vrot.lane.b32.xlu0 %v5444, 126
        %v5448 = vpop.permute.xlu0 %5447
        %v5451 = vadd.f32 %v5430, %v5446
        %v5452 = vadd.f32 %v5431, %v5448
        %s5453 = sld [smem:[#allocation2 + $0xb5]]
        %v5454 = vstv %s5453
        %v5455 = vmul.f32 %v5454, %v288
        %v5456 = vmul.f32 %v5454, %v270
        %v5457 = vmul.f32 %v5454, %v292
        %v5461 = vrot.slane %v5455, 1
        %v5462 = vrot.slane %v5456, 1
        %v5463 = vsel %vm438, %v5461, %v5462
        %v5464 = vrot.slane %v5457, 1
        %v5465 = vsel %vm438, %v5462, %v5464
        %5466 = vrot.lane.b32.xlu0 %v5463, 126
        %v5467 = vpop.permute.xlu0 %5466
        %5468 = vrot.lane.b32.xlu0 %v5465, 126
        %v5469 = vpop.permute.xlu0 %5468
        %v5472 = vadd.f32 %v5451, %v5467
        %v5473 = vadd.f32 %v5452, %v5469
        %s5474 = sld [smem:[#allocation2 + $0xbd]]
        %v5475 = vstv %s5474
        %v5476 = vmul.f32 %v5475, %v289
        %v5477 = vmul.f32 %v5475, %v273
        %v5478 = vmul.f32 %v5475, %v293
        %v5482 = vrot.slane %v5476, 1
        %v5483 = vrot.slane %v5477, 1
        %v5484 = vsel %vm438, %v5482, %v5483
        %v5485 = vrot.slane %v5478, 1
        %v5486 = vsel %vm438, %v5483, %v5485
        %5487 = vrot.lane.b32.xlu0 %v5484, 126
        %v5488 = vpop.permute.xlu0 %5487
        %5489 = vrot.lane.b32.xlu0 %v5486, 126
        %v5490 = vpop.permute.xlu0 %5489
        %v5493 = vadd.f32 %v5472, %v5488
        %v5494 = vadd.f32 %v5473, %v5490
        %s5495 = sld [smem:[#allocation2 + $0xc5]]
        %v5496 = vstv %s5495
        %v5497 = vmul.f32 %v5496, %v286
        %v5498 = vmul.f32 %v5496, %v264
        %v5499 = vmul.f32 %v5496, %v290
        %v5500 = vadd.f32 %v5497, 0.0
        %v5501 = vadd.f32 %v5498, 0.0
        %v5502 = vadd.f32 %v5499, 0.0
        %s5503 = sld [smem:[#allocation2 + $0xcd]]
        %v5504 = vstv %s5503
        %v5505 = vmul.f32 %v5504, %v287
        %v5506 = vmul.f32 %v5504, %v267
        %v5507 = vmul.f32 %v5504, %v291
        %v5508 = vadd.f32 %v5500, %v5505
        %v5509 = vadd.f32 %v5501, %v5506
        %v5510 = vadd.f32 %v5502, %v5507
        %s5511 = sld [smem:[#allocation2 + $0xd5]]
        %v5512 = vstv %s5511
        %v5513 = vmul.f32 %v5512, %v288
        %v5514 = vmul.f32 %v5512, %v270
        %v5515 = vmul.f32 %v5512, %v292
        %v5516 = vadd.f32 %v5508, %v5513
        %v5517 = vadd.f32 %v5509, %v5514
        %v5518 = vadd.f32 %v5510, %v5515
        %s5519 = sld [smem:[#allocation2 + $0xdd]]
        %v5520 = vstv %s5519
        %v5521 = vmul.f32 %v5520, %v289
        %v5522 = vmul.f32 %v5520, %v273
        %v5523 = vmul.f32 %v5520, %v293
        %v5524 = vadd.f32 %v5516, %v5521
        %v5525 = vadd.f32 %v5517, %v5522
        %v5526 = vadd.f32 %v5518, %v5523
        %s5527 = sld [smem:[#allocation2 + $0xe5]]
        %v5528 = vstv %s5527
        %v5529 = vmul.f32 %v5528, %v286
        %v5530 = vmul.f32 %v5528, %v264
        %v5531 = vmul.f32 %v5528, %v290
        %5535 = vrot.lane.b32.xlu0 %v5529, 127
        %v5536 = vpop.permute.xlu0 %5535
        %5537 = vrot.lane.b32.xlu0 %v5530, 127
        %v5538 = vpop.permute.xlu0 %5537
        %5539 = vrot.lane.b32.xlu0 %v5531, 127
        %v5540 = vpop.permute.xlu0 %5539
        %v5544 = vadd.f32 %v5524, %v5536
        %v5545 = vadd.f32 %v5525, %v5538
        %v5546 = vadd.f32 %v5526, %v5540
        %s5547 = sld [smem:[#allocation2 + $0xed]]
        %v5548 = vstv %s5547
        %v5549 = vmul.f32 %v5548, %v287
        %v5550 = vmul.f32 %v5548, %v267
        %v5551 = vmul.f32 %v5548, %v291
        %5555 = vrot.lane.b32.xlu0 %v5549, 127
        %v5556 = vpop.permute.xlu0 %5555
        %5557 = vrot.lane.b32.xlu0 %v5550, 127
        %v5558 = vpop.permute.xlu0 %5557
        %5559 = vrot.lane.b32.xlu0 %v5551, 127
        %v5560 = vpop.permute.xlu0 %5559
        %v5564 = vadd.f32 %v5544, %v5556
        %v5565 = vadd.f32 %v5545, %v5558
        %v5566 = vadd.f32 %v5546, %v5560
        %s5567 = sld [smem:[#allocation2 + $0xf5]]
        %v5568 = vstv %s5567
        %v5569 = vmul.f32 %v5568, %v288
        %v5570 = vmul.f32 %v5568, %v270
        %v5571 = vmul.f32 %v5568, %v292
        %5575 = vrot.lane.b32.xlu0 %v5569, 127
        %v5576 = vpop.permute.xlu0 %5575
        %5577 = vrot.lane.b32.xlu0 %v5570, 127
        %v5578 = vpop.permute.xlu0 %5577
        %5579 = vrot.lane.b32.xlu0 %v5571, 127
        %v5580 = vpop.permute.xlu0 %5579
        %v5584 = vadd.f32 %v5564, %v5576
        %v5585 = vadd.f32 %v5565, %v5578
        %v5586 = vadd.f32 %v5566, %v5580
        %s5587 = sld [smem:[#allocation2 + $0xfd]]
        %v5588 = vstv %s5587
        %v5589 = vmul.f32 %v5588, %v289
        %v5590 = vmul.f32 %v5588, %v273
        %v5591 = vmul.f32 %v5588, %v293
        %5595 = vrot.lane.b32.xlu0 %v5589, 127
        %v5596 = vpop.permute.xlu0 %5595
        %5597 = vrot.lane.b32.xlu0 %v5590, 127
        %v5598 = vpop.permute.xlu0 %5597
        %5599 = vrot.lane.b32.xlu0 %v5591, 127
        %v5600 = vpop.permute.xlu0 %5599
        %v5604 = vadd.f32 %v5584, %v5596
        %v5605 = vadd.f32 %v5585, %v5598
        %v5606 = vadd.f32 %v5586, %v5600
        %s5607 = sld [smem:[#allocation2 + $0x105]]
        %v5608 = vstv %s5607
        %v5609 = vmul.f32 %v5608, %v286
        %v5610 = vmul.f32 %v5608, %v264
        %v5611 = vmul.f32 %v5608, %v290
        %5615 = vrot.lane.b32.xlu0 %v5609, 126
        %v5616 = vpop.permute.xlu0 %5615
        %5617 = vrot.lane.b32.xlu0 %v5610, 126
        %v5618 = vpop.permute.xlu0 %5617
        %5619 = vrot.lane.b32.xlu0 %v5611, 126
        %v5620 = vpop.permute.xlu0 %5619
        %v5624 = vadd.f32 %v5604, %v5616
        %v5625 = vadd.f32 %v5605, %v5618
        %v5626 = vadd.f32 %v5606, %v5620
        %s5627 = sld [smem:[#allocation2 + $0x10d]]
        %v5628 = vstv %s5627
        %v5629 = vmul.f32 %v5628, %v287
        %v5630 = vmul.f32 %v5628, %v267
        %v5631 = vmul.f32 %v5628, %v291
        %5635 = vrot.lane.b32.xlu0 %v5629, 126
        %v5636 = vpop.permute.xlu0 %5635
        %5637 = vrot.lane.b32.xlu0 %v5630, 126
        %v5638 = vpop.permute.xlu0 %5637
        %5639 = vrot.lane.b32.xlu0 %v5631, 126
        %v5640 = vpop.permute.xlu0 %5639
        %v5644 = vadd.f32 %v5624, %v5636
        %v5645 = vadd.f32 %v5625, %v5638
        %v5646 = vadd.f32 %v5626, %v5640
        %s5647 = sld [smem:[#allocation2 + $0x115]]
        %v5648 = vstv %s5647
        %v5649 = vmul.f32 %v5648, %v288
        %v5650 = vmul.f32 %v5648, %v270
        %v5651 = vmul.f32 %v5648, %v292
        %5655 = vrot.lane.b32.xlu0 %v5649, 126
        %v5656 = vpop.permute.xlu0 %5655
        %5657 = vrot.lane.b32.xlu0 %v5650, 126
        %v5658 = vpop.permute.xlu0 %5657
        %5659 = vrot.lane.b32.xlu0 %v5651, 126
        %v5660 = vpop.permute.xlu0 %5659
        %v5664 = vadd.f32 %v5644, %v5656
        %v5665 = vadd.f32 %v5645, %v5658
        %v5666 = vadd.f32 %v5646, %v5660
        %s5667 = sld [smem:[#allocation2 + $0x11d]]
        %v5668 = vstv %s5667
        %v5669 = vmul.f32 %v5668, %v289
        %v5670 = vmul.f32 %v5668, %v273
        %v5671 = vmul.f32 %v5668, %v293
        %5675 = vrot.lane.b32.xlu0 %v5669, 126
        %v5676 = vpop.permute.xlu0 %5675
        %5677 = vrot.lane.b32.xlu0 %v5670, 126
        %v5678 = vpop.permute.xlu0 %5677
        %5679 = vrot.lane.b32.xlu0 %v5671, 126
        %v5680 = vpop.permute.xlu0 %5679
        %v5684 = vadd.f32 %v5664, %v5676
        %v5685 = vadd.f32 %v5665, %v5678
        %v5686 = vadd.f32 %v5666, %v5680
        %s5687 = sld [smem:[#allocation2 + $0x125]]
        %v5688 = vstv %s5687
        %v5689 = vmul.f32 %v5688, %v286
        %v5690 = vmul.f32 %v5688, %v264
        %v5691 = vmul.f32 %v5688, %v290
        %v5695 = vrot.slane %v5689, 1
        %v5696 = vrot.slane %v5690, 1
        %v5697 = vsel %vm438, %v5695, %v5696
        %v5698 = vrot.slane %v5691, 1
        %v5699 = vsel %vm438, %v5696, %v5698
        %v5703 = vadd.f32 %v5684, %v5697
        %v5704 = vadd.f32 %v5685, %v5699
        %v5705 = vadd.f32 %v5686, %v5698
        %s5706 = sld [smem:[#allocation2 + $0x12d]]
        %v5707 = vstv %s5706
        %v5708 = vmul.f32 %v5707, %v287
        %v5709 = vmul.f32 %v5707, %v267
        %v5710 = vmul.f32 %v5707, %v291
        %v5714 = vrot.slane %v5708, 1
        %v5715 = vrot.slane %v5709, 1
        %v5716 = vsel %vm438, %v5714, %v5715
        %v5717 = vrot.slane %v5710, 1
        %v5718 = vsel %vm438, %v5715, %v5717
        %v5722 = vadd.f32 %v5703, %v5716
        %v5723 = vadd.f32 %v5704, %v5718
        %v5724 = vadd.f32 %v5705, %v5717
        %s5725 = sld [smem:[#allocation2 + $0x135]]
        %v5726 = vstv %s5725
        %v5727 = vmul.f32 %v5726, %v288
        %v5728 = vmul.f32 %v5726, %v270
        %v5729 = vmul.f32 %v5726, %v292
        %v5733 = vrot.slane %v5727, 1
        %v5734 = vrot.slane %v5728, 1
        %v5735 = vsel %vm438, %v5733, %v5734
        %v5736 = vrot.slane %v5729, 1
        %v5737 = vsel %vm438, %v5734, %v5736
        %v5741 = vadd.f32 %v5722, %v5735
        %v5742 = vadd.f32 %v5723, %v5737
        %v5743 = vadd.f32 %v5724, %v5736
        %s5744 = sld [smem:[#allocation2 + $0x13d]]
        %v5745 = vstv %s5744
        %v5746 = vmul.f32 %v5745, %v289
        %v5747 = vmul.f32 %v5745, %v273
        %v5748 = vmul.f32 %v5745, %v293
        %v5752 = vrot.slane %v5746, 1
        %v5753 = vrot.slane %v5747, 1
        %v5754 = vsel %vm438, %v5752, %v5753
        %v5755 = vrot.slane %v5748, 1
        %v5756 = vsel %vm438, %v5753, %v5755
        %v5760 = vadd.f32 %v5741, %v5754
        %v5761 = vadd.f32 %v5742, %v5756
        %v5762 = vadd.f32 %v5743, %v5755
        %s5763 = sld [smem:[#allocation2 + $0x145]]
        %v5764 = vstv %s5763
        %v5765 = vmul.f32 %v5764, %v286
        %v5766 = vmul.f32 %v5764, %v264
        %v5767 = vmul.f32 %v5764, %v290
        %v5771 = vrot.slane %v5765, 1
        %v5772 = vrot.slane %v5766, 1
        %v5773 = vsel %vm438, %v5771, %v5772
        %v5774 = vrot.slane %v5767, 1
        %v5775 = vsel %vm438, %v5772, %v5774
        %5776 = vrot.lane.b32.xlu0 %v5773, 127
        %v5777 = vpop.permute.xlu0 %5776
        %5778 = vrot.lane.b32.xlu0 %v5775, 127
        %v5779 = vpop.permute.xlu0 %5778
        %5780 = vrot.lane.b32.xlu0 %v5774, 127
        %v5781 = vpop.permute.xlu0 %5780
        %v5785 = vadd.f32 %v5760, %v5777
        %v5786 = vadd.f32 %v5761, %v5779
        %v5787 = vadd.f32 %v5762, %v5781
        %s5788 = sld [smem:[#allocation2 + $0x14d]]
        %v5789 = vstv %s5788
        %v5790 = vmul.f32 %v5789, %v287
        %v5791 = vmul.f32 %v5789, %v267
        %v5792 = vmul.f32 %v5789, %v291
        %v5796 = vrot.slane %v5790, 1
        %v5797 = vrot.slane %v5791, 1
        %v5798 = vsel %vm438, %v5796, %v5797
        %v5799 = vrot.slane %v5792, 1
        %v5800 = vsel %vm438, %v5797, %v5799
        %5801 = vrot.lane.b32.xlu0 %v5798, 127
        %v5802 = vpop.permute.xlu0 %5801
        %5803 = vrot.lane.b32.xlu0 %v5800, 127
        %v5804 = vpop.permute.xlu0 %5803
        %5805 = vrot.lane.b32.xlu0 %v5799, 127
        %v5806 = vpop.permute.xlu0 %5805
        %v5810 = vadd.f32 %v5785, %v5802
        %v5811 = vadd.f32 %v5786, %v5804
        %v5812 = vadd.f32 %v5787, %v5806
        %s5813 = sld [smem:[#allocation2 + $0x155]]
        %v5814 = vstv %s5813
        %v5815 = vmul.f32 %v5814, %v288
        %v5816 = vmul.f32 %v5814, %v270
        %v5817 = vmul.f32 %v5814, %v292
        %v5821 = vrot.slane %v5815, 1
        %v5822 = vrot.slane %v5816, 1
        %v5823 = vsel %vm438, %v5821, %v5822
        %v5824 = vrot.slane %v5817, 1
        %v5825 = vsel %vm438, %v5822, %v5824
        %5826 = vrot.lane.b32.xlu0 %v5823, 127
        %v5827 = vpop.permute.xlu0 %5826
        %5828 = vrot.lane.b32.xlu0 %v5825, 127
        %v5829 = vpop.permute.xlu0 %5828
        %5830 = vrot.lane.b32.xlu0 %v5824, 127
        %v5831 = vpop.permute.xlu0 %5830
        %v5835 = vadd.f32 %v5810, %v5827
        %v5836 = vadd.f32 %v5811, %v5829
        %v5837 = vadd.f32 %v5812, %v5831
        %s5838 = sld [smem:[#allocation2 + $0x15d]]
        %v5839 = vstv %s5838
        %v5840 = vmul.f32 %v5839, %v289
        %v5841 = vmul.f32 %v5839, %v273
        %v5842 = vmul.f32 %v5839, %v293
        %v5846 = vrot.slane %v5840, 1
        %v5847 = vrot.slane %v5841, 1
        %v5848 = vsel %vm438, %v5846, %v5847
        %v5849 = vrot.slane %v5842, 1
        %v5850 = vsel %vm438, %v5847, %v5849
        %5851 = vrot.lane.b32.xlu0 %v5848, 127
        %v5852 = vpop.permute.xlu0 %5851
        %5853 = vrot.lane.b32.xlu0 %v5850, 127
        %v5854 = vpop.permute.xlu0 %5853
        %5855 = vrot.lane.b32.xlu0 %v5849, 127
        %v5856 = vpop.permute.xlu0 %5855
        %v5860 = vadd.f32 %v5835, %v5852
        %v5861 = vadd.f32 %v5836, %v5854
        %v5862 = vadd.f32 %v5837, %v5856
        %s5863 = sld [smem:[#allocation2 + $0x165]]
        %v5864 = vstv %s5863
        %v5865 = vmul.f32 %v5864, %v286
        %v5866 = vmul.f32 %v5864, %v264
        %v5867 = vmul.f32 %v5864, %v290
        %v5871 = vrot.slane %v5865, 1
        %v5872 = vrot.slane %v5866, 1
        %v5873 = vsel %vm438, %v5871, %v5872
        %v5874 = vrot.slane %v5867, 1
        %v5875 = vsel %vm438, %v5872, %v5874
        %5876 = vrot.lane.b32.xlu0 %v5873, 126
        %v5877 = vpop.permute.xlu0 %5876
        %5878 = vrot.lane.b32.xlu0 %v5875, 126
        %v5879 = vpop.permute.xlu0 %5878
        %5880 = vrot.lane.b32.xlu0 %v5874, 126
        %v5881 = vpop.permute.xlu0 %5880
        %v5885 = vadd.f32 %v5860, %v5877
        %v5886 = vadd.f32 %v5861, %v5879
        %v5887 = vadd.f32 %v5862, %v5881
        %s5888 = sld [smem:[#allocation2 + $0x16d]]
        %v5889 = vstv %s5888
        %v5890 = vmul.f32 %v5889, %v287
        %v5891 = vmul.f32 %v5889, %v267
        %v5892 = vmul.f32 %v5889, %v291
        %v5896 = vrot.slane %v5890, 1
        %v5897 = vrot.slane %v5891, 1
        %v5898 = vsel %vm438, %v5896, %v5897
        %v5899 = vrot.slane %v5892, 1
        %v5900 = vsel %vm438, %v5897, %v5899
        %5901 = vrot.lane.b32.xlu0 %v5898, 126
        %v5902 = vpop.permute.xlu0 %5901
        %5903 = vrot.lane.b32.xlu0 %v5900, 126
        %v5904 = vpop.permute.xlu0 %5903
        %5905 = vrot.lane.b32.xlu0 %v5899, 126
        %v5906 = vpop.permute.xlu0 %5905
        %v5910 = vadd.f32 %v5885, %v5902
        %v5911 = vadd.f32 %v5886, %v5904
        %v5912 = vadd.f32 %v5887, %v5906
        %s5913 = sld [smem:[#allocation2 + $0x175]]
        %v5914 = vstv %s5913
        %v5915 = vmul.f32 %v5914, %v288
        %v5916 = vmul.f32 %v5914, %v270
        %v5917 = vmul.f32 %v5914, %v292
        %v5921 = vrot.slane %v5915, 1
        %v5922 = vrot.slane %v5916, 1
        %v5923 = vsel %vm438, %v5921, %v5922
        %v5924 = vrot.slane %v5917, 1
        %v5925 = vsel %vm438, %v5922, %v5924
        %5926 = vrot.lane.b32.xlu0 %v5923, 126
        %v5927 = vpop.permute.xlu0 %5926
        %5928 = vrot.lane.b32.xlu0 %v5925, 126
        %v5929 = vpop.permute.xlu0 %5928
        %5930 = vrot.lane.b32.xlu0 %v5924, 126
        %v5931 = vpop.permute.xlu0 %5930
        %v5935 = vadd.f32 %v5910, %v5927
        %v5936 = vadd.f32 %v5911, %v5929
        %v5937 = vadd.f32 %v5912, %v5931
        %s5938 = sld [smem:[#allocation2 + $0x17d]]
        %v5939 = vstv %s5938
        %v5940 = vmul.f32 %v5939, %v289
        %v5941 = vmul.f32 %v5939, %v273
        %v5942 = vmul.f32 %v5939, %v293
        %v5946 = vrot.slane %v5940, 1
        %v5947 = vrot.slane %v5941, 1
        %v5948 = vsel %vm438, %v5946, %v5947
        %v5949 = vrot.slane %v5942, 1
        %v5950 = vsel %vm438, %v5947, %v5949
        %5951 = vrot.lane.b32.xlu0 %v5948, 126
        %v5952 = vpop.permute.xlu0 %5951
        %5953 = vrot.lane.b32.xlu0 %v5950, 126
        %v5954 = vpop.permute.xlu0 %5953
        %5955 = vrot.lane.b32.xlu0 %v5949, 126
        %v5956 = vpop.permute.xlu0 %5955
        %v5960 = vadd.f32 %v5935, %v5952
        %v5961 = vadd.f32 %v5936, %v5954
        %v5962 = vadd.f32 %v5937, %v5956
        %v5963 = vsel %vm1135, %v5493, 0.0
        %v5964 = vsel %vm1135, %v5494, 0.0
        %v5965 = vadd.f32 %v5963, %v5964
        %5966 = vadd.xlane.f32.xlu0 %v5965
        %v5967 = vpop.xlane.xlu0 %5966
        %v5968 = vrot.slane %v5967, 4
        %v5969 = vadd.f32 %v5967, %v5968
        %v5970 = vrot.slane %v5969, 2
        %v5971 = vadd.f32 %v5969, %v5970
        %v5972 = vrot.slane %v5971, 1
        %v5973 = vadd.f32 %v5971, %v5972
        %s5974 = vtos %v5973
        %v5978 = vrot.slane %v5960, 1
        %v5979 = vrot.slane %v5961, 1
        %v5980 = vsel %vm438, %v5978, %v5979
        %v5981 = vrot.slane %v5962, 1
        %v5982 = vsel %vm438, %v5979, %v5981
        %v5985 = vsel %vm1135, %v5980, 0.0
        %v5986 = vsel %vm1135, %v5982, 0.0
        %v5987 = vadd.f32 %v5985, %v5986
        %5988 = vadd.xlane.f32.xlu0 %v5987
        %v5989 = vpop.xlane.xlu0 %5988
        %v5990 = vrot.slane %v5989, 4
        %v5991 = vadd.f32 %v5989, %v5990
        %v5992 = vrot.slane %v5991, 2
        %v5993 = vadd.f32 %v5991, %v5992
        %v5994 = vrot.slane %v5993, 1
        %v5995 = vadd.f32 %v5993, %v5994
        %s5996 = vtos %v5995
        %s5997 = sadd.f32 %s5974, %s5996
        %s5998 = smul.f32 %s5997, 0.0009765625
        %v5999 = vstv %s5998
        %v6000 = vsub.f32 %v5493, %v5999
        %v6001 = vsub.f32 %v5494, %v5999
        %v6002 = vsub.f32 %v5960, %v5999
        %v6003 = vsub.f32 %v5961, %v5999
        %v6004 = vsub.f32 %v5962, %v5999
        %v6005 = vmul.f32 %v6000, %v6000
        %v6006 = vmul.f32 %v6001, %v6001
        %v6007 = vsel %vm1135, %v6005, 0.0
        %v6008 = vsel %vm1135, %v6006, 0.0
        %v6009 = vadd.f32 %v6007, %v6008
        %6010 = vadd.xlane.f32.xlu0 %v6009
        %v6011 = vpop.xlane.xlu0 %6010
        %v6012 = vrot.slane %v6011, 4
        %v6013 = vadd.f32 %v6011, %v6012
        %v6014 = vrot.slane %v6013, 2
        %v6015 = vadd.f32 %v6013, %v6014
        %v6016 = vrot.slane %v6015, 1
        %v6017 = vadd.f32 %v6015, %v6016
        %s6018 = vtos %v6017
        %v6019 = vmul.f32 %v6002, %v6002
        %v6020 = vmul.f32 %v6003, %v6003
        %v6021 = vmul.f32 %v6004, %v6004
        %v6025 = vrot.slane %v6019, 1
        %v6026 = vrot.slane %v6020, 1
        %v6027 = vsel %vm438, %v6025, %v6026
        %v6028 = vrot.slane %v6021, 1
        %v6029 = vsel %vm438, %v6026, %v6028
        %v6032 = vsel %vm1135, %v6027, 0.0
        %v6033 = vsel %vm1135, %v6029, 0.0
        %v6034 = vadd.f32 %v6032, %v6033
        %6035 = vadd.xlane.f32.xlu0 %v6034
        %v6036 = vpop.xlane.xlu0 %6035
        %v6037 = vrot.slane %v6036, 4
        %v6038 = vadd.f32 %v6036, %v6037
        %v6039 = vrot.slane %v6038, 2
        %v6040 = vadd.f32 %v6038, %v6039
        %v6041 = vrot.slane %v6040, 1
        %v6042 = vadd.f32 %v6040, %v6041
        %s6043 = vtos %v6042
        %s6044 = sadd.f32 %s6018, %s6043
        %s6045 = smul.f32 %s6044, 0.0009765625
        %s6046 = sadd.f32 %s6045, 1e-05
        %v6047 = vstv %s6046
        %v6048 = vrsqrt.pop %v6047
        %v6049 = vmul.f32 %v6048, %v6047
        %v6050 = vmul.f32 %v6049, %v6048
        %v6051 = vmul.f32 0.5, %v6050
        %v6052 = vsub.f32 1.5, %v6051
        %v6053 = vmul.f32 %v6048, %v6052
        %vm6054 = vweird.f32 %v6047
        %vm6055 = vweird.f32 %v6048
        %vm6056 = vmor %vm6054, %vm6055
        %v6057 = vsel %vm6056, %v6048, %v6053
        %s6058 = vtos %v6057
        %v6059 = vstv %s6058
        %v6060 = vmul.f32 %v6000, %v6059
        %v6061 = vmul.f32 %v6001, %v6059
        %v6062 = vmax.f32 %v6060, 0.0
        %v6063 = vmax.f32 %v6061, 0.0
        %s6064 = scalar_lea.vmem %s157, 80
        %6065 = vst.msk [vmem:[%s6064] sm:$0xff] %vm1135, %v6062
        %6066 = vst.msk [vmem:[%s6064 + $0x8] sm:$0xff] %vm1135, %v6063
        %v6067 = vmul.f32 %v6002, %v6059
        %v6068 = vmul.f32 %v6003, %v6059
        %v6069 = vmul.f32 %v6004, %v6059
        %v6070 = vmax.f32 %v6067, 0.0
        %v6071 = vmax.f32 %v6068, 0.0
        %v6072 = vmax.f32 %v6069, 0.0
        %6076 = vrot.lane.b32.xlu0 %v6070, 32
        %v6077 = vpop.permute.xlu0 %6076
        %6078 = vrot.lane.b32.xlu0 %v6071, 32
        %v6079 = vpop.permute.xlu0 %6078
        %6080 = vrot.lane.b32.xlu0 %v6072, 32
        %v6081 = vpop.permute.xlu0 %6080
        %6085 = vst.msk [vmem:[%s6064 - $0x1] sm:$0xfe] %vm1257, %v6077
        %6086 = vst.msk [vmem:[%s6064 + $0x7] sm:$0xff] %vm1259, %v6079
        %6087 = vst.msk [vmem:[%s6064 + $0xf] sm:$0x1] %vm1261, %v6081
        %s6088 = sld [smem:[#allocation2 + $0x6]]
        %v6089 = vstv %s6088
        %v6090 = vmul.f32 %v6089, %v286
        %v6091 = vmul.f32 %v6089, %v264
        %v6092 = vadd.f32 %v6090, 0.0
        %v6093 = vadd.f32 %v6091, 0.0
        %s6094 = sld [smem:[#allocation2 + $0xe]]
        %v6095 = vstv %s6094
        %v6096 = vmul.f32 %v6095, %v287
        %v6097 = vmul.f32 %v6095, %v267
        %v6098 = vadd.f32 %v6092, %v6096
        %v6099 = vadd.f32 %v6093, %v6097
        %s6100 = sld [smem:[#allocation2 + $0x16]]
        %v6101 = vstv %s6100
        %v6102 = vmul.f32 %v6101, %v288
        %v6103 = vmul.f32 %v6101, %v270
        %v6104 = vadd.f32 %v6098, %v6102
        %v6105 = vadd.f32 %v6099, %v6103
        %s6106 = sld [smem:[#allocation2 + $0x1e]]
        %v6107 = vstv %s6106
        %v6108 = vmul.f32 %v6107, %v289
        %v6109 = vmul.f32 %v6107, %v273
        %v6110 = vadd.f32 %v6104, %v6108
        %v6111 = vadd.f32 %v6105, %v6109
        %s6112 = sld [smem:[#allocation2 + $0x26]]
        %v6113 = vstv %s6112
        %v6114 = vmul.f32 %v6113, %v286
        %v6115 = vmul.f32 %v6113, %v264
        %6118 = vrot.lane.b32.xlu0 %v6114, 127
        %v6119 = vpop.permute.xlu0 %6118
        %6120 = vrot.lane.b32.xlu0 %v6115, 127
        %v6121 = vpop.permute.xlu0 %6120
        %v6124 = vadd.f32 %v6110, %v6119
        %v6125 = vadd.f32 %v6111, %v6121
        %s6126 = sld [smem:[#allocation2 + $0x2e]]
        %v6127 = vstv %s6126
        %v6128 = vmul.f32 %v6127, %v287
        %v6129 = vmul.f32 %v6127, %v267
        %6132 = vrot.lane.b32.xlu0 %v6128, 127
        %v6133 = vpop.permute.xlu0 %6132
        %6134 = vrot.lane.b32.xlu0 %v6129, 127
        %v6135 = vpop.permute.xlu0 %6134
        %v6138 = vadd.f32 %v6124, %v6133
        %v6139 = vadd.f32 %v6125, %v6135
        %s6140 = sld [smem:[#allocation2 + $0x36]]
        %v6141 = vstv %s6140
        %v6142 = vmul.f32 %v6141, %v288
        %v6143 = vmul.f32 %v6141, %v270
        %6146 = vrot.lane.b32.xlu0 %v6142, 127
        %v6147 = vpop.permute.xlu0 %6146
        %6148 = vrot.lane.b32.xlu0 %v6143, 127
        %v6149 = vpop.permute.xlu0 %6148
        %v6152 = vadd.f32 %v6138, %v6147
        %v6153 = vadd.f32 %v6139, %v6149
        %s6154 = sld [smem:[#allocation2 + $0x3e]]
        %v6155 = vstv %s6154
        %v6156 = vmul.f32 %v6155, %v289
        %v6157 = vmul.f32 %v6155, %v273
        %6160 = vrot.lane.b32.xlu0 %v6156, 127
        %v6161 = vpop.permute.xlu0 %6160
        %6162 = vrot.lane.b32.xlu0 %v6157, 127
        %v6163 = vpop.permute.xlu0 %6162
        %v6166 = vadd.f32 %v6152, %v6161
        %v6167 = vadd.f32 %v6153, %v6163
        %s6168 = sld [smem:[#allocation2 + $0x46]]
        %v6169 = vstv %s6168
        %v6170 = vmul.f32 %v6169, %v286
        %v6171 = vmul.f32 %v6169, %v264
        %6174 = vrot.lane.b32.xlu0 %v6170, 126
        %v6175 = vpop.permute.xlu0 %6174
        %6176 = vrot.lane.b32.xlu0 %v6171, 126
        %v6177 = vpop.permute.xlu0 %6176
        %v6180 = vadd.f32 %v6166, %v6175
        %v6181 = vadd.f32 %v6167, %v6177
        %s6182 = sld [smem:[#allocation2 + $0x4e]]
        %v6183 = vstv %s6182
        %v6184 = vmul.f32 %v6183, %v287
        %v6185 = vmul.f32 %v6183, %v267
        %6188 = vrot.lane.b32.xlu0 %v6184, 126
        %v6189 = vpop.permute.xlu0 %6188
        %6190 = vrot.lane.b32.xlu0 %v6185, 126
        %v6191 = vpop.permute.xlu0 %6190
        %v6194 = vadd.f32 %v6180, %v6189
        %v6195 = vadd.f32 %v6181, %v6191
        %s6196 = sld [smem:[#allocation2 + $0x56]]
        %v6197 = vstv %s6196
        %v6198 = vmul.f32 %v6197, %v288
        %v6199 = vmul.f32 %v6197, %v270
        %6202 = vrot.lane.b32.xlu0 %v6198, 126
        %v6203 = vpop.permute.xlu0 %6202
        %6204 = vrot.lane.b32.xlu0 %v6199, 126
        %v6205 = vpop.permute.xlu0 %6204
        %v6208 = vadd.f32 %v6194, %v6203
        %v6209 = vadd.f32 %v6195, %v6205
        %s6210 = sld [smem:[#allocation2 + $0x5e]]
        %v6211 = vstv %s6210
        %v6212 = vmul.f32 %v6211, %v289
        %v6213 = vmul.f32 %v6211, %v273
        %6216 = vrot.lane.b32.xlu0 %v6212, 126
        %v6217 = vpop.permute.xlu0 %6216
        %6218 = vrot.lane.b32.xlu0 %v6213, 126
        %v6219 = vpop.permute.xlu0 %6218
        %v6222 = vadd.f32 %v6208, %v6217
        %v6223 = vadd.f32 %v6209, %v6219
        %s6224 = sld [smem:[#allocation2 + $0x66]]
        %v6225 = vstv %s6224
        %v6226 = vmul.f32 %v6225, %v286
        %v6227 = vmul.f32 %v6225, %v264
        %v6228 = vmul.f32 %v6225, %v290
        %v6232 = vrot.slane %v6226, 1
        %v6233 = vrot.slane %v6227, 1
        %v6234 = vsel %vm438, %v6232, %v6233
        %v6235 = vrot.slane %v6228, 1
        %v6236 = vsel %vm438, %v6233, %v6235
        %v6239 = vadd.f32 %v6222, %v6234
        %v6240 = vadd.f32 %v6223, %v6236
        %s6241 = sld [smem:[#allocation2 + $0x6e]]
        %v6242 = vstv %s6241
        %v6243 = vmul.f32 %v6242, %v287
        %v6244 = vmul.f32 %v6242, %v267
        %v6245 = vmul.f32 %v6242, %v291
        %v6249 = vrot.slane %v6243, 1
        %v6250 = vrot.slane %v6244, 1
        %v6251 = vsel %vm438, %v6249, %v6250
        %v6252 = vrot.slane %v6245, 1
        %v6253 = vsel %vm438, %v6250, %v6252
        %v6256 = vadd.f32 %v6239, %v6251
        %v6257 = vadd.f32 %v6240, %v6253
        %s6258 = sld [smem:[#allocation2 + $0x76]]
        %v6259 = vstv %s6258
        %v6260 = vmul.f32 %v6259, %v288
        %v6261 = vmul.f32 %v6259, %v270
        %v6262 = vmul.f32 %v6259, %v292
        %v6266 = vrot.slane %v6260, 1
        %v6267 = vrot.slane %v6261, 1
        %v6268 = vsel %vm438, %v6266, %v6267
        %v6269 = vrot.slane %v6262, 1
        %v6270 = vsel %vm438, %v6267, %v6269
        %v6273 = vadd.f32 %v6256, %v6268
        %v6274 = vadd.f32 %v6257, %v6270
        %s6275 = sld [smem:[#allocation2 + $0x7e]]
        %v6276 = vstv %s6275
        %v6277 = vmul.f32 %v6276, %v289
        %v6278 = vmul.f32 %v6276, %v273
        %v6279 = vmul.f32 %v6276, %v293
        %v6283 = vrot.slane %v6277, 1
        %v6284 = vrot.slane %v6278, 1
        %v6285 = vsel %vm438, %v6283, %v6284
        %v6286 = vrot.slane %v6279, 1
        %v6287 = vsel %vm438, %v6284, %v6286
        %v6290 = vadd.f32 %v6273, %v6285
        %v6291 = vadd.f32 %v6274, %v6287
        %s6292 = sld [smem:[#allocation2 + $0x86]]
        %v6293 = vstv %s6292
        %v6294 = vmul.f32 %v6293, %v286
        %v6295 = vmul.f32 %v6293, %v264
        %v6296 = vmul.f32 %v6293, %v290
        %v6300 = vrot.slane %v6294, 1
        %v6301 = vrot.slane %v6295, 1
        %v6302 = vsel %vm438, %v6300, %v6301
        %v6303 = vrot.slane %v6296, 1
        %v6304 = vsel %vm438, %v6301, %v6303
        %6305 = vrot.lane.b32.xlu0 %v6302, 127
        %v6306 = vpop.permute.xlu0 %6305
        %6307 = vrot.lane.b32.xlu0 %v6304, 127
        %v6308 = vpop.permute.xlu0 %6307
        %v6311 = vadd.f32 %v6290, %v6306
        %v6312 = vadd.f32 %v6291, %v6308
        %s6313 = sld [smem:[#allocation2 + $0x8e]]
        %v6314 = vstv %s6313
        %v6315 = vmul.f32 %v6314, %v287
        %v6316 = vmul.f32 %v6314, %v267
        %v6317 = vmul.f32 %v6314, %v291
        %v6321 = vrot.slane %v6315, 1
        %v6322 = vrot.slane %v6316, 1
        %v6323 = vsel %vm438, %v6321, %v6322
        %v6324 = vrot.slane %v6317, 1
        %v6325 = vsel %vm438, %v6322, %v6324
        %6326 = vrot.lane.b32.xlu0 %v6323, 127
        %v6327 = vpop.permute.xlu0 %6326
        %6328 = vrot.lane.b32.xlu0 %v6325, 127
        %v6329 = vpop.permute.xlu0 %6328
        %v6332 = vadd.f32 %v6311, %v6327
        %v6333 = vadd.f32 %v6312, %v6329
        %s6334 = sld [smem:[#allocation2 + $0x96]]
        %v6335 = vstv %s6334
        %v6336 = vmul.f32 %v6335, %v288
        %v6337 = vmul.f32 %v6335, %v270
        %v6338 = vmul.f32 %v6335, %v292
        %v6342 = vrot.slane %v6336, 1
        %v6343 = vrot.slane %v6337, 1
        %v6344 = vsel %vm438, %v6342, %v6343
        %v6345 = vrot.slane %v6338, 1
        %v6346 = vsel %vm438, %v6343, %v6345
        %6347 = vrot.lane.b32.xlu0 %v6344, 127
        %v6348 = vpop.permute.xlu0 %6347
        %6349 = vrot.lane.b32.xlu0 %v6346, 127
        %v6350 = vpop.permute.xlu0 %6349
        %v6353 = vadd.f32 %v6332, %v6348
        %v6354 = vadd.f32 %v6333, %v6350
        %s6355 = sld [smem:[#allocation2 + $0x9e]]
        %v6356 = vstv %s6355
        %v6357 = vmul.f32 %v6356, %v289
        %v6358 = vmul.f32 %v6356, %v273
        %v6359 = vmul.f32 %v6356, %v293
        %v6363 = vrot.slane %v6357, 1
        %v6364 = vrot.slane %v6358, 1
        %v6365 = vsel %vm438, %v6363, %v6364
        %v6366 = vrot.slane %v6359, 1
        %v6367 = vsel %vm438, %v6364, %v6366
        %6368 = vrot.lane.b32.xlu0 %v6365, 127
        %v6369 = vpop.permute.xlu0 %6368
        %6370 = vrot.lane.b32.xlu0 %v6367, 127
        %v6371 = vpop.permute.xlu0 %6370
        %v6374 = vadd.f32 %v6353, %v6369
        %v6375 = vadd.f32 %v6354, %v6371
        %s6376 = sld [smem:[#allocation2 + $0xa6]]
        %v6377 = vstv %s6376
        %v6378 = vmul.f32 %v6377, %v286
        %v6379 = vmul.f32 %v6377, %v264
        %v6380 = vmul.f32 %v6377, %v290
        %v6384 = vrot.slane %v6378, 1
        %v6385 = vrot.slane %v6379, 1
        %v6386 = vsel %vm438, %v6384, %v6385
        %v6387 = vrot.slane %v6380, 1
        %v6388 = vsel %vm438, %v6385, %v6387
        %6389 = vrot.lane.b32.xlu0 %v6386, 126
        %v6390 = vpop.permute.xlu0 %6389
        %6391 = vrot.lane.b32.xlu0 %v6388, 126
        %v6392 = vpop.permute.xlu0 %6391
        %v6395 = vadd.f32 %v6374, %v6390
        %v6396 = vadd.f32 %v6375, %v6392
        %s6397 = sld [smem:[#allocation2 + $0xae]]
        %v6398 = vstv %s6397
        %v6399 = vmul.f32 %v6398, %v287
        %v6400 = vmul.f32 %v6398, %v267
        %v6401 = vmul.f32 %v6398, %v291
        %v6405 = vrot.slane %v6399, 1
        %v6406 = vrot.slane %v6400, 1
        %v6407 = vsel %vm438, %v6405, %v6406
        %v6408 = vrot.slane %v6401, 1
        %v6409 = vsel %vm438, %v6406, %v6408
        %6410 = vrot.lane.b32.xlu0 %v6407, 126
        %v6411 = vpop.permute.xlu0 %6410
        %6412 = vrot.lane.b32.xlu0 %v6409, 126
        %v6413 = vpop.permute.xlu0 %6412
        %v6416 = vadd.f32 %v6395, %v6411
        %v6417 = vadd.f32 %v6396, %v6413
        %s6418 = sld [smem:[#allocation2 + $0xb6]]
        %v6419 = vstv %s6418
        %v6420 = vmul.f32 %v6419, %v288
        %v6421 = vmul.f32 %v6419, %v270
        %v6422 = vmul.f32 %v6419, %v292
        %v6426 = vrot.slane %v6420, 1
        %v6427 = vrot.slane %v6421, 1
        %v6428 = vsel %vm438, %v6426, %v6427
        %v6429 = vrot.slane %v6422, 1
        %v6430 = vsel %vm438, %v6427, %v6429
        %6431 = vrot.lane.b32.xlu0 %v6428, 126
        %v6432 = vpop.permute.xlu0 %6431
        %6433 = vrot.lane.b32.xlu0 %v6430, 126
        %v6434 = vpop.permute.xlu0 %6433
        %v6437 = vadd.f32 %v6416, %v6432
        %v6438 = vadd.f32 %v6417, %v6434
        %s6439 = sld [smem:[#allocation2 + $0xbe]]
        %v6440 = vstv %s6439
        %v6441 = vmul.f32 %v6440, %v289
        %v6442 = vmul.f32 %v6440, %v273
        %v6443 = vmul.f32 %v6440, %v293
        %v6447 = vrot.slane %v6441, 1
        %v6448 = vrot.slane %v6442, 1
        %v6449 = vsel %vm438, %v6447, %v6448
        %v6450 = vrot.slane %v6443, 1
        %v6451 = vsel %vm438, %v6448, %v6450
        %6452 = vrot.lane.b32.xlu0 %v6449, 126
        %v6453 = vpop.permute.xlu0 %6452
        %6454 = vrot.lane.b32.xlu0 %v6451, 126
        %v6455 = vpop.permute.xlu0 %6454
        %v6458 = vadd.f32 %v6437, %v6453
        %v6459 = vadd.f32 %v6438, %v6455
        %s6460 = sld [smem:[#allocation2 + $0xc6]]
        %v6461 = vstv %s6460
        %v6462 = vmul.f32 %v6461, %v286
        %v6463 = vmul.f32 %v6461, %v264
        %v6464 = vmul.f32 %v6461, %v290
        %v6465 = vadd.f32 %v6462, 0.0
        %v6466 = vadd.f32 %v6463, 0.0
        %v6467 = vadd.f32 %v6464, 0.0
        %s6468 = sld [smem:[#allocation2 + $0xce]]
        %v6469 = vstv %s6468
        %v6470 = vmul.f32 %v6469, %v287
        %v6471 = vmul.f32 %v6469, %v267
        %v6472 = vmul.f32 %v6469, %v291
        %v6473 = vadd.f32 %v6465, %v6470
        %v6474 = vadd.f32 %v6466, %v6471
        %v6475 = vadd.f32 %v6467, %v6472
        %s6476 = sld [smem:[#allocation2 + $0xd6]]
        %v6477 = vstv %s6476
        %v6478 = vmul.f32 %v6477, %v288
        %v6479 = vmul.f32 %v6477, %v270
        %v6480 = vmul.f32 %v6477, %v292
        %v6481 = vadd.f32 %v6473, %v6478
        %v6482 = vadd.f32 %v6474, %v6479
        %v6483 = vadd.f32 %v6475, %v6480
        %s6484 = sld [smem:[#allocation2 + $0xde]]
        %v6485 = vstv %s6484
        %v6486 = vmul.f32 %v6485, %v289
        %v6487 = vmul.f32 %v6485, %v273
        %v6488 = vmul.f32 %v6485, %v293
        %v6489 = vadd.f32 %v6481, %v6486
        %v6490 = vadd.f32 %v6482, %v6487
        %v6491 = vadd.f32 %v6483, %v6488
        %s6492 = sld [smem:[#allocation2 + $0xe6]]
        %v6493 = vstv %s6492
        %v6494 = vmul.f32 %v6493, %v286
        %v6495 = vmul.f32 %v6493, %v264
        %v6496 = vmul.f32 %v6493, %v290
        %6500 = vrot.lane.b32.xlu0 %v6494, 127
        %v6501 = vpop.permute.xlu0 %6500
        %6502 = vrot.lane.b32.xlu0 %v6495, 127
        %v6503 = vpop.permute.xlu0 %6502
        %6504 = vrot.lane.b32.xlu0 %v6496, 127
        %v6505 = vpop.permute.xlu0 %6504
        %v6509 = vadd.f32 %v6489, %v6501
        %v6510 = vadd.f32 %v6490, %v6503
        %v6511 = vadd.f32 %v6491, %v6505
        %s6512 = sld [smem:[#allocation2 + $0xee]]
        %v6513 = vstv %s6512
        %v6514 = vmul.f32 %v6513, %v287
        %v6515 = vmul.f32 %v6513, %v267
        %v6516 = vmul.f32 %v6513, %v291
        %6520 = vrot.lane.b32.xlu0 %v6514, 127
        %v6521 = vpop.permute.xlu0 %6520
        %6522 = vrot.lane.b32.xlu0 %v6515, 127
        %v6523 = vpop.permute.xlu0 %6522
        %6524 = vrot.lane.b32.xlu0 %v6516, 127
        %v6525 = vpop.permute.xlu0 %6524
        %v6529 = vadd.f32 %v6509, %v6521
        %v6530 = vadd.f32 %v6510, %v6523
        %v6531 = vadd.f32 %v6511, %v6525
        %s6532 = sld [smem:[#allocation2 + $0xf6]]
        %v6533 = vstv %s6532
        %v6534 = vmul.f32 %v6533, %v288
        %v6535 = vmul.f32 %v6533, %v270
        %v6536 = vmul.f32 %v6533, %v292
        %6540 = vrot.lane.b32.xlu0 %v6534, 127
        %v6541 = vpop.permute.xlu0 %6540
        %6542 = vrot.lane.b32.xlu0 %v6535, 127
        %v6543 = vpop.permute.xlu0 %6542
        %6544 = vrot.lane.b32.xlu0 %v6536, 127
        %v6545 = vpop.permute.xlu0 %6544
        %v6549 = vadd.f32 %v6529, %v6541
        %v6550 = vadd.f32 %v6530, %v6543
        %v6551 = vadd.f32 %v6531, %v6545
        %s6552 = sld [smem:[#allocation2 + $0xfe]]
        %v6553 = vstv %s6552
        %v6554 = vmul.f32 %v6553, %v289
        %v6555 = vmul.f32 %v6553, %v273
        %v6556 = vmul.f32 %v6553, %v293
        %6560 = vrot.lane.b32.xlu0 %v6554, 127
        %v6561 = vpop.permute.xlu0 %6560
        %6562 = vrot.lane.b32.xlu0 %v6555, 127
        %v6563 = vpop.permute.xlu0 %6562
        %6564 = vrot.lane.b32.xlu0 %v6556, 127
        %v6565 = vpop.permute.xlu0 %6564
        %v6569 = vadd.f32 %v6549, %v6561
        %v6570 = vadd.f32 %v6550, %v6563
        %v6571 = vadd.f32 %v6551, %v6565
        %s6572 = sld [smem:[#allocation2 + $0x106]]
        %v6573 = vstv %s6572
        %v6574 = vmul.f32 %v6573, %v286
        %v6575 = vmul.f32 %v6573, %v264
        %v6576 = vmul.f32 %v6573, %v290
        %6580 = vrot.lane.b32.xlu0 %v6574, 126
        %v6581 = vpop.permute.xlu0 %6580
        %6582 = vrot.lane.b32.xlu0 %v6575, 126
        %v6583 = vpop.permute.xlu0 %6582
        %6584 = vrot.lane.b32.xlu0 %v6576, 126
        %v6585 = vpop.permute.xlu0 %6584
        %v6589 = vadd.f32 %v6569, %v6581
        %v6590 = vadd.f32 %v6570, %v6583
        %v6591 = vadd.f32 %v6571, %v6585
        %s6592 = sld [smem:[#allocation2 + $0x10e]]
        %v6593 = vstv %s6592
        %v6594 = vmul.f32 %v6593, %v287
        %v6595 = vmul.f32 %v6593, %v267
        %v6596 = vmul.f32 %v6593, %v291
        %6600 = vrot.lane.b32.xlu0 %v6594, 126
        %v6601 = vpop.permute.xlu0 %6600
        %6602 = vrot.lane.b32.xlu0 %v6595, 126
        %v6603 = vpop.permute.xlu0 %6602
        %6604 = vrot.lane.b32.xlu0 %v6596, 126
        %v6605 = vpop.permute.xlu0 %6604
        %v6609 = vadd.f32 %v6589, %v6601
        %v6610 = vadd.f32 %v6590, %v6603
        %v6611 = vadd.f32 %v6591, %v6605
        %s6612 = sld [smem:[#allocation2 + $0x116]]
        %v6613 = vstv %s6612
        %v6614 = vmul.f32 %v6613, %v288
        %v6615 = vmul.f32 %v6613, %v270
        %v6616 = vmul.f32 %v6613, %v292
        %6620 = vrot.lane.b32.xlu0 %v6614, 126
        %v6621 = vpop.permute.xlu0 %6620
        %6622 = vrot.lane.b32.xlu0 %v6615, 126
        %v6623 = vpop.permute.xlu0 %6622
        %6624 = vrot.lane.b32.xlu0 %v6616, 126
        %v6625 = vpop.permute.xlu0 %6624
        %v6629 = vadd.f32 %v6609, %v6621
        %v6630 = vadd.f32 %v6610, %v6623
        %v6631 = vadd.f32 %v6611, %v6625
        %s6632 = sld [smem:[#allocation2 + $0x11e]]
        %v6633 = vstv %s6632
        %v6634 = vmul.f32 %v6633, %v289
        %v6635 = vmul.f32 %v6633, %v273
        %v6636 = vmul.f32 %v6633, %v293
        %6640 = vrot.lane.b32.xlu0 %v6634, 126
        %v6641 = vpop.permute.xlu0 %6640
        %6642 = vrot.lane.b32.xlu0 %v6635, 126
        %v6643 = vpop.permute.xlu0 %6642
        %6644 = vrot.lane.b32.xlu0 %v6636, 126
        %v6645 = vpop.permute.xlu0 %6644
        %v6649 = vadd.f32 %v6629, %v6641
        %v6650 = vadd.f32 %v6630, %v6643
        %v6651 = vadd.f32 %v6631, %v6645
        %s6652 = sld [smem:[#allocation2 + $0x126]]
        %v6653 = vstv %s6652
        %v6654 = vmul.f32 %v6653, %v286
        %v6655 = vmul.f32 %v6653, %v264
        %v6656 = vmul.f32 %v6653, %v290
        %v6660 = vrot.slane %v6654, 1
        %v6661 = vrot.slane %v6655, 1
        %v6662 = vsel %vm438, %v6660, %v6661
        %v6663 = vrot.slane %v6656, 1
        %v6664 = vsel %vm438, %v6661, %v6663
        %v6668 = vadd.f32 %v6649, %v6662
        %v6669 = vadd.f32 %v6650, %v6664
        %v6670 = vadd.f32 %v6651, %v6663
        %s6671 = sld [smem:[#allocation2 + $0x12e]]
        %v6672 = vstv %s6671
        %v6673 = vmul.f32 %v6672, %v287
        %v6674 = vmul.f32 %v6672, %v267
        %v6675 = vmul.f32 %v6672, %v291
        %v6679 = vrot.slane %v6673, 1
        %v6680 = vrot.slane %v6674, 1
        %v6681 = vsel %vm438, %v6679, %v6680
        %v6682 = vrot.slane %v6675, 1
        %v6683 = vsel %vm438, %v6680, %v6682
        %v6687 = vadd.f32 %v6668, %v6681
        %v6688 = vadd.f32 %v6669, %v6683
        %v6689 = vadd.f32 %v6670, %v6682
        %s6690 = sld [smem:[#allocation2 + $0x136]]
        %v6691 = vstv %s6690
        %v6692 = vmul.f32 %v6691, %v288
        %v6693 = vmul.f32 %v6691, %v270
        %v6694 = vmul.f32 %v6691, %v292
        %v6698 = vrot.slane %v6692, 1
        %v6699 = vrot.slane %v6693, 1
        %v6700 = vsel %vm438, %v6698, %v6699
        %v6701 = vrot.slane %v6694, 1
        %v6702 = vsel %vm438, %v6699, %v6701
        %v6706 = vadd.f32 %v6687, %v6700
        %v6707 = vadd.f32 %v6688, %v6702
        %v6708 = vadd.f32 %v6689, %v6701
        %s6709 = sld [smem:[#allocation2 + $0x13e]]
        %v6710 = vstv %s6709
        %v6711 = vmul.f32 %v6710, %v289
        %v6712 = vmul.f32 %v6710, %v273
        %v6713 = vmul.f32 %v6710, %v293
        %v6717 = vrot.slane %v6711, 1
        %v6718 = vrot.slane %v6712, 1
        %v6719 = vsel %vm438, %v6717, %v6718
        %v6720 = vrot.slane %v6713, 1
        %v6721 = vsel %vm438, %v6718, %v6720
        %v6725 = vadd.f32 %v6706, %v6719
        %v6726 = vadd.f32 %v6707, %v6721
        %v6727 = vadd.f32 %v6708, %v6720
        %s6728 = sld [smem:[#allocation2 + $0x146]]
        %v6729 = vstv %s6728
        %v6730 = vmul.f32 %v6729, %v286
        %v6731 = vmul.f32 %v6729, %v264
        %v6732 = vmul.f32 %v6729, %v290
        %v6736 = vrot.slane %v6730, 1
        %v6737 = vrot.slane %v6731, 1
        %v6738 = vsel %vm438, %v6736, %v6737
        %v6739 = vrot.slane %v6732, 1
        %v6740 = vsel %vm438, %v6737, %v6739
        %6741 = vrot.lane.b32.xlu0 %v6738, 127
        %v6742 = vpop.permute.xlu0 %6741
        %6743 = vrot.lane.b32.xlu0 %v6740, 127
        %v6744 = vpop.permute.xlu0 %6743
        %6745 = vrot.lane.b32.xlu0 %v6739, 127
        %v6746 = vpop.permute.xlu0 %6745
        %v6750 = vadd.f32 %v6725, %v6742
        %v6751 = vadd.f32 %v6726, %v6744
        %v6752 = vadd.f32 %v6727, %v6746
        %s6753 = sld [smem:[#allocation2 + $0x14e]]
        %v6754 = vstv %s6753
        %v6755 = vmul.f32 %v6754, %v287
        %v6756 = vmul.f32 %v6754, %v267
        %v6757 = vmul.f32 %v6754, %v291
        %v6761 = vrot.slane %v6755, 1
        %v6762 = vrot.slane %v6756, 1
        %v6763 = vsel %vm438, %v6761, %v6762
        %v6764 = vrot.slane %v6757, 1
        %v6765 = vsel %vm438, %v6762, %v6764
        %6766 = vrot.lane.b32.xlu0 %v6763, 127
        %v6767 = vpop.permute.xlu0 %6766
        %6768 = vrot.lane.b32.xlu0 %v6765, 127
        %v6769 = vpop.permute.xlu0 %6768
        %6770 = vrot.lane.b32.xlu0 %v6764, 127
        %v6771 = vpop.permute.xlu0 %6770
        %v6775 = vadd.f32 %v6750, %v6767
        %v6776 = vadd.f32 %v6751, %v6769
        %v6777 = vadd.f32 %v6752, %v6771
        %s6778 = sld [smem:[#allocation2 + $0x156]]
        %v6779 = vstv %s6778
        %v6780 = vmul.f32 %v6779, %v288
        %v6781 = vmul.f32 %v6779, %v270
        %v6782 = vmul.f32 %v6779, %v292
        %v6786 = vrot.slane %v6780, 1
        %v6787 = vrot.slane %v6781, 1
        %v6788 = vsel %vm438, %v6786, %v6787
        %v6789 = vrot.slane %v6782, 1
        %v6790 = vsel %vm438, %v6787, %v6789
        %6791 = vrot.lane.b32.xlu0 %v6788, 127
        %v6792 = vpop.permute.xlu0 %6791
        %6793 = vrot.lane.b32.xlu0 %v6790, 127
        %v6794 = vpop.permute.xlu0 %6793
        %6795 = vrot.lane.b32.xlu0 %v6789, 127
        %v6796 = vpop.permute.xlu0 %6795
        %v6800 = vadd.f32 %v6775, %v6792
        %v6801 = vadd.f32 %v6776, %v6794
        %v6802 = vadd.f32 %v6777, %v6796
        %s6803 = sld [smem:[#allocation2 + $0x15e]]
        %v6804 = vstv %s6803
        %v6805 = vmul.f32 %v6804, %v289
        %v6806 = vmul.f32 %v6804, %v273
        %v6807 = vmul.f32 %v6804, %v293
        %v6811 = vrot.slane %v6805, 1
        %v6812 = vrot.slane %v6806, 1
        %v6813 = vsel %vm438, %v6811, %v6812
        %v6814 = vrot.slane %v6807, 1
        %v6815 = vsel %vm438, %v6812, %v6814
        %6816 = vrot.lane.b32.xlu0 %v6813, 127
        %v6817 = vpop.permute.xlu0 %6816
        %6818 = vrot.lane.b32.xlu0 %v6815, 127
        %v6819 = vpop.permute.xlu0 %6818
        %6820 = vrot.lane.b32.xlu0 %v6814, 127
        %v6821 = vpop.permute.xlu0 %6820
        %v6825 = vadd.f32 %v6800, %v6817
        %v6826 = vadd.f32 %v6801, %v6819
        %v6827 = vadd.f32 %v6802, %v6821
        %s6828 = sld [smem:[#allocation2 + $0x166]]
        %v6829 = vstv %s6828
        %v6830 = vmul.f32 %v6829, %v286
        %v6831 = vmul.f32 %v6829, %v264
        %v6832 = vmul.f32 %v6829, %v290
        %v6836 = vrot.slane %v6830, 1
        %v6837 = vrot.slane %v6831, 1
        %v6838 = vsel %vm438, %v6836, %v6837
        %v6839 = vrot.slane %v6832, 1
        %v6840 = vsel %vm438, %v6837, %v6839
        %6841 = vrot.lane.b32.xlu0 %v6838, 126
        %v6842 = vpop.permute.xlu0 %6841
        %6843 = vrot.lane.b32.xlu0 %v6840, 126
        %v6844 = vpop.permute.xlu0 %6843
        %6845 = vrot.lane.b32.xlu0 %v6839, 126
        %v6846 = vpop.permute.xlu0 %6845
        %v6850 = vadd.f32 %v6825, %v6842
        %v6851 = vadd.f32 %v6826, %v6844
        %v6852 = vadd.f32 %v6827, %v6846
        %s6853 = sld [smem:[#allocation2 + $0x16e]]
        %v6854 = vstv %s6853
        %v6855 = vmul.f32 %v6854, %v287
        %v6856 = vmul.f32 %v6854, %v267
        %v6857 = vmul.f32 %v6854, %v291
        %v6861 = vrot.slane %v6855, 1
        %v6862 = vrot.slane %v6856, 1
        %v6863 = vsel %vm438, %v6861, %v6862
        %v6864 = vrot.slane %v6857, 1
        %v6865 = vsel %vm438, %v6862, %v6864
        %6866 = vrot.lane.b32.xlu0 %v6863, 126
        %v6867 = vpop.permute.xlu0 %6866
        %6868 = vrot.lane.b32.xlu0 %v6865, 126
        %v6869 = vpop.permute.xlu0 %6868
        %6870 = vrot.lane.b32.xlu0 %v6864, 126
        %v6871 = vpop.permute.xlu0 %6870
        %v6875 = vadd.f32 %v6850, %v6867
        %v6876 = vadd.f32 %v6851, %v6869
        %v6877 = vadd.f32 %v6852, %v6871
        %s6878 = sld [smem:[#allocation2 + $0x176]]
        %v6879 = vstv %s6878
        %v6880 = vmul.f32 %v6879, %v288
        %v6881 = vmul.f32 %v6879, %v270
        %v6882 = vmul.f32 %v6879, %v292
        %v6886 = vrot.slane %v6880, 1
        %v6887 = vrot.slane %v6881, 1
        %v6888 = vsel %vm438, %v6886, %v6887
        %v6889 = vrot.slane %v6882, 1
        %v6890 = vsel %vm438, %v6887, %v6889
        %6891 = vrot.lane.b32.xlu0 %v6888, 126
        %v6892 = vpop.permute.xlu0 %6891
        %6893 = vrot.lane.b32.xlu0 %v6890, 126
        %v6894 = vpop.permute.xlu0 %6893
        %6895 = vrot.lane.b32.xlu0 %v6889, 126
        %v6896 = vpop.permute.xlu0 %6895
        %v6900 = vadd.f32 %v6875, %v6892
        %v6901 = vadd.f32 %v6876, %v6894
        %v6902 = vadd.f32 %v6877, %v6896
        %s6903 = sld [smem:[#allocation2 + $0x17e]]
        %v6904 = vstv %s6903
        %v6905 = vmul.f32 %v6904, %v289
        %v6906 = vmul.f32 %v6904, %v273
        %v6907 = vmul.f32 %v6904, %v293
        %v6911 = vrot.slane %v6905, 1
        %v6912 = vrot.slane %v6906, 1
        %v6913 = vsel %vm438, %v6911, %v6912
        %v6914 = vrot.slane %v6907, 1
        %v6915 = vsel %vm438, %v6912, %v6914
        %6916 = vrot.lane.b32.xlu0 %v6913, 126
        %v6917 = vpop.permute.xlu0 %6916
        %6918 = vrot.lane.b32.xlu0 %v6915, 126
        %v6919 = vpop.permute.xlu0 %6918
        %6920 = vrot.lane.b32.xlu0 %v6914, 126
        %v6921 = vpop.permute.xlu0 %6920
        %v6925 = vadd.f32 %v6900, %v6917
        %v6926 = vadd.f32 %v6901, %v6919
        %v6927 = vadd.f32 %v6902, %v6921
        %v6928 = vsel %vm1135, %v6458, 0.0
        %v6929 = vsel %vm1135, %v6459, 0.0
        %v6930 = vadd.f32 %v6928, %v6929
        %6931 = vadd.xlane.f32.xlu0 %v6930
        %v6932 = vpop.xlane.xlu0 %6931
        %v6933 = vrot.slane %v6932, 4
        %v6934 = vadd.f32 %v6932, %v6933
        %v6935 = vrot.slane %v6934, 2
        %v6936 = vadd.f32 %v6934, %v6935
        %v6937 = vrot.slane %v6936, 1
        %v6938 = vadd.f32 %v6936, %v6937
        %s6939 = vtos %v6938
        %v6943 = vrot.slane %v6925, 1
        %v6944 = vrot.slane %v6926, 1
        %v6945 = vsel %vm438, %v6943, %v6944
        %v6946 = vrot.slane %v6927, 1
        %v6947 = vsel %vm438, %v6944, %v6946
        %v6950 = vsel %vm1135, %v6945, 0.0
        %v6951 = vsel %vm1135, %v6947, 0.0
        %v6952 = vadd.f32 %v6950, %v6951
        %6953 = vadd.xlane.f32.xlu0 %v6952
        %v6954 = vpop.xlane.xlu0 %6953
        %v6955 = vrot.slane %v6954, 4
        %v6956 = vadd.f32 %v6954, %v6955
        %v6957 = vrot.slane %v6956, 2
        %v6958 = vadd.f32 %v6956, %v6957
        %v6959 = vrot.slane %v6958, 1
        %v6960 = vadd.f32 %v6958, %v6959
        %s6961 = vtos %v6960
        %s6962 = sadd.f32 %s6939, %s6961
        %s6963 = smul.f32 %s6962, 0.0009765625
        %v6964 = vstv %s6963
        %v6965 = vsub.f32 %v6458, %v6964
        %v6966 = vsub.f32 %v6459, %v6964
        %v6967 = vsub.f32 %v6925, %v6964
        %v6968 = vsub.f32 %v6926, %v6964
        %v6969 = vsub.f32 %v6927, %v6964
        %v6970 = vmul.f32 %v6965, %v6965
        %v6971 = vmul.f32 %v6966, %v6966
        %v6972 = vsel %vm1135, %v6970, 0.0
        %v6973 = vsel %vm1135, %v6971, 0.0
        %v6974 = vadd.f32 %v6972, %v6973
        %6975 = vadd.xlane.f32.xlu0 %v6974
        %v6976 = vpop.xlane.xlu0 %6975
        %v6977 = vrot.slane %v6976, 4
        %v6978 = vadd.f32 %v6976, %v6977
        %v6979 = vrot.slane %v6978, 2
        %v6980 = vadd.f32 %v6978, %v6979
        %v6981 = vrot.slane %v6980, 1
        %v6982 = vadd.f32 %v6980, %v6981
        %s6983 = vtos %v6982
        %v6984 = vmul.f32 %v6967, %v6967
        %v6985 = vmul.f32 %v6968, %v6968
        %v6986 = vmul.f32 %v6969, %v6969
        %v6990 = vrot.slane %v6984, 1
        %v6991 = vrot.slane %v6985, 1
        %v6992 = vsel %vm438, %v6990, %v6991
        %v6993 = vrot.slane %v6986, 1
        %v6994 = vsel %vm438, %v6991, %v6993
        %v6997 = vsel %vm1135, %v6992, 0.0
        %v6998 = vsel %vm1135, %v6994, 0.0
        %v6999 = vadd.f32 %v6997, %v6998
        %7000 = vadd.xlane.f32.xlu0 %v6999
        %v7001 = vpop.xlane.xlu0 %7000
        %v7002 = vrot.slane %v7001, 4
        %v7003 = vadd.f32 %v7001, %v7002
        %v7004 = vrot.slane %v7003, 2
        %v7005 = vadd.f32 %v7003, %v7004
        %v7006 = vrot.slane %v7005, 1
        %v7007 = vadd.f32 %v7005, %v7006
        %s7008 = vtos %v7007
        %s7009 = sadd.f32 %s6983, %s7008
        %s7010 = smul.f32 %s7009, 0.0009765625
        %s7011 = sadd.f32 %s7010, 1e-05
        %v7012 = vstv %s7011
        %v7013 = vrsqrt.pop %v7012
        %v7014 = vmul.f32 %v7013, %v7012
        %v7015 = vmul.f32 %v7014, %v7013
        %v7016 = vmul.f32 0.5, %v7015
        %v7017 = vsub.f32 1.5, %v7016
        %v7018 = vmul.f32 %v7013, %v7017
        %vm7019 = vweird.f32 %v7012
        %vm7020 = vweird.f32 %v7013
        %vm7021 = vmor %vm7019, %vm7020
        %v7022 = vsel %vm7021, %v7013, %v7018
        %s7023 = vtos %v7022
        %v7024 = vstv %s7023
        %v7025 = vmul.f32 %v6965, %v7024
        %v7026 = vmul.f32 %v6966, %v7024
        %v7027 = vmax.f32 %v7025, 0.0
        %v7028 = vmax.f32 %v7026, 0.0
        %s7029 = scalar_lea.vmem %s157, 96
        %7030 = vst.msk [vmem:[%s7029] sm:$0xff] %vm1135, %v7027
        %7031 = vst.msk [vmem:[%s7029 + $0x8] sm:$0xff] %vm1135, %v7028
        %v7032 = vmul.f32 %v6967, %v7024
        %v7033 = vmul.f32 %v6968, %v7024
        %v7034 = vmul.f32 %v6969, %v7024
        %v7035 = vmax.f32 %v7032, 0.0
        %v7036 = vmax.f32 %v7033, 0.0
        %v7037 = vmax.f32 %v7034, 0.0
        %7041 = vrot.lane.b32.xlu0 %v7035, 32
        %v7042 = vpop.permute.xlu0 %7041
        %7043 = vrot.lane.b32.xlu0 %v7036, 32
        %v7044 = vpop.permute.xlu0 %7043
        %7045 = vrot.lane.b32.xlu0 %v7037, 32
        %v7046 = vpop.permute.xlu0 %7045
        %7050 = vst.msk [vmem:[%s7029 - $0x1] sm:$0xfe] %vm1257, %v7042
        %7051 = vst.msk [vmem:[%s7029 + $0x7] sm:$0xff] %vm1259, %v7044
        %7052 = vst.msk [vmem:[%s7029 + $0xf] sm:$0x1] %vm1261, %v7046
        %s7053 = sld [smem:[#allocation2 + $0x7]]
        %v7054 = vstv %s7053
        %v7055 = vmul.f32 %v7054, %v286
        %v7056 = vmul.f32 %v7054, %v264
        %v7057 = vadd.f32 %v7055, 0.0
        %v7058 = vadd.f32 %v7056, 0.0
        %s7059 = sld [smem:[#allocation2 + $0xf]]
        %v7060 = vstv %s7059
        %v7061 = vmul.f32 %v7060, %v287
        %v7062 = vmul.f32 %v7060, %v267
        %v7063 = vadd.f32 %v7057, %v7061
        %v7064 = vadd.f32 %v7058, %v7062
        %s7065 = sld [smem:[#allocation2 + $0x17]]
        %v7066 = vstv %s7065
        %v7067 = vmul.f32 %v7066, %v288
        %v7068 = vmul.f32 %v7066, %v270
        %v7069 = vadd.f32 %v7063, %v7067
        %v7070 = vadd.f32 %v7064, %v7068
        %s7071 = sld [smem:[#allocation2 + $0x1f]]
        %v7072 = vstv %s7071
        %v7073 = vmul.f32 %v7072, %v289
        %v7074 = vmul.f32 %v7072, %v273
        %v7075 = vadd.f32 %v7069, %v7073
        %v7076 = vadd.f32 %v7070, %v7074
        %s7077 = sld [smem:[#allocation2 + $0x27]]
        %v7078 = vstv %s7077
        %v7079 = vmul.f32 %v7078, %v286
        %v7080 = vmul.f32 %v7078, %v264
        %7083 = vrot.lane.b32.xlu0 %v7079, 127
        %v7084 = vpop.permute.xlu0 %7083
        %7085 = vrot.lane.b32.xlu0 %v7080, 127
        %v7086 = vpop.permute.xlu0 %7085
        %v7089 = vadd.f32 %v7075, %v7084
        %v7090 = vadd.f32 %v7076, %v7086
        %s7091 = sld [smem:[#allocation2 + $0x2f]]
        %v7092 = vstv %s7091
        %v7093 = vmul.f32 %v7092, %v287
        %v7094 = vmul.f32 %v7092, %v267
        %7097 = vrot.lane.b32.xlu0 %v7093, 127
        %v7098 = vpop.permute.xlu0 %7097
        %7099 = vrot.lane.b32.xlu0 %v7094, 127
        %v7100 = vpop.permute.xlu0 %7099
        %v7103 = vadd.f32 %v7089, %v7098
        %v7104 = vadd.f32 %v7090, %v7100
        %s7105 = sld [smem:[#allocation2 + $0x37]]
        %v7106 = vstv %s7105
        %v7107 = vmul.f32 %v7106, %v288
        %v7108 = vmul.f32 %v7106, %v270
        %7111 = vrot.lane.b32.xlu0 %v7107, 127
        %v7112 = vpop.permute.xlu0 %7111
        %7113 = vrot.lane.b32.xlu0 %v7108, 127
        %v7114 = vpop.permute.xlu0 %7113
        %v7117 = vadd.f32 %v7103, %v7112
        %v7118 = vadd.f32 %v7104, %v7114
        %s7119 = sld [smem:[#allocation2 + $0x3f]]
        %v7120 = vstv %s7119
        %v7121 = vmul.f32 %v7120, %v289
        %v7122 = vmul.f32 %v7120, %v273
        %7125 = vrot.lane.b32.xlu0 %v7121, 127
        %v7126 = vpop.permute.xlu0 %7125
        %7127 = vrot.lane.b32.xlu0 %v7122, 127
        %v7128 = vpop.permute.xlu0 %7127
        %v7131 = vadd.f32 %v7117, %v7126
        %v7132 = vadd.f32 %v7118, %v7128
        %s7133 = sld [smem:[#allocation2 + $0x47]]
        %v7134 = vstv %s7133
        %v7135 = vmul.f32 %v7134, %v286
        %v7136 = vmul.f32 %v7134, %v264
        %7139 = vrot.lane.b32.xlu0 %v7135, 126
        %v7140 = vpop.permute.xlu0 %7139
        %7141 = vrot.lane.b32.xlu0 %v7136, 126
        %v7142 = vpop.permute.xlu0 %7141
        %v7145 = vadd.f32 %v7131, %v7140
        %v7146 = vadd.f32 %v7132, %v7142
        %s7147 = sld [smem:[#allocation2 + $0x4f]]
        %v7148 = vstv %s7147
        %v7149 = vmul.f32 %v7148, %v287
        %v7150 = vmul.f32 %v7148, %v267
        %7153 = vrot.lane.b32.xlu0 %v7149, 126
        %v7154 = vpop.permute.xlu0 %7153
        %7155 = vrot.lane.b32.xlu0 %v7150, 126
        %v7156 = vpop.permute.xlu0 %7155
        %v7159 = vadd.f32 %v7145, %v7154
        %v7160 = vadd.f32 %v7146, %v7156
        %s7161 = sld [smem:[#allocation2 + $0x57]]
        %v7162 = vstv %s7161
        %v7163 = vmul.f32 %v7162, %v288
        %v7164 = vmul.f32 %v7162, %v270
        %7167 = vrot.lane.b32.xlu0 %v7163, 126
        %v7168 = vpop.permute.xlu0 %7167
        %7169 = vrot.lane.b32.xlu0 %v7164, 126
        %v7170 = vpop.permute.xlu0 %7169
        %v7173 = vadd.f32 %v7159, %v7168
        %v7174 = vadd.f32 %v7160, %v7170
        %s7175 = sld [smem:[#allocation2 + $0x5f]]
        %v7176 = vstv %s7175
        %v7177 = vmul.f32 %v7176, %v289
        %v7178 = vmul.f32 %v7176, %v273
        %7181 = vrot.lane.b32.xlu0 %v7177, 126
        %v7182 = vpop.permute.xlu0 %7181
        %7183 = vrot.lane.b32.xlu0 %v7178, 126
        %v7184 = vpop.permute.xlu0 %7183
        %v7187 = vadd.f32 %v7173, %v7182
        %v7188 = vadd.f32 %v7174, %v7184
        %s7189 = sld [smem:[#allocation2 + $0x67]]
        %v7190 = vstv %s7189
        %v7191 = vmul.f32 %v7190, %v286
        %v7192 = vmul.f32 %v7190, %v264
        %v7193 = vmul.f32 %v7190, %v290
        %v7197 = vrot.slane %v7191, 1
        %v7198 = vrot.slane %v7192, 1
        %v7199 = vsel %vm438, %v7197, %v7198
        %v7200 = vrot.slane %v7193, 1
        %v7201 = vsel %vm438, %v7198, %v7200
        %v7204 = vadd.f32 %v7187, %v7199
        %v7205 = vadd.f32 %v7188, %v7201
        %s7206 = sld [smem:[#allocation2 + $0x6f]]
        %v7207 = vstv %s7206
        %v7208 = vmul.f32 %v7207, %v287
        %v7209 = vmul.f32 %v7207, %v267
        %v7210 = vmul.f32 %v7207, %v291
        %v7214 = vrot.slane %v7208, 1
        %v7215 = vrot.slane %v7209, 1
        %v7216 = vsel %vm438, %v7214, %v7215
        %v7217 = vrot.slane %v7210, 1
        %v7218 = vsel %vm438, %v7215, %v7217
        %v7221 = vadd.f32 %v7204, %v7216
        %v7222 = vadd.f32 %v7205, %v7218
        %s7223 = sld [smem:[#allocation2 + $0x77]]
        %v7224 = vstv %s7223
        %v7225 = vmul.f32 %v7224, %v288
        %v7226 = vmul.f32 %v7224, %v270
        %v7227 = vmul.f32 %v7224, %v292
        %v7231 = vrot.slane %v7225, 1
        %v7232 = vrot.slane %v7226, 1
        %v7233 = vsel %vm438, %v7231, %v7232
        %v7234 = vrot.slane %v7227, 1
        %v7235 = vsel %vm438, %v7232, %v7234
        %v7238 = vadd.f32 %v7221, %v7233
        %v7239 = vadd.f32 %v7222, %v7235
        %s7240 = sld [smem:[#allocation2 + $0x7f]]
        %v7241 = vstv %s7240
        %v7242 = vmul.f32 %v7241, %v289
        %v7243 = vmul.f32 %v7241, %v273
        %v7244 = vmul.f32 %v7241, %v293
        %v7248 = vrot.slane %v7242, 1
        %v7249 = vrot.slane %v7243, 1
        %v7250 = vsel %vm438, %v7248, %v7249
        %v7251 = vrot.slane %v7244, 1
        %v7252 = vsel %vm438, %v7249, %v7251
        %v7255 = vadd.f32 %v7238, %v7250
        %v7256 = vadd.f32 %v7239, %v7252
        %s7257 = sld [smem:[#allocation2 + $0x87]]
        %v7258 = vstv %s7257
        %v7259 = vmul.f32 %v7258, %v286
        %v7260 = vmul.f32 %v7258, %v264
        %v7261 = vmul.f32 %v7258, %v290
        %v7265 = vrot.slane %v7259, 1
        %v7266 = vrot.slane %v7260, 1
        %v7267 = vsel %vm438, %v7265, %v7266
        %v7268 = vrot.slane %v7261, 1
        %v7269 = vsel %vm438, %v7266, %v7268
        %7270 = vrot.lane.b32.xlu0 %v7267, 127
        %v7271 = vpop.permute.xlu0 %7270
        %7272 = vrot.lane.b32.xlu0 %v7269, 127
        %v7273 = vpop.permute.xlu0 %7272
        %v7276 = vadd.f32 %v7255, %v7271
        %v7277 = vadd.f32 %v7256, %v7273
        %s7278 = sld [smem:[#allocation2 + $0x8f]]
        %v7279 = vstv %s7278
        %v7280 = vmul.f32 %v7279, %v287
        %v7281 = vmul.f32 %v7279, %v267
        %v7282 = vmul.f32 %v7279, %v291
        %v7286 = vrot.slane %v7280, 1
        %v7287 = vrot.slane %v7281, 1
        %v7288 = vsel %vm438, %v7286, %v7287
        %v7289 = vrot.slane %v7282, 1
        %v7290 = vsel %vm438, %v7287, %v7289
        %7291 = vrot.lane.b32.xlu0 %v7288, 127
        %v7292 = vpop.permute.xlu0 %7291
        %7293 = vrot.lane.b32.xlu0 %v7290, 127
        %v7294 = vpop.permute.xlu0 %7293
        %v7297 = vadd.f32 %v7276, %v7292
        %v7298 = vadd.f32 %v7277, %v7294
        %s7299 = sld [smem:[#allocation2 + $0x97]]
        %v7300 = vstv %s7299
        %v7301 = vmul.f32 %v7300, %v288
        %v7302 = vmul.f32 %v7300, %v270
        %v7303 = vmul.f32 %v7300, %v292
        %v7307 = vrot.slane %v7301, 1
        %v7308 = vrot.slane %v7302, 1
        %v7309 = vsel %vm438, %v7307, %v7308
        %v7310 = vrot.slane %v7303, 1
        %v7311 = vsel %vm438, %v7308, %v7310
        %7312 = vrot.lane.b32.xlu0 %v7309, 127
        %v7313 = vpop.permute.xlu0 %7312
        %7314 = vrot.lane.b32.xlu0 %v7311, 127
        %v7315 = vpop.permute.xlu0 %7314
        %v7318 = vadd.f32 %v7297, %v7313
        %v7319 = vadd.f32 %v7298, %v7315
        %s7320 = sld [smem:[#allocation2 + $0x9f]]
        %v7321 = vstv %s7320
        %v7322 = vmul.f32 %v7321, %v289
        %v7323 = vmul.f32 %v7321, %v273
        %v7324 = vmul.f32 %v7321, %v293
        %v7328 = vrot.slane %v7322, 1
        %v7329 = vrot.slane %v7323, 1
        %v7330 = vsel %vm438, %v7328, %v7329
        %v7331 = vrot.slane %v7324, 1
        %v7332 = vsel %vm438, %v7329, %v7331
        %7333 = vrot.lane.b32.xlu0 %v7330, 127
        %v7334 = vpop.permute.xlu0 %7333
        %7335 = vrot.lane.b32.xlu0 %v7332, 127
        %v7336 = vpop.permute.xlu0 %7335
        %v7339 = vadd.f32 %v7318, %v7334
        %v7340 = vadd.f32 %v7319, %v7336
        %s7341 = sld [smem:[#allocation2 + $0xa7]]
        %v7342 = vstv %s7341
        %v7343 = vmul.f32 %v7342, %v286
        %v7344 = vmul.f32 %v7342, %v264
        %v7345 = vmul.f32 %v7342, %v290
        %v7349 = vrot.slane %v7343, 1
        %v7350 = vrot.slane %v7344, 1
        %v7351 = vsel %vm438, %v7349, %v7350
        %v7352 = vrot.slane %v7345, 1
        %v7353 = vsel %vm438, %v7350, %v7352
        %7354 = vrot.lane.b32.xlu0 %v7351, 126
        %v7355 = vpop.permute.xlu0 %7354
        %7356 = vrot.lane.b32.xlu0 %v7353, 126
        %v7357 = vpop.permute.xlu0 %7356
        %v7360 = vadd.f32 %v7339, %v7355
        %v7361 = vadd.f32 %v7340, %v7357
        %s7362 = sld [smem:[#allocation2 + $0xaf]]
        %v7363 = vstv %s7362
        %v7364 = vmul.f32 %v7363, %v287
        %v7365 = vmul.f32 %v7363, %v267
        %v7366 = vmul.f32 %v7363, %v291
        %v7370 = vrot.slane %v7364, 1
        %v7371 = vrot.slane %v7365, 1
        %v7372 = vsel %vm438, %v7370, %v7371
        %v7373 = vrot.slane %v7366, 1
        %v7374 = vsel %vm438, %v7371, %v7373
        %7375 = vrot.lane.b32.xlu0 %v7372, 126
        %v7376 = vpop.permute.xlu0 %7375
        %7377 = vrot.lane.b32.xlu0 %v7374, 126
        %v7378 = vpop.permute.xlu0 %7377
        %v7381 = vadd.f32 %v7360, %v7376
        %v7382 = vadd.f32 %v7361, %v7378
        %s7383 = sld [smem:[#allocation2 + $0xb7]]
        %v7384 = vstv %s7383
        %v7385 = vmul.f32 %v7384, %v288
        %v7386 = vmul.f32 %v7384, %v270
        %v7387 = vmul.f32 %v7384, %v292
        %v7391 = vrot.slane %v7385, 1
        %v7392 = vrot.slane %v7386, 1
        %v7393 = vsel %vm438, %v7391, %v7392
        %v7394 = vrot.slane %v7387, 1
        %v7395 = vsel %vm438, %v7392, %v7394
        %7396 = vrot.lane.b32.xlu0 %v7393, 126
        %v7397 = vpop.permute.xlu0 %7396
        %7398 = vrot.lane.b32.xlu0 %v7395, 126
        %v7399 = vpop.permute.xlu0 %7398
        %v7402 = vadd.f32 %v7381, %v7397
        %v7403 = vadd.f32 %v7382, %v7399
        %s7404 = sld [smem:[#allocation2 + $0xbf]]
        %v7405 = vstv %s7404
        %v7406 = vmul.f32 %v7405, %v289
        %v7407 = vmul.f32 %v7405, %v273
        %v7408 = vmul.f32 %v7405, %v293
        %v7412 = vrot.slane %v7406, 1
        %v7413 = vrot.slane %v7407, 1
        %v7414 = vsel %vm438, %v7412, %v7413
        %v7415 = vrot.slane %v7408, 1
        %v7416 = vsel %vm438, %v7413, %v7415
        %7417 = vrot.lane.b32.xlu0 %v7414, 126
        %v7418 = vpop.permute.xlu0 %7417
        %7419 = vrot.lane.b32.xlu0 %v7416, 126
        %v7420 = vpop.permute.xlu0 %7419
        %v7423 = vadd.f32 %v7402, %v7418
        %v7424 = vadd.f32 %v7403, %v7420
        %s7425 = sld [smem:[#allocation2 + $0xc7]]
        %v7426 = vstv %s7425
        %v7427 = vmul.f32 %v7426, %v286
        %v7428 = vmul.f32 %v7426, %v264
        %v7429 = vmul.f32 %v7426, %v290
        %v7430 = vadd.f32 %v7427, 0.0
        %v7431 = vadd.f32 %v7428, 0.0
        %v7432 = vadd.f32 %v7429, 0.0
        %s7433 = sld [smem:[#allocation2 + $0xcf]]
        %v7434 = vstv %s7433
        %v7435 = vmul.f32 %v7434, %v287
        %v7436 = vmul.f32 %v7434, %v267
        %v7437 = vmul.f32 %v7434, %v291
        %v7438 = vadd.f32 %v7430, %v7435
        %v7439 = vadd.f32 %v7431, %v7436
        %v7440 = vadd.f32 %v7432, %v7437
        %s7441 = sld [smem:[#allocation2 + $0xd7]]
        %v7442 = vstv %s7441
        %v7443 = vmul.f32 %v7442, %v288
        %v7444 = vmul.f32 %v7442, %v270
        %v7445 = vmul.f32 %v7442, %v292
        %v7446 = vadd.f32 %v7438, %v7443
        %v7447 = vadd.f32 %v7439, %v7444
        %v7448 = vadd.f32 %v7440, %v7445
        %s7449 = sld [smem:[#allocation2 + $0xdf]]
        %v7450 = vstv %s7449
        %v7451 = vmul.f32 %v7450, %v289
        %v7452 = vmul.f32 %v7450, %v273
        %v7453 = vmul.f32 %v7450, %v293
        %v7454 = vadd.f32 %v7446, %v7451
        %v7455 = vadd.f32 %v7447, %v7452
        %v7456 = vadd.f32 %v7448, %v7453
        %s7457 = sld [smem:[#allocation2 + $0xe7]]
        %v7458 = vstv %s7457
        %v7459 = vmul.f32 %v7458, %v286
        %v7460 = vmul.f32 %v7458, %v264
        %v7461 = vmul.f32 %v7458, %v290
        %7465 = vrot.lane.b32.xlu0 %v7459, 127
        %v7466 = vpop.permute.xlu0 %7465
        %7467 = vrot.lane.b32.xlu0 %v7460, 127
        %v7468 = vpop.permute.xlu0 %7467
        %7469 = vrot.lane.b32.xlu0 %v7461, 127
        %v7470 = vpop.permute.xlu0 %7469
        %v7474 = vadd.f32 %v7454, %v7466
        %v7475 = vadd.f32 %v7455, %v7468
        %v7476 = vadd.f32 %v7456, %v7470
        %s7477 = sld [smem:[#allocation2 + $0xef]]
        %v7478 = vstv %s7477
        %v7479 = vmul.f32 %v7478, %v287
        %v7480 = vmul.f32 %v7478, %v267
        %v7481 = vmul.f32 %v7478, %v291
        %7485 = vrot.lane.b32.xlu0 %v7479, 127
        %v7486 = vpop.permute.xlu0 %7485
        %7487 = vrot.lane.b32.xlu0 %v7480, 127
        %v7488 = vpop.permute.xlu0 %7487
        %7489 = vrot.lane.b32.xlu0 %v7481, 127
        %v7490 = vpop.permute.xlu0 %7489
        %v7494 = vadd.f32 %v7474, %v7486
        %v7495 = vadd.f32 %v7475, %v7488
        %v7496 = vadd.f32 %v7476, %v7490
        %s7497 = sld [smem:[#allocation2 + $0xf7]]
        %v7498 = vstv %s7497
        %v7499 = vmul.f32 %v7498, %v288
        %v7500 = vmul.f32 %v7498, %v270
        %v7501 = vmul.f32 %v7498, %v292
        %7505 = vrot.lane.b32.xlu0 %v7499, 127
        %v7506 = vpop.permute.xlu0 %7505
        %7507 = vrot.lane.b32.xlu0 %v7500, 127
        %v7508 = vpop.permute.xlu0 %7507
        %7509 = vrot.lane.b32.xlu0 %v7501, 127
        %v7510 = vpop.permute.xlu0 %7509
        %v7514 = vadd.f32 %v7494, %v7506
        %v7515 = vadd.f32 %v7495, %v7508
        %v7516 = vadd.f32 %v7496, %v7510
        %s7517 = sld [smem:[#allocation2 + $0xff]]
        %v7518 = vstv %s7517
        %v7519 = vmul.f32 %v7518, %v289
        %v7520 = vmul.f32 %v7518, %v273
        %v7521 = vmul.f32 %v7518, %v293
        %7525 = vrot.lane.b32.xlu0 %v7519, 127
        %v7526 = vpop.permute.xlu0 %7525
        %7527 = vrot.lane.b32.xlu0 %v7520, 127
        %v7528 = vpop.permute.xlu0 %7527
        %7529 = vrot.lane.b32.xlu0 %v7521, 127
        %v7530 = vpop.permute.xlu0 %7529
        %v7534 = vadd.f32 %v7514, %v7526
        %v7535 = vadd.f32 %v7515, %v7528
        %v7536 = vadd.f32 %v7516, %v7530
        %s7537 = sld [smem:[#allocation2 + $0x107]]
        %v7538 = vstv %s7537
        %v7539 = vmul.f32 %v7538, %v286
        %v7540 = vmul.f32 %v7538, %v264
        %v7541 = vmul.f32 %v7538, %v290
        %7545 = vrot.lane.b32.xlu0 %v7539, 126
        %v7546 = vpop.permute.xlu0 %7545
        %7547 = vrot.lane.b32.xlu0 %v7540, 126
        %v7548 = vpop.permute.xlu0 %7547
        %7549 = vrot.lane.b32.xlu0 %v7541, 126
        %v7550 = vpop.permute.xlu0 %7549
        %v7554 = vadd.f32 %v7534, %v7546
        %v7555 = vadd.f32 %v7535, %v7548
        %v7556 = vadd.f32 %v7536, %v7550
        %s7557 = sld [smem:[#allocation2 + $0x10f]]
        %v7558 = vstv %s7557
        %v7559 = vmul.f32 %v7558, %v287
        %v7560 = vmul.f32 %v7558, %v267
        %v7561 = vmul.f32 %v7558, %v291
        %7565 = vrot.lane.b32.xlu0 %v7559, 126
        %v7566 = vpop.permute.xlu0 %7565
        %7567 = vrot.lane.b32.xlu0 %v7560, 126
        %v7568 = vpop.permute.xlu0 %7567
        %7569 = vrot.lane.b32.xlu0 %v7561, 126
        %v7570 = vpop.permute.xlu0 %7569
        %v7574 = vadd.f32 %v7554, %v7566
        %v7575 = vadd.f32 %v7555, %v7568
        %v7576 = vadd.f32 %v7556, %v7570
        %s7577 = sld [smem:[#allocation2 + $0x117]]
        %v7578 = vstv %s7577
        %v7579 = vmul.f32 %v7578, %v288
        %v7580 = vmul.f32 %v7578, %v270
        %v7581 = vmul.f32 %v7578, %v292
        %7585 = vrot.lane.b32.xlu0 %v7579, 126
        %v7586 = vpop.permute.xlu0 %7585
        %7587 = vrot.lane.b32.xlu0 %v7580, 126
        %v7588 = vpop.permute.xlu0 %7587
        %7589 = vrot.lane.b32.xlu0 %v7581, 126
        %v7590 = vpop.permute.xlu0 %7589
        %v7594 = vadd.f32 %v7574, %v7586
        %v7595 = vadd.f32 %v7575, %v7588
        %v7596 = vadd.f32 %v7576, %v7590
        %s7597 = sld [smem:[#allocation2 + $0x11f]]
        %v7598 = vstv %s7597
        %v7599 = vmul.f32 %v7598, %v289
        %v7600 = vmul.f32 %v7598, %v273
        %v7601 = vmul.f32 %v7598, %v293
        %7605 = vrot.lane.b32.xlu0 %v7599, 126
        %v7606 = vpop.permute.xlu0 %7605
        %7607 = vrot.lane.b32.xlu0 %v7600, 126
        %v7608 = vpop.permute.xlu0 %7607
        %7609 = vrot.lane.b32.xlu0 %v7601, 126
        %v7610 = vpop.permute.xlu0 %7609
        %v7614 = vadd.f32 %v7594, %v7606
        %v7615 = vadd.f32 %v7595, %v7608
        %v7616 = vadd.f32 %v7596, %v7610
        %s7617 = sld [smem:[#allocation2 + $0x127]]
        %v7618 = vstv %s7617
        %v7619 = vmul.f32 %v7618, %v286
        %v7620 = vmul.f32 %v7618, %v264
        %v7621 = vmul.f32 %v7618, %v290
        %v7625 = vrot.slane %v7619, 1
        %v7626 = vrot.slane %v7620, 1
        %v7627 = vsel %vm438, %v7625, %v7626
        %v7628 = vrot.slane %v7621, 1
        %v7629 = vsel %vm438, %v7626, %v7628
        %v7633 = vadd.f32 %v7614, %v7627
        %v7634 = vadd.f32 %v7615, %v7629
        %v7635 = vadd.f32 %v7616, %v7628
        %s7636 = sld [smem:[#allocation2 + $0x12f]]
        %v7637 = vstv %s7636
        %v7638 = vmul.f32 %v7637, %v287
        %v7639 = vmul.f32 %v7637, %v267
        %v7640 = vmul.f32 %v7637, %v291
        %v7644 = vrot.slane %v7638, 1
        %v7645 = vrot.slane %v7639, 1
        %v7646 = vsel %vm438, %v7644, %v7645
        %v7647 = vrot.slane %v7640, 1
        %v7648 = vsel %vm438, %v7645, %v7647
        %v7652 = vadd.f32 %v7633, %v7646
        %v7653 = vadd.f32 %v7634, %v7648
        %v7654 = vadd.f32 %v7635, %v7647
        %s7655 = sld [smem:[#allocation2 + $0x137]]
        %v7656 = vstv %s7655
        %v7657 = vmul.f32 %v7656, %v288
        %v7658 = vmul.f32 %v7656, %v270
        %v7659 = vmul.f32 %v7656, %v292
        %v7663 = vrot.slane %v7657, 1
        %v7664 = vrot.slane %v7658, 1
        %v7665 = vsel %vm438, %v7663, %v7664
        %v7666 = vrot.slane %v7659, 1
        %v7667 = vsel %vm438, %v7664, %v7666
        %v7671 = vadd.f32 %v7652, %v7665
        %v7672 = vadd.f32 %v7653, %v7667
        %v7673 = vadd.f32 %v7654, %v7666
        %s7674 = sld [smem:[#allocation2 + $0x13f]]
        %v7675 = vstv %s7674
        %v7676 = vmul.f32 %v7675, %v289
        %v7677 = vmul.f32 %v7675, %v273
        %v7678 = vmul.f32 %v7675, %v293
        %v7682 = vrot.slane %v7676, 1
        %v7683 = vrot.slane %v7677, 1
        %v7684 = vsel %vm438, %v7682, %v7683
        %v7685 = vrot.slane %v7678, 1
        %v7686 = vsel %vm438, %v7683, %v7685
        %v7690 = vadd.f32 %v7671, %v7684
        %v7691 = vadd.f32 %v7672, %v7686
        %v7692 = vadd.f32 %v7673, %v7685
        %s7693 = sld [smem:[#allocation2 + $0x147]]
        %v7694 = vstv %s7693
        %v7695 = vmul.f32 %v7694, %v286
        %v7696 = vmul.f32 %v7694, %v264
        %v7697 = vmul.f32 %v7694, %v290
        %v7701 = vrot.slane %v7695, 1
        %v7702 = vrot.slane %v7696, 1
        %v7703 = vsel %vm438, %v7701, %v7702
        %v7704 = vrot.slane %v7697, 1
        %v7705 = vsel %vm438, %v7702, %v7704
        %7706 = vrot.lane.b32.xlu0 %v7703, 127
        %v7707 = vpop.permute.xlu0 %7706
        %7708 = vrot.lane.b32.xlu0 %v7705, 127
        %v7709 = vpop.permute.xlu0 %7708
        %7710 = vrot.lane.b32.xlu0 %v7704, 127
        %v7711 = vpop.permute.xlu0 %7710
        %v7715 = vadd.f32 %v7690, %v7707
        %v7716 = vadd.f32 %v7691, %v7709
        %v7717 = vadd.f32 %v7692, %v7711
        %s7718 = sld [smem:[#allocation2 + $0x14f]]
        %v7719 = vstv %s7718
        %v7720 = vmul.f32 %v7719, %v287
        %v7721 = vmul.f32 %v7719, %v267
        %v7722 = vmul.f32 %v7719, %v291
        %v7726 = vrot.slane %v7720, 1
        %v7727 = vrot.slane %v7721, 1
        %v7728 = vsel %vm438, %v7726, %v7727
        %v7729 = vrot.slane %v7722, 1
        %v7730 = vsel %vm438, %v7727, %v7729
        %7731 = vrot.lane.b32.xlu0 %v7728, 127
        %v7732 = vpop.permute.xlu0 %7731
        %7733 = vrot.lane.b32.xlu0 %v7730, 127
        %v7734 = vpop.permute.xlu0 %7733
        %7735 = vrot.lane.b32.xlu0 %v7729, 127
        %v7736 = vpop.permute.xlu0 %7735
        %v7740 = vadd.f32 %v7715, %v7732
        %v7741 = vadd.f32 %v7716, %v7734
        %v7742 = vadd.f32 %v7717, %v7736
        %s7743 = sld [smem:[#allocation2 + $0x157]]
        %v7744 = vstv %s7743
        %v7745 = vmul.f32 %v7744, %v288
        %v7746 = vmul.f32 %v7744, %v270
        %v7747 = vmul.f32 %v7744, %v292
        %v7751 = vrot.slane %v7745, 1
        %v7752 = vrot.slane %v7746, 1
        %v7753 = vsel %vm438, %v7751, %v7752
        %v7754 = vrot.slane %v7747, 1
        %v7755 = vsel %vm438, %v7752, %v7754
        %7756 = vrot.lane.b32.xlu0 %v7753, 127
        %v7757 = vpop.permute.xlu0 %7756
        %7758 = vrot.lane.b32.xlu0 %v7755, 127
        %v7759 = vpop.permute.xlu0 %7758
        %7760 = vrot.lane.b32.xlu0 %v7754, 127
        %v7761 = vpop.permute.xlu0 %7760
        %v7765 = vadd.f32 %v7740, %v7757
        %v7766 = vadd.f32 %v7741, %v7759
        %v7767 = vadd.f32 %v7742, %v7761
        %s7768 = sld [smem:[#allocation2 + $0x15f]]
        %v7769 = vstv %s7768
        %v7770 = vmul.f32 %v7769, %v289
        %v7771 = vmul.f32 %v7769, %v273
        %v7772 = vmul.f32 %v7769, %v293
        %v7776 = vrot.slane %v7770, 1
        %v7777 = vrot.slane %v7771, 1
        %v7778 = vsel %vm438, %v7776, %v7777
        %v7779 = vrot.slane %v7772, 1
        %v7780 = vsel %vm438, %v7777, %v7779
        %7781 = vrot.lane.b32.xlu0 %v7778, 127
        %v7782 = vpop.permute.xlu0 %7781
        %7783 = vrot.lane.b32.xlu0 %v7780, 127
        %v7784 = vpop.permute.xlu0 %7783
        %7785 = vrot.lane.b32.xlu0 %v7779, 127
        %v7786 = vpop.permute.xlu0 %7785
        %v7790 = vadd.f32 %v7765, %v7782
        %v7791 = vadd.f32 %v7766, %v7784
        %v7792 = vadd.f32 %v7767, %v7786
        %s7793 = sld [smem:[#allocation2 + $0x167]]
        %v7794 = vstv %s7793
        %v7795 = vmul.f32 %v7794, %v286
        %v7796 = vmul.f32 %v7794, %v264
        %v7797 = vmul.f32 %v7794, %v290
        %v7801 = vrot.slane %v7795, 1
        %v7802 = vrot.slane %v7796, 1
        %v7803 = vsel %vm438, %v7801, %v7802
        %v7804 = vrot.slane %v7797, 1
        %v7805 = vsel %vm438, %v7802, %v7804
        %7806 = vrot.lane.b32.xlu0 %v7803, 126
        %v7807 = vpop.permute.xlu0 %7806
        %7808 = vrot.lane.b32.xlu0 %v7805, 126
        %v7809 = vpop.permute.xlu0 %7808
        %7810 = vrot.lane.b32.xlu0 %v7804, 126
        %v7811 = vpop.permute.xlu0 %7810
        %v7815 = vadd.f32 %v7790, %v7807
        %v7816 = vadd.f32 %v7791, %v7809
        %v7817 = vadd.f32 %v7792, %v7811
        %s7818 = sld [smem:[#allocation2 + $0x16f]]
        %v7819 = vstv %s7818
        %v7820 = vmul.f32 %v7819, %v287
        %v7821 = vmul.f32 %v7819, %v267
        %v7822 = vmul.f32 %v7819, %v291
        %v7826 = vrot.slane %v7820, 1
        %v7827 = vrot.slane %v7821, 1
        %v7828 = vsel %vm438, %v7826, %v7827
        %v7829 = vrot.slane %v7822, 1
        %v7830 = vsel %vm438, %v7827, %v7829
        %7831 = vrot.lane.b32.xlu0 %v7828, 126
        %v7832 = vpop.permute.xlu0 %7831
        %7833 = vrot.lane.b32.xlu0 %v7830, 126
        %v7834 = vpop.permute.xlu0 %7833
        %7835 = vrot.lane.b32.xlu0 %v7829, 126
        %v7836 = vpop.permute.xlu0 %7835
        %v7840 = vadd.f32 %v7815, %v7832
        %v7841 = vadd.f32 %v7816, %v7834
        %v7842 = vadd.f32 %v7817, %v7836
        %s7843 = sld [smem:[#allocation2 + $0x177]]
        %v7844 = vstv %s7843
        %v7845 = vmul.f32 %v7844, %v288
        %v7846 = vmul.f32 %v7844, %v270
        %v7847 = vmul.f32 %v7844, %v292
        %v7851 = vrot.slane %v7845, 1
        %v7852 = vrot.slane %v7846, 1
        %v7853 = vsel %vm438, %v7851, %v7852
        %v7854 = vrot.slane %v7847, 1
        %v7855 = vsel %vm438, %v7852, %v7854
        %7856 = vrot.lane.b32.xlu0 %v7853, 126
        %v7857 = vpop.permute.xlu0 %7856
        %7858 = vrot.lane.b32.xlu0 %v7855, 126
        %v7859 = vpop.permute.xlu0 %7858
        %7860 = vrot.lane.b32.xlu0 %v7854, 126
        %v7861 = vpop.permute.xlu0 %7860
        %v7865 = vadd.f32 %v7840, %v7857
        %v7866 = vadd.f32 %v7841, %v7859
        %v7867 = vadd.f32 %v7842, %v7861
        %s7868 = sld [smem:[#allocation2 + $0x17f]]
        %v7869 = vstv %s7868
        %v7870 = vmul.f32 %v7869, %v289
        %v7871 = vmul.f32 %v7869, %v273
        %v7872 = vmul.f32 %v7869, %v293
        %v7876 = vrot.slane %v7870, 1
        %v7877 = vrot.slane %v7871, 1
        %v7878 = vsel %vm438, %v7876, %v7877
        %v7879 = vrot.slane %v7872, 1
        %v7880 = vsel %vm438, %v7877, %v7879
        %7881 = vrot.lane.b32.xlu0 %v7878, 126
        %v7882 = vpop.permute.xlu0 %7881
        %7883 = vrot.lane.b32.xlu0 %v7880, 126
        %v7884 = vpop.permute.xlu0 %7883
        %7885 = vrot.lane.b32.xlu0 %v7879, 126
        %v7886 = vpop.permute.xlu0 %7885
        %v7890 = vadd.f32 %v7865, %v7882
        %v7891 = vadd.f32 %v7866, %v7884
        %v7892 = vadd.f32 %v7867, %v7886
        %v7893 = vsel %vm1135, %v7423, 0.0
        %v7894 = vsel %vm1135, %v7424, 0.0
        %v7895 = vadd.f32 %v7893, %v7894
        %7896 = vadd.xlane.f32.xlu0 %v7895
        %v7897 = vpop.xlane.xlu0 %7896
        %v7898 = vrot.slane %v7897, 4
        %v7899 = vadd.f32 %v7897, %v7898
        %v7900 = vrot.slane %v7899, 2
        %v7901 = vadd.f32 %v7899, %v7900
        %v7902 = vrot.slane %v7901, 1
        %v7903 = vadd.f32 %v7901, %v7902
        %s7904 = vtos %v7903
        %v7908 = vrot.slane %v7890, 1
        %v7909 = vrot.slane %v7891, 1
        %v7910 = vsel %vm438, %v7908, %v7909
        %v7911 = vrot.slane %v7892, 1
        %v7912 = vsel %vm438, %v7909, %v7911
        %v7915 = vsel %vm1135, %v7910, 0.0
        %v7916 = vsel %vm1135, %v7912, 0.0
        %v7917 = vadd.f32 %v7915, %v7916
        %7918 = vadd.xlane.f32.xlu0 %v7917
        %v7919 = vpop.xlane.xlu0 %7918
        %v7920 = vrot.slane %v7919, 4
        %v7921 = vadd.f32 %v7919, %v7920
        %v7922 = vrot.slane %v7921, 2
        %v7923 = vadd.f32 %v7921, %v7922
        %v7924 = vrot.slane %v7923, 1
        %v7925 = vadd.f32 %v7923, %v7924
        %s7926 = vtos %v7925
        %s7927 = sadd.f32 %s7904, %s7926
        %s7928 = smul.f32 %s7927, 0.0009765625
        %v7929 = vstv %s7928
        %v7930 = vsub.f32 %v7423, %v7929
        %v7931 = vsub.f32 %v7424, %v7929
        %v7932 = vsub.f32 %v7890, %v7929
        %v7933 = vsub.f32 %v7891, %v7929
        %v7934 = vsub.f32 %v7892, %v7929
        %v7935 = vmul.f32 %v7930, %v7930
        %v7936 = vmul.f32 %v7931, %v7931
        %v7937 = vsel %vm1135, %v7935, 0.0
        %v7938 = vsel %vm1135, %v7936, 0.0
        %v7939 = vadd.f32 %v7937, %v7938
        %7940 = vadd.xlane.f32.xlu0 %v7939
        %v7941 = vpop.xlane.xlu0 %7940
        %v7942 = vrot.slane %v7941, 4
        %v7943 = vadd.f32 %v7941, %v7942
        %v7944 = vrot.slane %v7943, 2
        %v7945 = vadd.f32 %v7943, %v7944
        %v7946 = vrot.slane %v7945, 1
        %v7947 = vadd.f32 %v7945, %v7946
        %s7948 = vtos %v7947
        %v7949 = vmul.f32 %v7932, %v7932
        %v7950 = vmul.f32 %v7933, %v7933
        %v7951 = vmul.f32 %v7934, %v7934
        %v7955 = vrot.slane %v7949, 1
        %v7956 = vrot.slane %v7950, 1
        %v7957 = vsel %vm438, %v7955, %v7956
        %v7958 = vrot.slane %v7951, 1
        %v7959 = vsel %vm438, %v7956, %v7958
        %v7962 = vsel %vm1135, %v7957, 0.0
        %v7963 = vsel %vm1135, %v7959, 0.0
        %v7964 = vadd.f32 %v7962, %v7963
        %7965 = vadd.xlane.f32.xlu0 %v7964
        %v7966 = vpop.xlane.xlu0 %7965
        %v7967 = vrot.slane %v7966, 4
        %v7968 = vadd.f32 %v7966, %v7967
        %v7969 = vrot.slane %v7968, 2
        %v7970 = vadd.f32 %v7968, %v7969
        %v7971 = vrot.slane %v7970, 1
        %v7972 = vadd.f32 %v7970, %v7971
        %s7973 = vtos %v7972
        %s7974 = sadd.f32 %s7948, %s7973
        %s7975 = smul.f32 %s7974, 0.0009765625
        %s7976 = sadd.f32 %s7975, 1e-05
        %v7977 = vstv %s7976
        %v7978 = vrsqrt.pop %v7977
        %v7979 = vmul.f32 %v7978, %v7977
        %v7980 = vmul.f32 %v7979, %v7978
        %v7981 = vmul.f32 0.5, %v7980
        %v7982 = vsub.f32 1.5, %v7981
        %v7983 = vmul.f32 %v7978, %v7982
        %vm7984 = vweird.f32 %v7977
        %vm7985 = vweird.f32 %v7978
        %vm7986 = vmor %vm7984, %vm7985
        %v7987 = vsel %vm7986, %v7978, %v7983
        %s7988 = vtos %v7987
        %v7989 = vstv %s7988
        %v7990 = vmul.f32 %v7930, %v7989
        %v7991 = vmul.f32 %v7931, %v7989
        %v7992 = vmax.f32 %v7990, 0.0
        %v7993 = vmax.f32 %v7991, 0.0
        %s7994 = scalar_lea.vmem %s157, 112
        %7995 = vst.msk [vmem:[%s7994] sm:$0xff] %vm1135, %v7992
        %7996 = vst.msk [vmem:[%s7994 + $0x8] sm:$0xff] %vm1135, %v7993
        %v7997 = vmul.f32 %v7932, %v7989
        %v7998 = vmul.f32 %v7933, %v7989
        %v7999 = vmul.f32 %v7934, %v7989
        %v8000 = vmax.f32 %v7997, 0.0
        %v8001 = vmax.f32 %v7998, 0.0
        %v8002 = vmax.f32 %v7999, 0.0
        %8006 = vrot.lane.b32.xlu0 %v8000, 32
        %v8007 = vpop.permute.xlu0 %8006
        %8008 = vrot.lane.b32.xlu0 %v8001, 32
        %v8009 = vpop.permute.xlu0 %8008
        %8010 = vrot.lane.b32.xlu0 %v8002, 32
        %v8011 = vpop.permute.xlu0 %8010
        %8015 = vst.msk [vmem:[%s7994 - $0x1] sm:$0xfe] %vm1257, %v8007
        %8016 = vst.msk [vmem:[%s7994 + $0x7] sm:$0xff] %vm1259, %v8009
        %8017 = vst.msk [vmem:[%s7994 + $0xf] sm:$0x1] %vm1261, %v8011
        %p8018 = scmp.lt.s32.totalorder %s14, 1
        %s8019 = scalar_select %p8018, %s14, 1
        %s8020 = smul.addr %s8019, 16
        %s8021 = smul.addr %s8020, 8
        %s8022 = scalar_lea.vmem %s2, %s8021
        // Predicated region
        $region33: #{upconv_block.1} parent=27 // pred_check
          %p8023 = pneg %p79
        $region34: #{upconv_block.1} parent=27 // pred_check_branch
          %8025 = sbr.rel (%p8023) target = $region36
        $region35: #{upconv_block.1} parent=27 // pred_region
          _
        $region36: #{upconv_block.1} parent=27 // pred_fallthru
          _
      $region28: #{upconv_block.1} parent=5 // pred_fallthru
        _
      %p8026 = scmp.le.s32.totalorder 2, %s9
      // Predicated region
      $region37: #{upconv_block.1} parent=5 // pred_check
        %p8027 = pneg %p8026
      $region38: #{upconv_block.1} parent=5 // pred_check_branch
        %8029 = sbr.rel (%p8027) target = $region40
      $region39: #{upconv_block.1} parent=5 // pred_region
        %s8030 = ssub.s32 %s9, 2
        // Predicated region
        $region41: #{upconv_block.1} parent=39 // pred_check
          %p8031 = pneg %p85
        $region42: #{upconv_block.1} parent=39 // pred_check_branch
          %8033 = sbr.rel (%p8031) target = $region44
        $region43: #{upconv_block.1} parent=39 // pred_region
          %p8034 = scmp.lt.s32.totalorder %s15, 1
          %s8035 = scalar_select %p8034, %s15, 1
          %s8036 = smul.addr %s8035, 16
          %s8037 = smul.addr %s8036, 8
          %s8038 = scalar_lea.vmem %s2, %s8037
        $region44: #{upconv_block.1} parent=39 // pred_fallthru
          _
      $region40: #{upconv_block.1} parent=5 // pred_fallthru
        _
    $region6: #{upconv_block.1} parent=1 // loop_footer
      %s13 = sadd.s32 1, %s9
    $region7: #{upconv_block.1} parent=1 // loop_footer_branch
      %8 = sbr.rel target = $region3
    $region8: #{upconv_block.1} parent=1 // loop_exit
      _
    %8039 = vsyncpa [#allocation3], 1
    %s8040 = scalar_lea.sflag [#allocation3], 1
    %8041 = vsyncpa %s8040, 1

</llo_original>
